<compile_context>
chip_gen: v5e
topology: v5e:2x2
jax: 0.10.0
libtpu: 0.0.40
codegen_flags: <defaults>
</compile_context>

<pallas_src>
import numpy as np

import jax
import jax.numpy as jnp
from jax.experimental import pallas as pl
from jax.experimental.pallas import tpu as pltpu


# ------------------------- trace-time constant helpers -----------------------

def _conv_out_hw(h_in, w_in, stride):
    return (h_in + 2 - 3) // stride + 1, (w_in + 2 - 3) // stride + 1


def _selection_matrices(h_in, w_in, stride):
    """One-hot tap-selection matrices for a 3x3 / padding=1 / `stride` conv.

    G[t, m, p] = 1  iff output position m = i*W_out + j reads input position
    p = r*W_in + c for tap t = dh*3 + dw (rows are all-zero where the tap
    lands in the zero padding, which reproduces padding=1 exactly).
    """
    h_out, w_out = _conv_out_hw(h_in, w_in, stride)
    g = np.zeros((9, h_out * w_out, h_in * w_in), np.float32)
    for dh in range(3):
        for dw in range(3):
            t = dh * 3 + dw
            for i in range(h_out):
                r = stride * i + dh - 1
                if not 0 <= r < h_in:
                    continue
                for j in range(w_out):
                    c = stride * j + dw - 1
                    if 0 <= c < w_in:
                        g[t, i * w_out + j, r * w_in + c] = 1.0
    return jnp.asarray(g, jnp.bfloat16), (h_out, w_out)


def _tap_weights(w_oihw, c_in_pad=None):
    """OIHW conv weight -> [9, Cin(_pad), Cout], tap-major (t = kh*3 + kw)."""
    cout, cin, _, _ = w_oihw.shape
    w = jnp.transpose(w_oihw, (2, 3, 1, 0))                 # [3,3,Cin,Cout]
    if c_in_pad is not None and c_in_pad > cin:
        w = jnp.pad(w, ((0, 0), (0, 0), (0, c_in_pad - cin), (0, 0)))
    return w.reshape(9, -1, cout).astype(jnp.bfloat16)


# --------------------------------- kernel ------------------------------------

def _fused_kernel(x_ref, g1_ref, w1_ref, b1_ref, g2_ref, w2_ref, b2_ref,
                  g3_ref, w3_ref, b3_ref, wfc_ref, bfc_ref, o_ref):
    """One batch element per grid step: conv1 -> conv2 -> conv3 -> pool -> fc."""

    def conv_relu(a, g_ref, w_ref, b_ref):
        # a: [S_in, C_in] bf16; g_ref: [9, S_out, S_in] bf16 one-hot;
        # w_ref: [9, C_in, C_out] bf16; b_ref: [1, C_out] f32.
        s_out = g_ref.shape[1]
        c_out = w_ref.shape[2]
        acc = jnp.zeros((s_out, c_out), jnp.float32) + b_ref[...]
        for t in range(9):                                   # unrolled taps
            # One-hot row selection is exact, so the bf16 round-trip is lossless.
            sel = jnp.dot(g_ref[t], a, preferred_element_type=jnp.float32)
            sel = sel.astype(jnp.bfloat16)
            acc = acc + jnp.dot(sel, w_ref[t],
                                preferred_element_type=jnp.float32)
        return jnp.maximum(acc, 0.0)

    a0 = x_ref[0]                                            # [H*W, Cpad] bf16
    a1 = conv_relu(a0, g1_ref, w1_ref, b1_ref).astype(jnp.bfloat16)
    a2 = conv_relu(a1, g2_ref, w2_ref, b2_ref).astype(jnp.bfloat16)
    a3 = conv_relu(a2, g3_ref, w3_ref, b3_ref)               # [S3, C3] f32

    # mean-pool + fc:  mean_s(a3) @ wfc == sum_s(a3 @ (wfc/S3));  the 1/S3 is
    # already folded into wfc in the wrapper, so this is dot -> sum -> bias.
    proj = jnp.dot(a3, wfc_ref[...], preferred_element_type=jnp.float32)
    o_ref[0] = jnp.sum(proj, axis=0, keepdims=True) + bfc_ref[...]


# -------------------------------- wrapper ------------------------------------

def temporal_analyzer_forward(images_nchw, params):
    """images: [B, C, H, W] (PyTorch layout) -> [B, hidden_dim] float32."""
    B, C, H, W = images_nchw.shape
    hidden = params["wfc"].shape[1]

    # NHWC, flatten spatial, zero-pad channels to a lane-dense 128.
    c_pad = ((C + 127) // 128) * 128
    x = jnp.transpose(images_nchw, (0, 2, 3, 1)).reshape(B, H * W, C)
    x = jnp.pad(x, ((0, 0), (0, 0), (0, c_pad - C))).astype(jnp.bfloat16)

    # Tap-selection constants (trace-time, one-hot, bf16-exact).
    g1, hw1 = _selection_matrices(H, W, stride=1)
    g2, hw2 = _selection_matrices(hw1[0], hw1[1], stride=2)
    g3, hw3 = _selection_matrices(hw2[0], hw2[1], stride=2)
    s3 = hw3[0] * hw3[1]

    w1 = _tap_weights(params["w1"], c_in_pad=c_pad)          # [9, c_pad, C1]
    w2 = _tap_weights(params["w2"])                          # [9, C1, C2]
    w3 = _tap_weights(params["w3"])                          # [9, C2, C3]
    b1 = params["b1"].reshape(1, -1).astype(jnp.float32)
    b2 = params["b2"].reshape(1, -1).astype(jnp.float32)
    b3 = params["b3"].reshape(1, -1).astype(jnp.float32)
    wfc = (params["wfc"] / float(s3)).astype(jnp.float32)    # fold 1/S3 of pool
    bfc = params["bfc"].reshape(1, -1).astype(jnp.float32)

    def const(shape):
        return pl.BlockSpec(shape, lambda b: (0,) * len(shape))

    out = pl.pallas_call(
        _fused_kernel,
        out_shape=jax.ShapeDtypeStruct((B, 1, hidden), jnp.float32),
        grid=(B,),
        in_specs=[
            pl.BlockSpec((1, H * W, c_pad), lambda b: (b, 0, 0)),
            const(g1.shape), const(w1.shape), const(b1.shape),
            const(g2.shape), const(w2.shape), const(b2.shape),
            const(g3.shape), const(w3.shape), const(b3.shape),
            const(wfc.shape), const(bfc.shape),
        ],
        out_specs=pl.BlockSpec((1, 1, hidden), lambda b: (b, 0, 0)),
        compiler_params=pltpu.CompilerParams(
            dimension_semantics=("parallel",),     # v7x: one batch elem per TC
            vmem_limit_bytes=32 * 1024 * 1024,     # safe on v5e/v6e/v7x
        ),
    )(x, g1, w1, b1, g2, w2, b2, g3, w3, b3, wfc, bfc)
    return out.reshape(B, hidden)


# ------------------------------- parameters ----------------------------------

def init_params(key, input_dim=3, hidden_dim=32):
    ks = jax.random.split(key, 8)

    def conv_w(k, cout, cin):
        fan_in = cin * 9
        return jax.random.normal(k, (cout, cin, 3, 3), jnp.float32) * jnp.sqrt(
            2.0 / fan_in)

    return {
        "w1": conv_w(ks[0], hidden_dim, input_dim),
        "b1": 0.01 * jax.random.normal(ks[1], (hidden_dim,), jnp.float32),
        "w2": conv_w(ks[2], hidden_dim * 2, hidden_dim),
        "b2": 0.01 * jax.random.normal(ks[3], (hidden_dim * 2,), jnp.float32),
        "w3": conv_w(ks[4], hidden_dim * 4, hidden_dim * 2),
        "b3": 0.01 * jax.random.normal(ks[5], (hidden_dim * 4,), jnp.float32),
        "wfc": jax.random.normal(
            ks[6], (hidden_dim * 4, hidden_dim), jnp.float32
        ) * jnp.sqrt(1.0 / (hidden_dim * 4)),
        "bfc": 0.01 * jax.random.normal(ks[7], (hidden_dim,), jnp.float32),
    }


# ------------------------------ reference (check) -----------------------------

def reference_forward(images_nchw, params):
    def conv(x, w, b, stride):
        y = jax.lax.conv_general_dilated(
            x, w, window_strides=(stride, stride),
            padding=((1, 1), (1, 1)),
            dimension_numbers=("NCHW", "OIHW", "NCHW"))
        return jax.nn.relu(y + b[None, :, None, None])

    x = images_nchw.astype(jnp.float32)
    x = conv(x, params["w1"], params["b1"], 1)
    x = conv(x, params["w2"], params["b2"], 2)
    x = conv(x, params["w3"], params["b3"], 2)
    pooled = jnp.mean(x, axis=(2, 3))                        # [B, C3]
    return pooled @ params["wfc"] + params["bfc"]


# ----------------------------------- main -------------------------------------

if __name__ == "__main__":
    key = jax.random.PRNGKey(0)
    k_in, k_p = jax.random.split(key)

    B, C, H, W = 2, 3, 16, 16
    hidden_dim = 32
    images = jax.random.normal(k_in, (B, C, H, W), jnp.float32)
    params = init_params(k_p, input_dim=C, hidden_dim=hidden_dim)

    fwd = jax.jit(temporal_analyzer_forward)
    out = jax.block_until_ready(fwd(images, params))
    assert out.shape == (B, hidden_dim), out.shape

    ref = jax.block_until_ready(reference_forward(images, params))
    # bf16 MXU operands / bf16 inter-layer activations -> loosened tolerance.
    max_err = float(jnp.max(jnp.abs(out - ref)))
    assert jnp.allclose(out, ref, atol=5e-2, rtol=5e-2), max_err

    print("KERNEL_OK")
</pallas_src>

<mosaic_0001>
module attributes {stable_mosaic.version = 11 : i64} {
  func.func @_fused_kernel(%arg0: i32, %arg1: memref<1x256x128xbf16, #tpu.memory_space<vmem>>, %arg2: memref<9x256x256xbf16, #tpu.memory_space<vmem>>, %arg3: memref<9x128x32xbf16, #tpu.memory_space<vmem>>, %arg4: memref<1x32xf32, #tpu.memory_space<vmem>>, %arg5: memref<9x64x256xbf16, #tpu.memory_space<vmem>>, %arg6: memref<9x32x64xbf16, #tpu.memory_space<vmem>>, %arg7: memref<1x64xf32, #tpu.memory_space<vmem>>, %arg8: memref<9x16x64xbf16, #tpu.memory_space<vmem>>, %arg9: memref<9x64x128xbf16, #tpu.memory_space<vmem>>, %arg10: memref<1x128xf32, #tpu.memory_space<vmem>>, %arg11: memref<128x32xf32, #tpu.memory_space<vmem>>, %arg12: memref<1x32xf32, #tpu.memory_space<vmem>>, %arg13: memref<1x1x32xf32, #tpu.memory_space<vmem>>) attributes {dimension_semantics = [#tpu.dimension_semantics<parallel>], iteration_bounds = array<i64: 2>, scalar_prefetch = 0 : i64, scratch_operands = 0 : i64, tpu.core_type = #tpu.core_type<tc>, window_params = [{transform_indices = @transform_0, window_bounds = array<i64: 1, 256, 128>}, {pipeline_mode = #tpu.pipeline_mode<synchronous>, transform_indices = @transform_1, window_bounds = array<i64: 9, 256, 256>}, {pipeline_mode = #tpu.pipeline_mode<synchronous>, transform_indices = @transform_2, window_bounds = array<i64: 9, 128, 32>}, {pipeline_mode = #tpu.pipeline_mode<synchronous>, transform_indices = @transform_3, window_bounds = array<i64: 1, 32>}, {pipeline_mode = #tpu.pipeline_mode<synchronous>, transform_indices = @transform_4, window_bounds = array<i64: 9, 64, 256>}, {pipeline_mode = #tpu.pipeline_mode<synchronous>, transform_indices = @transform_5, window_bounds = array<i64: 9, 32, 64>}, {pipeline_mode = #tpu.pipeline_mode<synchronous>, transform_indices = @transform_6, window_bounds = array<i64: 1, 64>}, {pipeline_mode = #tpu.pipeline_mode<synchronous>, transform_indices = @transform_7, window_bounds = array<i64: 9, 16, 64>}, {pipeline_mode = #tpu.pipeline_mode<synchronous>, transform_indices = @transform_8, window_bounds = array<i64: 9, 64, 128>}, {pipeline_mode = #tpu.pipeline_mode<synchronous>, transform_indices = @transform_9, window_bounds = array<i64: 1, 128>}, {pipeline_mode = #tpu.pipeline_mode<synchronous>, transform_indices = @transform_10, window_bounds = array<i64: 128, 32>}, {pipeline_mode = #tpu.pipeline_mode<synchronous>, transform_indices = @transform_11, window_bounds = array<i64: 1, 32>}, {transform_indices = @transform_12, window_bounds = array<i64: 1, 1, 32>}]} {
    %c0 = arith.constant 0 : index
    %c0_0 = arith.constant 0 : index
    %c0_1 = arith.constant 0 : index
    %0 = vector.load %arg1[%c0, %c0_0, %c0_1] : memref<1x256x128xbf16, #tpu.memory_space<vmem>>, vector<1x256x128xbf16>
    %1 = vector.shape_cast %0 : vector<1x256x128xbf16> to vector<256x128xbf16>
    %cst = arith.constant 0.000000e+00 : f32
    %2 = vector.broadcast %cst : f32 to vector<256x32xf32>
    %c0_2 = arith.constant 0 : index
    %c0_3 = arith.constant 0 : index
    %3 = vector.load %arg4[%c0_2, %c0_3] : memref<1x32xf32, #tpu.memory_space<vmem>>, vector<1x32xf32>
    %4 = vector.broadcast %3 : vector<1x32xf32> to vector<256x32xf32>
    %5 = arith.addf %2, %4 : vector<256x32xf32>
    %c0_4 = arith.constant 0 : index
    %c0_5 = arith.constant 0 : index
    %c0_6 = arith.constant 0 : index
    %6 = vector.load %arg2[%c0_4, %c0_5, %c0_6] : memref<9x256x256xbf16, #tpu.memory_space<vmem>>, vector<1x256x256xbf16>
    %7 = vector.shape_cast %6 : vector<1x256x256xbf16> to vector<256x256xbf16>
    %cst_7 = arith.constant dense<0.000000e+00> : vector<256x128xf32>
    %8 = tpu.matmul %7, %1, %cst_7 {dimension_numbers = #tpu.dot_dimension_numbers<[1], [0], [0], [1], [0, 0, 1, 1], [], []>} : vector<256x256xbf16>, vector<256x128xbf16>, vector<256x128xf32> -> vector<256x128xf32>
    %9 = arith.truncf %8 : vector<256x128xf32> to vector<256x128xbf16>
    %c0_8 = arith.constant 0 : index
    %c0_9 = arith.constant 0 : index
    %c0_10 = arith.constant 0 : index
    %10 = vector.load %arg3[%c0_8, %c0_9, %c0_10] : memref<9x128x32xbf16, #tpu.memory_space<vmem>>, vector<1x128x32xbf16>
    %11 = vector.shape_cast %10 : vector<1x128x32xbf16> to vector<128x32xbf16>
    %cst_11 = arith.constant dense<0.000000e+00> : vector<256x32xf32>
    %12 = tpu.matmul %9, %11, %cst_11 {dimension_numbers = #tpu.dot_dimension_numbers<[1], [0], [0], [1], [0, 0, 1, 1], [], []>} : vector<256x128xbf16>, vector<128x32xbf16>, vector<256x32xf32> -> vector<256x32xf32>
    %13 = arith.addf %5, %12 : vector<256x32xf32>
    %c1 = arith.constant 1 : index
    %c0_12 = arith.constant 0 : index
    %c0_13 = arith.constant 0 : index
    %14 = vector.load %arg2[%c1, %c0_12, %c0_13] : memref<9x256x256xbf16, #tpu.memory_space<vmem>>, vector<1x256x256xbf16>
    %15 = vector.shape_cast %14 : vector<1x256x256xbf16> to vector<256x256xbf16>
    %cst_14 = arith.constant dense<0.000000e+00> : vector<256x128xf32>
    %16 = tpu.matmul %15, %1, %cst_14 {dimension_numbers = #tpu.dot_dimension_numbers<[1], [0], [0], [1], [0, 0, 1, 1], [], []>} : vector<256x256xbf16>, vector<256x128xbf16>, vector<256x128xf32> -> vector<256x128xf32>
    %17 = arith.truncf %16 : vector<256x128xf32> to vector<256x128xbf16>
    %c1_15 = arith.constant 1 : index
    %c0_16 = arith.constant 0 : index
    %c0_17 = arith.constant 0 : index
    %18 = vector.load %arg3[%c1_15, %c0_16, %c0_17] : memref<9x128x32xbf16, #tpu.memory_space<vmem>>, vector<1x128x32xbf16>
    %19 = vector.shape_cast %18 : vector<1x128x32xbf16> to vector<128x32xbf16>
    %cst_18 = arith.constant dense<0.000000e+00> : vector<256x32xf32>
    %20 = tpu.matmul %17, %19, %cst_18 {dimension_numbers = #tpu.dot_dimension_numbers<[1], [0], [0], [1], [0, 0, 1, 1], [], []>} : vector<256x128xbf16>, vector<128x32xbf16>, vector<256x32xf32> -> vector<256x32xf32>
    %21 = arith.addf %13, %20 : vector<256x32xf32>
    %c2 = arith.constant 2 : index
    %c0_19 = arith.constant 0 : index
    %c0_20 = arith.constant 0 : index
    %22 = vector.load %arg2[%c2, %c0_19, %c0_20] : memref<9x256x256xbf16, #tpu.memory_space<vmem>>, vector<1x256x256xbf16>
    %23 = vector.shape_cast %22 : vector<1x256x256xbf16> to vector<256x256xbf16>
    %cst_21 = arith.constant dense<0.000000e+00> : vector<256x128xf32>
    %24 = tpu.matmul %23, %1, %cst_21 {dimension_numbers = #tpu.dot_dimension_numbers<[1], [0], [0], [1], [0, 0, 1, 1], [], []>} : vector<256x256xbf16>, vector<256x128xbf16>, vector<256x128xf32> -> vector<256x128xf32>
    %25 = arith.truncf %24 : vector<256x128xf32> to vector<256x128xbf16>
    %c2_22 = arith.constant 2 : index
    %c0_23 = arith.constant 0 : index
    %c0_24 = arith.constant 0 : index
    %26 = vector.load %arg3[%c2_22, %c0_23, %c0_24] : memref<9x128x32xbf16, #tpu.memory_space<vmem>>, vector<1x128x32xbf16>
    %27 = vector.shape_cast %26 : vector<1x128x32xbf16> to vector<128x32xbf16>
    %cst_25 = arith.constant dense<0.000000e+00> : vector<256x32xf32>
    %28 = tpu.matmul %25, %27, %cst_25 {dimension_numbers = #tpu.dot_dimension_numbers<[1], [0], [0], [1], [0, 0, 1, 1], [], []>} : vector<256x128xbf16>, vector<128x32xbf16>, vector<256x32xf32> -> vector<256x32xf32>
    %29 = arith.addf %21, %28 : vector<256x32xf32>
    %c3 = arith.constant 3 : index
    %c0_26 = arith.constant 0 : index
    %c0_27 = arith.constant 0 : index
    %30 = vector.load %arg2[%c3, %c0_26, %c0_27] : memref<9x256x256xbf16, #tpu.memory_space<vmem>>, vector<1x256x256xbf16>
    %31 = vector.shape_cast %30 : vector<1x256x256xbf16> to vector<256x256xbf16>
    %cst_28 = arith.constant dense<0.000000e+00> : vector<256x128xf32>
    %32 = tpu.matmul %31, %1, %cst_28 {dimension_numbers = #tpu.dot_dimension_numbers<[1], [0], [0], [1], [0, 0, 1, 1], [], []>} : vector<256x256xbf16>, vector<256x128xbf16>, vector<256x128xf32> -> vector<256x128xf32>
    %33 = arith.truncf %32 : vector<256x128xf32> to vector<256x128xbf16>
    %c3_29 = arith.constant 3 : index
    %c0_30 = arith.constant 0 : index
    %c0_31 = arith.constant 0 : index
    %34 = vector.load %arg3[%c3_29, %c0_30, %c0_31] : memref<9x128x32xbf16, #tpu.memory_space<vmem>>, vector<1x128x32xbf16>
    %35 = vector.shape_cast %34 : vector<1x128x32xbf16> to vector<128x32xbf16>
    %cst_32 = arith.constant dense<0.000000e+00> : vector<256x32xf32>
    %36 = tpu.matmul %33, %35, %cst_32 {dimension_numbers = #tpu.dot_dimension_numbers<[1], [0], [0], [1], [0, 0, 1, 1], [], []>} : vector<256x128xbf16>, vector<128x32xbf16>, vector<256x32xf32> -> vector<256x32xf32>
    %37 = arith.addf %29, %36 : vector<256x32xf32>
    %c4 = arith.constant 4 : index
    %c0_33 = arith.constant 0 : index
    %c0_34 = arith.constant 0 : index
    %38 = vector.load %arg2[%c4, %c0_33, %c0_34] : memref<9x256x256xbf16, #tpu.memory_space<vmem>>, vector<1x256x256xbf16>
    %39 = vector.shape_cast %38 : vector<1x256x256xbf16> to vector<256x256xbf16>
    %cst_35 = arith.constant dense<0.000000e+00> : vector<256x128xf32>
    %40 = tpu.matmul %39, %1, %cst_35 {dimension_numbers = #tpu.dot_dimension_numbers<[1], [0], [0], [1], [0, 0, 1, 1], [], []>} : vector<256x256xbf16>, vector<256x128xbf16>, vector<256x128xf32> -> vector<256x128xf32>
    %41 = arith.truncf %40 : vector<256x128xf32> to vector<256x128xbf16>
    %c4_36 = arith.constant 4 : index
    %c0_37 = arith.constant 0 : index
    %c0_38 = arith.constant 0 : index
    %42 = vector.load %arg3[%c4_36, %c0_37, %c0_38] : memref<9x128x32xbf16, #tpu.memory_space<vmem>>, vector<1x128x32xbf16>
    %43 = vector.shape_cast %42 : vector<1x128x32xbf16> to vector<128x32xbf16>
    %cst_39 = arith.constant dense<0.000000e+00> : vector<256x32xf32>
    %44 = tpu.matmul %41, %43, %cst_39 {dimension_numbers = #tpu.dot_dimension_numbers<[1], [0], [0], [1], [0, 0, 1, 1], [], []>} : vector<256x128xbf16>, vector<128x32xbf16>, vector<256x32xf32> -> vector<256x32xf32>
    %45 = arith.addf %37, %44 : vector<256x32xf32>
    %c5 = arith.constant 5 : index
    %c0_40 = arith.constant 0 : index
    %c0_41 = arith.constant 0 : index
    %46 = vector.load %arg2[%c5, %c0_40, %c0_41] : memref<9x256x256xbf16, #tpu.memory_space<vmem>>, vector<1x256x256xbf16>
    %47 = vector.shape_cast %46 : vector<1x256x256xbf16> to vector<256x256xbf16>
    %cst_42 = arith.constant dense<0.000000e+00> : vector<256x128xf32>
    %48 = tpu.matmul %47, %1, %cst_42 {dimension_numbers = #tpu.dot_dimension_numbers<[1], [0], [0], [1], [0, 0, 1, 1], [], []>} : vector<256x256xbf16>, vector<256x128xbf16>, vector<256x128xf32> -> vector<256x128xf32>
    %49 = arith.truncf %48 : vector<256x128xf32> to vector<256x128xbf16>
    %c5_43 = arith.constant 5 : index
    %c0_44 = arith.constant 0 : index
    %c0_45 = arith.constant 0 : index
    %50 = vector.load %arg3[%c5_43, %c0_44, %c0_45] : memref<9x128x32xbf16, #tpu.memory_space<vmem>>, vector<1x128x32xbf16>
    %51 = vector.shape_cast %50 : vector<1x128x32xbf16> to vector<128x32xbf16>
    %cst_46 = arith.constant dense<0.000000e+00> : vector<256x32xf32>
    %52 = tpu.matmul %49, %51, %cst_46 {dimension_numbers = #tpu.dot_dimension_numbers<[1], [0], [0], [1], [0, 0, 1, 1], [], []>} : vector<256x128xbf16>, vector<128x32xbf16>, vector<256x32xf32> -> vector<256x32xf32>
    %53 = arith.addf %45, %52 : vector<256x32xf32>
    %c6 = arith.constant 6 : index
    %c0_47 = arith.constant 0 : index
    %c0_48 = arith.constant 0 : index
    %54 = vector.load %arg2[%c6, %c0_47, %c0_48] : memref<9x256x256xbf16, #tpu.memory_space<vmem>>, vector<1x256x256xbf16>
    %55 = vector.shape_cast %54 : vector<1x256x256xbf16> to vector<256x256xbf16>
    %cst_49 = arith.constant dense<0.000000e+00> : vector<256x128xf32>
    %56 = tpu.matmul %55, %1, %cst_49 {dimension_numbers = #tpu.dot_dimension_numbers<[1], [0], [0], [1], [0, 0, 1, 1], [], []>} : vector<256x256xbf16>, vector<256x128xbf16>, vector<256x128xf32> -> vector<256x128xf32>
    %57 = arith.truncf %56 : vector<256x128xf32> to vector<256x128xbf16>
    %c6_50 = arith.constant 6 : index
    %c0_51 = arith.constant 0 : index
    %c0_52 = arith.constant 0 : index
    %58 = vector.load %arg3[%c6_50, %c0_51, %c0_52] : memref<9x128x32xbf16, #tpu.memory_space<vmem>>, vector<1x128x32xbf16>
    %59 = vector.shape_cast %58 : vector<1x128x32xbf16> to vector<128x32xbf16>
    %cst_53 = arith.constant dense<0.000000e+00> : vector<256x32xf32>
    %60 = tpu.matmul %57, %59, %cst_53 {dimension_numbers = #tpu.dot_dimension_numbers<[1], [0], [0], [1], [0, 0, 1, 1], [], []>} : vector<256x128xbf16>, vector<128x32xbf16>, vector<256x32xf32> -> vector<256x32xf32>
    %61 = arith.addf %53, %60 : vector<256x32xf32>
    %c7 = arith.constant 7 : index
    %c0_54 = arith.constant 0 : index
    %c0_55 = arith.constant 0 : index
    %62 = vector.load %arg2[%c7, %c0_54, %c0_55] : memref<9x256x256xbf16, #tpu.memory_space<vmem>>, vector<1x256x256xbf16>
    %63 = vector.shape_cast %62 : vector<1x256x256xbf16> to vector<256x256xbf16>
    %cst_56 = arith.constant dense<0.000000e+00> : vector<256x128xf32>
    %64 = tpu.matmul %63, %1, %cst_56 {dimension_numbers = #tpu.dot_dimension_numbers<[1], [0], [0], [1], [0, 0, 1, 1], [], []>} : vector<256x256xbf16>, vector<256x128xbf16>, vector<256x128xf32> -> vector<256x128xf32>
    %65 = arith.truncf %64 : vector<256x128xf32> to vector<256x128xbf16>
    %c7_57 = arith.constant 7 : index
    %c0_58 = arith.constant 0 : index
    %c0_59 = arith.constant 0 : index
    %66 = vector.load %arg3[%c7_57, %c0_58, %c0_59] : memref<9x128x32xbf16, #tpu.memory_space<vmem>>, vector<1x128x32xbf16>
    %67 = vector.shape_cast %66 : vector<1x128x32xbf16> to vector<128x32xbf16>
    %cst_60 = arith.constant dense<0.000000e+00> : vector<256x32xf32>
    %68 = tpu.matmul %65, %67, %cst_60 {dimension_numbers = #tpu.dot_dimension_numbers<[1], [0], [0], [1], [0, 0, 1, 1], [], []>} : vector<256x128xbf16>, vector<128x32xbf16>, vector<256x32xf32> -> vector<256x32xf32>
    %69 = arith.addf %61, %68 : vector<256x32xf32>
    %c8 = arith.constant 8 : index
    %c0_61 = arith.constant 0 : index
    %c0_62 = arith.constant 0 : index
    %70 = vector.load %arg2[%c8, %c0_61, %c0_62] : memref<9x256x256xbf16, #tpu.memory_space<vmem>>, vector<1x256x256xbf16>
    %71 = vector.shape_cast %70 : vector<1x256x256xbf16> to vector<256x256xbf16>
    %cst_63 = arith.constant dense<0.000000e+00> : vector<256x128xf32>
    %72 = tpu.matmul %71, %1, %cst_63 {dimension_numbers = #tpu.dot_dimension_numbers<[1], [0], [0], [1], [0, 0, 1, 1], [], []>} : vector<256x256xbf16>, vector<256x128xbf16>, vector<256x128xf32> -> vector<256x128xf32>
    %73 = arith.truncf %72 : vector<256x128xf32> to vector<256x128xbf16>
    %c8_64 = arith.constant 8 : index
    %c0_65 = arith.constant 0 : index
    %c0_66 = arith.constant 0 : index
    %74 = vector.load %arg3[%c8_64, %c0_65, %c0_66] : memref<9x128x32xbf16, #tpu.memory_space<vmem>>, vector<1x128x32xbf16>
    %75 = vector.shape_cast %74 : vector<1x128x32xbf16> to vector<128x32xbf16>
    %cst_67 = arith.constant dense<0.000000e+00> : vector<256x32xf32>
    %76 = tpu.matmul %73, %75, %cst_67 {dimension_numbers = #tpu.dot_dimension_numbers<[1], [0], [0], [1], [0, 0, 1, 1], [], []>} : vector<256x128xbf16>, vector<128x32xbf16>, vector<256x32xf32> -> vector<256x32xf32>
    %77 = arith.addf %69, %76 : vector<256x32xf32>
    %cst_68 = arith.constant 0.000000e+00 : f32
    %78 = vector.broadcast %cst_68 : f32 to vector<256x32xf32>
    %79 = arith.maximumf %77, %78 : vector<256x32xf32>
    %80 = arith.truncf %79 : vector<256x32xf32> to vector<256x32xbf16>
    %cst_69 = arith.constant 0.000000e+00 : f32
    %81 = vector.broadcast %cst_69 : f32 to vector<64x64xf32>
    %c0_70 = arith.constant 0 : index
    %c0_71 = arith.constant 0 : index
    %82 = vector.load %arg7[%c0_70, %c0_71] : memref<1x64xf32, #tpu.memory_space<vmem>>, vector<1x64xf32>
    %83 = vector.broadcast %82 : vector<1x64xf32> to vector<64x64xf32>
    %84 = arith.addf %81, %83 : vector<64x64xf32>
    %c0_72 = arith.constant 0 : index
    %c0_73 = arith.constant 0 : index
    %c0_74 = arith.constant 0 : index
    %85 = vector.load %arg5[%c0_72, %c0_73, %c0_74] : memref<9x64x256xbf16, #tpu.memory_space<vmem>>, vector<1x64x256xbf16>
    %86 = vector.shape_cast %85 : vector<1x64x256xbf16> to vector<64x256xbf16>
    %cst_75 = arith.constant dense<0.000000e+00> : vector<64x32xf32>
    %87 = tpu.matmul %86, %80, %cst_75 {dimension_numbers = #tpu.dot_dimension_numbers<[1], [0], [0], [1], [0, 0, 1, 1], [], []>} : vector<64x256xbf16>, vector<256x32xbf16>, vector<64x32xf32> -> vector<64x32xf32>
    %88 = arith.truncf %87 : vector<64x32xf32> to vector<64x32xbf16>
    %c0_76 = arith.constant 0 : index
    %c0_77 = arith.constant 0 : index
    %c0_78 = arith.constant 0 : index
    %89 = vector.load %arg6[%c0_76, %c0_77, %c0_78] : memref<9x32x64xbf16, #tpu.memory_space<vmem>>, vector<1x32x64xbf16>
    %90 = vector.shape_cast %89 : vector<1x32x64xbf16> to vector<32x64xbf16>
    %cst_79 = arith.constant dense<0.000000e+00> : vector<64x64xf32>
    %91 = tpu.matmul %88, %90, %cst_79 {dimension_numbers = #tpu.dot_dimension_numbers<[1], [0], [0], [1], [0, 0, 1, 1], [], []>} : vector<64x32xbf16>, vector<32x64xbf16>, vector<64x64xf32> -> vector<64x64xf32>
    %92 = arith.addf %84, %91 : vector<64x64xf32>
    %c1_80 = arith.constant 1 : index
    %c0_81 = arith.constant 0 : index
    %c0_82 = arith.constant 0 : index
    %93 = vector.load %arg5[%c1_80, %c0_81, %c0_82] : memref<9x64x256xbf16, #tpu.memory_space<vmem>>, vector<1x64x256xbf16>
    %94 = vector.shape_cast %93 : vector<1x64x256xbf16> to vector<64x256xbf16>
    %cst_83 = arith.constant dense<0.000000e+00> : vector<64x32xf32>
    %95 = tpu.matmul %94, %80, %cst_83 {dimension_numbers = #tpu.dot_dimension_numbers<[1], [0], [0], [1], [0, 0, 1, 1], [], []>} : vector<64x256xbf16>, vector<256x32xbf16>, vector<64x32xf32> -> vector<64x32xf32>
    %96 = arith.truncf %95 : vector<64x32xf32> to vector<64x32xbf16>
    %c1_84 = arith.constant 1 : index
    %c0_85 = arith.constant 0 : index
    %c0_86 = arith.constant 0 : index
    %97 = vector.load %arg6[%c1_84, %c0_85, %c0_86] : memref<9x32x64xbf16, #tpu.memory_space<vmem>>, vector<1x32x64xbf16>
    %98 = vector.shape_cast %97 : vector<1x32x64xbf16> to vector<32x64xbf16>
    %cst_87 = arith.constant dense<0.000000e+00> : vector<64x64xf32>
    %99 = tpu.matmul %96, %98, %cst_87 {dimension_numbers = #tpu.dot_dimension_numbers<[1], [0], [0], [1], [0, 0, 1, 1], [], []>} : vector<64x32xbf16>, vector<32x64xbf16>, vector<64x64xf32> -> vector<64x64xf32>
    %100 = arith.addf %92, %99 : vector<64x64xf32>
    %c2_88 = arith.constant 2 : index
    %c0_89 = arith.constant 0 : index
    %c0_90 = arith.constant 0 : index
    %101 = vector.load %arg5[%c2_88, %c0_89, %c0_90] : memref<9x64x256xbf16, #tpu.memory_space<vmem>>, vector<1x64x256xbf16>
    %102 = vector.shape_cast %101 : vector<1x64x256xbf16> to vector<64x256xbf16>
    %cst_91 = arith.constant dense<0.000000e+00> : vector<64x32xf32>
    %103 = tpu.matmul %102, %80, %cst_91 {dimension_numbers = #tpu.dot_dimension_numbers<[1], [0], [0], [1], [0, 0, 1, 1], [], []>} : vector<64x256xbf16>, vector<256x32xbf16>, vector<64x32xf32> -> vector<64x32xf32>
    %104 = arith.truncf %103 : vector<64x32xf32> to vector<64x32xbf16>
    %c2_92 = arith.constant 2 : index
    %c0_93 = arith.constant 0 : index
    %c0_94 = arith.constant 0 : index
    %105 = vector.load %arg6[%c2_92, %c0_93, %c0_94] : memref<9x32x64xbf16, #tpu.memory_space<vmem>>, vector<1x32x64xbf16>
    %106 = vector.shape_cast %105 : vector<1x32x64xbf16> to vector<32x64xbf16>
    %cst_95 = arith.constant dense<0.000000e+00> : vector<64x64xf32>
    %107 = tpu.matmul %104, %106, %cst_95 {dimension_numbers = #tpu.dot_dimension_numbers<[1], [0], [0], [1], [0, 0, 1, 1], [], []>} : vector<64x32xbf16>, vector<32x64xbf16>, vector<64x64xf32> -> vector<64x64xf32>
    %108 = arith.addf %100, %107 : vector<64x64xf32>
    %c3_96 = arith.constant 3 : index
    %c0_97 = arith.constant 0 : index
    %c0_98 = arith.constant 0 : index
    %109 = vector.load %arg5[%c3_96, %c0_97, %c0_98] : memref<9x64x256xbf16, #tpu.memory_space<vmem>>, vector<1x64x256xbf16>
    %110 = vector.shape_cast %109 : vector<1x64x256xbf16> to vector<64x256xbf16>
    %cst_99 = arith.constant dense<0.000000e+00> : vector<64x32xf32>
    %111 = tpu.matmul %110, %80, %cst_99 {dimension_numbers = #tpu.dot_dimension_numbers<[1], [0], [0], [1], [0, 0, 1, 1], [], []>} : vector<64x256xbf16>, vector<256x32xbf16>, vector<64x32xf32> -> vector<64x32xf32>
    %112 = arith.truncf %111 : vector<64x32xf32> to vector<64x32xbf16>
    %c3_100 = arith.constant 3 : index
    %c0_101 = arith.constant 0 : index
    %c0_102 = arith.constant 0 : index
    %113 = vector.load %arg6[%c3_100, %c0_101, %c0_102] : memref<9x32x64xbf16, #tpu.memory_space<vmem>>, vector<1x32x64xbf16>
    %114 = vector.shape_cast %113 : vector<1x32x64xbf16> to vector<32x64xbf16>
    %cst_103 = arith.constant dense<0.000000e+00> : vector<64x64xf32>
    %115 = tpu.matmul %112, %114, %cst_103 {dimension_numbers = #tpu.dot_dimension_numbers<[1], [0], [0], [1], [0, 0, 1, 1], [], []>} : vector<64x32xbf16>, vector<32x64xbf16>, vector<64x64xf32> -> vector<64x64xf32>
    %116 = arith.addf %108, %115 : vector<64x64xf32>
    %c4_104 = arith.constant 4 : index
    %c0_105 = arith.constant 0 : index
    %c0_106 = arith.constant 0 : index
    %117 = vector.load %arg5[%c4_104, %c0_105, %c0_106] : memref<9x64x256xbf16, #tpu.memory_space<vmem>>, vector<1x64x256xbf16>
    %118 = vector.shape_cast %117 : vector<1x64x256xbf16> to vector<64x256xbf16>
    %cst_107 = arith.constant dense<0.000000e+00> : vector<64x32xf32>
    %119 = tpu.matmul %118, %80, %cst_107 {dimension_numbers = #tpu.dot_dimension_numbers<[1], [0], [0], [1], [0, 0, 1, 1], [], []>} : vector<64x256xbf16>, vector<256x32xbf16>, vector<64x32xf32> -> vector<64x32xf32>
    %120 = arith.truncf %119 : vector<64x32xf32> to vector<64x32xbf16>
    %c4_108 = arith.constant 4 : index
    %c0_109 = arith.constant 0 : index
    %c0_110 = arith.constant 0 : index
    %121 = vector.load %arg6[%c4_108, %c0_109, %c0_110] : memref<9x32x64xbf16, #tpu.memory_space<vmem>>, vector<1x32x64xbf16>
    %122 = vector.shape_cast %121 : vector<1x32x64xbf16> to vector<32x64xbf16>
    %cst_111 = arith.constant dense<0.000000e+00> : vector<64x64xf32>
    %123 = tpu.matmul %120, %122, %cst_111 {dimension_numbers = #tpu.dot_dimension_numbers<[1], [0], [0], [1], [0, 0, 1, 1], [], []>} : vector<64x32xbf16>, vector<32x64xbf16>, vector<64x64xf32> -> vector<64x64xf32>
    %124 = arith.addf %116, %123 : vector<64x64xf32>
    %c5_112 = arith.constant 5 : index
    %c0_113 = arith.constant 0 : index
    %c0_114 = arith.constant 0 : index
    %125 = vector.load %arg5[%c5_112, %c0_113, %c0_114] : memref<9x64x256xbf16, #tpu.memory_space<vmem>>, vector<1x64x256xbf16>
    %126 = vector.shape_cast %125 : vector<1x64x256xbf16> to vector<64x256xbf16>
    %cst_115 = arith.constant dense<0.000000e+00> : vector<64x32xf32>
    %127 = tpu.matmul %126, %80, %cst_115 {dimension_numbers = #tpu.dot_dimension_numbers<[1], [0], [0], [1], [0, 0, 1, 1], [], []>} : vector<64x256xbf16>, vector<256x32xbf16>, vector<64x32xf32> -> vector<64x32xf32>
    %128 = arith.truncf %127 : vector<64x32xf32> to vector<64x32xbf16>
    %c5_116 = arith.constant 5 : index
    %c0_117 = arith.constant 0 : index
    %c0_118 = arith.constant 0 : index
    %129 = vector.load %arg6[%c5_116, %c0_117, %c0_118] : memref<9x32x64xbf16, #tpu.memory_space<vmem>>, vector<1x32x64xbf16>
    %130 = vector.shape_cast %129 : vector<1x32x64xbf16> to vector<32x64xbf16>
    %cst_119 = arith.constant dense<0.000000e+00> : vector<64x64xf32>
    %131 = tpu.matmul %128, %130, %cst_119 {dimension_numbers = #tpu.dot_dimension_numbers<[1], [0], [0], [1], [0, 0, 1, 1], [], []>} : vector<64x32xbf16>, vector<32x64xbf16>, vector<64x64xf32> -> vector<64x64xf32>
    %132 = arith.addf %124, %131 : vector<64x64xf32>
    %c6_120 = arith.constant 6 : index
    %c0_121 = arith.constant 0 : index
    %c0_122 = arith.constant 0 : index
    %133 = vector.load %arg5[%c6_120, %c0_121, %c0_122] : memref<9x64x256xbf16, #tpu.memory_space<vmem>>, vector<1x64x256xbf16>
    %134 = vector.shape_cast %133 : vector<1x64x256xbf16> to vector<64x256xbf16>
    %cst_123 = arith.constant dense<0.000000e+00> : vector<64x32xf32>
    %135 = tpu.matmul %134, %80, %cst_123 {dimension_numbers = #tpu.dot_dimension_numbers<[1], [0], [0], [1], [0, 0, 1, 1], [], []>} : vector<64x256xbf16>, vector<256x32xbf16>, vector<64x32xf32> -> vector<64x32xf32>
    %136 = arith.truncf %135 : vector<64x32xf32> to vector<64x32xbf16>
    %c6_124 = arith.constant 6 : index
    %c0_125 = arith.constant 0 : index
    %c0_126 = arith.constant 0 : index
    %137 = vector.load %arg6[%c6_124, %c0_125, %c0_126] : memref<9x32x64xbf16, #tpu.memory_space<vmem>>, vector<1x32x64xbf16>
    %138 = vector.shape_cast %137 : vector<1x32x64xbf16> to vector<32x64xbf16>
    %cst_127 = arith.constant dense<0.000000e+00> : vector<64x64xf32>
    %139 = tpu.matmul %136, %138, %cst_127 {dimension_numbers = #tpu.dot_dimension_numbers<[1], [0], [0], [1], [0, 0, 1, 1], [], []>} : vector<64x32xbf16>, vector<32x64xbf16>, vector<64x64xf32> -> vector<64x64xf32>
    %140 = arith.addf %132, %139 : vector<64x64xf32>
    %c7_128 = arith.constant 7 : index
    %c0_129 = arith.constant 0 : index
    %c0_130 = arith.constant 0 : index
    %141 = vector.load %arg5[%c7_128, %c0_129, %c0_130] : memref<9x64x256xbf16, #tpu.memory_space<vmem>>, vector<1x64x256xbf16>
    %142 = vector.shape_cast %141 : vector<1x64x256xbf16> to vector<64x256xbf16>
    %cst_131 = arith.constant dense<0.000000e+00> : vector<64x32xf32>
    %143 = tpu.matmul %142, %80, %cst_131 {dimension_numbers = #tpu.dot_dimension_numbers<[1], [0], [0], [1], [0, 0, 1, 1], [], []>} : vector<64x256xbf16>, vector<256x32xbf16>, vector<64x32xf32> -> vector<64x32xf32>
    %144 = arith.truncf %143 : vector<64x32xf32> to vector<64x32xbf16>
    %c7_132 = arith.constant 7 : index
    %c0_133 = arith.constant 0 : index
    %c0_134 = arith.constant 0 : index
    %145 = vector.load %arg6[%c7_132, %c0_133, %c0_134] : memref<9x32x64xbf16, #tpu.memory_space<vmem>>, vector<1x32x64xbf16>
    %146 = vector.shape_cast %145 : vector<1x32x64xbf16> to vector<32x64xbf16>
    %cst_135 = arith.constant dense<0.000000e+00> : vector<64x64xf32>
    %147 = tpu.matmul %144, %146, %cst_135 {dimension_numbers = #tpu.dot_dimension_numbers<[1], [0], [0], [1], [0, 0, 1, 1], [], []>} : vector<64x32xbf16>, vector<32x64xbf16>, vector<64x64xf32> -> vector<64x64xf32>
    %148 = arith.addf %140, %147 : vector<64x64xf32>
    %c8_136 = arith.constant 8 : index
    %c0_137 = arith.constant 0 : index
    %c0_138 = arith.constant 0 : index
    %149 = vector.load %arg5[%c8_136, %c0_137, %c0_138] : memref<9x64x256xbf16, #tpu.memory_space<vmem>>, vector<1x64x256xbf16>
    %150 = vector.shape_cast %149 : vector<1x64x256xbf16> to vector<64x256xbf16>
    %cst_139 = arith.constant dense<0.000000e+00> : vector<64x32xf32>
    %151 = tpu.matmul %150, %80, %cst_139 {dimension_numbers = #tpu.dot_dimension_numbers<[1], [0], [0], [1], [0, 0, 1, 1], [], []>} : vector<64x256xbf16>, vector<256x32xbf16>, vector<64x32xf32> -> vector<64x32xf32>
    %152 = arith.truncf %151 : vector<64x32xf32> to vector<64x32xbf16>
    %c8_140 = arith.constant 8 : index
    %c0_141 = arith.constant 0 : index
    %c0_142 = arith.constant 0 : index
    %153 = vector.load %arg6[%c8_140, %c0_141, %c0_142] : memref<9x32x64xbf16, #tpu.memory_space<vmem>>, vector<1x32x64xbf16>
    %154 = vector.shape_cast %153 : vector<1x32x64xbf16> to vector<32x64xbf16>
    %cst_143 = arith.constant dense<0.000000e+00> : vector<64x64xf32>
    %155 = tpu.matmul %152, %154, %cst_143 {dimension_numbers = #tpu.dot_dimension_numbers<[1], [0], [0], [1], [0, 0, 1, 1], [], []>} : vector<64x32xbf16>, vector<32x64xbf16>, vector<64x64xf32> -> vector<64x64xf32>
    %156 = arith.addf %148, %155 : vector<64x64xf32>
    %cst_144 = arith.constant 0.000000e+00 : f32
    %157 = vector.broadcast %cst_144 : f32 to vector<64x64xf32>
    %158 = arith.maximumf %156, %157 : vector<64x64xf32>
    %159 = arith.truncf %158 : vector<64x64xf32> to vector<64x64xbf16>
    %cst_145 = arith.constant 0.000000e+00 : f32
    %160 = vector.broadcast %cst_145 : f32 to vector<16x128xf32>
    %c0_146 = arith.constant 0 : index
    %c0_147 = arith.constant 0 : index
    %161 = vector.load %arg10[%c0_146, %c0_147] : memref<1x128xf32, #tpu.memory_space<vmem>>, vector<1x128xf32>
    %162 = vector.broadcast %161 : vector<1x128xf32> to vector<16x128xf32>
    %163 = arith.addf %160, %162 : vector<16x128xf32>
    %c0_148 = arith.constant 0 : index
    %c0_149 = arith.constant 0 : index
    %c0_150 = arith.constant 0 : index
    %164 = vector.load %arg8[%c0_148, %c0_149, %c0_150] : memref<9x16x64xbf16, #tpu.memory_space<vmem>>, vector<1x16x64xbf16>
    %165 = vector.shape_cast %164 : vector<1x16x64xbf16> to vector<16x64xbf16>
    %cst_151 = arith.constant dense<0.000000e+00> : vector<16x64xf32>
    %166 = tpu.matmul %165, %159, %cst_151 {dimension_numbers = #tpu.dot_dimension_numbers<[1], [0], [0], [1], [0, 0, 1, 1], [], []>} : vector<16x64xbf16>, vector<64x64xbf16>, vector<16x64xf32> -> vector<16x64xf32>
    %167 = arith.truncf %166 : vector<16x64xf32> to vector<16x64xbf16>
    %c0_152 = arith.constant 0 : index
    %c0_153 = arith.constant 0 : index
    %c0_154 = arith.constant 0 : index
    %168 = vector.load %arg9[%c0_152, %c0_153, %c0_154] : memref<9x64x128xbf16, #tpu.memory_space<vmem>>, vector<1x64x128xbf16>
    %169 = vector.shape_cast %168 : vector<1x64x128xbf16> to vector<64x128xbf16>
    %cst_155 = arith.constant dense<0.000000e+00> : vector<16x128xf32>
    %170 = tpu.matmul %167, %169, %cst_155 {dimension_numbers = #tpu.dot_dimension_numbers<[1], [0], [0], [1], [0, 0, 1, 1], [], []>} : vector<16x64xbf16>, vector<64x128xbf16>, vector<16x128xf32> -> vector<16x128xf32>
    %171 = arith.addf %163, %170 : vector<16x128xf32>
    %c1_156 = arith.constant 1 : index
    %c0_157 = arith.constant 0 : index
    %c0_158 = arith.constant 0 : index
    %172 = vector.load %arg8[%c1_156, %c0_157, %c0_158] : memref<9x16x64xbf16, #tpu.memory_space<vmem>>, vector<1x16x64xbf16>
    %173 = vector.shape_cast %172 : vector<1x16x64xbf16> to vector<16x64xbf16>
    %cst_159 = arith.constant dense<0.000000e+00> : vector<16x64xf32>
    %174 = tpu.matmul %173, %159, %cst_159 {dimension_numbers = #tpu.dot_dimension_numbers<[1], [0], [0], [1], [0, 0, 1, 1], [], []>} : vector<16x64xbf16>, vector<64x64xbf16>, vector<16x64xf32> -> vector<16x64xf32>
    %175 = arith.truncf %174 : vector<16x64xf32> to vector<16x64xbf16>
    %c1_160 = arith.constant 1 : index
    %c0_161 = arith.constant 0 : index
    %c0_162 = arith.constant 0 : index
    %176 = vector.load %arg9[%c1_160, %c0_161, %c0_162] : memref<9x64x128xbf16, #tpu.memory_space<vmem>>, vector<1x64x128xbf16>
    %177 = vector.shape_cast %176 : vector<1x64x128xbf16> to vector<64x128xbf16>
    %cst_163 = arith.constant dense<0.000000e+00> : vector<16x128xf32>
    %178 = tpu.matmul %175, %177, %cst_163 {dimension_numbers = #tpu.dot_dimension_numbers<[1], [0], [0], [1], [0, 0, 1, 1], [], []>} : vector<16x64xbf16>, vector<64x128xbf16>, vector<16x128xf32> -> vector<16x128xf32>
    %179 = arith.addf %171, %178 : vector<16x128xf32>
    %c2_164 = arith.constant 2 : index
    %c0_165 = arith.constant 0 : index
    %c0_166 = arith.constant 0 : index
    %180 = vector.load %arg8[%c2_164, %c0_165, %c0_166] : memref<9x16x64xbf16, #tpu.memory_space<vmem>>, vector<1x16x64xbf16>
    %181 = vector.shape_cast %180 : vector<1x16x64xbf16> to vector<16x64xbf16>
    %cst_167 = arith.constant dense<0.000000e+00> : vector<16x64xf32>
    %182 = tpu.matmul %181, %159, %cst_167 {dimension_numbers = #tpu.dot_dimension_numbers<[1], [0], [0], [1], [0, 0, 1, 1], [], []>} : vector<16x64xbf16>, vector<64x64xbf16>, vector<16x64xf32> -> vector<16x64xf32>
    %183 = arith.truncf %182 : vector<16x64xf32> to vector<16x64xbf16>
    %c2_168 = arith.constant 2 : index
    %c0_169 = arith.constant 0 : index
    %c0_170 = arith.constant 0 : index
    %184 = vector.load %arg9[%c2_168, %c0_169, %c0_170] : memref<9x64x128xbf16, #tpu.memory_space<vmem>>, vector<1x64x128xbf16>
    %185 = vector.shape_cast %184 : vector<1x64x128xbf16> to vector<64x128xbf16>
    %cst_171 = arith.constant dense<0.000000e+00> : vector<16x128xf32>
    %186 = tpu.matmul %183, %185, %cst_171 {dimension_numbers = #tpu.dot_dimension_numbers<[1], [0], [0], [1], [0, 0, 1, 1], [], []>} : vector<16x64xbf16>, vector<64x128xbf16>, vector<16x128xf32> -> vector<16x128xf32>
    %187 = arith.addf %179, %186 : vector<16x128xf32>
    %c3_172 = arith.constant 3 : index
    %c0_173 = arith.constant 0 : index
    %c0_174 = arith.constant 0 : index
    %188 = vector.load %arg8[%c3_172, %c0_173, %c0_174] : memref<9x16x64xbf16, #tpu.memory_space<vmem>>, vector<1x16x64xbf16>
    %189 = vector.shape_cast %188 : vector<1x16x64xbf16> to vector<16x64xbf16>
    %cst_175 = arith.constant dense<0.000000e+00> : vector<16x64xf32>
    %190 = tpu.matmul %189, %159, %cst_175 {dimension_numbers = #tpu.dot_dimension_numbers<[1], [0], [0], [1], [0, 0, 1, 1], [], []>} : vector<16x64xbf16>, vector<64x64xbf16>, vector<16x64xf32> -> vector<16x64xf32>
    %191 = arith.truncf %190 : vector<16x64xf32> to vector<16x64xbf16>
    %c3_176 = arith.constant 3 : index
    %c0_177 = arith.constant 0 : index
    %c0_178 = arith.constant 0 : index
    %192 = vector.load %arg9[%c3_176, %c0_177, %c0_178] : memref<9x64x128xbf16, #tpu.memory_space<vmem>>, vector<1x64x128xbf16>
    %193 = vector.shape_cast %192 : vector<1x64x128xbf16> to vector<64x128xbf16>
    %cst_179 = arith.constant dense<0.000000e+00> : vector<16x128xf32>
    %194 = tpu.matmul %191, %193, %cst_179 {dimension_numbers = #tpu.dot_dimension_numbers<[1], [0], [0], [1], [0, 0, 1, 1], [], []>} : vector<16x64xbf16>, vector<64x128xbf16>, vector<16x128xf32> -> vector<16x128xf32>
    %195 = arith.addf %187, %194 : vector<16x128xf32>
    %c4_180 = arith.constant 4 : index
    %c0_181 = arith.constant 0 : index
    %c0_182 = arith.constant 0 : index
    %196 = vector.load %arg8[%c4_180, %c0_181, %c0_182] : memref<9x16x64xbf16, #tpu.memory_space<vmem>>, vector<1x16x64xbf16>
    %197 = vector.shape_cast %196 : vector<1x16x64xbf16> to vector<16x64xbf16>
    %cst_183 = arith.constant dense<0.000000e+00> : vector<16x64xf32>
    %198 = tpu.matmul %197, %159, %cst_183 {dimension_numbers = #tpu.dot_dimension_numbers<[1], [0], [0], [1], [0, 0, 1, 1], [], []>} : vector<16x64xbf16>, vector<64x64xbf16>, vector<16x64xf32> -> vector<16x64xf32>
    %199 = arith.truncf %198 : vector<16x64xf32> to vector<16x64xbf16>
    %c4_184 = arith.constant 4 : index
    %c0_185 = arith.constant 0 : index
    %c0_186 = arith.constant 0 : index
    %200 = vector.load %arg9[%c4_184, %c0_185, %c0_186] : memref<9x64x128xbf16, #tpu.memory_space<vmem>>, vector<1x64x128xbf16>
    %201 = vector.shape_cast %200 : vector<1x64x128xbf16> to vector<64x128xbf16>
    %cst_187 = arith.constant dense<0.000000e+00> : vector<16x128xf32>
    %202 = tpu.matmul %199, %201, %cst_187 {dimension_numbers = #tpu.dot_dimension_numbers<[1], [0], [0], [1], [0, 0, 1, 1], [], []>} : vector<16x64xbf16>, vector<64x128xbf16>, vector<16x128xf32> -> vector<16x128xf32>
    %203 = arith.addf %195, %202 : vector<16x128xf32>
    %c5_188 = arith.constant 5 : index
    %c0_189 = arith.constant 0 : index
    %c0_190 = arith.constant 0 : index
    %204 = vector.load %arg8[%c5_188, %c0_189, %c0_190] : memref<9x16x64xbf16, #tpu.memory_space<vmem>>, vector<1x16x64xbf16>
    %205 = vector.shape_cast %204 : vector<1x16x64xbf16> to vector<16x64xbf16>
    %cst_191 = arith.constant dense<0.000000e+00> : vector<16x64xf32>
    %206 = tpu.matmul %205, %159, %cst_191 {dimension_numbers = #tpu.dot_dimension_numbers<[1], [0], [0], [1], [0, 0, 1, 1], [], []>} : vector<16x64xbf16>, vector<64x64xbf16>, vector<16x64xf32> -> vector<16x64xf32>
    %207 = arith.truncf %206 : vector<16x64xf32> to vector<16x64xbf16>
    %c5_192 = arith.constant 5 : index
    %c0_193 = arith.constant 0 : index
    %c0_194 = arith.constant 0 : index
    %208 = vector.load %arg9[%c5_192, %c0_193, %c0_194] : memref<9x64x128xbf16, #tpu.memory_space<vmem>>, vector<1x64x128xbf16>
    %209 = vector.shape_cast %208 : vector<1x64x128xbf16> to vector<64x128xbf16>
    %cst_195 = arith.constant dense<0.000000e+00> : vector<16x128xf32>
    %210 = tpu.matmul %207, %209, %cst_195 {dimension_numbers = #tpu.dot_dimension_numbers<[1], [0], [0], [1], [0, 0, 1, 1], [], []>} : vector<16x64xbf16>, vector<64x128xbf16>, vector<16x128xf32> -> vector<16x128xf32>
    %211 = arith.addf %203, %210 : vector<16x128xf32>
    %c6_196 = arith.constant 6 : index
    %c0_197 = arith.constant 0 : index
    %c0_198 = arith.constant 0 : index
    %212 = vector.load %arg8[%c6_196, %c0_197, %c0_198] : memref<9x16x64xbf16, #tpu.memory_space<vmem>>, vector<1x16x64xbf16>
    %213 = vector.shape_cast %212 : vector<1x16x64xbf16> to vector<16x64xbf16>
    %cst_199 = arith.constant dense<0.000000e+00> : vector<16x64xf32>
    %214 = tpu.matmul %213, %159, %cst_199 {dimension_numbers = #tpu.dot_dimension_numbers<[1], [0], [0], [1], [0, 0, 1, 1], [], []>} : vector<16x64xbf16>, vector<64x64xbf16>, vector<16x64xf32> -> vector<16x64xf32>
    %215 = arith.truncf %214 : vector<16x64xf32> to vector<16x64xbf16>
    %c6_200 = arith.constant 6 : index
    %c0_201 = arith.constant 0 : index
    %c0_202 = arith.constant 0 : index
    %216 = vector.load %arg9[%c6_200, %c0_201, %c0_202] : memref<9x64x128xbf16, #tpu.memory_space<vmem>>, vector<1x64x128xbf16>
    %217 = vector.shape_cast %216 : vector<1x64x128xbf16> to vector<64x128xbf16>
    %cst_203 = arith.constant dense<0.000000e+00> : vector<16x128xf32>
    %218 = tpu.matmul %215, %217, %cst_203 {dimension_numbers = #tpu.dot_dimension_numbers<[1], [0], [0], [1], [0, 0, 1, 1], [], []>} : vector<16x64xbf16>, vector<64x128xbf16>, vector<16x128xf32> -> vector<16x128xf32>
    %219 = arith.addf %211, %218 : vector<16x128xf32>
    %c7_204 = arith.constant 7 : index
    %c0_205 = arith.constant 0 : index
    %c0_206 = arith.constant 0 : index
    %220 = vector.load %arg8[%c7_204, %c0_205, %c0_206] : memref<9x16x64xbf16, #tpu.memory_space<vmem>>, vector<1x16x64xbf16>
    %221 = vector.shape_cast %220 : vector<1x16x64xbf16> to vector<16x64xbf16>
    %cst_207 = arith.constant dense<0.000000e+00> : vector<16x64xf32>
    %222 = tpu.matmul %221, %159, %cst_207 {dimension_numbers = #tpu.dot_dimension_numbers<[1], [0], [0], [1], [0, 0, 1, 1], [], []>} : vector<16x64xbf16>, vector<64x64xbf16>, vector<16x64xf32> -> vector<16x64xf32>
    %223 = arith.truncf %222 : vector<16x64xf32> to vector<16x64xbf16>
    %c7_208 = arith.constant 7 : index
    %c0_209 = arith.constant 0 : index
    %c0_210 = arith.constant 0 : index
    %224 = vector.load %arg9[%c7_208, %c0_209, %c0_210] : memref<9x64x128xbf16, #tpu.memory_space<vmem>>, vector<1x64x128xbf16>
    %225 = vector.shape_cast %224 : vector<1x64x128xbf16> to vector<64x128xbf16>
    %cst_211 = arith.constant dense<0.000000e+00> : vector<16x128xf32>
    %226 = tpu.matmul %223, %225, %cst_211 {dimension_numbers = #tpu.dot_dimension_numbers<[1], [0], [0], [1], [0, 0, 1, 1], [], []>} : vector<16x64xbf16>, vector<64x128xbf16>, vector<16x128xf32> -> vector<16x128xf32>
    %227 = arith.addf %219, %226 : vector<16x128xf32>
    %c8_212 = arith.constant 8 : index
    %c0_213 = arith.constant 0 : index
    %c0_214 = arith.constant 0 : index
    %228 = vector.load %arg8[%c8_212, %c0_213, %c0_214] : memref<9x16x64xbf16, #tpu.memory_space<vmem>>, vector<1x16x64xbf16>
    %229 = vector.shape_cast %228 : vector<1x16x64xbf16> to vector<16x64xbf16>
    %cst_215 = arith.constant dense<0.000000e+00> : vector<16x64xf32>
    %230 = tpu.matmul %229, %159, %cst_215 {dimension_numbers = #tpu.dot_dimension_numbers<[1], [0], [0], [1], [0, 0, 1, 1], [], []>} : vector<16x64xbf16>, vector<64x64xbf16>, vector<16x64xf32> -> vector<16x64xf32>
    %231 = arith.truncf %230 : vector<16x64xf32> to vector<16x64xbf16>
    %c8_216 = arith.constant 8 : index
    %c0_217 = arith.constant 0 : index
    %c0_218 = arith.constant 0 : index
    %232 = vector.load %arg9[%c8_216, %c0_217, %c0_218] : memref<9x64x128xbf16, #tpu.memory_space<vmem>>, vector<1x64x128xbf16>
    %233 = vector.shape_cast %232 : vector<1x64x128xbf16> to vector<64x128xbf16>
    %cst_219 = arith.constant dense<0.000000e+00> : vector<16x128xf32>
    %234 = tpu.matmul %231, %233, %cst_219 {dimension_numbers = #tpu.dot_dimension_numbers<[1], [0], [0], [1], [0, 0, 1, 1], [], []>} : vector<16x64xbf16>, vector<64x128xbf16>, vector<16x128xf32> -> vector<16x128xf32>
    %235 = arith.addf %227, %234 : vector<16x128xf32>
    %cst_220 = arith.constant 0.000000e+00 : f32
    %236 = vector.broadcast %cst_220 : f32 to vector<16x128xf32>
    %237 = arith.maximumf %235, %236 : vector<16x128xf32>
    %c0_221 = arith.constant 0 : index
    %c0_222 = arith.constant 0 : index
    %238 = vector.load %arg11[%c0_221, %c0_222] : memref<128x32xf32, #tpu.memory_space<vmem>>, vector<128x32xf32>
    %cst_223 = arith.constant dense<0.000000e+00> : vector<16x32xf32>
    %239 = tpu.matmul %237, %238, %cst_223 {dimension_numbers = #tpu.dot_dimension_numbers<[1], [0], [0], [1], [0, 0, 1, 1], [], []>} : vector<16x128xf32>, vector<128x32xf32>, vector<16x32xf32> -> vector<16x32xf32>
    %cst_224 = arith.constant dense<0.000000e+00> : vector<32xf32>
    %240 = vector.multi_reduction <add>, %239, %cst_224 [0] : vector<16x32xf32> to vector<32xf32>
    %241 = vector.shape_cast %240 : vector<32xf32> to vector<1x32xf32>
    %c0_225 = arith.constant 0 : index
    %c0_226 = arith.constant 0 : index
    %242 = vector.load %arg12[%c0_225, %c0_226] : memref<1x32xf32, #tpu.memory_space<vmem>>, vector<1x32xf32>
    %243 = arith.addf %241, %242 : vector<1x32xf32>
    %c0_227 = arith.constant 0 : index
    %c0_228 = arith.constant 0 : index
    %c0_229 = arith.constant 0 : index
    %244 = vector.load %arg13[%c0_227, %c0_228, %c0_229] : memref<1x1x32xf32, #tpu.memory_space<vmem>>, vector<1x1x32xf32>
    %245 = vector.shape_cast %244 : vector<1x1x32xf32> to vector<1x32xf32>
    %246 = vector.shape_cast %243 : vector<1x32xf32> to vector<1x1x32xf32>
    tpu.vector_store %arg13[%c0_227, %c0_228, %c0_229], %246 {strides = array<i32>} : memref<1x1x32xf32, #tpu.memory_space<vmem>>, vector<1x1x32xf32>,
    return
  }
  func.func @transform_0(%arg0: i32) -> (i32, i32, i32) {
    %c0_i32 = arith.constant 0 : i32
    %c0_i32_0 = arith.constant 0 : i32
    %c0_i32_1 = arith.constant 0 : i32
    return %arg0, %c0_i32, %c0_i32_0 : i32, i32, i32
  }
  func.func @transform_1(%arg0: i32) -> (i32, i32, i32) {
    %c0_i32 = arith.constant 0 : i32
    %c0_i32_0 = arith.constant 0 : i32
    %c0_i32_1 = arith.constant 0 : i32
    %c0_i32_2 = arith.constant 0 : i32
    return %c0_i32, %c0_i32_0, %c0_i32_1 : i32, i32, i32
  }
  func.func @transform_2(%arg0: i32) -> (i32, i32, i32) {
    %c0_i32 = arith.constant 0 : i32
    %c0_i32_0 = arith.constant 0 : i32
    %c0_i32_1 = arith.constant 0 : i32
    %c0_i32_2 = arith.constant 0 : i32
    return %c0_i32, %c0_i32_0, %c0_i32_1 : i32, i32, i32
  }
  func.func @transform_3(%arg0: i32) -> (i32, i32) {
    %c0_i32 = arith.constant 0 : i32
    %c0_i32_0 = arith.constant 0 : i32
    %c0_i32_1 = arith.constant 0 : i32
    return %c0_i32, %c0_i32_0 : i32, i32
  }
  func.func @transform_4(%arg0: i32) -> (i32, i32, i32) {
    %c0_i32 = arith.constant 0 : i32
    %c0_i32_0 = arith.constant 0 : i32
    %c0_i32_1 = arith.constant 0 : i32
    %c0_i32_2 = arith.constant 0 : i32
    return %c0_i32, %c0_i32_0, %c0_i32_1 : i32, i32, i32
  }
  func.func @transform_5(%arg0: i32) -> (i32, i32, i32) {
    %c0_i32 = arith.constant 0 : i32
    %c0_i32_0 = arith.constant 0 : i32
    %c0_i32_1 = arith.constant 0 : i32
    %c0_i32_2 = arith.constant 0 : i32
    return %c0_i32, %c0_i32_0, %c0_i32_1 : i32, i32, i32
  }
  func.func @transform_6(%arg0: i32) -> (i32, i32) {
    %c0_i32 = arith.constant 0 : i32
    %c0_i32_0 = arith.constant 0 : i32
    %c0_i32_1 = arith.constant 0 : i32
    return %c0_i32, %c0_i32_0 : i32, i32
  }
  func.func @transform_7(%arg0: i32) -> (i32, i32, i32) {
    %c0_i32 = arith.constant 0 : i32
    %c0_i32_0 = arith.constant 0 : i32
    %c0_i32_1 = arith.constant 0 : i32
    %c0_i32_2 = arith.constant 0 : i32
    return %c0_i32, %c0_i32_0, %c0_i32_1 : i32, i32, i32
  }
  func.func @transform_8(%arg0: i32) -> (i32, i32, i32) {
    %c0_i32 = arith.constant 0 : i32
    %c0_i32_0 = arith.constant 0 : i32
    %c0_i32_1 = arith.constant 0 : i32
    %c0_i32_2 = arith.constant 0 : i32
    return %c0_i32, %c0_i32_0, %c0_i32_1 : i32, i32, i32
  }
  func.func @transform_9(%arg0: i32) -> (i32, i32) {
    %c0_i32 = arith.constant 0 : i32
    %c0_i32_0 = arith.constant 0 : i32
    %c0_i32_1 = arith.constant 0 : i32
    return %c0_i32, %c0_i32_0 : i32, i32
  }
  func.func @transform_10(%arg0: i32) -> (i32, i32) {
    %c0_i32 = arith.constant 0 : i32
    %c0_i32_0 = arith.constant 0 : i32
    %c0_i32_1 = arith.constant 0 : i32
    return %c0_i32, %c0_i32_0 : i32, i32
  }
  func.func @transform_11(%arg0: i32) -> (i32, i32) {
    %c0_i32 = arith.constant 0 : i32
    %c0_i32_0 = arith.constant 0 : i32
    %c0_i32_1 = arith.constant 0 : i32
    return %c0_i32, %c0_i32_0 : i32, i32
  }
  func.func @transform_12(%arg0: i32) -> (i32, i32, i32) {
    %c0_i32 = arith.constant 0 : i32
    %c0_i32_0 = arith.constant 0 : i32
    %c0_i32_1 = arith.constant 0 : i32
    return %arg0, %c0_i32, %c0_i32_0 : i32, i32, i32
  }
}

</mosaic_0001>

<llo_original>
// kernel: temporal_analyzer_forward.1
$region0: #{temporal_analyzer_forward.1}
  #allocation0 [shape = 'u32[]', space=smem, size = 0x4, offset = 0x4, fixed_abs, tag = 'smem constant byte address 0x4 - core index']
  #allocation1 [shape = 'u32[72,128]{1,0:T(1,128)}', space=vmem, size = 0x9000, scoped, tag = 'internal scratch']
  %s0 = inlined_call_operand.vmem [shape: bf16[2,256,128], index: 0, kind: input, shape index: {}]
  %s1 = inlined_call_operand.vmem [shape: bf16[9,256,256], index: 1, kind: input, shape index: {}]
  %s2 = inlined_call_operand.vmem [shape: bf16[9,128,32], index: 2, kind: input, shape index: {}]
  %s3 = inlined_call_operand.vmem [shape: f32[1,32], index: 3, kind: input, shape index: {}]
  %s4 = inlined_call_operand.vmem [shape: bf16[9,64,256], index: 4, kind: input, shape index: {}]
  %s5 = inlined_call_operand.vmem [shape: bf16[9,32,64], index: 5, kind: input, shape index: {}]
  %s6 = inlined_call_operand.vmem [shape: f32[1,64], index: 6, kind: input, shape index: {}]
  %s7 = inlined_call_operand.vmem [shape: bf16[9,16,64], index: 7, kind: input, shape index: {}]
  %s8 = inlined_call_operand.vmem [shape: bf16[9,64,128], index: 8, kind: input, shape index: {}]
  %s9 = inlined_call_operand.vmem [shape: f32[1,128], index: 9, kind: input, shape index: {}]
  %s10 = inlined_call_operand.vmem [shape: f32[128,32], index: 10, kind: input, shape index: {}]
  %s11 = inlined_call_operand.vmem [shape: f32[1,32], index: 11, kind: input, shape index: {}]
  %s12 = inlined_call_operand.hbm [shape: f32[2,1,32], index: 12, kind: output, shape index: {}]
  %s13 = sld [smem:[#allocation0]]
  $region81: #{temporal_analyzer_forward.1} parent=0
    _
  %s15 = ssub.s32 1, %s13
  %s16 = scalar_select 0, %s15, %s13
  $region1: #{temporal_analyzer_forward.1} parent=0
    #allocation2 [shape = 'u8[1024]{0}', space=vmem, size = 0x400, scoped, tag = 'output window, operand 0']
    #allocation3 [shape = 's32[2]{0}', space=sflag, size = 0x8, scoped, tag = 'scoped memory for temporal_analyzer_forward.1']
    %17 = vsyncpa [#allocation3], 0
    %s18 = scalar_lea.sflag [#allocation3], 1
    %19 = vsyncpa %s18, 0
    loop: start=0, step=1, limit=4
    $region2: #{temporal_analyzer_forward.1} parent=1 // loop_pre_header
      _
    $region3: #{temporal_analyzer_forward.1} parent=1 // loop_header
      %s21 = sphi 0, %s25
      %p22 = scmp.ge.s32.totalorder %s21, 4
      %s31 = sphi 0, %s33
      %s34 = sphi 0, %s31
      %s35 = sphi 0, %s34
      %s51 = sphi 0, %s35
      %s55 = sphi 0, %s55
      %s57 = sphi 0, %s55
      %s58 = sphi 0, %s57
      %s72 = sphi 0, %s58
      %s76 = sphi 0, %s76
      %s78 = sphi 0, %s76
      %s79 = sphi 0, %s78
      %s93 = sphi 0, %s79
      %s97 = sphi 0, %s97
      %s99 = sphi 0, %s97
      %s100 = sphi 0, %s99
      %s114 = sphi 0, %s100
      %s118 = sphi 0, %s118
      %s120 = sphi 0, %s118
      %s121 = sphi 0, %s120
      %s135 = sphi 0, %s121
      %s139 = sphi 0, %s139
      %s141 = sphi 0, %s139
      %s142 = sphi 0, %s141
      %s156 = sphi 0, %s142
      %s160 = sphi 0, %s160
      %s162 = sphi 0, %s160
      %s163 = sphi 0, %s162
      %s177 = sphi 0, %s163
      %s181 = sphi 0, %s181
      %s183 = sphi 0, %s181
      %s184 = sphi 0, %s183
      %s198 = sphi 0, %s184
      %s202 = sphi 0, %s202
      %s204 = sphi 0, %s202
      %s205 = sphi 0, %s204
      %s219 = sphi 0, %s205
      %s223 = sphi 0, %s223
      %s225 = sphi 0, %s223
      %s226 = sphi 0, %s225
      %s240 = sphi 0, %s226
      %s244 = sphi 0, %s244
      %s246 = sphi 0, %s244
      %s247 = sphi 0, %s246
      %s261 = sphi 0, %s247
      %s265 = sphi 0, %s265
      %s267 = sphi 0, %s265
      %s268 = sphi 0, %s267
      %s282 = sphi 0, %s268
      %s288 = sphi 0, %s290
      %s291 = sphi 0, %s288
      %s292 = sphi 0, %s291
      %s308 = sphi 0, %s292
    $region4: #{temporal_analyzer_forward.1} parent=1 // loop_header_branch
      %24 = sbr.rel (%p22) target = $region8
    $region5: #{temporal_analyzer_forward.1} parent=1 // loop_body
      %s26 = ssub.s32 %s21, 1
      %s27 = ssub.s32 %s21, 2
      %s28 = sadd.s32 %s21, 1
      %s29 = ssub.s32 %s21, %s28
      %p30 = scmp.eq.s32.totalorder %s29, 0
      %s32 = sadd.s32 %s31, 1
      %s33 = scalar_select %p30, %s31, %s32
      %p36 = pneg %p30
      %p37 = scmp.eq.s32.totalorder %s21, 1
      %p38 = por %p36, %p37
      %p39 = scmp.ne.s32.totalorder %s31, %s34
      %p40 = scmp.eq.s32.totalorder %s21, 0
      %p41 = por %p39, %p40
      %p42 = scmp.ne.s32.totalorder %s31, %s34
      %p43 = scmp.eq.s32.totalorder %s26, 1
      %p44 = por %p42, %p43
      %p45 = scmp.ne.s32.totalorder %s34, %s35
      %p46 = scmp.eq.s32.totalorder %s26, 0
      %p47 = por %p45, %p46
      %p48 = scmp.ne.s32.totalorder %s34, %s35
      %p49 = scmp.eq.s32.totalorder %s27, 1
      %p50 = por %p48, %p49
      %p52 = scmp.ne.s32.totalorder %s35, %s51
      %p53 = scmp.eq.s32.totalorder %s27, 0
      %p54 = por %p52, %p53
      %s56 = sadd.s32 %s55, 1
      %p59 = scmp.eq.s32.totalorder %s21, 1
      %p60 = scmp.ne.s32.totalorder %s55, %s57
      %p61 = scmp.eq.s32.totalorder %s21, 0
      %p62 = por %p60, %p61
      %p63 = scmp.ne.s32.totalorder %s55, %s57
      %p64 = scmp.eq.s32.totalorder %s26, 1
      %p65 = por %p63, %p64
      %p66 = scmp.ne.s32.totalorder %s57, %s58
      %p67 = scmp.eq.s32.totalorder %s26, 0
      %p68 = por %p66, %p67
      %p69 = scmp.ne.s32.totalorder %s57, %s58
      %p70 = scmp.eq.s32.totalorder %s27, 1
      %p71 = por %p69, %p70
      %p73 = scmp.ne.s32.totalorder %s58, %s72
      %p74 = scmp.eq.s32.totalorder %s27, 0
      %p75 = por %p73, %p74
      %s77 = sadd.s32 %s76, 1
      %p80 = scmp.eq.s32.totalorder %s21, 1
      %p81 = scmp.ne.s32.totalorder %s76, %s78
      %p82 = scmp.eq.s32.totalorder %s21, 0
      %p83 = por %p81, %p82
      %p84 = scmp.ne.s32.totalorder %s76, %s78
      %p85 = scmp.eq.s32.totalorder %s26, 1
      %p86 = por %p84, %p85
      %p87 = scmp.ne.s32.totalorder %s78, %s79
      %p88 = scmp.eq.s32.totalorder %s26, 0
      %p89 = por %p87, %p88
      %p90 = scmp.ne.s32.totalorder %s78, %s79
      %p91 = scmp.eq.s32.totalorder %s27, 1
      %p92 = por %p90, %p91
      %p94 = scmp.ne.s32.totalorder %s79, %s93
      %p95 = scmp.eq.s32.totalorder %s27, 0
      %p96 = por %p94, %p95
      %s98 = sadd.s32 %s97, 1
      %p101 = scmp.eq.s32.totalorder %s21, 1
      %p102 = scmp.ne.s32.totalorder %s97, %s99
      %p103 = scmp.eq.s32.totalorder %s21, 0
      %p104 = por %p102, %p103
      %p105 = scmp.ne.s32.totalorder %s97, %s99
      %p106 = scmp.eq.s32.totalorder %s26, 1
      %p107 = por %p105, %p106
      %p108 = scmp.ne.s32.totalorder %s99, %s100
      %p109 = scmp.eq.s32.totalorder %s26, 0
      %p110 = por %p108, %p109
      %p111 = scmp.ne.s32.totalorder %s99, %s100
      %p112 = scmp.eq.s32.totalorder %s27, 1
      %p113 = por %p111, %p112
      %p115 = scmp.ne.s32.totalorder %s100, %s114
      %p116 = scmp.eq.s32.totalorder %s27, 0
      %p117 = por %p115, %p116
      %s119 = sadd.s32 %s118, 1
      %p122 = scmp.eq.s32.totalorder %s21, 1
      %p123 = scmp.ne.s32.totalorder %s118, %s120
      %p124 = scmp.eq.s32.totalorder %s21, 0
      %p125 = por %p123, %p124
      %p126 = scmp.ne.s32.totalorder %s118, %s120
      %p127 = scmp.eq.s32.totalorder %s26, 1
      %p128 = por %p126, %p127
      %p129 = scmp.ne.s32.totalorder %s120, %s121
      %p130 = scmp.eq.s32.totalorder %s26, 0
      %p131 = por %p129, %p130
      %p132 = scmp.ne.s32.totalorder %s120, %s121
      %p133 = scmp.eq.s32.totalorder %s27, 1
      %p134 = por %p132, %p133
      %p136 = scmp.ne.s32.totalorder %s121, %s135
      %p137 = scmp.eq.s32.totalorder %s27, 0
      %p138 = por %p136, %p137
      %s140 = sadd.s32 %s139, 1
      %p143 = scmp.eq.s32.totalorder %s21, 1
      %p144 = scmp.ne.s32.totalorder %s139, %s141
      %p145 = scmp.eq.s32.totalorder %s21, 0
      %p146 = por %p144, %p145
      %p147 = scmp.ne.s32.totalorder %s139, %s141
      %p148 = scmp.eq.s32.totalorder %s26, 1
      %p149 = por %p147, %p148
      %p150 = scmp.ne.s32.totalorder %s141, %s142
      %p151 = scmp.eq.s32.totalorder %s26, 0
      %p152 = por %p150, %p151
      %p153 = scmp.ne.s32.totalorder %s141, %s142
      %p154 = scmp.eq.s32.totalorder %s27, 1
      %p155 = por %p153, %p154
      %p157 = scmp.ne.s32.totalorder %s142, %s156
      %p158 = scmp.eq.s32.totalorder %s27, 0
      %p159 = por %p157, %p158
      %s161 = sadd.s32 %s160, 1
      %p164 = scmp.eq.s32.totalorder %s21, 1
      %p165 = scmp.ne.s32.totalorder %s160, %s162
      %p166 = scmp.eq.s32.totalorder %s21, 0
      %p167 = por %p165, %p166
      %p168 = scmp.ne.s32.totalorder %s160, %s162
      %p169 = scmp.eq.s32.totalorder %s26, 1
      %p170 = por %p168, %p169
      %p171 = scmp.ne.s32.totalorder %s162, %s163
      %p172 = scmp.eq.s32.totalorder %s26, 0
      %p173 = por %p171, %p172
      %p174 = scmp.ne.s32.totalorder %s162, %s163
      %p175 = scmp.eq.s32.totalorder %s27, 1
      %p176 = por %p174, %p175
      %p178 = scmp.ne.s32.totalorder %s163, %s177
      %p179 = scmp.eq.s32.totalorder %s27, 0
      %p180 = por %p178, %p179
      %s182 = sadd.s32 %s181, 1
      %p185 = scmp.eq.s32.totalorder %s21, 1
      %p186 = scmp.ne.s32.totalorder %s181, %s183
      %p187 = scmp.eq.s32.totalorder %s21, 0
      %p188 = por %p186, %p187
      %p189 = scmp.ne.s32.totalorder %s181, %s183
      %p190 = scmp.eq.s32.totalorder %s26, 1
      %p191 = por %p189, %p190
      %p192 = scmp.ne.s32.totalorder %s183, %s184
      %p193 = scmp.eq.s32.totalorder %s26, 0
      %p194 = por %p192, %p193
      %p195 = scmp.ne.s32.totalorder %s183, %s184
      %p196 = scmp.eq.s32.totalorder %s27, 1
      %p197 = por %p195, %p196
      %p199 = scmp.ne.s32.totalorder %s184, %s198
      %p200 = scmp.eq.s32.totalorder %s27, 0
      %p201 = por %p199, %p200
      %s203 = sadd.s32 %s202, 1
      %p206 = scmp.eq.s32.totalorder %s21, 1
      %p207 = scmp.ne.s32.totalorder %s202, %s204
      %p208 = scmp.eq.s32.totalorder %s21, 0
      %p209 = por %p207, %p208
      %p210 = scmp.ne.s32.totalorder %s202, %s204
      %p211 = scmp.eq.s32.totalorder %s26, 1
      %p212 = por %p210, %p211
      %p213 = scmp.ne.s32.totalorder %s204, %s205
      %p214 = scmp.eq.s32.totalorder %s26, 0
      %p215 = por %p213, %p214
      %p216 = scmp.ne.s32.totalorder %s204, %s205
      %p217 = scmp.eq.s32.totalorder %s27, 1
      %p218 = por %p216, %p217
      %p220 = scmp.ne.s32.totalorder %s205, %s219
      %p221 = scmp.eq.s32.totalorder %s27, 0
      %p222 = por %p220, %p221
      %s224 = sadd.s32 %s223, 1
      %p227 = scmp.eq.s32.totalorder %s21, 1
      %p228 = scmp.ne.s32.totalorder %s223, %s225
      %p229 = scmp.eq.s32.totalorder %s21, 0
      %p230 = por %p228, %p229
      %p231 = scmp.ne.s32.totalorder %s223, %s225
      %p232 = scmp.eq.s32.totalorder %s26, 1
      %p233 = por %p231, %p232
      %p234 = scmp.ne.s32.totalorder %s225, %s226
      %p235 = scmp.eq.s32.totalorder %s26, 0
      %p236 = por %p234, %p235
      %p237 = scmp.ne.s32.totalorder %s225, %s226
      %p238 = scmp.eq.s32.totalorder %s27, 1
      %p239 = por %p237, %p238
      %p241 = scmp.ne.s32.totalorder %s226, %s240
      %p242 = scmp.eq.s32.totalorder %s27, 0
      %p243 = por %p241, %p242
      %s245 = sadd.s32 %s244, 1
      %p248 = scmp.eq.s32.totalorder %s21, 1
      %p249 = scmp.ne.s32.totalorder %s244, %s246
      %p250 = scmp.eq.s32.totalorder %s21, 0
      %p251 = por %p249, %p250
      %p252 = scmp.ne.s32.totalorder %s244, %s246
      %p253 = scmp.eq.s32.totalorder %s26, 1
      %p254 = por %p252, %p253
      %p255 = scmp.ne.s32.totalorder %s246, %s247
      %p256 = scmp.eq.s32.totalorder %s26, 0
      %p257 = por %p255, %p256
      %p258 = scmp.ne.s32.totalorder %s246, %s247
      %p259 = scmp.eq.s32.totalorder %s27, 1
      %p260 = por %p258, %p259
      %p262 = scmp.ne.s32.totalorder %s247, %s261
      %p263 = scmp.eq.s32.totalorder %s27, 0
      %p264 = por %p262, %p263
      %s266 = sadd.s32 %s265, 1
      %p269 = scmp.eq.s32.totalorder %s21, 1
      %p270 = scmp.ne.s32.totalorder %s265, %s267
      %p271 = scmp.eq.s32.totalorder %s21, 0
      %p272 = por %p270, %p271
      %p273 = scmp.ne.s32.totalorder %s265, %s267
      %p274 = scmp.eq.s32.totalorder %s26, 1
      %p275 = por %p273, %p274
      %p276 = scmp.ne.s32.totalorder %s267, %s268
      %p277 = scmp.eq.s32.totalorder %s26, 0
      %p278 = por %p276, %p277
      %p279 = scmp.ne.s32.totalorder %s267, %s268
      %p280 = scmp.eq.s32.totalorder %s27, 1
      %p281 = por %p279, %p280
      %p283 = scmp.ne.s32.totalorder %s268, %s282
      %p284 = scmp.eq.s32.totalorder %s27, 0
      %p285 = por %p283, %p284
      %s286 = ssub.s32 %s21, %s28
      %p287 = scmp.eq.s32.totalorder %s286, 0
      %s289 = sadd.s32 %s288, 1
      %s290 = scalar_select %p287, %s288, %s289
      %p293 = pneg %p287
      %p294 = scmp.eq.s32.totalorder %s21, 1
      %p295 = por %p293, %p294
      %p296 = scmp.ne.s32.totalorder %s288, %s291
      %p297 = scmp.eq.s32.totalorder %s21, 0
      %p298 = por %p296, %p297
      %p299 = scmp.ne.s32.totalorder %s288, %s291
      %p300 = scmp.eq.s32.totalorder %s26, 1
      %p301 = por %p299, %p300
      %p302 = scmp.ne.s32.totalorder %s291, %s292
      %p303 = scmp.eq.s32.totalorder %s26, 0
      %p304 = por %p302, %p303
      %p305 = scmp.ne.s32.totalorder %s291, %s292
      %p306 = scmp.eq.s32.totalorder %s27, 1
      %p307 = por %p305, %p306
      %p309 = scmp.ne.s32.totalorder %s292, %s308
      %p310 = scmp.eq.s32.totalorder %s27, 0
      %p311 = por %p309, %p310
      %p312 = scmp.le.s32.totalorder 1, %s21
      %p313 = scmp.lt.s32.totalorder %s21, 3
      %p314 = pnand %p312, %p313
      %p315 = pneg %p314
      // Predicated region
      $region9: #{temporal_analyzer_forward.1} parent=5 // pred_check
        _
      $region10: #{temporal_analyzer_forward.1} parent=5 // pred_check_branch
        %317 = sbr.rel (%p314) target = $region12
      $region11: #{temporal_analyzer_forward.1} parent=5 // pred_region
        %s318 = ssub.s32 %s21, 1
        // Predicated region
        $region13: #{temporal_analyzer_forward.1} parent=11 // pred_check
          %p319 = pneg %p68
        $region14: #{temporal_analyzer_forward.1} parent=11 // pred_check_branch
          %321 = sbr.rel (%p319) target = $region16
        $region15: #{temporal_analyzer_forward.1} parent=11 // pred_region
          _
        $region16: #{temporal_analyzer_forward.1} parent=11 // pred_fallthru
          _
        // Predicated region
        $region17: #{temporal_analyzer_forward.1} parent=11 // pred_check
          %p322 = pneg %p89
        $region18: #{temporal_analyzer_forward.1} parent=11 // pred_check_branch
          %324 = sbr.rel (%p322) target = $region20
        $region19: #{temporal_analyzer_forward.1} parent=11 // pred_region
          _
        $region20: #{temporal_analyzer_forward.1} parent=11 // pred_fallthru
          _
        // Predicated region
        $region21: #{temporal_analyzer_forward.1} parent=11 // pred_check
          %p325 = pneg %p110
        $region22: #{temporal_analyzer_forward.1} parent=11 // pred_check_branch
          %327 = sbr.rel (%p325) target = $region24
        $region23: #{temporal_analyzer_forward.1} parent=11 // pred_region
          _
        $region24: #{temporal_analyzer_forward.1} parent=11 // pred_fallthru
          _
        // Predicated region
        $region25: #{temporal_analyzer_forward.1} parent=11 // pred_check
          %p328 = pneg %p131
        $region26: #{temporal_analyzer_forward.1} parent=11 // pred_check_branch
          %330 = sbr.rel (%p328) target = $region28
        $region27: #{temporal_analyzer_forward.1} parent=11 // pred_region
          _
        $region28: #{temporal_analyzer_forward.1} parent=11 // pred_fallthru
          _
        // Predicated region
        $region29: #{temporal_analyzer_forward.1} parent=11 // pred_check
          %p331 = pneg %p152
        $region30: #{temporal_analyzer_forward.1} parent=11 // pred_check_branch
          %333 = sbr.rel (%p331) target = $region32
        $region31: #{temporal_analyzer_forward.1} parent=11 // pred_region
          _
        $region32: #{temporal_analyzer_forward.1} parent=11 // pred_fallthru
          _
        // Predicated region
        $region33: #{temporal_analyzer_forward.1} parent=11 // pred_check
          %p334 = pneg %p173
        $region34: #{temporal_analyzer_forward.1} parent=11 // pred_check_branch
          %336 = sbr.rel (%p334) target = $region36
        $region35: #{temporal_analyzer_forward.1} parent=11 // pred_region
          _
        $region36: #{temporal_analyzer_forward.1} parent=11 // pred_fallthru
          _
        // Predicated region
        $region37: #{temporal_analyzer_forward.1} parent=11 // pred_check
          %p337 = pneg %p194
        $region38: #{temporal_analyzer_forward.1} parent=11 // pred_check_branch
          %339 = sbr.rel (%p337) target = $region40
        $region39: #{temporal_analyzer_forward.1} parent=11 // pred_region
          _
        $region40: #{temporal_analyzer_forward.1} parent=11 // pred_fallthru
          _
        // Predicated region
        $region41: #{temporal_analyzer_forward.1} parent=11 // pred_check
          %p340 = pneg %p215
        $region42: #{temporal_analyzer_forward.1} parent=11 // pred_check_branch
          %342 = sbr.rel (%p340) target = $region44
        $region43: #{temporal_analyzer_forward.1} parent=11 // pred_region
          _
        $region44: #{temporal_analyzer_forward.1} parent=11 // pred_fallthru
          _
        // Predicated region
        $region45: #{temporal_analyzer_forward.1} parent=11 // pred_check
          %p343 = pneg %p236
        $region46: #{temporal_analyzer_forward.1} parent=11 // pred_check_branch
          %345 = sbr.rel (%p343) target = $region48
        $region47: #{temporal_analyzer_forward.1} parent=11 // pred_region
          _
        $region48: #{temporal_analyzer_forward.1} parent=11 // pred_fallthru
          _
        // Predicated region
        $region49: #{temporal_analyzer_forward.1} parent=11 // pred_check
          %p346 = pneg %p257
        $region50: #{temporal_analyzer_forward.1} parent=11 // pred_check_branch
          %348 = sbr.rel (%p346) target = $region52
        $region51: #{temporal_analyzer_forward.1} parent=11 // pred_region
          _
        $region52: #{temporal_analyzer_forward.1} parent=11 // pred_fallthru
          _
        // Predicated region
        $region53: #{temporal_analyzer_forward.1} parent=11 // pred_check
          %p349 = pneg %p278
        $region54: #{temporal_analyzer_forward.1} parent=11 // pred_check_branch
          %351 = sbr.rel (%p349) target = $region56
        $region55: #{temporal_analyzer_forward.1} parent=11 // pred_region
          _
        $region56: #{temporal_analyzer_forward.1} parent=11 // pred_fallthru
          _
      $region12: #{temporal_analyzer_forward.1} parent=5 // pred_fallthru
        _
      %p352 = scmp.lt.s32.totalorder %s21, 2
      // Predicated region
      $region57: #{temporal_analyzer_forward.1} parent=5 // pred_check
        %p353 = pneg %p352
      $region58: #{temporal_analyzer_forward.1} parent=5 // pred_check_branch
        %355 = sbr.rel (%p353) target = $region60
      $region59: #{temporal_analyzer_forward.1} parent=5 // pred_region
        // Predicated region
        $region61: #{temporal_analyzer_forward.1} parent=59 // pred_check
          %p356 = pneg %p41
        $region62: #{temporal_analyzer_forward.1} parent=59 // pred_check_branch
          %358 = sbr.rel (%p356) target = $region64
        $region63: #{temporal_analyzer_forward.1} parent=59 // pred_region
          %p359 = scmp.lt.s32.totalorder %s21, 1
          %s360 = scalar_select %p359, %s21, 1
          %s361 = smul.addr %s360, 32
          %s362 = smul.addr %s361, 4
          %s363 = scalar_lea.vmem %s0, %s362
        $region64: #{temporal_analyzer_forward.1} parent=59 // pred_fallthru
          _
      $region60: #{temporal_analyzer_forward.1} parent=5 // pred_fallthru
        _
      %p364 = scmp.le.s32.totalorder 1, %s21
      %p365 = scmp.lt.s32.totalorder %s21, 3
      %p366 = pnand %p364, %p365
      %p367 = pneg %p366
      // Predicated region
      $region65: #{temporal_analyzer_forward.1} parent=5 // pred_check
        _
      $region66: #{temporal_analyzer_forward.1} parent=5 // pred_check_branch
        %369 = sbr.rel (%p366) target = $region68
      $region67: #{temporal_analyzer_forward.1} parent=5 // pred_region
        %s370 = ssub.s32 %s21, 1
        %p371 = scmp.lt.s32.totalorder %s26, 1
        %s372 = scalar_select %p371, %s26, 1
        %s373 = smul.addr %s372, 32
        %s374 = smul.addr %s373, 4
        %s375 = scalar_lea.vmem %s0, %s374
        %p376 = pneg %p47
        %p377 = pneg %p44
        %p378 = pneg %p68
        %p379 = pneg %p65
        %p380 = pneg %p89
        %p381 = pneg %p86
        %p382 = pneg %p110
        %p383 = pneg %p107
        %p384 = pneg %p131
        %p385 = pneg %p128
        %p386 = pneg %p152
        %p387 = pneg %p149
        %p388 = pneg %p173
        %p389 = pneg %p170
        %p390 = pneg %p194
        %p391 = pneg %p191
        %p392 = pneg %p215
        %p393 = pneg %p212
        %p394 = pneg %p236
        %p395 = pneg %p233
        %p396 = pneg %p257
        %p397 = pneg %p254
        %p398 = pneg %p278
        %p399 = pneg %p275
        %p400 = pneg %p304
        %p401 = pneg %p301
        %s402 = sand.u32 %s291, 1
        %s403 = scalar_lea.sflag [#allocation3], %s402
        %s404 = sand.u32 %s291, 1
        %s405 = scalar_lea.vmem [#allocation2], %s404
        %p406 = scmp.lt.s32.totalorder %s26, 1
        %s407 = scalar_select %p406, %s26, 1
        %s408 = smul.addr %s407, 32
        %s409 = smul.addr %s408, 4
        %s410 = scalar_lea.vmem %s0, %s409
        %v412 = vld [vmem:[%s410] sm:$0xf]
        %v413 = vld [vmem:[%s410 + $0x4] sm:$0xf]
        %v414 = vld [vmem:[%s410 + $0x8] sm:$0xf]
        %v415 = vld [vmem:[%s410 + $0xc] sm:$0xf]
        %v416 = vld [vmem:[%s410 + $0x10] sm:$0xf]
        %v417 = vld [vmem:[%s410 + $0x14] sm:$0xf]
        %v418 = vld [vmem:[%s410 + $0x18] sm:$0xf]
        %v419 = vld [vmem:[%s410 + $0x1c] sm:$0xf]
        %v420 = vld [vmem:[%s410 + $0x20] sm:$0xf]
        %v421 = vld [vmem:[%s410 + $0x24] sm:$0xf]
        %v422 = vld [vmem:[%s410 + $0x28] sm:$0xf]
        %v423 = vld [vmem:[%s410 + $0x2c] sm:$0xf]
        %v424 = vld [vmem:[%s410 + $0x30] sm:$0xf]
        %v425 = vld [vmem:[%s410 + $0x34] sm:$0xf]
        %v426 = vld [vmem:[%s410 + $0x38] sm:$0xf]
        %v427 = vld [vmem:[%s410 + $0x3c] sm:$0xf]
        %v428 = vld [vmem:[%s410 + $0x40] sm:$0xf]
        %v429 = vld [vmem:[%s410 + $0x44] sm:$0xf]
        %v430 = vld [vmem:[%s410 + $0x48] sm:$0xf]
        %v431 = vld [vmem:[%s410 + $0x4c] sm:$0xf]
        %v432 = vld [vmem:[%s410 + $0x50] sm:$0xf]
        %v433 = vld [vmem:[%s410 + $0x54] sm:$0xf]
        %v434 = vld [vmem:[%s410 + $0x58] sm:$0xf]
        %v435 = vld [vmem:[%s410 + $0x5c] sm:$0xf]
        %v436 = vld [vmem:[%s410 + $0x60] sm:$0xf]
        %v437 = vld [vmem:[%s410 + $0x64] sm:$0xf]
        %v438 = vld [vmem:[%s410 + $0x68] sm:$0xf]
        %v439 = vld [vmem:[%s410 + $0x6c] sm:$0xf]
        %v440 = vld [vmem:[%s410 + $0x70] sm:$0xf]
        %v441 = vld [vmem:[%s410 + $0x74] sm:$0xf]
        %v442 = vld [vmem:[%s410 + $0x78] sm:$0xf]
        %v443 = vld [vmem:[%s410 + $0x7c] sm:$0xf]
        %v444 = vld [vmem:[%s3] sm:$0x1]
        %v446 = vperm.slane %v444, 0
        %v448 = vadd.f32 %v446, 0.0
        %v449 = vld [vmem:[%s1] sm:$0xff]
        %v450 = vld [vmem:[%s1 + $0x8] sm:$0xff]
        %v451 = vld [vmem:[%s1 + $0x10] sm:$0xff]
        %v452 = vld [vmem:[%s1 + $0x18] sm:$0xff]
        %v453 = vld [vmem:[%s1 + $0x20] sm:$0xff]
        %v454 = vld [vmem:[%s1 + $0x28] sm:$0xff]
        %v455 = vld [vmem:[%s1 + $0x30] sm:$0xff]
        %v456 = vld [vmem:[%s1 + $0x38] sm:$0xff]
        %v457 = vld [vmem:[%s1 + $0x40] sm:$0xff]
        %v458 = vld [vmem:[%s1 + $0x48] sm:$0xff]
        %v459 = vld [vmem:[%s1 + $0x50] sm:$0xff]
        %v460 = vld [vmem:[%s1 + $0x58] sm:$0xff]
        %v461 = vld [vmem:[%s1 + $0x60] sm:$0xff]
        %v462 = vld [vmem:[%s1 + $0x68] sm:$0xff]
        %v463 = vld [vmem:[%s1 + $0x70] sm:$0xff]
        %v464 = vld [vmem:[%s1 + $0x78] sm:$0xff]
        %v465 = vld [vmem:[%s1 + $0x80] sm:$0xff]
        %v466 = vld [vmem:[%s1 + $0x88] sm:$0xff]
        %v467 = vld [vmem:[%s1 + $0x90] sm:$0xff]
        %v468 = vld [vmem:[%s1 + $0x98] sm:$0xff]
        %v469 = vld [vmem:[%s1 + $0xa0] sm:$0xff]
        %v470 = vld [vmem:[%s1 + $0xa8] sm:$0xff]
        %v471 = vld [vmem:[%s1 + $0xb0] sm:$0xff]
        %v472 = vld [vmem:[%s1 + $0xb8] sm:$0xff]
        %v473 = vld [vmem:[%s1 + $0xc0] sm:$0xff]
        %v474 = vld [vmem:[%s1 + $0xc8] sm:$0xff]
        %v475 = vld [vmem:[%s1 + $0xd0] sm:$0xff]
        %v476 = vld [vmem:[%s1 + $0xd8] sm:$0xff]
        %v477 = vld [vmem:[%s1 + $0xe0] sm:$0xff]
        %v478 = vld [vmem:[%s1 + $0xe8] sm:$0xff]
        %v479 = vld [vmem:[%s1 + $0xf0] sm:$0xff]
        %v480 = vld [vmem:[%s1 + $0xf8] sm:$0xff]
        %v513 = vunpack.c.l.b16 %v449
        %v514 = vunpack.c.h.b16 %v449
        %v515 = vunpack.c.l.b16 %v450
        %v516 = vunpack.c.h.b16 %v450
        %v517 = vunpack.c.l.b16 %v451
        %v518 = vunpack.c.h.b16 %v451
        %v519 = vunpack.c.l.b16 %v452
        %v520 = vunpack.c.h.b16 %v452
        %v521 = vunpack.c.l.b16 %v453
        %v522 = vunpack.c.h.b16 %v453
        %v523 = vunpack.c.l.b16 %v454
        %v524 = vunpack.c.h.b16 %v454
        %v525 = vunpack.c.l.b16 %v455
        %v526 = vunpack.c.h.b16 %v455
        %v527 = vunpack.c.l.b16 %v456
        %v528 = vunpack.c.h.b16 %v456
        %v529 = vunpack.c.l.b16 %v457
        %v530 = vunpack.c.h.b16 %v457
        %v531 = vunpack.c.l.b16 %v458
        %v532 = vunpack.c.h.b16 %v458
        %v533 = vunpack.c.l.b16 %v459
        %v534 = vunpack.c.h.b16 %v459
        %v535 = vunpack.c.l.b16 %v460
        %v536 = vunpack.c.h.b16 %v460
        %v537 = vunpack.c.l.b16 %v461
        %v538 = vunpack.c.h.b16 %v461
        %v539 = vunpack.c.l.b16 %v462
        %v540 = vunpack.c.h.b16 %v462
        %v541 = vunpack.c.l.b16 %v463
        %v542 = vunpack.c.h.b16 %v463
        %v543 = vunpack.c.l.b16 %v464
        %v544 = vunpack.c.h.b16 %v464
        %v545 = vunpack.c.l.b16 %v465
        %v546 = vunpack.c.h.b16 %v465
        %v547 = vunpack.c.l.b16 %v466
        %v548 = vunpack.c.h.b16 %v466
        %v549 = vunpack.c.l.b16 %v467
        %v550 = vunpack.c.h.b16 %v467
        %v551 = vunpack.c.l.b16 %v468
        %v552 = vunpack.c.h.b16 %v468
        %v553 = vunpack.c.l.b16 %v469
        %v554 = vunpack.c.h.b16 %v469
        %v555 = vunpack.c.l.b16 %v470
        %v556 = vunpack.c.h.b16 %v470
        %v557 = vunpack.c.l.b16 %v471
        %v558 = vunpack.c.h.b16 %v471
        %v559 = vunpack.c.l.b16 %v472
        %v560 = vunpack.c.h.b16 %v472
        %v561 = vunpack.c.l.b16 %v473
        %v562 = vunpack.c.h.b16 %v473
        %v563 = vunpack.c.l.b16 %v474
        %v564 = vunpack.c.h.b16 %v474
        %v565 = vunpack.c.l.b16 %v475
        %v566 = vunpack.c.h.b16 %v475
        %v567 = vunpack.c.l.b16 %v476
        %v568 = vunpack.c.h.b16 %v476
        %v569 = vunpack.c.l.b16 %v477
        %v570 = vunpack.c.h.b16 %v477
        %v571 = vunpack.c.l.b16 %v478
        %v572 = vunpack.c.h.b16 %v478
        %v573 = vunpack.c.l.b16 %v479
        %v574 = vunpack.c.h.b16 %v479
        %v575 = vunpack.c.l.b16 %v480
        %v576 = vunpack.c.h.b16 %v480
        %v577 = vpack.c.b16 %v515, %v513
        %v578 = vpack.c.b16 %v516, %v514
        %v579 = vpack.c.b16 %v519, %v517
        %v580 = vpack.c.b16 %v520, %v518
        %v581 = vpack.c.b16 %v523, %v521
        %v582 = vpack.c.b16 %v524, %v522
        %v583 = vpack.c.b16 %v527, %v525
        %v584 = vpack.c.b16 %v528, %v526
        %v585 = vpack.c.b16 %v531, %v529
        %v586 = vpack.c.b16 %v532, %v530
        %v587 = vpack.c.b16 %v535, %v533
        %v588 = vpack.c.b16 %v536, %v534
        %v589 = vpack.c.b16 %v539, %v537
        %v590 = vpack.c.b16 %v540, %v538
        %v591 = vpack.c.b16 %v543, %v541
        %v592 = vpack.c.b16 %v544, %v542
        %v593 = vpack.c.b16 %v547, %v545
        %v594 = vpack.c.b16 %v548, %v546
        %v595 = vpack.c.b16 %v551, %v549
        %v596 = vpack.c.b16 %v552, %v550
        %v597 = vpack.c.b16 %v555, %v553
        %v598 = vpack.c.b16 %v556, %v554
        %v599 = vpack.c.b16 %v559, %v557
        %v600 = vpack.c.b16 %v560, %v558
        %v601 = vpack.c.b16 %v563, %v561
        %v602 = vpack.c.b16 %v564, %v562
        %v603 = vpack.c.b16 %v567, %v565
        %v604 = vpack.c.b16 %v568, %v566
        %v605 = vpack.c.b16 %v571, %v569
        %v606 = vpack.c.b16 %v572, %v570
        %v607 = vpack.c.b16 %v575, %v573
        %v608 = vpack.c.b16 %v576, %v574
        %v673 = vunpack.c.l.b16 %v412
        %v674 = vunpack.c.l.b16 %v413
        %v675 = vunpack.c.l.b16 %v414
        %v676 = vunpack.c.l.b16 %v415
        %v677 = vunpack.c.l.b16 %v416
        %v678 = vunpack.c.l.b16 %v417
        %v679 = vunpack.c.l.b16 %v418
        %v680 = vunpack.c.l.b16 %v419
        %v681 = vunpack.c.l.b16 %v420
        %v682 = vunpack.c.l.b16 %v421
        %v683 = vunpack.c.l.b16 %v422
        %v684 = vunpack.c.l.b16 %v423
        %v685 = vunpack.c.l.b16 %v424
        %v686 = vunpack.c.l.b16 %v425
        %v687 = vunpack.c.l.b16 %v426
        %v688 = vunpack.c.l.b16 %v427
        %v689 = vunpack.c.l.b16 %v428
        %v690 = vunpack.c.l.b16 %v429
        %v691 = vunpack.c.l.b16 %v430
        %v692 = vunpack.c.l.b16 %v431
        %v693 = vunpack.c.l.b16 %v432
        %v694 = vunpack.c.l.b16 %v433
        %v695 = vunpack.c.l.b16 %v434
        %v696 = vunpack.c.l.b16 %v435
        %v697 = vunpack.c.l.b16 %v436
        %v698 = vunpack.c.l.b16 %v437
        %v699 = vunpack.c.l.b16 %v438
        %v700 = vunpack.c.l.b16 %v439
        %v701 = vunpack.c.l.b16 %v440
        %v702 = vunpack.c.l.b16 %v441
        %v703 = vunpack.c.l.b16 %v442
        %v704 = vunpack.c.l.b16 %v443
        %v705 = vpack.c.b16 %v674, %v673
        %v706 = vpack.c.b16 %v676, %v675
        %v707 = vpack.c.b16 %v678, %v677
        %v708 = vpack.c.b16 %v680, %v679
        %v709 = vpack.c.b16 %v682, %v681
        %v710 = vpack.c.b16 %v684, %v683
        %v711 = vpack.c.b16 %v686, %v685
        %v712 = vpack.c.b16 %v688, %v687
        %v713 = vpack.c.b16 %v690, %v689
        %v714 = vpack.c.b16 %v692, %v691
        %v715 = vpack.c.b16 %v694, %v693
        %v716 = vpack.c.b16 %v696, %v695
        %v717 = vpack.c.b16 %v698, %v697
        %v718 = vpack.c.b16 %v700, %v699
        %v719 = vpack.c.b16 %v702, %v701
        %v720 = vpack.c.b16 %v704, %v703
        %737 = vmatpush.bf16.msra.mxu0 %v712
        %738 = vmatpush.bf16.msra.mxu0 %v711
        %739 = vmatpush.bf16.msra.mxu0 %v710
        %740 = vmatpush.bf16.msra.mxu0 %v709
        %741 = vmatpush.bf16.msra.mxu0 %v708
        %742 = vmatpush.bf16.msra.mxu0 %v707
        %743 = vmatpush.bf16.msra.mxu0 %v706
        %744 = vmatpush.bf16.msra.mxu0 %v705
        %745 = vmatmul.bf16.gmra.mxu0 %v577
        %v746 = vpop.f32.mrf.mxu0
        %v747 = vadd.f32 0.0, %v746
        %v748 = vpop.f32.mrf.mxu0
        %v749 = vadd.f32 0.0, %v748
        %750 = vmatmul.bf16.gmra.mxu0 %v579
        %v751 = vpop.f32.mrf.mxu0
        %v752 = vadd.f32 0.0, %v751
        %v753 = vpop.f32.mrf.mxu0
        %v754 = vadd.f32 0.0, %v753
        %755 = vmatmul.bf16.gmra.mxu0 %v581
        %v756 = vpop.f32.mrf.mxu0
        %v757 = vadd.f32 0.0, %v756
        %v758 = vpop.f32.mrf.mxu0
        %v759 = vadd.f32 0.0, %v758
        %760 = vmatmul.bf16.gmra.mxu0 %v583
        %v761 = vpop.f32.mrf.mxu0
        %v762 = vadd.f32 0.0, %v761
        %v763 = vpop.f32.mrf.mxu0
        %v764 = vadd.f32 0.0, %v763
        %765 = vmatmul.bf16.gmra.mxu0 %v585
        %v766 = vpop.f32.mrf.mxu0
        %v767 = vadd.f32 0.0, %v766
        %v768 = vpop.f32.mrf.mxu0
        %v769 = vadd.f32 0.0, %v768
        %770 = vmatmul.bf16.gmra.mxu0 %v587
        %v771 = vpop.f32.mrf.mxu0
        %v772 = vadd.f32 0.0, %v771
        %v773 = vpop.f32.mrf.mxu0
        %v774 = vadd.f32 0.0, %v773
        %775 = vmatmul.bf16.gmra.mxu0 %v589
        %v776 = vpop.f32.mrf.mxu0
        %v777 = vadd.f32 0.0, %v776
        %v778 = vpop.f32.mrf.mxu0
        %v779 = vadd.f32 0.0, %v778
        %780 = vmatmul.bf16.gmra.mxu0 %v591
        %v781 = vpop.f32.mrf.mxu0
        %v782 = vadd.f32 0.0, %v781
        %v783 = vpop.f32.mrf.mxu0
        %v784 = vadd.f32 0.0, %v783
        %785 = vmatmul.bf16.gmra.mxu0 %v593
        %v786 = vpop.f32.mrf.mxu0
        %v787 = vadd.f32 0.0, %v786
        %v788 = vpop.f32.mrf.mxu0
        %v789 = vadd.f32 0.0, %v788
        %790 = vmatmul.bf16.gmra.mxu0 %v595
        %v791 = vpop.f32.mrf.mxu0
        %v792 = vadd.f32 0.0, %v791
        %v793 = vpop.f32.mrf.mxu0
        %v794 = vadd.f32 0.0, %v793
        %795 = vmatmul.bf16.gmra.mxu0 %v597
        %v796 = vpop.f32.mrf.mxu0
        %v797 = vadd.f32 0.0, %v796
        %v798 = vpop.f32.mrf.mxu0
        %v799 = vadd.f32 0.0, %v798
        %800 = vmatmul.bf16.gmra.mxu0 %v599
        %v801 = vpop.f32.mrf.mxu0
        %v802 = vadd.f32 0.0, %v801
        %v803 = vpop.f32.mrf.mxu0
        %v804 = vadd.f32 0.0, %v803
        %805 = vmatmul.bf16.gmra.mxu0 %v601
        %v806 = vpop.f32.mrf.mxu0
        %v807 = vadd.f32 0.0, %v806
        %v808 = vpop.f32.mrf.mxu0
        %v809 = vadd.f32 0.0, %v808
        %810 = vmatmul.bf16.gmra.mxu0 %v603
        %v811 = vpop.f32.mrf.mxu0
        %v812 = vadd.f32 0.0, %v811
        %v813 = vpop.f32.mrf.mxu0
        %v814 = vadd.f32 0.0, %v813
        %815 = vmatmul.bf16.gmra.mxu0 %v605
        %v816 = vpop.f32.mrf.mxu0
        %v817 = vadd.f32 0.0, %v816
        %v818 = vpop.f32.mrf.mxu0
        %v819 = vadd.f32 0.0, %v818
        %820 = vmatmul.bf16.gmra.mxu0 %v607
        %v821 = vpop.f32.mrf.mxu0
        %v822 = vadd.f32 0.0, %v821
        %v823 = vpop.f32.mrf.mxu0
        %v824 = vadd.f32 0.0, %v823
        %825 = vdwg.mxu0
        %826 = vmatpush.bf16.msra.mxu0 %v720
        %827 = vmatpush.bf16.msra.mxu0 %v719
        %828 = vmatpush.bf16.msra.mxu0 %v718
        %829 = vmatpush.bf16.msra.mxu0 %v717
        %830 = vmatpush.bf16.msra.mxu0 %v716
        %831 = vmatpush.bf16.msra.mxu0 %v715
        %832 = vmatpush.bf16.msra.mxu0 %v714
        %833 = vmatpush.bf16.msra.mxu0 %v713
        %834 = vmatmul.bf16.gmra.mxu0 %v578
        %v835 = vpop.f32.mrf.mxu0
        %v836 = vadd.f32 %v747, %v835
        %v837 = vpop.f32.mrf.mxu0
        %v838 = vadd.f32 %v749, %v837
        %839 = vmatmul.bf16.gmra.mxu0 %v580
        %v840 = vpop.f32.mrf.mxu0
        %v841 = vadd.f32 %v752, %v840
        %v842 = vpop.f32.mrf.mxu0
        %v843 = vadd.f32 %v754, %v842
        %844 = vmatmul.bf16.gmra.mxu0 %v582
        %v845 = vpop.f32.mrf.mxu0
        %v846 = vadd.f32 %v757, %v845
        %v847 = vpop.f32.mrf.mxu0
        %v848 = vadd.f32 %v759, %v847
        %849 = vmatmul.bf16.gmra.mxu0 %v584
        %v850 = vpop.f32.mrf.mxu0
        %v851 = vadd.f32 %v762, %v850
        %v852 = vpop.f32.mrf.mxu0
        %v853 = vadd.f32 %v764, %v852
        %854 = vmatmul.bf16.gmra.mxu0 %v586
        %v855 = vpop.f32.mrf.mxu0
        %v856 = vadd.f32 %v767, %v855
        %v857 = vpop.f32.mrf.mxu0
        %v858 = vadd.f32 %v769, %v857
        %859 = vmatmul.bf16.gmra.mxu0 %v588
        %v860 = vpop.f32.mrf.mxu0
        %v861 = vadd.f32 %v772, %v860
        %v862 = vpop.f32.mrf.mxu0
        %v863 = vadd.f32 %v774, %v862
        %864 = vmatmul.bf16.gmra.mxu0 %v590
        %v865 = vpop.f32.mrf.mxu0
        %v866 = vadd.f32 %v777, %v865
        %v867 = vpop.f32.mrf.mxu0
        %v868 = vadd.f32 %v779, %v867
        %869 = vmatmul.bf16.gmra.mxu0 %v592
        %v870 = vpop.f32.mrf.mxu0
        %v871 = vadd.f32 %v782, %v870
        %v872 = vpop.f32.mrf.mxu0
        %v873 = vadd.f32 %v784, %v872
        %874 = vmatmul.bf16.gmra.mxu0 %v594
        %v875 = vpop.f32.mrf.mxu0
        %v876 = vadd.f32 %v787, %v875
        %v877 = vpop.f32.mrf.mxu0
        %v878 = vadd.f32 %v789, %v877
        %879 = vmatmul.bf16.gmra.mxu0 %v596
        %v880 = vpop.f32.mrf.mxu0
        %v881 = vadd.f32 %v792, %v880
        %v882 = vpop.f32.mrf.mxu0
        %v883 = vadd.f32 %v794, %v882
        %884 = vmatmul.bf16.gmra.mxu0 %v598
        %v885 = vpop.f32.mrf.mxu0
        %v886 = vadd.f32 %v797, %v885
        %v887 = vpop.f32.mrf.mxu0
        %v888 = vadd.f32 %v799, %v887
        %889 = vmatmul.bf16.gmra.mxu0 %v600
        %v890 = vpop.f32.mrf.mxu0
        %v891 = vadd.f32 %v802, %v890
        %v892 = vpop.f32.mrf.mxu0
        %v893 = vadd.f32 %v804, %v892
        %894 = vmatmul.bf16.gmra.mxu0 %v602
        %v895 = vpop.f32.mrf.mxu0
        %v896 = vadd.f32 %v807, %v895
        %v897 = vpop.f32.mrf.mxu0
        %v898 = vadd.f32 %v809, %v897
        %899 = vmatmul.bf16.gmra.mxu0 %v604
        %v900 = vpop.f32.mrf.mxu0
        %v901 = vadd.f32 %v812, %v900
        %v902 = vpop.f32.mrf.mxu0
        %v903 = vadd.f32 %v814, %v902
        %904 = vmatmul.bf16.gmra.mxu0 %v606
        %v905 = vpop.f32.mrf.mxu0
        %v906 = vadd.f32 %v817, %v905
        %v907 = vpop.f32.mrf.mxu0
        %v908 = vadd.f32 %v819, %v907
        %909 = vmatmul.bf16.gmra.mxu0 %v608
        %v910 = vpop.f32.mrf.mxu0
        %v911 = vadd.f32 %v822, %v910
        %v912 = vpop.f32.mrf.mxu0
        %v913 = vadd.f32 %v824, %v912
        %914 = vdwg.mxu0
        %v915 = vpack.c.bf16 %v838, %v836
        %v916 = vpack.c.bf16 %v843, %v841
        %v917 = vpack.c.bf16 %v848, %v846
        %v918 = vpack.c.bf16 %v853, %v851
        %v919 = vpack.c.bf16 %v858, %v856
        %v920 = vpack.c.bf16 %v863, %v861
        %v921 = vpack.c.bf16 %v868, %v866
        %v922 = vpack.c.bf16 %v873, %v871
        %v923 = vpack.c.bf16 %v878, %v876
        %v924 = vpack.c.bf16 %v883, %v881
        %v925 = vpack.c.bf16 %v888, %v886
        %v926 = vpack.c.bf16 %v893, %v891
        %v927 = vpack.c.bf16 %v898, %v896
        %v928 = vpack.c.bf16 %v903, %v901
        %v929 = vpack.c.bf16 %v908, %v906
        %v930 = vpack.c.bf16 %v913, %v911
        %v931 = vld [vmem:[%s2] sm:$0xf]
        %v932 = vld [vmem:[%s2 + $0x4] sm:$0xf]
        %v933 = vld [vmem:[%s2 + $0x8] sm:$0xf]
        %v934 = vld [vmem:[%s2 + $0xc] sm:$0xf]
        %v935 = vld [vmem:[%s2 + $0x10] sm:$0xf]
        %v936 = vld [vmem:[%s2 + $0x14] sm:$0xf]
        %v937 = vld [vmem:[%s2 + $0x18] sm:$0xf]
        %v938 = vld [vmem:[%s2 + $0x1c] sm:$0xf]
        %v939 = vld [vmem:[%s2 + $0x20] sm:$0xf]
        %v940 = vld [vmem:[%s2 + $0x24] sm:$0xf]
        %v941 = vld [vmem:[%s2 + $0x28] sm:$0xf]
        %v942 = vld [vmem:[%s2 + $0x2c] sm:$0xf]
        %v943 = vld [vmem:[%s2 + $0x30] sm:$0xf]
        %v944 = vld [vmem:[%s2 + $0x34] sm:$0xf]
        %v945 = vld [vmem:[%s2 + $0x38] sm:$0xf]
        %v946 = vld [vmem:[%s2 + $0x3c] sm:$0xf]
        %v963 = vunpack.c.l.b16 %v931
        %v964 = vunpack.c.l.b16 %v932
        %v965 = vunpack.c.l.b16 %v933
        %v966 = vunpack.c.l.b16 %v934
        %v967 = vunpack.c.l.b16 %v935
        %v968 = vunpack.c.l.b16 %v936
        %v969 = vunpack.c.l.b16 %v937
        %v970 = vunpack.c.l.b16 %v938
        %v971 = vunpack.c.l.b16 %v939
        %v972 = vunpack.c.l.b16 %v940
        %v973 = vunpack.c.l.b16 %v941
        %v974 = vunpack.c.l.b16 %v942
        %v975 = vunpack.c.l.b16 %v943
        %v976 = vunpack.c.l.b16 %v944
        %v977 = vunpack.c.l.b16 %v945
        %v978 = vunpack.c.l.b16 %v946
        %v979 = vpack.c.b16 %v964, %v963
        %v980 = vpack.c.b16 %v966, %v965
        %v981 = vpack.c.b16 %v968, %v967
        %v982 = vpack.c.b16 %v970, %v969
        %v983 = vpack.c.b16 %v972, %v971
        %v984 = vpack.c.b16 %v974, %v973
        %v985 = vpack.c.b16 %v976, %v975
        %v986 = vpack.c.b16 %v978, %v977
        %995 = vmatpush.bf16.msra.mxu0 %v986
        %996 = vmatpush.bf16.msra.mxu0 %v985
        %997 = vmatpush.bf16.msra.mxu0 %v984
        %998 = vmatpush.bf16.msra.mxu0 %v983
        %999 = vmatpush.bf16.msra.mxu0 %v982
        %1000 = vmatpush.bf16.msra.mxu0 %v981
        %1001 = vmatpush.bf16.msra.mxu0 %v980
        %1002 = vmatpush.bf16.msra.mxu0 %v979
        %1003 = vmatmul.bf16.gmra.mxu0 %v915
        %v1004 = vpop.f32.mrf.mxu0
        %v1005 = vadd.f32 0.0, %v1004
        %v1006 = vpop.f32.mrf.mxu0
        %v1007 = vadd.f32 0.0, %v1006
        %1008 = vmatmul.bf16.gmra.mxu0 %v916
        %v1009 = vpop.f32.mrf.mxu0
        %v1010 = vadd.f32 0.0, %v1009
        %v1011 = vpop.f32.mrf.mxu0
        %v1012 = vadd.f32 0.0, %v1011
        %1013 = vmatmul.bf16.gmra.mxu0 %v917
        %v1014 = vpop.f32.mrf.mxu0
        %v1015 = vadd.f32 0.0, %v1014
        %v1016 = vpop.f32.mrf.mxu0
        %v1017 = vadd.f32 0.0, %v1016
        %1018 = vmatmul.bf16.gmra.mxu0 %v918
        %v1019 = vpop.f32.mrf.mxu0
        %v1020 = vadd.f32 0.0, %v1019
        %v1021 = vpop.f32.mrf.mxu0
        %v1022 = vadd.f32 0.0, %v1021
        %1023 = vmatmul.bf16.gmra.mxu0 %v919
        %v1024 = vpop.f32.mrf.mxu0
        %v1025 = vadd.f32 0.0, %v1024
        %v1026 = vpop.f32.mrf.mxu0
        %v1027 = vadd.f32 0.0, %v1026
        %1028 = vmatmul.bf16.gmra.mxu0 %v920
        %v1029 = vpop.f32.mrf.mxu0
        %v1030 = vadd.f32 0.0, %v1029
        %v1031 = vpop.f32.mrf.mxu0
        %v1032 = vadd.f32 0.0, %v1031
        %1033 = vmatmul.bf16.gmra.mxu0 %v921
        %v1034 = vpop.f32.mrf.mxu0
        %v1035 = vadd.f32 0.0, %v1034
        %v1036 = vpop.f32.mrf.mxu0
        %v1037 = vadd.f32 0.0, %v1036
        %1038 = vmatmul.bf16.gmra.mxu0 %v922
        %v1039 = vpop.f32.mrf.mxu0
        %v1040 = vadd.f32 0.0, %v1039
        %v1041 = vpop.f32.mrf.mxu0
        %v1042 = vadd.f32 0.0, %v1041
        %1043 = vmatmul.bf16.gmra.mxu0 %v923
        %v1044 = vpop.f32.mrf.mxu0
        %v1045 = vadd.f32 0.0, %v1044
        %v1046 = vpop.f32.mrf.mxu0
        %v1047 = vadd.f32 0.0, %v1046
        %1048 = vmatmul.bf16.gmra.mxu0 %v924
        %v1049 = vpop.f32.mrf.mxu0
        %v1050 = vadd.f32 0.0, %v1049
        %v1051 = vpop.f32.mrf.mxu0
        %v1052 = vadd.f32 0.0, %v1051
        %1053 = vmatmul.bf16.gmra.mxu0 %v925
        %v1054 = vpop.f32.mrf.mxu0
        %v1055 = vadd.f32 0.0, %v1054
        %v1056 = vpop.f32.mrf.mxu0
        %v1057 = vadd.f32 0.0, %v1056
        %1058 = vmatmul.bf16.gmra.mxu0 %v926
        %v1059 = vpop.f32.mrf.mxu0
        %v1060 = vadd.f32 0.0, %v1059
        %v1061 = vpop.f32.mrf.mxu0
        %v1062 = vadd.f32 0.0, %v1061
        %1063 = vmatmul.bf16.gmra.mxu0 %v927
        %v1064 = vpop.f32.mrf.mxu0
        %v1065 = vadd.f32 0.0, %v1064
        %v1066 = vpop.f32.mrf.mxu0
        %v1067 = vadd.f32 0.0, %v1066
        %1068 = vmatmul.bf16.gmra.mxu0 %v928
        %v1069 = vpop.f32.mrf.mxu0
        %v1070 = vadd.f32 0.0, %v1069
        %v1071 = vpop.f32.mrf.mxu0
        %v1072 = vadd.f32 0.0, %v1071
        %1073 = vmatmul.bf16.gmra.mxu0 %v929
        %v1074 = vpop.f32.mrf.mxu0
        %v1075 = vadd.f32 0.0, %v1074
        %v1076 = vpop.f32.mrf.mxu0
        %v1077 = vadd.f32 0.0, %v1076
        %1078 = vmatmul.bf16.gmra.mxu0 %v930
        %v1079 = vpop.f32.mrf.mxu0
        %v1080 = vadd.f32 0.0, %v1079
        %v1081 = vpop.f32.mrf.mxu0
        %v1082 = vadd.f32 0.0, %v1081
        %1083 = vdwg.mxu0
        %v1084 = vadd.f32 %v448, %v1005
        %v1085 = vadd.f32 %v448, %v1007
        %v1086 = vadd.f32 %v448, %v1010
        %v1087 = vadd.f32 %v448, %v1012
        %v1088 = vadd.f32 %v448, %v1015
        %v1089 = vadd.f32 %v448, %v1017
        %v1090 = vadd.f32 %v448, %v1020
        %v1091 = vadd.f32 %v448, %v1022
        %v1092 = vadd.f32 %v448, %v1025
        %v1093 = vadd.f32 %v448, %v1027
        %v1094 = vadd.f32 %v448, %v1030
        %v1095 = vadd.f32 %v448, %v1032
        %v1096 = vadd.f32 %v448, %v1035
        %v1097 = vadd.f32 %v448, %v1037
        %v1098 = vadd.f32 %v448, %v1040
        %v1099 = vadd.f32 %v448, %v1042
        %v1100 = vadd.f32 %v448, %v1045
        %v1101 = vadd.f32 %v448, %v1047
        %v1102 = vadd.f32 %v448, %v1050
        %v1103 = vadd.f32 %v448, %v1052
        %v1104 = vadd.f32 %v448, %v1055
        %v1105 = vadd.f32 %v448, %v1057
        %v1106 = vadd.f32 %v448, %v1060
        %v1107 = vadd.f32 %v448, %v1062
        %v1108 = vadd.f32 %v448, %v1065
        %v1109 = vadd.f32 %v448, %v1067
        %v1110 = vadd.f32 %v448, %v1070
        %v1111 = vadd.f32 %v448, %v1072
        %v1112 = vadd.f32 %v448, %v1075
        %v1113 = vadd.f32 %v448, %v1077
        %v1114 = vadd.f32 %v448, %v1080
        %v1115 = vadd.f32 %v448, %v1082
        %s1116 = scalar_lea.vmem %s1, 256
        %v1117 = vld [vmem:[%s1116] sm:$0xff]
        %v1118 = vld [vmem:[%s1116 + $0x8] sm:$0xff]
        %v1119 = vld [vmem:[%s1116 + $0x10] sm:$0xff]
        %v1120 = vld [vmem:[%s1116 + $0x18] sm:$0xff]
        %v1121 = vld [vmem:[%s1116 + $0x20] sm:$0xff]
        %v1122 = vld [vmem:[%s1116 + $0x28] sm:$0xff]
        %v1123 = vld [vmem:[%s1116 + $0x30] sm:$0xff]
        %v1124 = vld [vmem:[%s1116 + $0x38] sm:$0xff]
        %v1125 = vld [vmem:[%s1116 + $0x40] sm:$0xff]
        %v1126 = vld [vmem:[%s1116 + $0x48] sm:$0xff]
        %v1127 = vld [vmem:[%s1116 + $0x50] sm:$0xff]
        %v1128 = vld [vmem:[%s1116 + $0x58] sm:$0xff]
        %v1129 = vld [vmem:[%s1116 + $0x60] sm:$0xff]
        %v1130 = vld [vmem:[%s1116 + $0x68] sm:$0xff]
        %v1131 = vld [vmem:[%s1116 + $0x70] sm:$0xff]
        %v1132 = vld [vmem:[%s1116 + $0x78] sm:$0xff]
        %v1133 = vld [vmem:[%s1116 + $0x80] sm:$0xff]
        %v1134 = vld [vmem:[%s1116 + $0x88] sm:$0xff]
        %v1135 = vld [vmem:[%s1116 + $0x90] sm:$0xff]
        %v1136 = vld [vmem:[%s1116 + $0x98] sm:$0xff]
        %v1137 = vld [vmem:[%s1116 + $0xa0] sm:$0xff]
        %v1138 = vld [vmem:[%s1116 + $0xa8] sm:$0xff]
        %v1139 = vld [vmem:[%s1116 + $0xb0] sm:$0xff]
        %v1140 = vld [vmem:[%s1116 + $0xb8] sm:$0xff]
        %v1141 = vld [vmem:[%s1116 + $0xc0] sm:$0xff]
        %v1142 = vld [vmem:[%s1116 + $0xc8] sm:$0xff]
        %v1143 = vld [vmem:[%s1116 + $0xd0] sm:$0xff]
        %v1144 = vld [vmem:[%s1116 + $0xd8] sm:$0xff]
        %v1145 = vld [vmem:[%s1116 + $0xe0] sm:$0xff]
        %v1146 = vld [vmem:[%s1116 + $0xe8] sm:$0xff]
        %v1147 = vld [vmem:[%s1116 + $0xf0] sm:$0xff]
        %v1148 = vld [vmem:[%s1116 + $0xf8] sm:$0xff]
        %v1181 = vunpack.c.l.b16 %v1117
        %v1182 = vunpack.c.h.b16 %v1117
        %v1183 = vunpack.c.l.b16 %v1118
        %v1184 = vunpack.c.h.b16 %v1118
        %v1185 = vunpack.c.l.b16 %v1119
        %v1186 = vunpack.c.h.b16 %v1119
        %v1187 = vunpack.c.l.b16 %v1120
        %v1188 = vunpack.c.h.b16 %v1120
        %v1189 = vunpack.c.l.b16 %v1121
        %v1190 = vunpack.c.h.b16 %v1121
        %v1191 = vunpack.c.l.b16 %v1122
        %v1192 = vunpack.c.h.b16 %v1122
        %v1193 = vunpack.c.l.b16 %v1123
        %v1194 = vunpack.c.h.b16 %v1123
        %v1195 = vunpack.c.l.b16 %v1124
        %v1196 = vunpack.c.h.b16 %v1124
        %v1197 = vunpack.c.l.b16 %v1125
        %v1198 = vunpack.c.h.b16 %v1125
        %v1199 = vunpack.c.l.b16 %v1126
        %v1200 = vunpack.c.h.b16 %v1126
        %v1201 = vunpack.c.l.b16 %v1127
        %v1202 = vunpack.c.h.b16 %v1127
        %v1203 = vunpack.c.l.b16 %v1128
        %v1204 = vunpack.c.h.b16 %v1128
        %v1205 = vunpack.c.l.b16 %v1129
        %v1206 = vunpack.c.h.b16 %v1129
        %v1207 = vunpack.c.l.b16 %v1130
        %v1208 = vunpack.c.h.b16 %v1130
        %v1209 = vunpack.c.l.b16 %v1131
        %v1210 = vunpack.c.h.b16 %v1131
        %v1211 = vunpack.c.l.b16 %v1132
        %v1212 = vunpack.c.h.b16 %v1132
        %v1213 = vunpack.c.l.b16 %v1133
        %v1214 = vunpack.c.h.b16 %v1133
        %v1215 = vunpack.c.l.b16 %v1134
        %v1216 = vunpack.c.h.b16 %v1134
        %v1217 = vunpack.c.l.b16 %v1135
        %v1218 = vunpack.c.h.b16 %v1135
        %v1219 = vunpack.c.l.b16 %v1136
        %v1220 = vunpack.c.h.b16 %v1136
        %v1221 = vunpack.c.l.b16 %v1137
        %v1222 = vunpack.c.h.b16 %v1137
        %v1223 = vunpack.c.l.b16 %v1138
        %v1224 = vunpack.c.h.b16 %v1138
        %v1225 = vunpack.c.l.b16 %v1139
        %v1226 = vunpack.c.h.b16 %v1139
        %v1227 = vunpack.c.l.b16 %v1140
        %v1228 = vunpack.c.h.b16 %v1140
        %v1229 = vunpack.c.l.b16 %v1141
        %v1230 = vunpack.c.h.b16 %v1141
        %v1231 = vunpack.c.l.b16 %v1142
        %v1232 = vunpack.c.h.b16 %v1142
        %v1233 = vunpack.c.l.b16 %v1143
        %v1234 = vunpack.c.h.b16 %v1143
        %v1235 = vunpack.c.l.b16 %v1144
        %v1236 = vunpack.c.h.b16 %v1144
        %v1237 = vunpack.c.l.b16 %v1145
        %v1238 = vunpack.c.h.b16 %v1145
        %v1239 = vunpack.c.l.b16 %v1146
        %v1240 = vunpack.c.h.b16 %v1146
        %v1241 = vunpack.c.l.b16 %v1147
        %v1242 = vunpack.c.h.b16 %v1147
        %v1243 = vunpack.c.l.b16 %v1148
        %v1244 = vunpack.c.h.b16 %v1148
        %v1245 = vpack.c.b16 %v1183, %v1181
        %v1246 = vpack.c.b16 %v1184, %v1182
        %v1247 = vpack.c.b16 %v1187, %v1185
        %v1248 = vpack.c.b16 %v1188, %v1186
        %v1249 = vpack.c.b16 %v1191, %v1189
        %v1250 = vpack.c.b16 %v1192, %v1190
        %v1251 = vpack.c.b16 %v1195, %v1193
        %v1252 = vpack.c.b16 %v1196, %v1194
        %v1253 = vpack.c.b16 %v1199, %v1197
        %v1254 = vpack.c.b16 %v1200, %v1198
        %v1255 = vpack.c.b16 %v1203, %v1201
        %v1256 = vpack.c.b16 %v1204, %v1202
        %v1257 = vpack.c.b16 %v1207, %v1205
        %v1258 = vpack.c.b16 %v1208, %v1206
        %v1259 = vpack.c.b16 %v1211, %v1209
        %v1260 = vpack.c.b16 %v1212, %v1210
        %v1261 = vpack.c.b16 %v1215, %v1213
        %v1262 = vpack.c.b16 %v1216, %v1214
        %v1263 = vpack.c.b16 %v1219, %v1217
        %v1264 = vpack.c.b16 %v1220, %v1218
        %v1265 = vpack.c.b16 %v1223, %v1221
        %v1266 = vpack.c.b16 %v1224, %v1222
        %v1267 = vpack.c.b16 %v1227, %v1225
        %v1268 = vpack.c.b16 %v1228, %v1226
        %v1269 = vpack.c.b16 %v1231, %v1229
        %v1270 = vpack.c.b16 %v1232, %v1230
        %v1271 = vpack.c.b16 %v1235, %v1233
        %v1272 = vpack.c.b16 %v1236, %v1234
        %v1273 = vpack.c.b16 %v1239, %v1237
        %v1274 = vpack.c.b16 %v1240, %v1238
        %v1275 = vpack.c.b16 %v1243, %v1241
        %v1276 = vpack.c.b16 %v1244, %v1242
        %1309 = vmatpush.bf16.msra.mxu0 %v712
        %1310 = vmatpush.bf16.msra.mxu0 %v711
        %1311 = vmatpush.bf16.msra.mxu0 %v710
        %1312 = vmatpush.bf16.msra.mxu0 %v709
        %1313 = vmatpush.bf16.msra.mxu0 %v708
        %1314 = vmatpush.bf16.msra.mxu0 %v707
        %1315 = vmatpush.bf16.msra.mxu0 %v706
        %1316 = vmatpush.bf16.msra.mxu0 %v705
        %1317 = vmatmul.bf16.gmra.mxu0 %v1245
        %v1318 = vpop.f32.mrf.mxu0
        %v1319 = vadd.f32 0.0, %v1318
        %v1320 = vpop.f32.mrf.mxu0
        %v1321 = vadd.f32 0.0, %v1320
        %1322 = vmatmul.bf16.gmra.mxu0 %v1247
        %v1323 = vpop.f32.mrf.mxu0
        %v1324 = vadd.f32 0.0, %v1323
        %v1325 = vpop.f32.mrf.mxu0
        %v1326 = vadd.f32 0.0, %v1325
        %1327 = vmatmul.bf16.gmra.mxu0 %v1249
        %v1328 = vpop.f32.mrf.mxu0
        %v1329 = vadd.f32 0.0, %v1328
        %v1330 = vpop.f32.mrf.mxu0
        %v1331 = vadd.f32 0.0, %v1330
        %1332 = vmatmul.bf16.gmra.mxu0 %v1251
        %v1333 = vpop.f32.mrf.mxu0
        %v1334 = vadd.f32 0.0, %v1333
        %v1335 = vpop.f32.mrf.mxu0
        %v1336 = vadd.f32 0.0, %v1335
        %1337 = vmatmul.bf16.gmra.mxu0 %v1253
        %v1338 = vpop.f32.mrf.mxu0
        %v1339 = vadd.f32 0.0, %v1338
        %v1340 = vpop.f32.mrf.mxu0
        %v1341 = vadd.f32 0.0, %v1340
        %1342 = vmatmul.bf16.gmra.mxu0 %v1255
        %v1343 = vpop.f32.mrf.mxu0
        %v1344 = vadd.f32 0.0, %v1343
        %v1345 = vpop.f32.mrf.mxu0
        %v1346 = vadd.f32 0.0, %v1345
        %1347 = vmatmul.bf16.gmra.mxu0 %v1257
        %v1348 = vpop.f32.mrf.mxu0
        %v1349 = vadd.f32 0.0, %v1348
        %v1350 = vpop.f32.mrf.mxu0
        %v1351 = vadd.f32 0.0, %v1350
        %1352 = vmatmul.bf16.gmra.mxu0 %v1259
        %v1353 = vpop.f32.mrf.mxu0
        %v1354 = vadd.f32 0.0, %v1353
        %v1355 = vpop.f32.mrf.mxu0
        %v1356 = vadd.f32 0.0, %v1355
        %1357 = vmatmul.bf16.gmra.mxu0 %v1261
        %v1358 = vpop.f32.mrf.mxu0
        %v1359 = vadd.f32 0.0, %v1358
        %v1360 = vpop.f32.mrf.mxu0
        %v1361 = vadd.f32 0.0, %v1360
        %1362 = vmatmul.bf16.gmra.mxu0 %v1263
        %v1363 = vpop.f32.mrf.mxu0
        %v1364 = vadd.f32 0.0, %v1363
        %v1365 = vpop.f32.mrf.mxu0
        %v1366 = vadd.f32 0.0, %v1365
        %1367 = vmatmul.bf16.gmra.mxu0 %v1265
        %v1368 = vpop.f32.mrf.mxu0
        %v1369 = vadd.f32 0.0, %v1368
        %v1370 = vpop.f32.mrf.mxu0
        %v1371 = vadd.f32 0.0, %v1370
        %1372 = vmatmul.bf16.gmra.mxu0 %v1267
        %v1373 = vpop.f32.mrf.mxu0
        %v1374 = vadd.f32 0.0, %v1373
        %v1375 = vpop.f32.mrf.mxu0
        %v1376 = vadd.f32 0.0, %v1375
        %1377 = vmatmul.bf16.gmra.mxu0 %v1269
        %v1378 = vpop.f32.mrf.mxu0
        %v1379 = vadd.f32 0.0, %v1378
        %v1380 = vpop.f32.mrf.mxu0
        %v1381 = vadd.f32 0.0, %v1380
        %1382 = vmatmul.bf16.gmra.mxu0 %v1271
        %v1383 = vpop.f32.mrf.mxu0
        %v1384 = vadd.f32 0.0, %v1383
        %v1385 = vpop.f32.mrf.mxu0
        %v1386 = vadd.f32 0.0, %v1385
        %1387 = vmatmul.bf16.gmra.mxu0 %v1273
        %v1388 = vpop.f32.mrf.mxu0
        %v1389 = vadd.f32 0.0, %v1388
        %v1390 = vpop.f32.mrf.mxu0
        %v1391 = vadd.f32 0.0, %v1390
        %1392 = vmatmul.bf16.gmra.mxu0 %v1275
        %v1393 = vpop.f32.mrf.mxu0
        %v1394 = vadd.f32 0.0, %v1393
        %v1395 = vpop.f32.mrf.mxu0
        %v1396 = vadd.f32 0.0, %v1395
        %1397 = vdwg.mxu0
        %1398 = vmatpush.bf16.msra.mxu0 %v720
        %1399 = vmatpush.bf16.msra.mxu0 %v719
        %1400 = vmatpush.bf16.msra.mxu0 %v718
        %1401 = vmatpush.bf16.msra.mxu0 %v717
        %1402 = vmatpush.bf16.msra.mxu0 %v716
        %1403 = vmatpush.bf16.msra.mxu0 %v715
        %1404 = vmatpush.bf16.msra.mxu0 %v714
        %1405 = vmatpush.bf16.msra.mxu0 %v713
        %1406 = vmatmul.bf16.gmra.mxu0 %v1246
        %v1407 = vpop.f32.mrf.mxu0
        %v1408 = vadd.f32 %v1319, %v1407
        %v1409 = vpop.f32.mrf.mxu0
        %v1410 = vadd.f32 %v1321, %v1409
        %1411 = vmatmul.bf16.gmra.mxu0 %v1248
        %v1412 = vpop.f32.mrf.mxu0
        %v1413 = vadd.f32 %v1324, %v1412
        %v1414 = vpop.f32.mrf.mxu0
        %v1415 = vadd.f32 %v1326, %v1414
        %1416 = vmatmul.bf16.gmra.mxu0 %v1250
        %v1417 = vpop.f32.mrf.mxu0
        %v1418 = vadd.f32 %v1329, %v1417
        %v1419 = vpop.f32.mrf.mxu0
        %v1420 = vadd.f32 %v1331, %v1419
        %1421 = vmatmul.bf16.gmra.mxu0 %v1252
        %v1422 = vpop.f32.mrf.mxu0
        %v1423 = vadd.f32 %v1334, %v1422
        %v1424 = vpop.f32.mrf.mxu0
        %v1425 = vadd.f32 %v1336, %v1424
        %1426 = vmatmul.bf16.gmra.mxu0 %v1254
        %v1427 = vpop.f32.mrf.mxu0
        %v1428 = vadd.f32 %v1339, %v1427
        %v1429 = vpop.f32.mrf.mxu0
        %v1430 = vadd.f32 %v1341, %v1429
        %1431 = vmatmul.bf16.gmra.mxu0 %v1256
        %v1432 = vpop.f32.mrf.mxu0
        %v1433 = vadd.f32 %v1344, %v1432
        %v1434 = vpop.f32.mrf.mxu0
        %v1435 = vadd.f32 %v1346, %v1434
        %1436 = vmatmul.bf16.gmra.mxu0 %v1258
        %v1437 = vpop.f32.mrf.mxu0
        %v1438 = vadd.f32 %v1349, %v1437
        %v1439 = vpop.f32.mrf.mxu0
        %v1440 = vadd.f32 %v1351, %v1439
        %1441 = vmatmul.bf16.gmra.mxu0 %v1260
        %v1442 = vpop.f32.mrf.mxu0
        %v1443 = vadd.f32 %v1354, %v1442
        %v1444 = vpop.f32.mrf.mxu0
        %v1445 = vadd.f32 %v1356, %v1444
        %1446 = vmatmul.bf16.gmra.mxu0 %v1262
        %v1447 = vpop.f32.mrf.mxu0
        %v1448 = vadd.f32 %v1359, %v1447
        %v1449 = vpop.f32.mrf.mxu0
        %v1450 = vadd.f32 %v1361, %v1449
        %1451 = vmatmul.bf16.gmra.mxu0 %v1264
        %v1452 = vpop.f32.mrf.mxu0
        %v1453 = vadd.f32 %v1364, %v1452
        %v1454 = vpop.f32.mrf.mxu0
        %v1455 = vadd.f32 %v1366, %v1454
        %1456 = vmatmul.bf16.gmra.mxu0 %v1266
        %v1457 = vpop.f32.mrf.mxu0
        %v1458 = vadd.f32 %v1369, %v1457
        %v1459 = vpop.f32.mrf.mxu0
        %v1460 = vadd.f32 %v1371, %v1459
        %1461 = vmatmul.bf16.gmra.mxu0 %v1268
        %v1462 = vpop.f32.mrf.mxu0
        %v1463 = vadd.f32 %v1374, %v1462
        %v1464 = vpop.f32.mrf.mxu0
        %v1465 = vadd.f32 %v1376, %v1464
        %1466 = vmatmul.bf16.gmra.mxu0 %v1270
        %v1467 = vpop.f32.mrf.mxu0
        %v1468 = vadd.f32 %v1379, %v1467
        %v1469 = vpop.f32.mrf.mxu0
        %v1470 = vadd.f32 %v1381, %v1469
        %1471 = vmatmul.bf16.gmra.mxu0 %v1272
        %v1472 = vpop.f32.mrf.mxu0
        %v1473 = vadd.f32 %v1384, %v1472
        %v1474 = vpop.f32.mrf.mxu0
        %v1475 = vadd.f32 %v1386, %v1474
        %1476 = vmatmul.bf16.gmra.mxu0 %v1274
        %v1477 = vpop.f32.mrf.mxu0
        %v1478 = vadd.f32 %v1389, %v1477
        %v1479 = vpop.f32.mrf.mxu0
        %v1480 = vadd.f32 %v1391, %v1479
        %1481 = vmatmul.bf16.gmra.mxu0 %v1276
        %v1482 = vpop.f32.mrf.mxu0
        %v1483 = vadd.f32 %v1394, %v1482
        %v1484 = vpop.f32.mrf.mxu0
        %v1485 = vadd.f32 %v1396, %v1484
        %1486 = vdwg.mxu0
        %v1487 = vpack.c.bf16 %v1410, %v1408
        %v1488 = vpack.c.bf16 %v1415, %v1413
        %v1489 = vpack.c.bf16 %v1420, %v1418
        %v1490 = vpack.c.bf16 %v1425, %v1423
        %v1491 = vpack.c.bf16 %v1430, %v1428
        %v1492 = vpack.c.bf16 %v1435, %v1433
        %v1493 = vpack.c.bf16 %v1440, %v1438
        %v1494 = vpack.c.bf16 %v1445, %v1443
        %v1495 = vpack.c.bf16 %v1450, %v1448
        %v1496 = vpack.c.bf16 %v1455, %v1453
        %v1497 = vpack.c.bf16 %v1460, %v1458
        %v1498 = vpack.c.bf16 %v1465, %v1463
        %v1499 = vpack.c.bf16 %v1470, %v1468
        %v1500 = vpack.c.bf16 %v1475, %v1473
        %v1501 = vpack.c.bf16 %v1480, %v1478
        %v1502 = vpack.c.bf16 %v1485, %v1483
        %s1503 = scalar_lea.vmem %s2, 64
        %v1504 = vld [vmem:[%s1503] sm:$0xf]
        %v1505 = vld [vmem:[%s1503 + $0x4] sm:$0xf]
        %v1506 = vld [vmem:[%s1503 + $0x8] sm:$0xf]
        %v1507 = vld [vmem:[%s1503 + $0xc] sm:$0xf]
        %v1508 = vld [vmem:[%s1503 + $0x10] sm:$0xf]
        %v1509 = vld [vmem:[%s1503 + $0x14] sm:$0xf]
        %v1510 = vld [vmem:[%s1503 + $0x18] sm:$0xf]
        %v1511 = vld [vmem:[%s1503 + $0x1c] sm:$0xf]
        %v1512 = vld [vmem:[%s1503 + $0x20] sm:$0xf]
        %v1513 = vld [vmem:[%s1503 + $0x24] sm:$0xf]
        %v1514 = vld [vmem:[%s1503 + $0x28] sm:$0xf]
        %v1515 = vld [vmem:[%s1503 + $0x2c] sm:$0xf]
        %v1516 = vld [vmem:[%s1503 + $0x30] sm:$0xf]
        %v1517 = vld [vmem:[%s1503 + $0x34] sm:$0xf]
        %v1518 = vld [vmem:[%s1503 + $0x38] sm:$0xf]
        %v1519 = vld [vmem:[%s1503 + $0x3c] sm:$0xf]
        %v1536 = vunpack.c.l.b16 %v1504
        %v1537 = vunpack.c.l.b16 %v1505
        %v1538 = vunpack.c.l.b16 %v1506
        %v1539 = vunpack.c.l.b16 %v1507
        %v1540 = vunpack.c.l.b16 %v1508
        %v1541 = vunpack.c.l.b16 %v1509
        %v1542 = vunpack.c.l.b16 %v1510
        %v1543 = vunpack.c.l.b16 %v1511
        %v1544 = vunpack.c.l.b16 %v1512
        %v1545 = vunpack.c.l.b16 %v1513
        %v1546 = vunpack.c.l.b16 %v1514
        %v1547 = vunpack.c.l.b16 %v1515
        %v1548 = vunpack.c.l.b16 %v1516
        %v1549 = vunpack.c.l.b16 %v1517
        %v1550 = vunpack.c.l.b16 %v1518
        %v1551 = vunpack.c.l.b16 %v1519
        %v1552 = vpack.c.b16 %v1537, %v1536
        %v1553 = vpack.c.b16 %v1539, %v1538
        %v1554 = vpack.c.b16 %v1541, %v1540
        %v1555 = vpack.c.b16 %v1543, %v1542
        %v1556 = vpack.c.b16 %v1545, %v1544
        %v1557 = vpack.c.b16 %v1547, %v1546
        %v1558 = vpack.c.b16 %v1549, %v1548
        %v1559 = vpack.c.b16 %v1551, %v1550
        %1568 = vmatpush.bf16.msra.mxu0 %v1559
        %1569 = vmatpush.bf16.msra.mxu0 %v1558
        %1570 = vmatpush.bf16.msra.mxu0 %v1557
        %1571 = vmatpush.bf16.msra.mxu0 %v1556
        %1572 = vmatpush.bf16.msra.mxu0 %v1555
        %1573 = vmatpush.bf16.msra.mxu0 %v1554
        %1574 = vmatpush.bf16.msra.mxu0 %v1553
        %1575 = vmatpush.bf16.msra.mxu0 %v1552
        %1576 = vmatmul.bf16.gmra.mxu0 %v1487
        %v1577 = vpop.f32.mrf.mxu0
        %v1578 = vadd.f32 0.0, %v1577
        %v1579 = vpop.f32.mrf.mxu0
        %v1580 = vadd.f32 0.0, %v1579
        %1581 = vmatmul.bf16.gmra.mxu0 %v1488
        %v1582 = vpop.f32.mrf.mxu0
        %v1583 = vadd.f32 0.0, %v1582
        %v1584 = vpop.f32.mrf.mxu0
        %v1585 = vadd.f32 0.0, %v1584
        %1586 = vmatmul.bf16.gmra.mxu0 %v1489
        %v1587 = vpop.f32.mrf.mxu0
        %v1588 = vadd.f32 0.0, %v1587
        %v1589 = vpop.f32.mrf.mxu0
        %v1590 = vadd.f32 0.0, %v1589
        %1591 = vmatmul.bf16.gmra.mxu0 %v1490
        %v1592 = vpop.f32.mrf.mxu0
        %v1593 = vadd.f32 0.0, %v1592
        %v1594 = vpop.f32.mrf.mxu0
        %v1595 = vadd.f32 0.0, %v1594
        %1596 = vmatmul.bf16.gmra.mxu0 %v1491
        %v1597 = vpop.f32.mrf.mxu0
        %v1598 = vadd.f32 0.0, %v1597
        %v1599 = vpop.f32.mrf.mxu0
        %v1600 = vadd.f32 0.0, %v1599
        %1601 = vmatmul.bf16.gmra.mxu0 %v1492
        %v1602 = vpop.f32.mrf.mxu0
        %v1603 = vadd.f32 0.0, %v1602
        %v1604 = vpop.f32.mrf.mxu0
        %v1605 = vadd.f32 0.0, %v1604
        %1606 = vmatmul.bf16.gmra.mxu0 %v1493
        %v1607 = vpop.f32.mrf.mxu0
        %v1608 = vadd.f32 0.0, %v1607
        %v1609 = vpop.f32.mrf.mxu0
        %v1610 = vadd.f32 0.0, %v1609
        %1611 = vmatmul.bf16.gmra.mxu0 %v1494
        %v1612 = vpop.f32.mrf.mxu0
        %v1613 = vadd.f32 0.0, %v1612
        %v1614 = vpop.f32.mrf.mxu0
        %v1615 = vadd.f32 0.0, %v1614
        %1616 = vmatmul.bf16.gmra.mxu0 %v1495
        %v1617 = vpop.f32.mrf.mxu0
        %v1618 = vadd.f32 0.0, %v1617
        %v1619 = vpop.f32.mrf.mxu0
        %v1620 = vadd.f32 0.0, %v1619
        %1621 = vmatmul.bf16.gmra.mxu0 %v1496
        %v1622 = vpop.f32.mrf.mxu0
        %v1623 = vadd.f32 0.0, %v1622
        %v1624 = vpop.f32.mrf.mxu0
        %v1625 = vadd.f32 0.0, %v1624
        %1626 = vmatmul.bf16.gmra.mxu0 %v1497
        %v1627 = vpop.f32.mrf.mxu0
        %v1628 = vadd.f32 0.0, %v1627
        %v1629 = vpop.f32.mrf.mxu0
        %v1630 = vadd.f32 0.0, %v1629
        %1631 = vmatmul.bf16.gmra.mxu0 %v1498
        %v1632 = vpop.f32.mrf.mxu0
        %v1633 = vadd.f32 0.0, %v1632
        %v1634 = vpop.f32.mrf.mxu0
        %v1635 = vadd.f32 0.0, %v1634
        %1636 = vmatmul.bf16.gmra.mxu0 %v1499
        %v1637 = vpop.f32.mrf.mxu0
        %v1638 = vadd.f32 0.0, %v1637
        %v1639 = vpop.f32.mrf.mxu0
        %v1640 = vadd.f32 0.0, %v1639
        %1641 = vmatmul.bf16.gmra.mxu0 %v1500
        %v1642 = vpop.f32.mrf.mxu0
        %v1643 = vadd.f32 0.0, %v1642
        %v1644 = vpop.f32.mrf.mxu0
        %v1645 = vadd.f32 0.0, %v1644
        %1646 = vmatmul.bf16.gmra.mxu0 %v1501
        %v1647 = vpop.f32.mrf.mxu0
        %v1648 = vadd.f32 0.0, %v1647
        %v1649 = vpop.f32.mrf.mxu0
        %v1650 = vadd.f32 0.0, %v1649
        %1651 = vmatmul.bf16.gmra.mxu0 %v1502
        %v1652 = vpop.f32.mrf.mxu0
        %v1653 = vadd.f32 0.0, %v1652
        %v1654 = vpop.f32.mrf.mxu0
        %v1655 = vadd.f32 0.0, %v1654
        %1656 = vdwg.mxu0
        %v1657 = vadd.f32 %v1084, %v1578
        %v1658 = vadd.f32 %v1085, %v1580
        %v1659 = vadd.f32 %v1086, %v1583
        %v1660 = vadd.f32 %v1087, %v1585
        %v1661 = vadd.f32 %v1088, %v1588
        %v1662 = vadd.f32 %v1089, %v1590
        %v1663 = vadd.f32 %v1090, %v1593
        %v1664 = vadd.f32 %v1091, %v1595
        %v1665 = vadd.f32 %v1092, %v1598
        %v1666 = vadd.f32 %v1093, %v1600
        %v1667 = vadd.f32 %v1094, %v1603
        %v1668 = vadd.f32 %v1095, %v1605
        %v1669 = vadd.f32 %v1096, %v1608
        %v1670 = vadd.f32 %v1097, %v1610
        %v1671 = vadd.f32 %v1098, %v1613
        %v1672 = vadd.f32 %v1099, %v1615
        %v1673 = vadd.f32 %v1100, %v1618
        %v1674 = vadd.f32 %v1101, %v1620
        %v1675 = vadd.f32 %v1102, %v1623
        %v1676 = vadd.f32 %v1103, %v1625
        %v1677 = vadd.f32 %v1104, %v1628
        %v1678 = vadd.f32 %v1105, %v1630
        %v1679 = vadd.f32 %v1106, %v1633
        %v1680 = vadd.f32 %v1107, %v1635
        %v1681 = vadd.f32 %v1108, %v1638
        %v1682 = vadd.f32 %v1109, %v1640
        %v1683 = vadd.f32 %v1110, %v1643
        %v1684 = vadd.f32 %v1111, %v1645
        %v1685 = vadd.f32 %v1112, %v1648
        %v1686 = vadd.f32 %v1113, %v1650
        %v1687 = vadd.f32 %v1114, %v1653
        %v1688 = vadd.f32 %v1115, %v1655
        %s1689 = scalar_lea.vmem %s1, 512
        %v1690 = vld [vmem:[%s1689] sm:$0xff]
        %v1691 = vld [vmem:[%s1689 + $0x8] sm:$0xff]
        %v1692 = vld [vmem:[%s1689 + $0x10] sm:$0xff]
        %v1693 = vld [vmem:[%s1689 + $0x18] sm:$0xff]
        %v1694 = vld [vmem:[%s1689 + $0x20] sm:$0xff]
        %v1695 = vld [vmem:[%s1689 + $0x28] sm:$0xff]
        %v1696 = vld [vmem:[%s1689 + $0x30] sm:$0xff]
        %v1697 = vld [vmem:[%s1689 + $0x38] sm:$0xff]
        %v1698 = vld [vmem:[%s1689 + $0x40] sm:$0xff]
        %v1699 = vld [vmem:[%s1689 + $0x48] sm:$0xff]
        %v1700 = vld [vmem:[%s1689 + $0x50] sm:$0xff]
        %v1701 = vld [vmem:[%s1689 + $0x58] sm:$0xff]
        %v1702 = vld [vmem:[%s1689 + $0x60] sm:$0xff]
        %v1703 = vld [vmem:[%s1689 + $0x68] sm:$0xff]
        %v1704 = vld [vmem:[%s1689 + $0x70] sm:$0xff]
        %v1705 = vld [vmem:[%s1689 + $0x78] sm:$0xff]
        %v1706 = vld [vmem:[%s1689 + $0x80] sm:$0xff]
        %v1707 = vld [vmem:[%s1689 + $0x88] sm:$0xff]
        %v1708 = vld [vmem:[%s1689 + $0x90] sm:$0xff]
        %v1709 = vld [vmem:[%s1689 + $0x98] sm:$0xff]
        %v1710 = vld [vmem:[%s1689 + $0xa0] sm:$0xff]
        %v1711 = vld [vmem:[%s1689 + $0xa8] sm:$0xff]
        %v1712 = vld [vmem:[%s1689 + $0xb0] sm:$0xff]
        %v1713 = vld [vmem:[%s1689 + $0xb8] sm:$0xff]
        %v1714 = vld [vmem:[%s1689 + $0xc0] sm:$0xff]
        %v1715 = vld [vmem:[%s1689 + $0xc8] sm:$0xff]
        %v1716 = vld [vmem:[%s1689 + $0xd0] sm:$0xff]
        %v1717 = vld [vmem:[%s1689 + $0xd8] sm:$0xff]
        %v1718 = vld [vmem:[%s1689 + $0xe0] sm:$0xff]
        %v1719 = vld [vmem:[%s1689 + $0xe8] sm:$0xff]
        %v1720 = vld [vmem:[%s1689 + $0xf0] sm:$0xff]
        %v1721 = vld [vmem:[%s1689 + $0xf8] sm:$0xff]
        %v1754 = vunpack.c.l.b16 %v1690
        %v1755 = vunpack.c.h.b16 %v1690
        %v1756 = vunpack.c.l.b16 %v1691
        %v1757 = vunpack.c.h.b16 %v1691
        %v1758 = vunpack.c.l.b16 %v1692
        %v1759 = vunpack.c.h.b16 %v1692
        %v1760 = vunpack.c.l.b16 %v1693
        %v1761 = vunpack.c.h.b16 %v1693
        %v1762 = vunpack.c.l.b16 %v1694
        %v1763 = vunpack.c.h.b16 %v1694
        %v1764 = vunpack.c.l.b16 %v1695
        %v1765 = vunpack.c.h.b16 %v1695
        %v1766 = vunpack.c.l.b16 %v1696
        %v1767 = vunpack.c.h.b16 %v1696
        %v1768 = vunpack.c.l.b16 %v1697
        %v1769 = vunpack.c.h.b16 %v1697
        %v1770 = vunpack.c.l.b16 %v1698
        %v1771 = vunpack.c.h.b16 %v1698
        %v1772 = vunpack.c.l.b16 %v1699
        %v1773 = vunpack.c.h.b16 %v1699
        %v1774 = vunpack.c.l.b16 %v1700
        %v1775 = vunpack.c.h.b16 %v1700
        %v1776 = vunpack.c.l.b16 %v1701
        %v1777 = vunpack.c.h.b16 %v1701
        %v1778 = vunpack.c.l.b16 %v1702
        %v1779 = vunpack.c.h.b16 %v1702
        %v1780 = vunpack.c.l.b16 %v1703
        %v1781 = vunpack.c.h.b16 %v1703
        %v1782 = vunpack.c.l.b16 %v1704
        %v1783 = vunpack.c.h.b16 %v1704
        %v1784 = vunpack.c.l.b16 %v1705
        %v1785 = vunpack.c.h.b16 %v1705
        %v1786 = vunpack.c.l.b16 %v1706
        %v1787 = vunpack.c.h.b16 %v1706
        %v1788 = vunpack.c.l.b16 %v1707
        %v1789 = vunpack.c.h.b16 %v1707
        %v1790 = vunpack.c.l.b16 %v1708
        %v1791 = vunpack.c.h.b16 %v1708
        %v1792 = vunpack.c.l.b16 %v1709
        %v1793 = vunpack.c.h.b16 %v1709
        %v1794 = vunpack.c.l.b16 %v1710
        %v1795 = vunpack.c.h.b16 %v1710
        %v1796 = vunpack.c.l.b16 %v1711
        %v1797 = vunpack.c.h.b16 %v1711
        %v1798 = vunpack.c.l.b16 %v1712
        %v1799 = vunpack.c.h.b16 %v1712
        %v1800 = vunpack.c.l.b16 %v1713
        %v1801 = vunpack.c.h.b16 %v1713
        %v1802 = vunpack.c.l.b16 %v1714
        %v1803 = vunpack.c.h.b16 %v1714
        %v1804 = vunpack.c.l.b16 %v1715
        %v1805 = vunpack.c.h.b16 %v1715
        %v1806 = vunpack.c.l.b16 %v1716
        %v1807 = vunpack.c.h.b16 %v1716
        %v1808 = vunpack.c.l.b16 %v1717
        %v1809 = vunpack.c.h.b16 %v1717
        %v1810 = vunpack.c.l.b16 %v1718
        %v1811 = vunpack.c.h.b16 %v1718
        %v1812 = vunpack.c.l.b16 %v1719
        %v1813 = vunpack.c.h.b16 %v1719
        %v1814 = vunpack.c.l.b16 %v1720
        %v1815 = vunpack.c.h.b16 %v1720
        %v1816 = vunpack.c.l.b16 %v1721
        %v1817 = vunpack.c.h.b16 %v1721
        %v1818 = vpack.c.b16 %v1756, %v1754
        %v1819 = vpack.c.b16 %v1757, %v1755
        %v1820 = vpack.c.b16 %v1760, %v1758
        %v1821 = vpack.c.b16 %v1761, %v1759
        %v1822 = vpack.c.b16 %v1764, %v1762
        %v1823 = vpack.c.b16 %v1765, %v1763
        %v1824 = vpack.c.b16 %v1768, %v1766
        %v1825 = vpack.c.b16 %v1769, %v1767
        %v1826 = vpack.c.b16 %v1772, %v1770
        %v1827 = vpack.c.b16 %v1773, %v1771
        %v1828 = vpack.c.b16 %v1776, %v1774
        %v1829 = vpack.c.b16 %v1777, %v1775
        %v1830 = vpack.c.b16 %v1780, %v1778
        %v1831 = vpack.c.b16 %v1781, %v1779
        %v1832 = vpack.c.b16 %v1784, %v1782
        %v1833 = vpack.c.b16 %v1785, %v1783
        %v1834 = vpack.c.b16 %v1788, %v1786
        %v1835 = vpack.c.b16 %v1789, %v1787
        %v1836 = vpack.c.b16 %v1792, %v1790
        %v1837 = vpack.c.b16 %v1793, %v1791
        %v1838 = vpack.c.b16 %v1796, %v1794
        %v1839 = vpack.c.b16 %v1797, %v1795
        %v1840 = vpack.c.b16 %v1800, %v1798
        %v1841 = vpack.c.b16 %v1801, %v1799
        %v1842 = vpack.c.b16 %v1804, %v1802
        %v1843 = vpack.c.b16 %v1805, %v1803
        %v1844 = vpack.c.b16 %v1808, %v1806
        %v1845 = vpack.c.b16 %v1809, %v1807
        %v1846 = vpack.c.b16 %v1812, %v1810
        %v1847 = vpack.c.b16 %v1813, %v1811
        %v1848 = vpack.c.b16 %v1816, %v1814
        %v1849 = vpack.c.b16 %v1817, %v1815
        %1882 = vmatpush.bf16.msra.mxu0 %v712
        %1883 = vmatpush.bf16.msra.mxu0 %v711
        %1884 = vmatpush.bf16.msra.mxu0 %v710
        %1885 = vmatpush.bf16.msra.mxu0 %v709
        %1886 = vmatpush.bf16.msra.mxu0 %v708
        %1887 = vmatpush.bf16.msra.mxu0 %v707
        %1888 = vmatpush.bf16.msra.mxu0 %v706
        %1889 = vmatpush.bf16.msra.mxu0 %v705
        %1890 = vmatmul.bf16.gmra.mxu0 %v1818
        %v1891 = vpop.f32.mrf.mxu0
        %v1892 = vadd.f32 0.0, %v1891
        %v1893 = vpop.f32.mrf.mxu0
        %v1894 = vadd.f32 0.0, %v1893
        %1895 = vmatmul.bf16.gmra.mxu0 %v1820
        %v1896 = vpop.f32.mrf.mxu0
        %v1897 = vadd.f32 0.0, %v1896
        %v1898 = vpop.f32.mrf.mxu0
        %v1899 = vadd.f32 0.0, %v1898
        %1900 = vmatmul.bf16.gmra.mxu0 %v1822
        %v1901 = vpop.f32.mrf.mxu0
        %v1902 = vadd.f32 0.0, %v1901
        %v1903 = vpop.f32.mrf.mxu0
        %v1904 = vadd.f32 0.0, %v1903
        %1905 = vmatmul.bf16.gmra.mxu0 %v1824
        %v1906 = vpop.f32.mrf.mxu0
        %v1907 = vadd.f32 0.0, %v1906
        %v1908 = vpop.f32.mrf.mxu0
        %v1909 = vadd.f32 0.0, %v1908
        %1910 = vmatmul.bf16.gmra.mxu0 %v1826
        %v1911 = vpop.f32.mrf.mxu0
        %v1912 = vadd.f32 0.0, %v1911
        %v1913 = vpop.f32.mrf.mxu0
        %v1914 = vadd.f32 0.0, %v1913
        %1915 = vmatmul.bf16.gmra.mxu0 %v1828
        %v1916 = vpop.f32.mrf.mxu0
        %v1917 = vadd.f32 0.0, %v1916
        %v1918 = vpop.f32.mrf.mxu0
        %v1919 = vadd.f32 0.0, %v1918
        %1920 = vmatmul.bf16.gmra.mxu0 %v1830
        %v1921 = vpop.f32.mrf.mxu0
        %v1922 = vadd.f32 0.0, %v1921
        %v1923 = vpop.f32.mrf.mxu0
        %v1924 = vadd.f32 0.0, %v1923
        %1925 = vmatmul.bf16.gmra.mxu0 %v1832
        %v1926 = vpop.f32.mrf.mxu0
        %v1927 = vadd.f32 0.0, %v1926
        %v1928 = vpop.f32.mrf.mxu0
        %v1929 = vadd.f32 0.0, %v1928
        %1930 = vmatmul.bf16.gmra.mxu0 %v1834
        %v1931 = vpop.f32.mrf.mxu0
        %v1932 = vadd.f32 0.0, %v1931
        %v1933 = vpop.f32.mrf.mxu0
        %v1934 = vadd.f32 0.0, %v1933
        %1935 = vmatmul.bf16.gmra.mxu0 %v1836
        %v1936 = vpop.f32.mrf.mxu0
        %v1937 = vadd.f32 0.0, %v1936
        %v1938 = vpop.f32.mrf.mxu0
        %v1939 = vadd.f32 0.0, %v1938
        %1940 = vmatmul.bf16.gmra.mxu0 %v1838
        %v1941 = vpop.f32.mrf.mxu0
        %v1942 = vadd.f32 0.0, %v1941
        %v1943 = vpop.f32.mrf.mxu0
        %v1944 = vadd.f32 0.0, %v1943
        %1945 = vmatmul.bf16.gmra.mxu0 %v1840
        %v1946 = vpop.f32.mrf.mxu0
        %v1947 = vadd.f32 0.0, %v1946
        %v1948 = vpop.f32.mrf.mxu0
        %v1949 = vadd.f32 0.0, %v1948
        %1950 = vmatmul.bf16.gmra.mxu0 %v1842
        %v1951 = vpop.f32.mrf.mxu0
        %v1952 = vadd.f32 0.0, %v1951
        %v1953 = vpop.f32.mrf.mxu0
        %v1954 = vadd.f32 0.0, %v1953
        %1955 = vmatmul.bf16.gmra.mxu0 %v1844
        %v1956 = vpop.f32.mrf.mxu0
        %v1957 = vadd.f32 0.0, %v1956
        %v1958 = vpop.f32.mrf.mxu0
        %v1959 = vadd.f32 0.0, %v1958
        %1960 = vmatmul.bf16.gmra.mxu0 %v1846
        %v1961 = vpop.f32.mrf.mxu0
        %v1962 = vadd.f32 0.0, %v1961
        %v1963 = vpop.f32.mrf.mxu0
        %v1964 = vadd.f32 0.0, %v1963
        %1965 = vmatmul.bf16.gmra.mxu0 %v1848
        %v1966 = vpop.f32.mrf.mxu0
        %v1967 = vadd.f32 0.0, %v1966
        %v1968 = vpop.f32.mrf.mxu0
        %v1969 = vadd.f32 0.0, %v1968
        %1970 = vdwg.mxu0
        %1971 = vmatpush.bf16.msra.mxu0 %v720
        %1972 = vmatpush.bf16.msra.mxu0 %v719
        %1973 = vmatpush.bf16.msra.mxu0 %v718
        %1974 = vmatpush.bf16.msra.mxu0 %v717
        %1975 = vmatpush.bf16.msra.mxu0 %v716
        %1976 = vmatpush.bf16.msra.mxu0 %v715
        %1977 = vmatpush.bf16.msra.mxu0 %v714
        %1978 = vmatpush.bf16.msra.mxu0 %v713
        %1979 = vmatmul.bf16.gmra.mxu0 %v1819
        %v1980 = vpop.f32.mrf.mxu0
        %v1981 = vadd.f32 %v1892, %v1980
        %v1982 = vpop.f32.mrf.mxu0
        %v1983 = vadd.f32 %v1894, %v1982
        %1984 = vmatmul.bf16.gmra.mxu0 %v1821
        %v1985 = vpop.f32.mrf.mxu0
        %v1986 = vadd.f32 %v1897, %v1985
        %v1987 = vpop.f32.mrf.mxu0
        %v1988 = vadd.f32 %v1899, %v1987
        %1989 = vmatmul.bf16.gmra.mxu0 %v1823
        %v1990 = vpop.f32.mrf.mxu0
        %v1991 = vadd.f32 %v1902, %v1990
        %v1992 = vpop.f32.mrf.mxu0
        %v1993 = vadd.f32 %v1904, %v1992
        %1994 = vmatmul.bf16.gmra.mxu0 %v1825
        %v1995 = vpop.f32.mrf.mxu0
        %v1996 = vadd.f32 %v1907, %v1995
        %v1997 = vpop.f32.mrf.mxu0
        %v1998 = vadd.f32 %v1909, %v1997
        %1999 = vmatmul.bf16.gmra.mxu0 %v1827
        %v2000 = vpop.f32.mrf.mxu0
        %v2001 = vadd.f32 %v1912, %v2000
        %v2002 = vpop.f32.mrf.mxu0
        %v2003 = vadd.f32 %v1914, %v2002
        %2004 = vmatmul.bf16.gmra.mxu0 %v1829
        %v2005 = vpop.f32.mrf.mxu0
        %v2006 = vadd.f32 %v1917, %v2005
        %v2007 = vpop.f32.mrf.mxu0
        %v2008 = vadd.f32 %v1919, %v2007
        %2009 = vmatmul.bf16.gmra.mxu0 %v1831
        %v2010 = vpop.f32.mrf.mxu0
        %v2011 = vadd.f32 %v1922, %v2010
        %v2012 = vpop.f32.mrf.mxu0
        %v2013 = vadd.f32 %v1924, %v2012
        %2014 = vmatmul.bf16.gmra.mxu0 %v1833
        %v2015 = vpop.f32.mrf.mxu0
        %v2016 = vadd.f32 %v1927, %v2015
        %v2017 = vpop.f32.mrf.mxu0
        %v2018 = vadd.f32 %v1929, %v2017
        %2019 = vmatmul.bf16.gmra.mxu0 %v1835
        %v2020 = vpop.f32.mrf.mxu0
        %v2021 = vadd.f32 %v1932, %v2020
        %v2022 = vpop.f32.mrf.mxu0
        %v2023 = vadd.f32 %v1934, %v2022
        %2024 = vmatmul.bf16.gmra.mxu0 %v1837
        %v2025 = vpop.f32.mrf.mxu0
        %v2026 = vadd.f32 %v1937, %v2025
        %v2027 = vpop.f32.mrf.mxu0
        %v2028 = vadd.f32 %v1939, %v2027
        %2029 = vmatmul.bf16.gmra.mxu0 %v1839
        %v2030 = vpop.f32.mrf.mxu0
        %v2031 = vadd.f32 %v1942, %v2030
        %v2032 = vpop.f32.mrf.mxu0
        %v2033 = vadd.f32 %v1944, %v2032
        %2034 = vmatmul.bf16.gmra.mxu0 %v1841
        %v2035 = vpop.f32.mrf.mxu0
        %v2036 = vadd.f32 %v1947, %v2035
        %v2037 = vpop.f32.mrf.mxu0
        %v2038 = vadd.f32 %v1949, %v2037
        %2039 = vmatmul.bf16.gmra.mxu0 %v1843
        %v2040 = vpop.f32.mrf.mxu0
        %v2041 = vadd.f32 %v1952, %v2040
        %v2042 = vpop.f32.mrf.mxu0
        %v2043 = vadd.f32 %v1954, %v2042
        %2044 = vmatmul.bf16.gmra.mxu0 %v1845
        %v2045 = vpop.f32.mrf.mxu0
        %v2046 = vadd.f32 %v1957, %v2045
        %v2047 = vpop.f32.mrf.mxu0
        %v2048 = vadd.f32 %v1959, %v2047
        %2049 = vmatmul.bf16.gmra.mxu0 %v1847
        %v2050 = vpop.f32.mrf.mxu0
        %v2051 = vadd.f32 %v1962, %v2050
        %v2052 = vpop.f32.mrf.mxu0
        %v2053 = vadd.f32 %v1964, %v2052
        %2054 = vmatmul.bf16.gmra.mxu0 %v1849
        %v2055 = vpop.f32.mrf.mxu0
        %v2056 = vadd.f32 %v1967, %v2055
        %v2057 = vpop.f32.mrf.mxu0
        %v2058 = vadd.f32 %v1969, %v2057
        %2059 = vdwg.mxu0
        %v2060 = vpack.c.bf16 %v1983, %v1981
        %v2061 = vpack.c.bf16 %v1988, %v1986
        %v2062 = vpack.c.bf16 %v1993, %v1991
        %v2063 = vpack.c.bf16 %v1998, %v1996
        %v2064 = vpack.c.bf16 %v2003, %v2001
        %v2065 = vpack.c.bf16 %v2008, %v2006
        %v2066 = vpack.c.bf16 %v2013, %v2011
        %v2067 = vpack.c.bf16 %v2018, %v2016
        %v2068 = vpack.c.bf16 %v2023, %v2021
        %v2069 = vpack.c.bf16 %v2028, %v2026
        %v2070 = vpack.c.bf16 %v2033, %v2031
        %v2071 = vpack.c.bf16 %v2038, %v2036
        %v2072 = vpack.c.bf16 %v2043, %v2041
        %v2073 = vpack.c.bf16 %v2048, %v2046
        %v2074 = vpack.c.bf16 %v2053, %v2051
        %v2075 = vpack.c.bf16 %v2058, %v2056
        %s2076 = scalar_lea.vmem %s2, 128
        %v2077 = vld [vmem:[%s2076] sm:$0xf]
        %v2078 = vld [vmem:[%s2076 + $0x4] sm:$0xf]
        %v2079 = vld [vmem:[%s2076 + $0x8] sm:$0xf]
        %v2080 = vld [vmem:[%s2076 + $0xc] sm:$0xf]
        %v2081 = vld [vmem:[%s2076 + $0x10] sm:$0xf]
        %v2082 = vld [vmem:[%s2076 + $0x14] sm:$0xf]
        %v2083 = vld [vmem:[%s2076 + $0x18] sm:$0xf]
        %v2084 = vld [vmem:[%s2076 + $0x1c] sm:$0xf]
        %v2085 = vld [vmem:[%s2076 + $0x20] sm:$0xf]
        %v2086 = vld [vmem:[%s2076 + $0x24] sm:$0xf]
        %v2087 = vld [vmem:[%s2076 + $0x28] sm:$0xf]
        %v2088 = vld [vmem:[%s2076 + $0x2c] sm:$0xf]
        %v2089 = vld [vmem:[%s2076 + $0x30] sm:$0xf]
        %v2090 = vld [vmem:[%s2076 + $0x34] sm:$0xf]
        %v2091 = vld [vmem:[%s2076 + $0x38] sm:$0xf]
        %v2092 = vld [vmem:[%s2076 + $0x3c] sm:$0xf]
        %v2109 = vunpack.c.l.b16 %v2077
        %v2110 = vunpack.c.l.b16 %v2078
        %v2111 = vunpack.c.l.b16 %v2079
        %v2112 = vunpack.c.l.b16 %v2080
        %v2113 = vunpack.c.l.b16 %v2081
        %v2114 = vunpack.c.l.b16 %v2082
        %v2115 = vunpack.c.l.b16 %v2083
        %v2116 = vunpack.c.l.b16 %v2084
        %v2117 = vunpack.c.l.b16 %v2085
        %v2118 = vunpack.c.l.b16 %v2086
        %v2119 = vunpack.c.l.b16 %v2087
        %v2120 = vunpack.c.l.b16 %v2088
        %v2121 = vunpack.c.l.b16 %v2089
        %v2122 = vunpack.c.l.b16 %v2090
        %v2123 = vunpack.c.l.b16 %v2091
        %v2124 = vunpack.c.l.b16 %v2092
        %v2125 = vpack.c.b16 %v2110, %v2109
        %v2126 = vpack.c.b16 %v2112, %v2111
        %v2127 = vpack.c.b16 %v2114, %v2113
        %v2128 = vpack.c.b16 %v2116, %v2115
        %v2129 = vpack.c.b16 %v2118, %v2117
        %v2130 = vpack.c.b16 %v2120, %v2119
        %v2131 = vpack.c.b16 %v2122, %v2121
        %v2132 = vpack.c.b16 %v2124, %v2123
        %2141 = vmatpush.bf16.msra.mxu0 %v2132
        %2142 = vmatpush.bf16.msra.mxu0 %v2131
        %2143 = vmatpush.bf16.msra.mxu0 %v2130
        %2144 = vmatpush.bf16.msra.mxu0 %v2129
        %2145 = vmatpush.bf16.msra.mxu0 %v2128
        %2146 = vmatpush.bf16.msra.mxu0 %v2127
        %2147 = vmatpush.bf16.msra.mxu0 %v2126
        %2148 = vmatpush.bf16.msra.mxu0 %v2125
        %2149 = vmatmul.bf16.gmra.mxu0 %v2060
        %v2150 = vpop.f32.mrf.mxu0
        %v2151 = vadd.f32 0.0, %v2150
        %v2152 = vpop.f32.mrf.mxu0
        %v2153 = vadd.f32 0.0, %v2152
        %2154 = vmatmul.bf16.gmra.mxu0 %v2061
        %v2155 = vpop.f32.mrf.mxu0
        %v2156 = vadd.f32 0.0, %v2155
        %v2157 = vpop.f32.mrf.mxu0
        %v2158 = vadd.f32 0.0, %v2157
        %2159 = vmatmul.bf16.gmra.mxu0 %v2062
        %v2160 = vpop.f32.mrf.mxu0
        %v2161 = vadd.f32 0.0, %v2160
        %v2162 = vpop.f32.mrf.mxu0
        %v2163 = vadd.f32 0.0, %v2162
        %2164 = vmatmul.bf16.gmra.mxu0 %v2063
        %v2165 = vpop.f32.mrf.mxu0
        %v2166 = vadd.f32 0.0, %v2165
        %v2167 = vpop.f32.mrf.mxu0
        %v2168 = vadd.f32 0.0, %v2167
        %2169 = vmatmul.bf16.gmra.mxu0 %v2064
        %v2170 = vpop.f32.mrf.mxu0
        %v2171 = vadd.f32 0.0, %v2170
        %v2172 = vpop.f32.mrf.mxu0
        %v2173 = vadd.f32 0.0, %v2172
        %2174 = vmatmul.bf16.gmra.mxu0 %v2065
        %v2175 = vpop.f32.mrf.mxu0
        %v2176 = vadd.f32 0.0, %v2175
        %v2177 = vpop.f32.mrf.mxu0
        %v2178 = vadd.f32 0.0, %v2177
        %2179 = vmatmul.bf16.gmra.mxu0 %v2066
        %v2180 = vpop.f32.mrf.mxu0
        %v2181 = vadd.f32 0.0, %v2180
        %v2182 = vpop.f32.mrf.mxu0
        %v2183 = vadd.f32 0.0, %v2182
        %2184 = vmatmul.bf16.gmra.mxu0 %v2067
        %v2185 = vpop.f32.mrf.mxu0
        %v2186 = vadd.f32 0.0, %v2185
        %v2187 = vpop.f32.mrf.mxu0
        %v2188 = vadd.f32 0.0, %v2187
        %2189 = vmatmul.bf16.gmra.mxu0 %v2068
        %v2190 = vpop.f32.mrf.mxu0
        %v2191 = vadd.f32 0.0, %v2190
        %v2192 = vpop.f32.mrf.mxu0
        %v2193 = vadd.f32 0.0, %v2192
        %2194 = vmatmul.bf16.gmra.mxu0 %v2069
        %v2195 = vpop.f32.mrf.mxu0
        %v2196 = vadd.f32 0.0, %v2195
        %v2197 = vpop.f32.mrf.mxu0
        %v2198 = vadd.f32 0.0, %v2197
        %2199 = vmatmul.bf16.gmra.mxu0 %v2070
        %v2200 = vpop.f32.mrf.mxu0
        %v2201 = vadd.f32 0.0, %v2200
        %v2202 = vpop.f32.mrf.mxu0
        %v2203 = vadd.f32 0.0, %v2202
        %2204 = vmatmul.bf16.gmra.mxu0 %v2071
        %v2205 = vpop.f32.mrf.mxu0
        %v2206 = vadd.f32 0.0, %v2205
        %v2207 = vpop.f32.mrf.mxu0
        %v2208 = vadd.f32 0.0, %v2207
        %2209 = vmatmul.bf16.gmra.mxu0 %v2072
        %v2210 = vpop.f32.mrf.mxu0
        %v2211 = vadd.f32 0.0, %v2210
        %v2212 = vpop.f32.mrf.mxu0
        %v2213 = vadd.f32 0.0, %v2212
        %2214 = vmatmul.bf16.gmra.mxu0 %v2073
        %v2215 = vpop.f32.mrf.mxu0
        %v2216 = vadd.f32 0.0, %v2215
        %v2217 = vpop.f32.mrf.mxu0
        %v2218 = vadd.f32 0.0, %v2217
        %2219 = vmatmul.bf16.gmra.mxu0 %v2074
        %v2220 = vpop.f32.mrf.mxu0
        %v2221 = vadd.f32 0.0, %v2220
        %v2222 = vpop.f32.mrf.mxu0
        %v2223 = vadd.f32 0.0, %v2222
        %2224 = vmatmul.bf16.gmra.mxu0 %v2075
        %v2225 = vpop.f32.mrf.mxu0
        %v2226 = vadd.f32 0.0, %v2225
        %v2227 = vpop.f32.mrf.mxu0
        %v2228 = vadd.f32 0.0, %v2227
        %2229 = vdwg.mxu0
        %v2230 = vadd.f32 %v1657, %v2151
        %v2231 = vadd.f32 %v1658, %v2153
        %v2232 = vadd.f32 %v1659, %v2156
        %v2233 = vadd.f32 %v1660, %v2158
        %v2234 = vadd.f32 %v1661, %v2161
        %v2235 = vadd.f32 %v1662, %v2163
        %v2236 = vadd.f32 %v1663, %v2166
        %v2237 = vadd.f32 %v1664, %v2168
        %v2238 = vadd.f32 %v1665, %v2171
        %v2239 = vadd.f32 %v1666, %v2173
        %v2240 = vadd.f32 %v1667, %v2176
        %v2241 = vadd.f32 %v1668, %v2178
        %v2242 = vadd.f32 %v1669, %v2181
        %v2243 = vadd.f32 %v1670, %v2183
        %v2244 = vadd.f32 %v1671, %v2186
        %v2245 = vadd.f32 %v1672, %v2188
        %v2246 = vadd.f32 %v1673, %v2191
        %v2247 = vadd.f32 %v1674, %v2193
        %v2248 = vadd.f32 %v1675, %v2196
        %v2249 = vadd.f32 %v1676, %v2198
        %v2250 = vadd.f32 %v1677, %v2201
        %v2251 = vadd.f32 %v1678, %v2203
        %v2252 = vadd.f32 %v1679, %v2206
        %v2253 = vadd.f32 %v1680, %v2208
        %v2254 = vadd.f32 %v1681, %v2211
        %v2255 = vadd.f32 %v1682, %v2213
        %v2256 = vadd.f32 %v1683, %v2216
        %v2257 = vadd.f32 %v1684, %v2218
        %v2258 = vadd.f32 %v1685, %v2221
        %v2259 = vadd.f32 %v1686, %v2223
        %v2260 = vadd.f32 %v1687, %v2226
        %v2261 = vadd.f32 %v1688, %v2228
        %s2262 = scalar_lea.vmem %s1, 768
        %v2263 = vld [vmem:[%s2262] sm:$0xff]
        %v2264 = vld [vmem:[%s2262 + $0x8] sm:$0xff]
        %v2265 = vld [vmem:[%s2262 + $0x10] sm:$0xff]
        %v2266 = vld [vmem:[%s2262 + $0x18] sm:$0xff]
        %v2267 = vld [vmem:[%s2262 + $0x20] sm:$0xff]
        %v2268 = vld [vmem:[%s2262 + $0x28] sm:$0xff]
        %v2269 = vld [vmem:[%s2262 + $0x30] sm:$0xff]
        %v2270 = vld [vmem:[%s2262 + $0x38] sm:$0xff]
        %v2271 = vld [vmem:[%s2262 + $0x40] sm:$0xff]
        %v2272 = vld [vmem:[%s2262 + $0x48] sm:$0xff]
        %v2273 = vld [vmem:[%s2262 + $0x50] sm:$0xff]
        %v2274 = vld [vmem:[%s2262 + $0x58] sm:$0xff]
        %v2275 = vld [vmem:[%s2262 + $0x60] sm:$0xff]
        %v2276 = vld [vmem:[%s2262 + $0x68] sm:$0xff]
        %v2277 = vld [vmem:[%s2262 + $0x70] sm:$0xff]
        %v2278 = vld [vmem:[%s2262 + $0x78] sm:$0xff]
        %v2279 = vld [vmem:[%s2262 + $0x80] sm:$0xff]
        %v2280 = vld [vmem:[%s2262 + $0x88] sm:$0xff]
        %v2281 = vld [vmem:[%s2262 + $0x90] sm:$0xff]
        %v2282 = vld [vmem:[%s2262 + $0x98] sm:$0xff]
        %v2283 = vld [vmem:[%s2262 + $0xa0] sm:$0xff]
        %v2284 = vld [vmem:[%s2262 + $0xa8] sm:$0xff]
        %v2285 = vld [vmem:[%s2262 + $0xb0] sm:$0xff]
        %v2286 = vld [vmem:[%s2262 + $0xb8] sm:$0xff]
        %v2287 = vld [vmem:[%s2262 + $0xc0] sm:$0xff]
        %v2288 = vld [vmem:[%s2262 + $0xc8] sm:$0xff]
        %v2289 = vld [vmem:[%s2262 + $0xd0] sm:$0xff]
        %v2290 = vld [vmem:[%s2262 + $0xd8] sm:$0xff]
        %v2291 = vld [vmem:[%s2262 + $0xe0] sm:$0xff]
        %v2292 = vld [vmem:[%s2262 + $0xe8] sm:$0xff]
        %v2293 = vld [vmem:[%s2262 + $0xf0] sm:$0xff]
        %v2294 = vld [vmem:[%s2262 + $0xf8] sm:$0xff]
        %v2327 = vunpack.c.l.b16 %v2263
        %v2328 = vunpack.c.h.b16 %v2263
        %v2329 = vunpack.c.l.b16 %v2264
        %v2330 = vunpack.c.h.b16 %v2264
        %v2331 = vunpack.c.l.b16 %v2265
        %v2332 = vunpack.c.h.b16 %v2265
        %v2333 = vunpack.c.l.b16 %v2266
        %v2334 = vunpack.c.h.b16 %v2266
        %v2335 = vunpack.c.l.b16 %v2267
        %v2336 = vunpack.c.h.b16 %v2267
        %v2337 = vunpack.c.l.b16 %v2268
        %v2338 = vunpack.c.h.b16 %v2268
        %v2339 = vunpack.c.l.b16 %v2269
        %v2340 = vunpack.c.h.b16 %v2269
        %v2341 = vunpack.c.l.b16 %v2270
        %v2342 = vunpack.c.h.b16 %v2270
        %v2343 = vunpack.c.l.b16 %v2271
        %v2344 = vunpack.c.h.b16 %v2271
        %v2345 = vunpack.c.l.b16 %v2272
        %v2346 = vunpack.c.h.b16 %v2272
        %v2347 = vunpack.c.l.b16 %v2273
        %v2348 = vunpack.c.h.b16 %v2273
        %v2349 = vunpack.c.l.b16 %v2274
        %v2350 = vunpack.c.h.b16 %v2274
        %v2351 = vunpack.c.l.b16 %v2275
        %v2352 = vunpack.c.h.b16 %v2275
        %v2353 = vunpack.c.l.b16 %v2276
        %v2354 = vunpack.c.h.b16 %v2276
        %v2355 = vunpack.c.l.b16 %v2277
        %v2356 = vunpack.c.h.b16 %v2277
        %v2357 = vunpack.c.l.b16 %v2278
        %v2358 = vunpack.c.h.b16 %v2278
        %v2359 = vunpack.c.l.b16 %v2279
        %v2360 = vunpack.c.h.b16 %v2279
        %v2361 = vunpack.c.l.b16 %v2280
        %v2362 = vunpack.c.h.b16 %v2280
        %v2363 = vunpack.c.l.b16 %v2281
        %v2364 = vunpack.c.h.b16 %v2281
        %v2365 = vunpack.c.l.b16 %v2282
        %v2366 = vunpack.c.h.b16 %v2282
        %v2367 = vunpack.c.l.b16 %v2283
        %v2368 = vunpack.c.h.b16 %v2283
        %v2369 = vunpack.c.l.b16 %v2284
        %v2370 = vunpack.c.h.b16 %v2284
        %v2371 = vunpack.c.l.b16 %v2285
        %v2372 = vunpack.c.h.b16 %v2285
        %v2373 = vunpack.c.l.b16 %v2286
        %v2374 = vunpack.c.h.b16 %v2286
        %v2375 = vunpack.c.l.b16 %v2287
        %v2376 = vunpack.c.h.b16 %v2287
        %v2377 = vunpack.c.l.b16 %v2288
        %v2378 = vunpack.c.h.b16 %v2288
        %v2379 = vunpack.c.l.b16 %v2289
        %v2380 = vunpack.c.h.b16 %v2289
        %v2381 = vunpack.c.l.b16 %v2290
        %v2382 = vunpack.c.h.b16 %v2290
        %v2383 = vunpack.c.l.b16 %v2291
        %v2384 = vunpack.c.h.b16 %v2291
        %v2385 = vunpack.c.l.b16 %v2292
        %v2386 = vunpack.c.h.b16 %v2292
        %v2387 = vunpack.c.l.b16 %v2293
        %v2388 = vunpack.c.h.b16 %v2293
        %v2389 = vunpack.c.l.b16 %v2294
        %v2390 = vunpack.c.h.b16 %v2294
        %v2391 = vpack.c.b16 %v2329, %v2327
        %v2392 = vpack.c.b16 %v2330, %v2328
        %v2393 = vpack.c.b16 %v2333, %v2331
        %v2394 = vpack.c.b16 %v2334, %v2332
        %v2395 = vpack.c.b16 %v2337, %v2335
        %v2396 = vpack.c.b16 %v2338, %v2336
        %v2397 = vpack.c.b16 %v2341, %v2339
        %v2398 = vpack.c.b16 %v2342, %v2340
        %v2399 = vpack.c.b16 %v2345, %v2343
        %v2400 = vpack.c.b16 %v2346, %v2344
        %v2401 = vpack.c.b16 %v2349, %v2347
        %v2402 = vpack.c.b16 %v2350, %v2348
        %v2403 = vpack.c.b16 %v2353, %v2351
        %v2404 = vpack.c.b16 %v2354, %v2352
        %v2405 = vpack.c.b16 %v2357, %v2355
        %v2406 = vpack.c.b16 %v2358, %v2356
        %v2407 = vpack.c.b16 %v2361, %v2359
        %v2408 = vpack.c.b16 %v2362, %v2360
        %v2409 = vpack.c.b16 %v2365, %v2363
        %v2410 = vpack.c.b16 %v2366, %v2364
        %v2411 = vpack.c.b16 %v2369, %v2367
        %v2412 = vpack.c.b16 %v2370, %v2368
        %v2413 = vpack.c.b16 %v2373, %v2371
        %v2414 = vpack.c.b16 %v2374, %v2372
        %v2415 = vpack.c.b16 %v2377, %v2375
        %v2416 = vpack.c.b16 %v2378, %v2376
        %v2417 = vpack.c.b16 %v2381, %v2379
        %v2418 = vpack.c.b16 %v2382, %v2380
        %v2419 = vpack.c.b16 %v2385, %v2383
        %v2420 = vpack.c.b16 %v2386, %v2384
        %v2421 = vpack.c.b16 %v2389, %v2387
        %v2422 = vpack.c.b16 %v2390, %v2388
        %2455 = vmatpush.bf16.msra.mxu0 %v712
        %2456 = vmatpush.bf16.msra.mxu0 %v711
        %2457 = vmatpush.bf16.msra.mxu0 %v710
        %2458 = vmatpush.bf16.msra.mxu0 %v709
        %2459 = vmatpush.bf16.msra.mxu0 %v708
        %2460 = vmatpush.bf16.msra.mxu0 %v707
        %2461 = vmatpush.bf16.msra.mxu0 %v706
        %2462 = vmatpush.bf16.msra.mxu0 %v705
        %2463 = vmatmul.bf16.gmra.mxu0 %v2391
        %v2464 = vpop.f32.mrf.mxu0
        %v2465 = vadd.f32 0.0, %v2464
        %v2466 = vpop.f32.mrf.mxu0
        %v2467 = vadd.f32 0.0, %v2466
        %2468 = vmatmul.bf16.gmra.mxu0 %v2393
        %v2469 = vpop.f32.mrf.mxu0
        %v2470 = vadd.f32 0.0, %v2469
        %v2471 = vpop.f32.mrf.mxu0
        %v2472 = vadd.f32 0.0, %v2471
        %2473 = vmatmul.bf16.gmra.mxu0 %v2395
        %v2474 = vpop.f32.mrf.mxu0
        %v2475 = vadd.f32 0.0, %v2474
        %v2476 = vpop.f32.mrf.mxu0
        %v2477 = vadd.f32 0.0, %v2476
        %2478 = vmatmul.bf16.gmra.mxu0 %v2397
        %v2479 = vpop.f32.mrf.mxu0
        %v2480 = vadd.f32 0.0, %v2479
        %v2481 = vpop.f32.mrf.mxu0
        %v2482 = vadd.f32 0.0, %v2481
        %2483 = vmatmul.bf16.gmra.mxu0 %v2399
        %v2484 = vpop.f32.mrf.mxu0
        %v2485 = vadd.f32 0.0, %v2484
        %v2486 = vpop.f32.mrf.mxu0
        %v2487 = vadd.f32 0.0, %v2486
        %2488 = vmatmul.bf16.gmra.mxu0 %v2401
        %v2489 = vpop.f32.mrf.mxu0
        %v2490 = vadd.f32 0.0, %v2489
        %v2491 = vpop.f32.mrf.mxu0
        %v2492 = vadd.f32 0.0, %v2491
        %2493 = vmatmul.bf16.gmra.mxu0 %v2403
        %v2494 = vpop.f32.mrf.mxu0
        %v2495 = vadd.f32 0.0, %v2494
        %v2496 = vpop.f32.mrf.mxu0
        %v2497 = vadd.f32 0.0, %v2496
        %2498 = vmatmul.bf16.gmra.mxu0 %v2405
        %v2499 = vpop.f32.mrf.mxu0
        %v2500 = vadd.f32 0.0, %v2499
        %v2501 = vpop.f32.mrf.mxu0
        %v2502 = vadd.f32 0.0, %v2501
        %2503 = vmatmul.bf16.gmra.mxu0 %v2407
        %v2504 = vpop.f32.mrf.mxu0
        %v2505 = vadd.f32 0.0, %v2504
        %v2506 = vpop.f32.mrf.mxu0
        %v2507 = vadd.f32 0.0, %v2506
        %2508 = vmatmul.bf16.gmra.mxu0 %v2409
        %v2509 = vpop.f32.mrf.mxu0
        %v2510 = vadd.f32 0.0, %v2509
        %v2511 = vpop.f32.mrf.mxu0
        %v2512 = vadd.f32 0.0, %v2511
        %2513 = vmatmul.bf16.gmra.mxu0 %v2411
        %v2514 = vpop.f32.mrf.mxu0
        %v2515 = vadd.f32 0.0, %v2514
        %v2516 = vpop.f32.mrf.mxu0
        %v2517 = vadd.f32 0.0, %v2516
        %2518 = vmatmul.bf16.gmra.mxu0 %v2413
        %v2519 = vpop.f32.mrf.mxu0
        %v2520 = vadd.f32 0.0, %v2519
        %v2521 = vpop.f32.mrf.mxu0
        %v2522 = vadd.f32 0.0, %v2521
        %2523 = vmatmul.bf16.gmra.mxu0 %v2415
        %v2524 = vpop.f32.mrf.mxu0
        %v2525 = vadd.f32 0.0, %v2524
        %v2526 = vpop.f32.mrf.mxu0
        %v2527 = vadd.f32 0.0, %v2526
        %2528 = vmatmul.bf16.gmra.mxu0 %v2417
        %v2529 = vpop.f32.mrf.mxu0
        %v2530 = vadd.f32 0.0, %v2529
        %v2531 = vpop.f32.mrf.mxu0
        %v2532 = vadd.f32 0.0, %v2531
        %2533 = vmatmul.bf16.gmra.mxu0 %v2419
        %v2534 = vpop.f32.mrf.mxu0
        %v2535 = vadd.f32 0.0, %v2534
        %v2536 = vpop.f32.mrf.mxu0
        %v2537 = vadd.f32 0.0, %v2536
        %2538 = vmatmul.bf16.gmra.mxu0 %v2421
        %v2539 = vpop.f32.mrf.mxu0
        %v2540 = vadd.f32 0.0, %v2539
        %v2541 = vpop.f32.mrf.mxu0
        %v2542 = vadd.f32 0.0, %v2541
        %2543 = vdwg.mxu0
        %2544 = vmatpush.bf16.msra.mxu0 %v720
        %2545 = vmatpush.bf16.msra.mxu0 %v719
        %2546 = vmatpush.bf16.msra.mxu0 %v718
        %2547 = vmatpush.bf16.msra.mxu0 %v717
        %2548 = vmatpush.bf16.msra.mxu0 %v716
        %2549 = vmatpush.bf16.msra.mxu0 %v715
        %2550 = vmatpush.bf16.msra.mxu0 %v714
        %2551 = vmatpush.bf16.msra.mxu0 %v713
        %2552 = vmatmul.bf16.gmra.mxu0 %v2392
        %v2553 = vpop.f32.mrf.mxu0
        %v2554 = vadd.f32 %v2465, %v2553
        %v2555 = vpop.f32.mrf.mxu0
        %v2556 = vadd.f32 %v2467, %v2555
        %2557 = vmatmul.bf16.gmra.mxu0 %v2394
        %v2558 = vpop.f32.mrf.mxu0
        %v2559 = vadd.f32 %v2470, %v2558
        %v2560 = vpop.f32.mrf.mxu0
        %v2561 = vadd.f32 %v2472, %v2560
        %2562 = vmatmul.bf16.gmra.mxu0 %v2396
        %v2563 = vpop.f32.mrf.mxu0
        %v2564 = vadd.f32 %v2475, %v2563
        %v2565 = vpop.f32.mrf.mxu0
        %v2566 = vadd.f32 %v2477, %v2565
        %2567 = vmatmul.bf16.gmra.mxu0 %v2398
        %v2568 = vpop.f32.mrf.mxu0
        %v2569 = vadd.f32 %v2480, %v2568
        %v2570 = vpop.f32.mrf.mxu0
        %v2571 = vadd.f32 %v2482, %v2570
        %2572 = vmatmul.bf16.gmra.mxu0 %v2400
        %v2573 = vpop.f32.mrf.mxu0
        %v2574 = vadd.f32 %v2485, %v2573
        %v2575 = vpop.f32.mrf.mxu0
        %v2576 = vadd.f32 %v2487, %v2575
        %2577 = vmatmul.bf16.gmra.mxu0 %v2402
        %v2578 = vpop.f32.mrf.mxu0
        %v2579 = vadd.f32 %v2490, %v2578
        %v2580 = vpop.f32.mrf.mxu0
        %v2581 = vadd.f32 %v2492, %v2580
        %2582 = vmatmul.bf16.gmra.mxu0 %v2404
        %v2583 = vpop.f32.mrf.mxu0
        %v2584 = vadd.f32 %v2495, %v2583
        %v2585 = vpop.f32.mrf.mxu0
        %v2586 = vadd.f32 %v2497, %v2585
        %2587 = vmatmul.bf16.gmra.mxu0 %v2406
        %v2588 = vpop.f32.mrf.mxu0
        %v2589 = vadd.f32 %v2500, %v2588
        %v2590 = vpop.f32.mrf.mxu0
        %v2591 = vadd.f32 %v2502, %v2590
        %2592 = vmatmul.bf16.gmra.mxu0 %v2408
        %v2593 = vpop.f32.mrf.mxu0
        %v2594 = vadd.f32 %v2505, %v2593
        %v2595 = vpop.f32.mrf.mxu0
        %v2596 = vadd.f32 %v2507, %v2595
        %2597 = vmatmul.bf16.gmra.mxu0 %v2410
        %v2598 = vpop.f32.mrf.mxu0
        %v2599 = vadd.f32 %v2510, %v2598
        %v2600 = vpop.f32.mrf.mxu0
        %v2601 = vadd.f32 %v2512, %v2600
        %2602 = vmatmul.bf16.gmra.mxu0 %v2412
        %v2603 = vpop.f32.mrf.mxu0
        %v2604 = vadd.f32 %v2515, %v2603
        %v2605 = vpop.f32.mrf.mxu0
        %v2606 = vadd.f32 %v2517, %v2605
        %2607 = vmatmul.bf16.gmra.mxu0 %v2414
        %v2608 = vpop.f32.mrf.mxu0
        %v2609 = vadd.f32 %v2520, %v2608
        %v2610 = vpop.f32.mrf.mxu0
        %v2611 = vadd.f32 %v2522, %v2610
        %2612 = vmatmul.bf16.gmra.mxu0 %v2416
        %v2613 = vpop.f32.mrf.mxu0
        %v2614 = vadd.f32 %v2525, %v2613
        %v2615 = vpop.f32.mrf.mxu0
        %v2616 = vadd.f32 %v2527, %v2615
        %2617 = vmatmul.bf16.gmra.mxu0 %v2418
        %v2618 = vpop.f32.mrf.mxu0
        %v2619 = vadd.f32 %v2530, %v2618
        %v2620 = vpop.f32.mrf.mxu0
        %v2621 = vadd.f32 %v2532, %v2620
        %2622 = vmatmul.bf16.gmra.mxu0 %v2420
        %v2623 = vpop.f32.mrf.mxu0
        %v2624 = vadd.f32 %v2535, %v2623
        %v2625 = vpop.f32.mrf.mxu0
        %v2626 = vadd.f32 %v2537, %v2625
        %2627 = vmatmul.bf16.gmra.mxu0 %v2422
        %v2628 = vpop.f32.mrf.mxu0
        %v2629 = vadd.f32 %v2540, %v2628
        %v2630 = vpop.f32.mrf.mxu0
        %v2631 = vadd.f32 %v2542, %v2630
        %2632 = vdwg.mxu0
        %v2633 = vpack.c.bf16 %v2556, %v2554
        %v2634 = vpack.c.bf16 %v2561, %v2559
        %v2635 = vpack.c.bf16 %v2566, %v2564
        %v2636 = vpack.c.bf16 %v2571, %v2569
        %v2637 = vpack.c.bf16 %v2576, %v2574
        %v2638 = vpack.c.bf16 %v2581, %v2579
        %v2639 = vpack.c.bf16 %v2586, %v2584
        %v2640 = vpack.c.bf16 %v2591, %v2589
        %v2641 = vpack.c.bf16 %v2596, %v2594
        %v2642 = vpack.c.bf16 %v2601, %v2599
        %v2643 = vpack.c.bf16 %v2606, %v2604
        %v2644 = vpack.c.bf16 %v2611, %v2609
        %v2645 = vpack.c.bf16 %v2616, %v2614
        %v2646 = vpack.c.bf16 %v2621, %v2619
        %v2647 = vpack.c.bf16 %v2626, %v2624
        %v2648 = vpack.c.bf16 %v2631, %v2629
        %s2649 = scalar_lea.vmem %s2, 192
        %v2650 = vld [vmem:[%s2649] sm:$0xf]
        %v2651 = vld [vmem:[%s2649 + $0x4] sm:$0xf]
        %v2652 = vld [vmem:[%s2649 + $0x8] sm:$0xf]
        %v2653 = vld [vmem:[%s2649 + $0xc] sm:$0xf]
        %v2654 = vld [vmem:[%s2649 + $0x10] sm:$0xf]
        %v2655 = vld [vmem:[%s2649 + $0x14] sm:$0xf]
        %v2656 = vld [vmem:[%s2649 + $0x18] sm:$0xf]
        %v2657 = vld [vmem:[%s2649 + $0x1c] sm:$0xf]
        %v2658 = vld [vmem:[%s2649 + $0x20] sm:$0xf]
        %v2659 = vld [vmem:[%s2649 + $0x24] sm:$0xf]
        %v2660 = vld [vmem:[%s2649 + $0x28] sm:$0xf]
        %v2661 = vld [vmem:[%s2649 + $0x2c] sm:$0xf]
        %v2662 = vld [vmem:[%s2649 + $0x30] sm:$0xf]
        %v2663 = vld [vmem:[%s2649 + $0x34] sm:$0xf]
        %v2664 = vld [vmem:[%s2649 + $0x38] sm:$0xf]
        %v2665 = vld [vmem:[%s2649 + $0x3c] sm:$0xf]
        %v2682 = vunpack.c.l.b16 %v2650
        %v2683 = vunpack.c.l.b16 %v2651
        %v2684 = vunpack.c.l.b16 %v2652
        %v2685 = vunpack.c.l.b16 %v2653
        %v2686 = vunpack.c.l.b16 %v2654
        %v2687 = vunpack.c.l.b16 %v2655
        %v2688 = vunpack.c.l.b16 %v2656
        %v2689 = vunpack.c.l.b16 %v2657
        %v2690 = vunpack.c.l.b16 %v2658
        %v2691 = vunpack.c.l.b16 %v2659
        %v2692 = vunpack.c.l.b16 %v2660
        %v2693 = vunpack.c.l.b16 %v2661
        %v2694 = vunpack.c.l.b16 %v2662
        %v2695 = vunpack.c.l.b16 %v2663
        %v2696 = vunpack.c.l.b16 %v2664
        %v2697 = vunpack.c.l.b16 %v2665
        %v2698 = vpack.c.b16 %v2683, %v2682
        %v2699 = vpack.c.b16 %v2685, %v2684
        %v2700 = vpack.c.b16 %v2687, %v2686
        %v2701 = vpack.c.b16 %v2689, %v2688
        %v2702 = vpack.c.b16 %v2691, %v2690
        %v2703 = vpack.c.b16 %v2693, %v2692
        %v2704 = vpack.c.b16 %v2695, %v2694
        %v2705 = vpack.c.b16 %v2697, %v2696
        %2714 = vmatpush.bf16.msra.mxu0 %v2705
        %2715 = vmatpush.bf16.msra.mxu0 %v2704
        %2716 = vmatpush.bf16.msra.mxu0 %v2703
        %2717 = vmatpush.bf16.msra.mxu0 %v2702
        %2718 = vmatpush.bf16.msra.mxu0 %v2701
        %2719 = vmatpush.bf16.msra.mxu0 %v2700
        %2720 = vmatpush.bf16.msra.mxu0 %v2699
        %2721 = vmatpush.bf16.msra.mxu0 %v2698
        %2722 = vmatmul.bf16.gmra.mxu0 %v2633
        %v2723 = vpop.f32.mrf.mxu0
        %v2724 = vadd.f32 0.0, %v2723
        %v2725 = vpop.f32.mrf.mxu0
        %v2726 = vadd.f32 0.0, %v2725
        %2727 = vmatmul.bf16.gmra.mxu0 %v2634
        %v2728 = vpop.f32.mrf.mxu0
        %v2729 = vadd.f32 0.0, %v2728
        %v2730 = vpop.f32.mrf.mxu0
        %v2731 = vadd.f32 0.0, %v2730
        %2732 = vmatmul.bf16.gmra.mxu0 %v2635
        %v2733 = vpop.f32.mrf.mxu0
        %v2734 = vadd.f32 0.0, %v2733
        %v2735 = vpop.f32.mrf.mxu0
        %v2736 = vadd.f32 0.0, %v2735
        %2737 = vmatmul.bf16.gmra.mxu0 %v2636
        %v2738 = vpop.f32.mrf.mxu0
        %v2739 = vadd.f32 0.0, %v2738
        %v2740 = vpop.f32.mrf.mxu0
        %v2741 = vadd.f32 0.0, %v2740
        %2742 = vmatmul.bf16.gmra.mxu0 %v2637
        %v2743 = vpop.f32.mrf.mxu0
        %v2744 = vadd.f32 0.0, %v2743
        %v2745 = vpop.f32.mrf.mxu0
        %v2746 = vadd.f32 0.0, %v2745
        %2747 = vmatmul.bf16.gmra.mxu0 %v2638
        %v2748 = vpop.f32.mrf.mxu0
        %v2749 = vadd.f32 0.0, %v2748
        %v2750 = vpop.f32.mrf.mxu0
        %v2751 = vadd.f32 0.0, %v2750
        %2752 = vmatmul.bf16.gmra.mxu0 %v2639
        %v2753 = vpop.f32.mrf.mxu0
        %v2754 = vadd.f32 0.0, %v2753
        %v2755 = vpop.f32.mrf.mxu0
        %v2756 = vadd.f32 0.0, %v2755
        %2757 = vmatmul.bf16.gmra.mxu0 %v2640
        %v2758 = vpop.f32.mrf.mxu0
        %v2759 = vadd.f32 0.0, %v2758
        %v2760 = vpop.f32.mrf.mxu0
        %v2761 = vadd.f32 0.0, %v2760
        %2762 = vmatmul.bf16.gmra.mxu0 %v2641
        %v2763 = vpop.f32.mrf.mxu0
        %v2764 = vadd.f32 0.0, %v2763
        %v2765 = vpop.f32.mrf.mxu0
        %v2766 = vadd.f32 0.0, %v2765
        %2767 = vmatmul.bf16.gmra.mxu0 %v2642
        %v2768 = vpop.f32.mrf.mxu0
        %v2769 = vadd.f32 0.0, %v2768
        %v2770 = vpop.f32.mrf.mxu0
        %v2771 = vadd.f32 0.0, %v2770
        %2772 = vmatmul.bf16.gmra.mxu0 %v2643
        %v2773 = vpop.f32.mrf.mxu0
        %v2774 = vadd.f32 0.0, %v2773
        %v2775 = vpop.f32.mrf.mxu0
        %v2776 = vadd.f32 0.0, %v2775
        %2777 = vmatmul.bf16.gmra.mxu0 %v2644
        %v2778 = vpop.f32.mrf.mxu0
        %v2779 = vadd.f32 0.0, %v2778
        %v2780 = vpop.f32.mrf.mxu0
        %v2781 = vadd.f32 0.0, %v2780
        %2782 = vmatmul.bf16.gmra.mxu0 %v2645
        %v2783 = vpop.f32.mrf.mxu0
        %v2784 = vadd.f32 0.0, %v2783
        %v2785 = vpop.f32.mrf.mxu0
        %v2786 = vadd.f32 0.0, %v2785
        %2787 = vmatmul.bf16.gmra.mxu0 %v2646
        %v2788 = vpop.f32.mrf.mxu0
        %v2789 = vadd.f32 0.0, %v2788
        %v2790 = vpop.f32.mrf.mxu0
        %v2791 = vadd.f32 0.0, %v2790
        %2792 = vmatmul.bf16.gmra.mxu0 %v2647
        %v2793 = vpop.f32.mrf.mxu0
        %v2794 = vadd.f32 0.0, %v2793
        %v2795 = vpop.f32.mrf.mxu0
        %v2796 = vadd.f32 0.0, %v2795
        %2797 = vmatmul.bf16.gmra.mxu0 %v2648
        %v2798 = vpop.f32.mrf.mxu0
        %v2799 = vadd.f32 0.0, %v2798
        %v2800 = vpop.f32.mrf.mxu0
        %v2801 = vadd.f32 0.0, %v2800
        %2802 = vdwg.mxu0
        %v2803 = vadd.f32 %v2230, %v2724
        %v2804 = vadd.f32 %v2231, %v2726
        %v2805 = vadd.f32 %v2232, %v2729
        %v2806 = vadd.f32 %v2233, %v2731
        %v2807 = vadd.f32 %v2234, %v2734
        %v2808 = vadd.f32 %v2235, %v2736
        %v2809 = vadd.f32 %v2236, %v2739
        %v2810 = vadd.f32 %v2237, %v2741
        %v2811 = vadd.f32 %v2238, %v2744
        %v2812 = vadd.f32 %v2239, %v2746
        %v2813 = vadd.f32 %v2240, %v2749
        %v2814 = vadd.f32 %v2241, %v2751
        %v2815 = vadd.f32 %v2242, %v2754
        %v2816 = vadd.f32 %v2243, %v2756
        %v2817 = vadd.f32 %v2244, %v2759
        %v2818 = vadd.f32 %v2245, %v2761
        %v2819 = vadd.f32 %v2246, %v2764
        %v2820 = vadd.f32 %v2247, %v2766
        %v2821 = vadd.f32 %v2248, %v2769
        %v2822 = vadd.f32 %v2249, %v2771
        %v2823 = vadd.f32 %v2250, %v2774
        %v2824 = vadd.f32 %v2251, %v2776
        %v2825 = vadd.f32 %v2252, %v2779
        %v2826 = vadd.f32 %v2253, %v2781
        %v2827 = vadd.f32 %v2254, %v2784
        %v2828 = vadd.f32 %v2255, %v2786
        %v2829 = vadd.f32 %v2256, %v2789
        %v2830 = vadd.f32 %v2257, %v2791
        %v2831 = vadd.f32 %v2258, %v2794
        %v2832 = vadd.f32 %v2259, %v2796
        %v2833 = vadd.f32 %v2260, %v2799
        %v2834 = vadd.f32 %v2261, %v2801
        %s2835 = scalar_lea.vmem %s1, 1024
        %v2836 = vld [vmem:[%s2835] sm:$0xff]
        %v2837 = vld [vmem:[%s2835 + $0x8] sm:$0xff]
        %v2838 = vld [vmem:[%s2835 + $0x10] sm:$0xff]
        %v2839 = vld [vmem:[%s2835 + $0x18] sm:$0xff]
        %v2840 = vld [vmem:[%s2835 + $0x20] sm:$0xff]
        %v2841 = vld [vmem:[%s2835 + $0x28] sm:$0xff]
        %v2842 = vld [vmem:[%s2835 + $0x30] sm:$0xff]
        %v2843 = vld [vmem:[%s2835 + $0x38] sm:$0xff]
        %v2844 = vld [vmem:[%s2835 + $0x40] sm:$0xff]
        %v2845 = vld [vmem:[%s2835 + $0x48] sm:$0xff]
        %v2846 = vld [vmem:[%s2835 + $0x50] sm:$0xff]
        %v2847 = vld [vmem:[%s2835 + $0x58] sm:$0xff]
        %v2848 = vld [vmem:[%s2835 + $0x60] sm:$0xff]
        %v2849 = vld [vmem:[%s2835 + $0x68] sm:$0xff]
        %v2850 = vld [vmem:[%s2835 + $0x70] sm:$0xff]
        %v2851 = vld [vmem:[%s2835 + $0x78] sm:$0xff]
        %v2852 = vld [vmem:[%s2835 + $0x80] sm:$0xff]
        %v2853 = vld [vmem:[%s2835 + $0x88] sm:$0xff]
        %v2854 = vld [vmem:[%s2835 + $0x90] sm:$0xff]
        %v2855 = vld [vmem:[%s2835 + $0x98] sm:$0xff]
        %v2856 = vld [vmem:[%s2835 + $0xa0] sm:$0xff]
        %v2857 = vld [vmem:[%s2835 + $0xa8] sm:$0xff]
        %v2858 = vld [vmem:[%s2835 + $0xb0] sm:$0xff]
        %v2859 = vld [vmem:[%s2835 + $0xb8] sm:$0xff]
        %v2860 = vld [vmem:[%s2835 + $0xc0] sm:$0xff]
        %v2861 = vld [vmem:[%s2835 + $0xc8] sm:$0xff]
        %v2862 = vld [vmem:[%s2835 + $0xd0] sm:$0xff]
        %v2863 = vld [vmem:[%s2835 + $0xd8] sm:$0xff]
        %v2864 = vld [vmem:[%s2835 + $0xe0] sm:$0xff]
        %v2865 = vld [vmem:[%s2835 + $0xe8] sm:$0xff]
        %v2866 = vld [vmem:[%s2835 + $0xf0] sm:$0xff]
        %v2867 = vld [vmem:[%s2835 + $0xf8] sm:$0xff]
        %v2900 = vunpack.c.l.b16 %v2836
        %v2901 = vunpack.c.h.b16 %v2836
        %v2902 = vunpack.c.l.b16 %v2837
        %v2903 = vunpack.c.h.b16 %v2837
        %v2904 = vunpack.c.l.b16 %v2838
        %v2905 = vunpack.c.h.b16 %v2838
        %v2906 = vunpack.c.l.b16 %v2839
        %v2907 = vunpack.c.h.b16 %v2839
        %v2908 = vunpack.c.l.b16 %v2840
        %v2909 = vunpack.c.h.b16 %v2840
        %v2910 = vunpack.c.l.b16 %v2841
        %v2911 = vunpack.c.h.b16 %v2841
        %v2912 = vunpack.c.l.b16 %v2842
        %v2913 = vunpack.c.h.b16 %v2842
        %v2914 = vunpack.c.l.b16 %v2843
        %v2915 = vunpack.c.h.b16 %v2843
        %v2916 = vunpack.c.l.b16 %v2844
        %v2917 = vunpack.c.h.b16 %v2844
        %v2918 = vunpack.c.l.b16 %v2845
        %v2919 = vunpack.c.h.b16 %v2845
        %v2920 = vunpack.c.l.b16 %v2846
        %v2921 = vunpack.c.h.b16 %v2846
        %v2922 = vunpack.c.l.b16 %v2847
        %v2923 = vunpack.c.h.b16 %v2847
        %v2924 = vunpack.c.l.b16 %v2848
        %v2925 = vunpack.c.h.b16 %v2848
        %v2926 = vunpack.c.l.b16 %v2849
        %v2927 = vunpack.c.h.b16 %v2849
        %v2928 = vunpack.c.l.b16 %v2850
        %v2929 = vunpack.c.h.b16 %v2850
        %v2930 = vunpack.c.l.b16 %v2851
        %v2931 = vunpack.c.h.b16 %v2851
        %v2932 = vunpack.c.l.b16 %v2852
        %v2933 = vunpack.c.h.b16 %v2852
        %v2934 = vunpack.c.l.b16 %v2853
        %v2935 = vunpack.c.h.b16 %v2853
        %v2936 = vunpack.c.l.b16 %v2854
        %v2937 = vunpack.c.h.b16 %v2854
        %v2938 = vunpack.c.l.b16 %v2855
        %v2939 = vunpack.c.h.b16 %v2855
        %v2940 = vunpack.c.l.b16 %v2856
        %v2941 = vunpack.c.h.b16 %v2856
        %v2942 = vunpack.c.l.b16 %v2857
        %v2943 = vunpack.c.h.b16 %v2857
        %v2944 = vunpack.c.l.b16 %v2858
        %v2945 = vunpack.c.h.b16 %v2858
        %v2946 = vunpack.c.l.b16 %v2859
        %v2947 = vunpack.c.h.b16 %v2859
        %v2948 = vunpack.c.l.b16 %v2860
        %v2949 = vunpack.c.h.b16 %v2860
        %v2950 = vunpack.c.l.b16 %v2861
        %v2951 = vunpack.c.h.b16 %v2861
        %v2952 = vunpack.c.l.b16 %v2862
        %v2953 = vunpack.c.h.b16 %v2862
        %v2954 = vunpack.c.l.b16 %v2863
        %v2955 = vunpack.c.h.b16 %v2863
        %v2956 = vunpack.c.l.b16 %v2864
        %v2957 = vunpack.c.h.b16 %v2864
        %v2958 = vunpack.c.l.b16 %v2865
        %v2959 = vunpack.c.h.b16 %v2865
        %v2960 = vunpack.c.l.b16 %v2866
        %v2961 = vunpack.c.h.b16 %v2866
        %v2962 = vunpack.c.l.b16 %v2867
        %v2963 = vunpack.c.h.b16 %v2867
        %v2964 = vpack.c.b16 %v2902, %v2900
        %v2965 = vpack.c.b16 %v2903, %v2901
        %v2966 = vpack.c.b16 %v2906, %v2904
        %v2967 = vpack.c.b16 %v2907, %v2905
        %v2968 = vpack.c.b16 %v2910, %v2908
        %v2969 = vpack.c.b16 %v2911, %v2909
        %v2970 = vpack.c.b16 %v2914, %v2912
        %v2971 = vpack.c.b16 %v2915, %v2913
        %v2972 = vpack.c.b16 %v2918, %v2916
        %v2973 = vpack.c.b16 %v2919, %v2917
        %v2974 = vpack.c.b16 %v2922, %v2920
        %v2975 = vpack.c.b16 %v2923, %v2921
        %v2976 = vpack.c.b16 %v2926, %v2924
        %v2977 = vpack.c.b16 %v2927, %v2925
        %v2978 = vpack.c.b16 %v2930, %v2928
        %v2979 = vpack.c.b16 %v2931, %v2929
        %v2980 = vpack.c.b16 %v2934, %v2932
        %v2981 = vpack.c.b16 %v2935, %v2933
        %v2982 = vpack.c.b16 %v2938, %v2936
        %v2983 = vpack.c.b16 %v2939, %v2937
        %v2984 = vpack.c.b16 %v2942, %v2940
        %v2985 = vpack.c.b16 %v2943, %v2941
        %v2986 = vpack.c.b16 %v2946, %v2944
        %v2987 = vpack.c.b16 %v2947, %v2945
        %v2988 = vpack.c.b16 %v2950, %v2948
        %v2989 = vpack.c.b16 %v2951, %v2949
        %v2990 = vpack.c.b16 %v2954, %v2952
        %v2991 = vpack.c.b16 %v2955, %v2953
        %v2992 = vpack.c.b16 %v2958, %v2956
        %v2993 = vpack.c.b16 %v2959, %v2957
        %v2994 = vpack.c.b16 %v2962, %v2960
        %v2995 = vpack.c.b16 %v2963, %v2961
        %3028 = vmatpush.bf16.msra.mxu0 %v712
        %3029 = vmatpush.bf16.msra.mxu0 %v711
        %3030 = vmatpush.bf16.msra.mxu0 %v710
        %3031 = vmatpush.bf16.msra.mxu0 %v709
        %3032 = vmatpush.bf16.msra.mxu0 %v708
        %3033 = vmatpush.bf16.msra.mxu0 %v707
        %3034 = vmatpush.bf16.msra.mxu0 %v706
        %3035 = vmatpush.bf16.msra.mxu0 %v705
        %3036 = vmatmul.bf16.gmra.mxu0 %v2964
        %v3037 = vpop.f32.mrf.mxu0
        %v3038 = vadd.f32 0.0, %v3037
        %v3039 = vpop.f32.mrf.mxu0
        %v3040 = vadd.f32 0.0, %v3039
        %3041 = vmatmul.bf16.gmra.mxu0 %v2966
        %v3042 = vpop.f32.mrf.mxu0
        %v3043 = vadd.f32 0.0, %v3042
        %v3044 = vpop.f32.mrf.mxu0
        %v3045 = vadd.f32 0.0, %v3044
        %3046 = vmatmul.bf16.gmra.mxu0 %v2968
        %v3047 = vpop.f32.mrf.mxu0
        %v3048 = vadd.f32 0.0, %v3047
        %v3049 = vpop.f32.mrf.mxu0
        %v3050 = vadd.f32 0.0, %v3049
        %3051 = vmatmul.bf16.gmra.mxu0 %v2970
        %v3052 = vpop.f32.mrf.mxu0
        %v3053 = vadd.f32 0.0, %v3052
        %v3054 = vpop.f32.mrf.mxu0
        %v3055 = vadd.f32 0.0, %v3054
        %3056 = vmatmul.bf16.gmra.mxu0 %v2972
        %v3057 = vpop.f32.mrf.mxu0
        %v3058 = vadd.f32 0.0, %v3057
        %v3059 = vpop.f32.mrf.mxu0
        %v3060 = vadd.f32 0.0, %v3059
        %3061 = vmatmul.bf16.gmra.mxu0 %v2974
        %v3062 = vpop.f32.mrf.mxu0
        %v3063 = vadd.f32 0.0, %v3062
        %v3064 = vpop.f32.mrf.mxu0
        %v3065 = vadd.f32 0.0, %v3064
        %3066 = vmatmul.bf16.gmra.mxu0 %v2976
        %v3067 = vpop.f32.mrf.mxu0
        %v3068 = vadd.f32 0.0, %v3067
        %v3069 = vpop.f32.mrf.mxu0
        %v3070 = vadd.f32 0.0, %v3069
        %3071 = vmatmul.bf16.gmra.mxu0 %v2978
        %v3072 = vpop.f32.mrf.mxu0
        %v3073 = vadd.f32 0.0, %v3072
        %v3074 = vpop.f32.mrf.mxu0
        %v3075 = vadd.f32 0.0, %v3074
        %3076 = vmatmul.bf16.gmra.mxu0 %v2980
        %v3077 = vpop.f32.mrf.mxu0
        %v3078 = vadd.f32 0.0, %v3077
        %v3079 = vpop.f32.mrf.mxu0
        %v3080 = vadd.f32 0.0, %v3079
        %3081 = vmatmul.bf16.gmra.mxu0 %v2982
        %v3082 = vpop.f32.mrf.mxu0
        %v3083 = vadd.f32 0.0, %v3082
        %v3084 = vpop.f32.mrf.mxu0
        %v3085 = vadd.f32 0.0, %v3084
        %3086 = vmatmul.bf16.gmra.mxu0 %v2984
        %v3087 = vpop.f32.mrf.mxu0
        %v3088 = vadd.f32 0.0, %v3087
        %v3089 = vpop.f32.mrf.mxu0
        %v3090 = vadd.f32 0.0, %v3089
        %3091 = vmatmul.bf16.gmra.mxu0 %v2986
        %v3092 = vpop.f32.mrf.mxu0
        %v3093 = vadd.f32 0.0, %v3092
        %v3094 = vpop.f32.mrf.mxu0
        %v3095 = vadd.f32 0.0, %v3094
        %3096 = vmatmul.bf16.gmra.mxu0 %v2988
        %v3097 = vpop.f32.mrf.mxu0
        %v3098 = vadd.f32 0.0, %v3097
        %v3099 = vpop.f32.mrf.mxu0
        %v3100 = vadd.f32 0.0, %v3099
        %3101 = vmatmul.bf16.gmra.mxu0 %v2990
        %v3102 = vpop.f32.mrf.mxu0
        %v3103 = vadd.f32 0.0, %v3102
        %v3104 = vpop.f32.mrf.mxu0
        %v3105 = vadd.f32 0.0, %v3104
        %3106 = vmatmul.bf16.gmra.mxu0 %v2992
        %v3107 = vpop.f32.mrf.mxu0
        %v3108 = vadd.f32 0.0, %v3107
        %v3109 = vpop.f32.mrf.mxu0
        %v3110 = vadd.f32 0.0, %v3109
        %3111 = vmatmul.bf16.gmra.mxu0 %v2994
        %v3112 = vpop.f32.mrf.mxu0
        %v3113 = vadd.f32 0.0, %v3112
        %v3114 = vpop.f32.mrf.mxu0
        %v3115 = vadd.f32 0.0, %v3114
        %3116 = vdwg.mxu0
        %3117 = vmatpush.bf16.msra.mxu0 %v720
        %3118 = vmatpush.bf16.msra.mxu0 %v719
        %3119 = vmatpush.bf16.msra.mxu0 %v718
        %3120 = vmatpush.bf16.msra.mxu0 %v717
        %3121 = vmatpush.bf16.msra.mxu0 %v716
        %3122 = vmatpush.bf16.msra.mxu0 %v715
        %3123 = vmatpush.bf16.msra.mxu0 %v714
        %3124 = vmatpush.bf16.msra.mxu0 %v713
        %3125 = vmatmul.bf16.gmra.mxu0 %v2965
        %v3126 = vpop.f32.mrf.mxu0
        %v3127 = vadd.f32 %v3038, %v3126
        %v3128 = vpop.f32.mrf.mxu0
        %v3129 = vadd.f32 %v3040, %v3128
        %3130 = vmatmul.bf16.gmra.mxu0 %v2967
        %v3131 = vpop.f32.mrf.mxu0
        %v3132 = vadd.f32 %v3043, %v3131
        %v3133 = vpop.f32.mrf.mxu0
        %v3134 = vadd.f32 %v3045, %v3133
        %3135 = vmatmul.bf16.gmra.mxu0 %v2969
        %v3136 = vpop.f32.mrf.mxu0
        %v3137 = vadd.f32 %v3048, %v3136
        %v3138 = vpop.f32.mrf.mxu0
        %v3139 = vadd.f32 %v3050, %v3138
        %3140 = vmatmul.bf16.gmra.mxu0 %v2971
        %v3141 = vpop.f32.mrf.mxu0
        %v3142 = vadd.f32 %v3053, %v3141
        %v3143 = vpop.f32.mrf.mxu0
        %v3144 = vadd.f32 %v3055, %v3143
        %3145 = vmatmul.bf16.gmra.mxu0 %v2973
        %v3146 = vpop.f32.mrf.mxu0
        %v3147 = vadd.f32 %v3058, %v3146
        %v3148 = vpop.f32.mrf.mxu0
        %v3149 = vadd.f32 %v3060, %v3148
        %3150 = vmatmul.bf16.gmra.mxu0 %v2975
        %v3151 = vpop.f32.mrf.mxu0
        %v3152 = vadd.f32 %v3063, %v3151
        %v3153 = vpop.f32.mrf.mxu0
        %v3154 = vadd.f32 %v3065, %v3153
        %3155 = vmatmul.bf16.gmra.mxu0 %v2977
        %v3156 = vpop.f32.mrf.mxu0
        %v3157 = vadd.f32 %v3068, %v3156
        %v3158 = vpop.f32.mrf.mxu0
        %v3159 = vadd.f32 %v3070, %v3158
        %3160 = vmatmul.bf16.gmra.mxu0 %v2979
        %v3161 = vpop.f32.mrf.mxu0
        %v3162 = vadd.f32 %v3073, %v3161
        %v3163 = vpop.f32.mrf.mxu0
        %v3164 = vadd.f32 %v3075, %v3163
        %3165 = vmatmul.bf16.gmra.mxu0 %v2981
        %v3166 = vpop.f32.mrf.mxu0
        %v3167 = vadd.f32 %v3078, %v3166
        %v3168 = vpop.f32.mrf.mxu0
        %v3169 = vadd.f32 %v3080, %v3168
        %3170 = vmatmul.bf16.gmra.mxu0 %v2983
        %v3171 = vpop.f32.mrf.mxu0
        %v3172 = vadd.f32 %v3083, %v3171
        %v3173 = vpop.f32.mrf.mxu0
        %v3174 = vadd.f32 %v3085, %v3173
        %3175 = vmatmul.bf16.gmra.mxu0 %v2985
        %v3176 = vpop.f32.mrf.mxu0
        %v3177 = vadd.f32 %v3088, %v3176
        %v3178 = vpop.f32.mrf.mxu0
        %v3179 = vadd.f32 %v3090, %v3178
        %3180 = vmatmul.bf16.gmra.mxu0 %v2987
        %v3181 = vpop.f32.mrf.mxu0
        %v3182 = vadd.f32 %v3093, %v3181
        %v3183 = vpop.f32.mrf.mxu0
        %v3184 = vadd.f32 %v3095, %v3183
        %3185 = vmatmul.bf16.gmra.mxu0 %v2989
        %v3186 = vpop.f32.mrf.mxu0
        %v3187 = vadd.f32 %v3098, %v3186
        %v3188 = vpop.f32.mrf.mxu0
        %v3189 = vadd.f32 %v3100, %v3188
        %3190 = vmatmul.bf16.gmra.mxu0 %v2991
        %v3191 = vpop.f32.mrf.mxu0
        %v3192 = vadd.f32 %v3103, %v3191
        %v3193 = vpop.f32.mrf.mxu0
        %v3194 = vadd.f32 %v3105, %v3193
        %3195 = vmatmul.bf16.gmra.mxu0 %v2993
        %v3196 = vpop.f32.mrf.mxu0
        %v3197 = vadd.f32 %v3108, %v3196
        %v3198 = vpop.f32.mrf.mxu0
        %v3199 = vadd.f32 %v3110, %v3198
        %3200 = vmatmul.bf16.gmra.mxu0 %v2995
        %v3201 = vpop.f32.mrf.mxu0
        %v3202 = vadd.f32 %v3113, %v3201
        %v3203 = vpop.f32.mrf.mxu0
        %v3204 = vadd.f32 %v3115, %v3203
        %3205 = vdwg.mxu0
        %v3206 = vpack.c.bf16 %v3129, %v3127
        %v3207 = vpack.c.bf16 %v3134, %v3132
        %v3208 = vpack.c.bf16 %v3139, %v3137
        %v3209 = vpack.c.bf16 %v3144, %v3142
        %v3210 = vpack.c.bf16 %v3149, %v3147
        %v3211 = vpack.c.bf16 %v3154, %v3152
        %v3212 = vpack.c.bf16 %v3159, %v3157
        %v3213 = vpack.c.bf16 %v3164, %v3162
        %v3214 = vpack.c.bf16 %v3169, %v3167
        %v3215 = vpack.c.bf16 %v3174, %v3172
        %v3216 = vpack.c.bf16 %v3179, %v3177
        %v3217 = vpack.c.bf16 %v3184, %v3182
        %v3218 = vpack.c.bf16 %v3189, %v3187
        %v3219 = vpack.c.bf16 %v3194, %v3192
        %v3220 = vpack.c.bf16 %v3199, %v3197
        %v3221 = vpack.c.bf16 %v3204, %v3202
        %s3222 = scalar_lea.vmem %s2, 256
        %v3223 = vld [vmem:[%s3222] sm:$0xf]
        %v3224 = vld [vmem:[%s3222 + $0x4] sm:$0xf]
        %v3225 = vld [vmem:[%s3222 + $0x8] sm:$0xf]
        %v3226 = vld [vmem:[%s3222 + $0xc] sm:$0xf]
        %v3227 = vld [vmem:[%s3222 + $0x10] sm:$0xf]
        %v3228 = vld [vmem:[%s3222 + $0x14] sm:$0xf]
        %v3229 = vld [vmem:[%s3222 + $0x18] sm:$0xf]
        %v3230 = vld [vmem:[%s3222 + $0x1c] sm:$0xf]
        %v3231 = vld [vmem:[%s3222 + $0x20] sm:$0xf]
        %v3232 = vld [vmem:[%s3222 + $0x24] sm:$0xf]
        %v3233 = vld [vmem:[%s3222 + $0x28] sm:$0xf]
        %v3234 = vld [vmem:[%s3222 + $0x2c] sm:$0xf]
        %v3235 = vld [vmem:[%s3222 + $0x30] sm:$0xf]
        %v3236 = vld [vmem:[%s3222 + $0x34] sm:$0xf]
        %v3237 = vld [vmem:[%s3222 + $0x38] sm:$0xf]
        %v3238 = vld [vmem:[%s3222 + $0x3c] sm:$0xf]
        %v3255 = vunpack.c.l.b16 %v3223
        %v3256 = vunpack.c.l.b16 %v3224
        %v3257 = vunpack.c.l.b16 %v3225
        %v3258 = vunpack.c.l.b16 %v3226
        %v3259 = vunpack.c.l.b16 %v3227
        %v3260 = vunpack.c.l.b16 %v3228
        %v3261 = vunpack.c.l.b16 %v3229
        %v3262 = vunpack.c.l.b16 %v3230
        %v3263 = vunpack.c.l.b16 %v3231
        %v3264 = vunpack.c.l.b16 %v3232
        %v3265 = vunpack.c.l.b16 %v3233
        %v3266 = vunpack.c.l.b16 %v3234
        %v3267 = vunpack.c.l.b16 %v3235
        %v3268 = vunpack.c.l.b16 %v3236
        %v3269 = vunpack.c.l.b16 %v3237
        %v3270 = vunpack.c.l.b16 %v3238
        %v3271 = vpack.c.b16 %v3256, %v3255
        %v3272 = vpack.c.b16 %v3258, %v3257
        %v3273 = vpack.c.b16 %v3260, %v3259
        %v3274 = vpack.c.b16 %v3262, %v3261
        %v3275 = vpack.c.b16 %v3264, %v3263
        %v3276 = vpack.c.b16 %v3266, %v3265
        %v3277 = vpack.c.b16 %v3268, %v3267
        %v3278 = vpack.c.b16 %v3270, %v3269
        %3287 = vmatpush.bf16.msra.mxu0 %v3278
        %3288 = vmatpush.bf16.msra.mxu0 %v3277
        %3289 = vmatpush.bf16.msra.mxu0 %v3276
        %3290 = vmatpush.bf16.msra.mxu0 %v3275
        %3291 = vmatpush.bf16.msra.mxu0 %v3274
        %3292 = vmatpush.bf16.msra.mxu0 %v3273
        %3293 = vmatpush.bf16.msra.mxu0 %v3272
        %3294 = vmatpush.bf16.msra.mxu0 %v3271
        %3295 = vmatmul.bf16.gmra.mxu0 %v3206
        %v3296 = vpop.f32.mrf.mxu0
        %v3297 = vadd.f32 0.0, %v3296
        %v3298 = vpop.f32.mrf.mxu0
        %v3299 = vadd.f32 0.0, %v3298
        %3300 = vmatmul.bf16.gmra.mxu0 %v3207
        %v3301 = vpop.f32.mrf.mxu0
        %v3302 = vadd.f32 0.0, %v3301
        %v3303 = vpop.f32.mrf.mxu0
        %v3304 = vadd.f32 0.0, %v3303
        %3305 = vmatmul.bf16.gmra.mxu0 %v3208
        %v3306 = vpop.f32.mrf.mxu0
        %v3307 = vadd.f32 0.0, %v3306
        %v3308 = vpop.f32.mrf.mxu0
        %v3309 = vadd.f32 0.0, %v3308
        %3310 = vmatmul.bf16.gmra.mxu0 %v3209
        %v3311 = vpop.f32.mrf.mxu0
        %v3312 = vadd.f32 0.0, %v3311
        %v3313 = vpop.f32.mrf.mxu0
        %v3314 = vadd.f32 0.0, %v3313
        %3315 = vmatmul.bf16.gmra.mxu0 %v3210
        %v3316 = vpop.f32.mrf.mxu0
        %v3317 = vadd.f32 0.0, %v3316
        %v3318 = vpop.f32.mrf.mxu0
        %v3319 = vadd.f32 0.0, %v3318
        %3320 = vmatmul.bf16.gmra.mxu0 %v3211
        %v3321 = vpop.f32.mrf.mxu0
        %v3322 = vadd.f32 0.0, %v3321
        %v3323 = vpop.f32.mrf.mxu0
        %v3324 = vadd.f32 0.0, %v3323
        %3325 = vmatmul.bf16.gmra.mxu0 %v3212
        %v3326 = vpop.f32.mrf.mxu0
        %v3327 = vadd.f32 0.0, %v3326
        %v3328 = vpop.f32.mrf.mxu0
        %v3329 = vadd.f32 0.0, %v3328
        %3330 = vmatmul.bf16.gmra.mxu0 %v3213
        %v3331 = vpop.f32.mrf.mxu0
        %v3332 = vadd.f32 0.0, %v3331
        %v3333 = vpop.f32.mrf.mxu0
        %v3334 = vadd.f32 0.0, %v3333
        %3335 = vmatmul.bf16.gmra.mxu0 %v3214
        %v3336 = vpop.f32.mrf.mxu0
        %v3337 = vadd.f32 0.0, %v3336
        %v3338 = vpop.f32.mrf.mxu0
        %v3339 = vadd.f32 0.0, %v3338
        %3340 = vmatmul.bf16.gmra.mxu0 %v3215
        %v3341 = vpop.f32.mrf.mxu0
        %v3342 = vadd.f32 0.0, %v3341
        %v3343 = vpop.f32.mrf.mxu0
        %v3344 = vadd.f32 0.0, %v3343
        %3345 = vmatmul.bf16.gmra.mxu0 %v3216
        %v3346 = vpop.f32.mrf.mxu0
        %v3347 = vadd.f32 0.0, %v3346
        %v3348 = vpop.f32.mrf.mxu0
        %v3349 = vadd.f32 0.0, %v3348
        %3350 = vmatmul.bf16.gmra.mxu0 %v3217
        %v3351 = vpop.f32.mrf.mxu0
        %v3352 = vadd.f32 0.0, %v3351
        %v3353 = vpop.f32.mrf.mxu0
        %v3354 = vadd.f32 0.0, %v3353
        %3355 = vmatmul.bf16.gmra.mxu0 %v3218
        %v3356 = vpop.f32.mrf.mxu0
        %v3357 = vadd.f32 0.0, %v3356
        %v3358 = vpop.f32.mrf.mxu0
        %v3359 = vadd.f32 0.0, %v3358
        %3360 = vmatmul.bf16.gmra.mxu0 %v3219
        %v3361 = vpop.f32.mrf.mxu0
        %v3362 = vadd.f32 0.0, %v3361
        %v3363 = vpop.f32.mrf.mxu0
        %v3364 = vadd.f32 0.0, %v3363
        %3365 = vmatmul.bf16.gmra.mxu0 %v3220
        %v3366 = vpop.f32.mrf.mxu0
        %v3367 = vadd.f32 0.0, %v3366
        %v3368 = vpop.f32.mrf.mxu0
        %v3369 = vadd.f32 0.0, %v3368
        %3370 = vmatmul.bf16.gmra.mxu0 %v3221
        %v3371 = vpop.f32.mrf.mxu0
        %v3372 = vadd.f32 0.0, %v3371
        %v3373 = vpop.f32.mrf.mxu0
        %v3374 = vadd.f32 0.0, %v3373
        %3375 = vdwg.mxu0
        %v3376 = vadd.f32 %v2803, %v3297
        %v3377 = vadd.f32 %v2804, %v3299
        %v3378 = vadd.f32 %v2805, %v3302
        %v3379 = vadd.f32 %v2806, %v3304
        %v3380 = vadd.f32 %v2807, %v3307
        %v3381 = vadd.f32 %v2808, %v3309
        %v3382 = vadd.f32 %v2809, %v3312
        %v3383 = vadd.f32 %v2810, %v3314
        %v3384 = vadd.f32 %v2811, %v3317
        %v3385 = vadd.f32 %v2812, %v3319
        %v3386 = vadd.f32 %v2813, %v3322
        %v3387 = vadd.f32 %v2814, %v3324
        %v3388 = vadd.f32 %v2815, %v3327
        %v3389 = vadd.f32 %v2816, %v3329
        %v3390 = vadd.f32 %v2817, %v3332
        %v3391 = vadd.f32 %v2818, %v3334
        %v3392 = vadd.f32 %v2819, %v3337
        %v3393 = vadd.f32 %v2820, %v3339
        %v3394 = vadd.f32 %v2821, %v3342
        %v3395 = vadd.f32 %v2822, %v3344
        %v3396 = vadd.f32 %v2823, %v3347
        %v3397 = vadd.f32 %v2824, %v3349
        %v3398 = vadd.f32 %v2825, %v3352
        %v3399 = vadd.f32 %v2826, %v3354
        %v3400 = vadd.f32 %v2827, %v3357
        %v3401 = vadd.f32 %v2828, %v3359
        %v3402 = vadd.f32 %v2829, %v3362
        %v3403 = vadd.f32 %v2830, %v3364
        %v3404 = vadd.f32 %v2831, %v3367
        %v3405 = vadd.f32 %v2832, %v3369
        %v3406 = vadd.f32 %v2833, %v3372
        %v3407 = vadd.f32 %v2834, %v3374
        %s3408 = scalar_lea.vmem %s1, 1280
        %v3409 = vld [vmem:[%s3408] sm:$0xff]
        %v3410 = vld [vmem:[%s3408 + $0x8] sm:$0xff]
        %v3411 = vld [vmem:[%s3408 + $0x10] sm:$0xff]
        %v3412 = vld [vmem:[%s3408 + $0x18] sm:$0xff]
        %v3413 = vld [vmem:[%s3408 + $0x20] sm:$0xff]
        %v3414 = vld [vmem:[%s3408 + $0x28] sm:$0xff]
        %v3415 = vld [vmem:[%s3408 + $0x30] sm:$0xff]
        %v3416 = vld [vmem:[%s3408 + $0x38] sm:$0xff]
        %v3417 = vld [vmem:[%s3408 + $0x40] sm:$0xff]
        %v3418 = vld [vmem:[%s3408 + $0x48] sm:$0xff]
        %v3419 = vld [vmem:[%s3408 + $0x50] sm:$0xff]
        %v3420 = vld [vmem:[%s3408 + $0x58] sm:$0xff]
        %v3421 = vld [vmem:[%s3408 + $0x60] sm:$0xff]
        %v3422 = vld [vmem:[%s3408 + $0x68] sm:$0xff]
        %v3423 = vld [vmem:[%s3408 + $0x70] sm:$0xff]
        %v3424 = vld [vmem:[%s3408 + $0x78] sm:$0xff]
        %v3425 = vld [vmem:[%s3408 + $0x80] sm:$0xff]
        %v3426 = vld [vmem:[%s3408 + $0x88] sm:$0xff]
        %v3427 = vld [vmem:[%s3408 + $0x90] sm:$0xff]
        %v3428 = vld [vmem:[%s3408 + $0x98] sm:$0xff]
        %v3429 = vld [vmem:[%s3408 + $0xa0] sm:$0xff]
        %v3430 = vld [vmem:[%s3408 + $0xa8] sm:$0xff]
        %v3431 = vld [vmem:[%s3408 + $0xb0] sm:$0xff]
        %v3432 = vld [vmem:[%s3408 + $0xb8] sm:$0xff]
        %v3433 = vld [vmem:[%s3408 + $0xc0] sm:$0xff]
        %v3434 = vld [vmem:[%s3408 + $0xc8] sm:$0xff]
        %v3435 = vld [vmem:[%s3408 + $0xd0] sm:$0xff]
        %v3436 = vld [vmem:[%s3408 + $0xd8] sm:$0xff]
        %v3437 = vld [vmem:[%s3408 + $0xe0] sm:$0xff]
        %v3438 = vld [vmem:[%s3408 + $0xe8] sm:$0xff]
        %v3439 = vld [vmem:[%s3408 + $0xf0] sm:$0xff]
        %v3440 = vld [vmem:[%s3408 + $0xf8] sm:$0xff]
        %v3473 = vunpack.c.l.b16 %v3409
        %v3474 = vunpack.c.h.b16 %v3409
        %v3475 = vunpack.c.l.b16 %v3410
        %v3476 = vunpack.c.h.b16 %v3410
        %v3477 = vunpack.c.l.b16 %v3411
        %v3478 = vunpack.c.h.b16 %v3411
        %v3479 = vunpack.c.l.b16 %v3412
        %v3480 = vunpack.c.h.b16 %v3412
        %v3481 = vunpack.c.l.b16 %v3413
        %v3482 = vunpack.c.h.b16 %v3413
        %v3483 = vunpack.c.l.b16 %v3414
        %v3484 = vunpack.c.h.b16 %v3414
        %v3485 = vunpack.c.l.b16 %v3415
        %v3486 = vunpack.c.h.b16 %v3415
        %v3487 = vunpack.c.l.b16 %v3416
        %v3488 = vunpack.c.h.b16 %v3416
        %v3489 = vunpack.c.l.b16 %v3417
        %v3490 = vunpack.c.h.b16 %v3417
        %v3491 = vunpack.c.l.b16 %v3418
        %v3492 = vunpack.c.h.b16 %v3418
        %v3493 = vunpack.c.l.b16 %v3419
        %v3494 = vunpack.c.h.b16 %v3419
        %v3495 = vunpack.c.l.b16 %v3420
        %v3496 = vunpack.c.h.b16 %v3420
        %v3497 = vunpack.c.l.b16 %v3421
        %v3498 = vunpack.c.h.b16 %v3421
        %v3499 = vunpack.c.l.b16 %v3422
        %v3500 = vunpack.c.h.b16 %v3422
        %v3501 = vunpack.c.l.b16 %v3423
        %v3502 = vunpack.c.h.b16 %v3423
        %v3503 = vunpack.c.l.b16 %v3424
        %v3504 = vunpack.c.h.b16 %v3424
        %v3505 = vunpack.c.l.b16 %v3425
        %v3506 = vunpack.c.h.b16 %v3425
        %v3507 = vunpack.c.l.b16 %v3426
        %v3508 = vunpack.c.h.b16 %v3426
        %v3509 = vunpack.c.l.b16 %v3427
        %v3510 = vunpack.c.h.b16 %v3427
        %v3511 = vunpack.c.l.b16 %v3428
        %v3512 = vunpack.c.h.b16 %v3428
        %v3513 = vunpack.c.l.b16 %v3429
        %v3514 = vunpack.c.h.b16 %v3429
        %v3515 = vunpack.c.l.b16 %v3430
        %v3516 = vunpack.c.h.b16 %v3430
        %v3517 = vunpack.c.l.b16 %v3431
        %v3518 = vunpack.c.h.b16 %v3431
        %v3519 = vunpack.c.l.b16 %v3432
        %v3520 = vunpack.c.h.b16 %v3432
        %v3521 = vunpack.c.l.b16 %v3433
        %v3522 = vunpack.c.h.b16 %v3433
        %v3523 = vunpack.c.l.b16 %v3434
        %v3524 = vunpack.c.h.b16 %v3434
        %v3525 = vunpack.c.l.b16 %v3435
        %v3526 = vunpack.c.h.b16 %v3435
        %v3527 = vunpack.c.l.b16 %v3436
        %v3528 = vunpack.c.h.b16 %v3436
        %v3529 = vunpack.c.l.b16 %v3437
        %v3530 = vunpack.c.h.b16 %v3437
        %v3531 = vunpack.c.l.b16 %v3438
        %v3532 = vunpack.c.h.b16 %v3438
        %v3533 = vunpack.c.l.b16 %v3439
        %v3534 = vunpack.c.h.b16 %v3439
        %v3535 = vunpack.c.l.b16 %v3440
        %v3536 = vunpack.c.h.b16 %v3440
        %v3537 = vpack.c.b16 %v3475, %v3473
        %v3538 = vpack.c.b16 %v3476, %v3474
        %v3539 = vpack.c.b16 %v3479, %v3477
        %v3540 = vpack.c.b16 %v3480, %v3478
        %v3541 = vpack.c.b16 %v3483, %v3481
        %v3542 = vpack.c.b16 %v3484, %v3482
        %v3543 = vpack.c.b16 %v3487, %v3485
        %v3544 = vpack.c.b16 %v3488, %v3486
        %v3545 = vpack.c.b16 %v3491, %v3489
        %v3546 = vpack.c.b16 %v3492, %v3490
        %v3547 = vpack.c.b16 %v3495, %v3493
        %v3548 = vpack.c.b16 %v3496, %v3494
        %v3549 = vpack.c.b16 %v3499, %v3497
        %v3550 = vpack.c.b16 %v3500, %v3498
        %v3551 = vpack.c.b16 %v3503, %v3501
        %v3552 = vpack.c.b16 %v3504, %v3502
        %v3553 = vpack.c.b16 %v3507, %v3505
        %v3554 = vpack.c.b16 %v3508, %v3506
        %v3555 = vpack.c.b16 %v3511, %v3509
        %v3556 = vpack.c.b16 %v3512, %v3510
        %v3557 = vpack.c.b16 %v3515, %v3513
        %v3558 = vpack.c.b16 %v3516, %v3514
        %v3559 = vpack.c.b16 %v3519, %v3517
        %v3560 = vpack.c.b16 %v3520, %v3518
        %v3561 = vpack.c.b16 %v3523, %v3521
        %v3562 = vpack.c.b16 %v3524, %v3522
        %v3563 = vpack.c.b16 %v3527, %v3525
        %v3564 = vpack.c.b16 %v3528, %v3526
        %v3565 = vpack.c.b16 %v3531, %v3529
        %v3566 = vpack.c.b16 %v3532, %v3530
        %v3567 = vpack.c.b16 %v3535, %v3533
        %v3568 = vpack.c.b16 %v3536, %v3534
        %3601 = vmatpush.bf16.msra.mxu0 %v712
        %3602 = vmatpush.bf16.msra.mxu0 %v711
        %3603 = vmatpush.bf16.msra.mxu0 %v710
        %3604 = vmatpush.bf16.msra.mxu0 %v709
        %3605 = vmatpush.bf16.msra.mxu0 %v708
        %3606 = vmatpush.bf16.msra.mxu0 %v707
        %3607 = vmatpush.bf16.msra.mxu0 %v706
        %3608 = vmatpush.bf16.msra.mxu0 %v705
        %3609 = vmatmul.bf16.gmra.mxu0 %v3537
        %v3610 = vpop.f32.mrf.mxu0
        %v3611 = vadd.f32 0.0, %v3610
        %v3612 = vpop.f32.mrf.mxu0
        %v3613 = vadd.f32 0.0, %v3612
        %3614 = vmatmul.bf16.gmra.mxu0 %v3539
        %v3615 = vpop.f32.mrf.mxu0
        %v3616 = vadd.f32 0.0, %v3615
        %v3617 = vpop.f32.mrf.mxu0
        %v3618 = vadd.f32 0.0, %v3617
        %3619 = vmatmul.bf16.gmra.mxu0 %v3541
        %v3620 = vpop.f32.mrf.mxu0
        %v3621 = vadd.f32 0.0, %v3620
        %v3622 = vpop.f32.mrf.mxu0
        %v3623 = vadd.f32 0.0, %v3622
        %3624 = vmatmul.bf16.gmra.mxu0 %v3543
        %v3625 = vpop.f32.mrf.mxu0
        %v3626 = vadd.f32 0.0, %v3625
        %v3627 = vpop.f32.mrf.mxu0
        %v3628 = vadd.f32 0.0, %v3627
        %3629 = vmatmul.bf16.gmra.mxu0 %v3545
        %v3630 = vpop.f32.mrf.mxu0
        %v3631 = vadd.f32 0.0, %v3630
        %v3632 = vpop.f32.mrf.mxu0
        %v3633 = vadd.f32 0.0, %v3632
        %3634 = vmatmul.bf16.gmra.mxu0 %v3547
        %v3635 = vpop.f32.mrf.mxu0
        %v3636 = vadd.f32 0.0, %v3635
        %v3637 = vpop.f32.mrf.mxu0
        %v3638 = vadd.f32 0.0, %v3637
        %3639 = vmatmul.bf16.gmra.mxu0 %v3549
        %v3640 = vpop.f32.mrf.mxu0
        %v3641 = vadd.f32 0.0, %v3640
        %v3642 = vpop.f32.mrf.mxu0
        %v3643 = vadd.f32 0.0, %v3642
        %3644 = vmatmul.bf16.gmra.mxu0 %v3551
        %v3645 = vpop.f32.mrf.mxu0
        %v3646 = vadd.f32 0.0, %v3645
        %v3647 = vpop.f32.mrf.mxu0
        %v3648 = vadd.f32 0.0, %v3647
        %3649 = vmatmul.bf16.gmra.mxu0 %v3553
        %v3650 = vpop.f32.mrf.mxu0
        %v3651 = vadd.f32 0.0, %v3650
        %v3652 = vpop.f32.mrf.mxu0
        %v3653 = vadd.f32 0.0, %v3652
        %3654 = vmatmul.bf16.gmra.mxu0 %v3555
        %v3655 = vpop.f32.mrf.mxu0
        %v3656 = vadd.f32 0.0, %v3655
        %v3657 = vpop.f32.mrf.mxu0
        %v3658 = vadd.f32 0.0, %v3657
        %3659 = vmatmul.bf16.gmra.mxu0 %v3557
        %v3660 = vpop.f32.mrf.mxu0
        %v3661 = vadd.f32 0.0, %v3660
        %v3662 = vpop.f32.mrf.mxu0
        %v3663 = vadd.f32 0.0, %v3662
        %3664 = vmatmul.bf16.gmra.mxu0 %v3559
        %v3665 = vpop.f32.mrf.mxu0
        %v3666 = vadd.f32 0.0, %v3665
        %v3667 = vpop.f32.mrf.mxu0
        %v3668 = vadd.f32 0.0, %v3667
        %3669 = vmatmul.bf16.gmra.mxu0 %v3561
        %v3670 = vpop.f32.mrf.mxu0
        %v3671 = vadd.f32 0.0, %v3670
        %v3672 = vpop.f32.mrf.mxu0
        %v3673 = vadd.f32 0.0, %v3672
        %3674 = vmatmul.bf16.gmra.mxu0 %v3563
        %v3675 = vpop.f32.mrf.mxu0
        %v3676 = vadd.f32 0.0, %v3675
        %v3677 = vpop.f32.mrf.mxu0
        %v3678 = vadd.f32 0.0, %v3677
        %3679 = vmatmul.bf16.gmra.mxu0 %v3565
        %v3680 = vpop.f32.mrf.mxu0
        %v3681 = vadd.f32 0.0, %v3680
        %v3682 = vpop.f32.mrf.mxu0
        %v3683 = vadd.f32 0.0, %v3682
        %3684 = vmatmul.bf16.gmra.mxu0 %v3567
        %v3685 = vpop.f32.mrf.mxu0
        %v3686 = vadd.f32 0.0, %v3685
        %v3687 = vpop.f32.mrf.mxu0
        %v3688 = vadd.f32 0.0, %v3687
        %3689 = vdwg.mxu0
        %3690 = vmatpush.bf16.msra.mxu0 %v720
        %3691 = vmatpush.bf16.msra.mxu0 %v719
        %3692 = vmatpush.bf16.msra.mxu0 %v718
        %3693 = vmatpush.bf16.msra.mxu0 %v717
        %3694 = vmatpush.bf16.msra.mxu0 %v716
        %3695 = vmatpush.bf16.msra.mxu0 %v715
        %3696 = vmatpush.bf16.msra.mxu0 %v714
        %3697 = vmatpush.bf16.msra.mxu0 %v713
        %3698 = vmatmul.bf16.gmra.mxu0 %v3538
        %v3699 = vpop.f32.mrf.mxu0
        %v3700 = vadd.f32 %v3611, %v3699
        %v3701 = vpop.f32.mrf.mxu0
        %v3702 = vadd.f32 %v3613, %v3701
        %3703 = vmatmul.bf16.gmra.mxu0 %v3540
        %v3704 = vpop.f32.mrf.mxu0
        %v3705 = vadd.f32 %v3616, %v3704
        %v3706 = vpop.f32.mrf.mxu0
        %v3707 = vadd.f32 %v3618, %v3706
        %3708 = vmatmul.bf16.gmra.mxu0 %v3542
        %v3709 = vpop.f32.mrf.mxu0
        %v3710 = vadd.f32 %v3621, %v3709
        %v3711 = vpop.f32.mrf.mxu0
        %v3712 = vadd.f32 %v3623, %v3711
        %3713 = vmatmul.bf16.gmra.mxu0 %v3544
        %v3714 = vpop.f32.mrf.mxu0
        %v3715 = vadd.f32 %v3626, %v3714
        %v3716 = vpop.f32.mrf.mxu0
        %v3717 = vadd.f32 %v3628, %v3716
        %3718 = vmatmul.bf16.gmra.mxu0 %v3546
        %v3719 = vpop.f32.mrf.mxu0
        %v3720 = vadd.f32 %v3631, %v3719
        %v3721 = vpop.f32.mrf.mxu0
        %v3722 = vadd.f32 %v3633, %v3721
        %3723 = vmatmul.bf16.gmra.mxu0 %v3548
        %v3724 = vpop.f32.mrf.mxu0
        %v3725 = vadd.f32 %v3636, %v3724
        %v3726 = vpop.f32.mrf.mxu0
        %v3727 = vadd.f32 %v3638, %v3726
        %3728 = vmatmul.bf16.gmra.mxu0 %v3550
        %v3729 = vpop.f32.mrf.mxu0
        %v3730 = vadd.f32 %v3641, %v3729
        %v3731 = vpop.f32.mrf.mxu0
        %v3732 = vadd.f32 %v3643, %v3731
        %3733 = vmatmul.bf16.gmra.mxu0 %v3552
        %v3734 = vpop.f32.mrf.mxu0
        %v3735 = vadd.f32 %v3646, %v3734
        %v3736 = vpop.f32.mrf.mxu0
        %v3737 = vadd.f32 %v3648, %v3736
        %3738 = vmatmul.bf16.gmra.mxu0 %v3554
        %v3739 = vpop.f32.mrf.mxu0
        %v3740 = vadd.f32 %v3651, %v3739
        %v3741 = vpop.f32.mrf.mxu0
        %v3742 = vadd.f32 %v3653, %v3741
        %3743 = vmatmul.bf16.gmra.mxu0 %v3556
        %v3744 = vpop.f32.mrf.mxu0
        %v3745 = vadd.f32 %v3656, %v3744
        %v3746 = vpop.f32.mrf.mxu0
        %v3747 = vadd.f32 %v3658, %v3746
        %3748 = vmatmul.bf16.gmra.mxu0 %v3558
        %v3749 = vpop.f32.mrf.mxu0
        %v3750 = vadd.f32 %v3661, %v3749
        %v3751 = vpop.f32.mrf.mxu0
        %v3752 = vadd.f32 %v3663, %v3751
        %3753 = vmatmul.bf16.gmra.mxu0 %v3560
        %v3754 = vpop.f32.mrf.mxu0
        %v3755 = vadd.f32 %v3666, %v3754
        %v3756 = vpop.f32.mrf.mxu0
        %v3757 = vadd.f32 %v3668, %v3756
        %3758 = vmatmul.bf16.gmra.mxu0 %v3562
        %v3759 = vpop.f32.mrf.mxu0
        %v3760 = vadd.f32 %v3671, %v3759
        %v3761 = vpop.f32.mrf.mxu0
        %v3762 = vadd.f32 %v3673, %v3761
        %3763 = vmatmul.bf16.gmra.mxu0 %v3564
        %v3764 = vpop.f32.mrf.mxu0
        %v3765 = vadd.f32 %v3676, %v3764
        %v3766 = vpop.f32.mrf.mxu0
        %v3767 = vadd.f32 %v3678, %v3766
        %3768 = vmatmul.bf16.gmra.mxu0 %v3566
        %v3769 = vpop.f32.mrf.mxu0
        %v3770 = vadd.f32 %v3681, %v3769
        %v3771 = vpop.f32.mrf.mxu0
        %v3772 = vadd.f32 %v3683, %v3771
        %3773 = vmatmul.bf16.gmra.mxu0 %v3568
        %v3774 = vpop.f32.mrf.mxu0
        %v3775 = vadd.f32 %v3686, %v3774
        %v3776 = vpop.f32.mrf.mxu0
        %v3777 = vadd.f32 %v3688, %v3776
        %3778 = vdwg.mxu0
        %v3779 = vpack.c.bf16 %v3702, %v3700
        %v3780 = vpack.c.bf16 %v3707, %v3705
        %v3781 = vpack.c.bf16 %v3712, %v3710
        %v3782 = vpack.c.bf16 %v3717, %v3715
        %v3783 = vpack.c.bf16 %v3722, %v3720
        %v3784 = vpack.c.bf16 %v3727, %v3725
        %v3785 = vpack.c.bf16 %v3732, %v3730
        %v3786 = vpack.c.bf16 %v3737, %v3735
        %v3787 = vpack.c.bf16 %v3742, %v3740
        %v3788 = vpack.c.bf16 %v3747, %v3745
        %v3789 = vpack.c.bf16 %v3752, %v3750
        %v3790 = vpack.c.bf16 %v3757, %v3755
        %v3791 = vpack.c.bf16 %v3762, %v3760
        %v3792 = vpack.c.bf16 %v3767, %v3765
        %v3793 = vpack.c.bf16 %v3772, %v3770
        %v3794 = vpack.c.bf16 %v3777, %v3775
        %s3795 = scalar_lea.vmem %s2, 320
        %v3796 = vld [vmem:[%s3795] sm:$0xf]
        %v3797 = vld [vmem:[%s3795 + $0x4] sm:$0xf]
        %v3798 = vld [vmem:[%s3795 + $0x8] sm:$0xf]
        %v3799 = vld [vmem:[%s3795 + $0xc] sm:$0xf]
        %v3800 = vld [vmem:[%s3795 + $0x10] sm:$0xf]
        %v3801 = vld [vmem:[%s3795 + $0x14] sm:$0xf]
        %v3802 = vld [vmem:[%s3795 + $0x18] sm:$0xf]
        %v3803 = vld [vmem:[%s3795 + $0x1c] sm:$0xf]
        %v3804 = vld [vmem:[%s3795 + $0x20] sm:$0xf]
        %v3805 = vld [vmem:[%s3795 + $0x24] sm:$0xf]
        %v3806 = vld [vmem:[%s3795 + $0x28] sm:$0xf]
        %v3807 = vld [vmem:[%s3795 + $0x2c] sm:$0xf]
        %v3808 = vld [vmem:[%s3795 + $0x30] sm:$0xf]
        %v3809 = vld [vmem:[%s3795 + $0x34] sm:$0xf]
        %v3810 = vld [vmem:[%s3795 + $0x38] sm:$0xf]
        %v3811 = vld [vmem:[%s3795 + $0x3c] sm:$0xf]
        %v3828 = vunpack.c.l.b16 %v3796
        %v3829 = vunpack.c.l.b16 %v3797
        %v3830 = vunpack.c.l.b16 %v3798
        %v3831 = vunpack.c.l.b16 %v3799
        %v3832 = vunpack.c.l.b16 %v3800
        %v3833 = vunpack.c.l.b16 %v3801
        %v3834 = vunpack.c.l.b16 %v3802
        %v3835 = vunpack.c.l.b16 %v3803
        %v3836 = vunpack.c.l.b16 %v3804
        %v3837 = vunpack.c.l.b16 %v3805
        %v3838 = vunpack.c.l.b16 %v3806
        %v3839 = vunpack.c.l.b16 %v3807
        %v3840 = vunpack.c.l.b16 %v3808
        %v3841 = vunpack.c.l.b16 %v3809
        %v3842 = vunpack.c.l.b16 %v3810
        %v3843 = vunpack.c.l.b16 %v3811
        %v3844 = vpack.c.b16 %v3829, %v3828
        %v3845 = vpack.c.b16 %v3831, %v3830
        %v3846 = vpack.c.b16 %v3833, %v3832
        %v3847 = vpack.c.b16 %v3835, %v3834
        %v3848 = vpack.c.b16 %v3837, %v3836
        %v3849 = vpack.c.b16 %v3839, %v3838
        %v3850 = vpack.c.b16 %v3841, %v3840
        %v3851 = vpack.c.b16 %v3843, %v3842
        %3860 = vmatpush.bf16.msra.mxu0 %v3851
        %3861 = vmatpush.bf16.msra.mxu0 %v3850
        %3862 = vmatpush.bf16.msra.mxu0 %v3849
        %3863 = vmatpush.bf16.msra.mxu0 %v3848
        %3864 = vmatpush.bf16.msra.mxu0 %v3847
        %3865 = vmatpush.bf16.msra.mxu0 %v3846
        %3866 = vmatpush.bf16.msra.mxu0 %v3845
        %3867 = vmatpush.bf16.msra.mxu0 %v3844
        %3868 = vmatmul.bf16.gmra.mxu0 %v3779
        %v3869 = vpop.f32.mrf.mxu0
        %v3870 = vadd.f32 0.0, %v3869
        %v3871 = vpop.f32.mrf.mxu0
        %v3872 = vadd.f32 0.0, %v3871
        %3873 = vmatmul.bf16.gmra.mxu0 %v3780
        %v3874 = vpop.f32.mrf.mxu0
        %v3875 = vadd.f32 0.0, %v3874
        %v3876 = vpop.f32.mrf.mxu0
        %v3877 = vadd.f32 0.0, %v3876
        %3878 = vmatmul.bf16.gmra.mxu0 %v3781
        %v3879 = vpop.f32.mrf.mxu0
        %v3880 = vadd.f32 0.0, %v3879
        %v3881 = vpop.f32.mrf.mxu0
        %v3882 = vadd.f32 0.0, %v3881
        %3883 = vmatmul.bf16.gmra.mxu0 %v3782
        %v3884 = vpop.f32.mrf.mxu0
        %v3885 = vadd.f32 0.0, %v3884
        %v3886 = vpop.f32.mrf.mxu0
        %v3887 = vadd.f32 0.0, %v3886
        %3888 = vmatmul.bf16.gmra.mxu0 %v3783
        %v3889 = vpop.f32.mrf.mxu0
        %v3890 = vadd.f32 0.0, %v3889
        %v3891 = vpop.f32.mrf.mxu0
        %v3892 = vadd.f32 0.0, %v3891
        %3893 = vmatmul.bf16.gmra.mxu0 %v3784
        %v3894 = vpop.f32.mrf.mxu0
        %v3895 = vadd.f32 0.0, %v3894
        %v3896 = vpop.f32.mrf.mxu0
        %v3897 = vadd.f32 0.0, %v3896
        %3898 = vmatmul.bf16.gmra.mxu0 %v3785
        %v3899 = vpop.f32.mrf.mxu0
        %v3900 = vadd.f32 0.0, %v3899
        %v3901 = vpop.f32.mrf.mxu0
        %v3902 = vadd.f32 0.0, %v3901
        %3903 = vmatmul.bf16.gmra.mxu0 %v3786
        %v3904 = vpop.f32.mrf.mxu0
        %v3905 = vadd.f32 0.0, %v3904
        %v3906 = vpop.f32.mrf.mxu0
        %v3907 = vadd.f32 0.0, %v3906
        %3908 = vmatmul.bf16.gmra.mxu0 %v3787
        %v3909 = vpop.f32.mrf.mxu0
        %v3910 = vadd.f32 0.0, %v3909
        %v3911 = vpop.f32.mrf.mxu0
        %v3912 = vadd.f32 0.0, %v3911
        %3913 = vmatmul.bf16.gmra.mxu0 %v3788
        %v3914 = vpop.f32.mrf.mxu0
        %v3915 = vadd.f32 0.0, %v3914
        %v3916 = vpop.f32.mrf.mxu0
        %v3917 = vadd.f32 0.0, %v3916
        %3918 = vmatmul.bf16.gmra.mxu0 %v3789
        %v3919 = vpop.f32.mrf.mxu0
        %v3920 = vadd.f32 0.0, %v3919
        %v3921 = vpop.f32.mrf.mxu0
        %v3922 = vadd.f32 0.0, %v3921
        %3923 = vmatmul.bf16.gmra.mxu0 %v3790
        %v3924 = vpop.f32.mrf.mxu0
        %v3925 = vadd.f32 0.0, %v3924
        %v3926 = vpop.f32.mrf.mxu0
        %v3927 = vadd.f32 0.0, %v3926
        %3928 = vmatmul.bf16.gmra.mxu0 %v3791
        %v3929 = vpop.f32.mrf.mxu0
        %v3930 = vadd.f32 0.0, %v3929
        %v3931 = vpop.f32.mrf.mxu0
        %v3932 = vadd.f32 0.0, %v3931
        %3933 = vmatmul.bf16.gmra.mxu0 %v3792
        %v3934 = vpop.f32.mrf.mxu0
        %v3935 = vadd.f32 0.0, %v3934
        %v3936 = vpop.f32.mrf.mxu0
        %v3937 = vadd.f32 0.0, %v3936
        %3938 = vmatmul.bf16.gmra.mxu0 %v3793
        %v3939 = vpop.f32.mrf.mxu0
        %v3940 = vadd.f32 0.0, %v3939
        %v3941 = vpop.f32.mrf.mxu0
        %v3942 = vadd.f32 0.0, %v3941
        %3943 = vmatmul.bf16.gmra.mxu0 %v3794
        %v3944 = vpop.f32.mrf.mxu0
        %v3945 = vadd.f32 0.0, %v3944
        %v3946 = vpop.f32.mrf.mxu0
        %v3947 = vadd.f32 0.0, %v3946
        %3948 = vdwg.mxu0
        %v3949 = vadd.f32 %v3376, %v3870
        %v3950 = vadd.f32 %v3377, %v3872
        %v3951 = vadd.f32 %v3378, %v3875
        %v3952 = vadd.f32 %v3379, %v3877
        %v3953 = vadd.f32 %v3380, %v3880
        %v3954 = vadd.f32 %v3381, %v3882
        %v3955 = vadd.f32 %v3382, %v3885
        %v3956 = vadd.f32 %v3383, %v3887
        %v3957 = vadd.f32 %v3384, %v3890
        %v3958 = vadd.f32 %v3385, %v3892
        %v3959 = vadd.f32 %v3386, %v3895
        %v3960 = vadd.f32 %v3387, %v3897
        %v3961 = vadd.f32 %v3388, %v3900
        %v3962 = vadd.f32 %v3389, %v3902
        %v3963 = vadd.f32 %v3390, %v3905
        %v3964 = vadd.f32 %v3391, %v3907
        %v3965 = vadd.f32 %v3392, %v3910
        %v3966 = vadd.f32 %v3393, %v3912
        %v3967 = vadd.f32 %v3394, %v3915
        %v3968 = vadd.f32 %v3395, %v3917
        %v3969 = vadd.f32 %v3396, %v3920
        %v3970 = vadd.f32 %v3397, %v3922
        %v3971 = vadd.f32 %v3398, %v3925
        %v3972 = vadd.f32 %v3399, %v3927
        %v3973 = vadd.f32 %v3400, %v3930
        %v3974 = vadd.f32 %v3401, %v3932
        %v3975 = vadd.f32 %v3402, %v3935
        %v3976 = vadd.f32 %v3403, %v3937
        %v3977 = vadd.f32 %v3404, %v3940
        %v3978 = vadd.f32 %v3405, %v3942
        %v3979 = vadd.f32 %v3406, %v3945
        %v3980 = vadd.f32 %v3407, %v3947
        %s3981 = scalar_lea.vmem %s1, 1536
        %v3982 = vld [vmem:[%s3981] sm:$0xff]
        %v3983 = vld [vmem:[%s3981 + $0x8] sm:$0xff]
        %v3984 = vld [vmem:[%s3981 + $0x10] sm:$0xff]
        %v3985 = vld [vmem:[%s3981 + $0x18] sm:$0xff]
        %v3986 = vld [vmem:[%s3981 + $0x20] sm:$0xff]
        %v3987 = vld [vmem:[%s3981 + $0x28] sm:$0xff]
        %v3988 = vld [vmem:[%s3981 + $0x30] sm:$0xff]
        %v3989 = vld [vmem:[%s3981 + $0x38] sm:$0xff]
        %v3990 = vld [vmem:[%s3981 + $0x40] sm:$0xff]
        %v3991 = vld [vmem:[%s3981 + $0x48] sm:$0xff]
        %v3992 = vld [vmem:[%s3981 + $0x50] sm:$0xff]
        %v3993 = vld [vmem:[%s3981 + $0x58] sm:$0xff]
        %v3994 = vld [vmem:[%s3981 + $0x60] sm:$0xff]
        %v3995 = vld [vmem:[%s3981 + $0x68] sm:$0xff]
        %v3996 = vld [vmem:[%s3981 + $0x70] sm:$0xff]
        %v3997 = vld [vmem:[%s3981 + $0x78] sm:$0xff]
        %v3998 = vld [vmem:[%s3981 + $0x80] sm:$0xff]
        %v3999 = vld [vmem:[%s3981 + $0x88] sm:$0xff]
        %v4000 = vld [vmem:[%s3981 + $0x90] sm:$0xff]
        %v4001 = vld [vmem:[%s3981 + $0x98] sm:$0xff]
        %v4002 = vld [vmem:[%s3981 + $0xa0] sm:$0xff]
        %v4003 = vld [vmem:[%s3981 + $0xa8] sm:$0xff]
        %v4004 = vld [vmem:[%s3981 + $0xb0] sm:$0xff]
        %v4005 = vld [vmem:[%s3981 + $0xb8] sm:$0xff]
        %v4006 = vld [vmem:[%s3981 + $0xc0] sm:$0xff]
        %v4007 = vld [vmem:[%s3981 + $0xc8] sm:$0xff]
        %v4008 = vld [vmem:[%s3981 + $0xd0] sm:$0xff]
        %v4009 = vld [vmem:[%s3981 + $0xd8] sm:$0xff]
        %v4010 = vld [vmem:[%s3981 + $0xe0] sm:$0xff]
        %v4011 = vld [vmem:[%s3981 + $0xe8] sm:$0xff]
        %v4012 = vld [vmem:[%s3981 + $0xf0] sm:$0xff]
        %v4013 = vld [vmem:[%s3981 + $0xf8] sm:$0xff]
        %v4046 = vunpack.c.l.b16 %v3982
        %v4047 = vunpack.c.h.b16 %v3982
        %v4048 = vunpack.c.l.b16 %v3983
        %v4049 = vunpack.c.h.b16 %v3983
        %v4050 = vunpack.c.l.b16 %v3984
        %v4051 = vunpack.c.h.b16 %v3984
        %v4052 = vunpack.c.l.b16 %v3985
        %v4053 = vunpack.c.h.b16 %v3985
        %v4054 = vunpack.c.l.b16 %v3986
        %v4055 = vunpack.c.h.b16 %v3986
        %v4056 = vunpack.c.l.b16 %v3987
        %v4057 = vunpack.c.h.b16 %v3987
        %v4058 = vunpack.c.l.b16 %v3988
        %v4059 = vunpack.c.h.b16 %v3988
        %v4060 = vunpack.c.l.b16 %v3989
        %v4061 = vunpack.c.h.b16 %v3989
        %v4062 = vunpack.c.l.b16 %v3990
        %v4063 = vunpack.c.h.b16 %v3990
        %v4064 = vunpack.c.l.b16 %v3991
        %v4065 = vunpack.c.h.b16 %v3991
        %v4066 = vunpack.c.l.b16 %v3992
        %v4067 = vunpack.c.h.b16 %v3992
        %v4068 = vunpack.c.l.b16 %v3993
        %v4069 = vunpack.c.h.b16 %v3993
        %v4070 = vunpack.c.l.b16 %v3994
        %v4071 = vunpack.c.h.b16 %v3994
        %v4072 = vunpack.c.l.b16 %v3995
        %v4073 = vunpack.c.h.b16 %v3995
        %v4074 = vunpack.c.l.b16 %v3996
        %v4075 = vunpack.c.h.b16 %v3996
        %v4076 = vunpack.c.l.b16 %v3997
        %v4077 = vunpack.c.h.b16 %v3997
        %v4078 = vunpack.c.l.b16 %v3998
        %v4079 = vunpack.c.h.b16 %v3998
        %v4080 = vunpack.c.l.b16 %v3999
        %v4081 = vunpack.c.h.b16 %v3999
        %v4082 = vunpack.c.l.b16 %v4000
        %v4083 = vunpack.c.h.b16 %v4000
        %v4084 = vunpack.c.l.b16 %v4001
        %v4085 = vunpack.c.h.b16 %v4001
        %v4086 = vunpack.c.l.b16 %v4002
        %v4087 = vunpack.c.h.b16 %v4002
        %v4088 = vunpack.c.l.b16 %v4003
        %v4089 = vunpack.c.h.b16 %v4003
        %v4090 = vunpack.c.l.b16 %v4004
        %v4091 = vunpack.c.h.b16 %v4004
        %v4092 = vunpack.c.l.b16 %v4005
        %v4093 = vunpack.c.h.b16 %v4005
        %v4094 = vunpack.c.l.b16 %v4006
        %v4095 = vunpack.c.h.b16 %v4006
        %v4096 = vunpack.c.l.b16 %v4007
        %v4097 = vunpack.c.h.b16 %v4007
        %v4098 = vunpack.c.l.b16 %v4008
        %v4099 = vunpack.c.h.b16 %v4008
        %v4100 = vunpack.c.l.b16 %v4009
        %v4101 = vunpack.c.h.b16 %v4009
        %v4102 = vunpack.c.l.b16 %v4010
        %v4103 = vunpack.c.h.b16 %v4010
        %v4104 = vunpack.c.l.b16 %v4011
        %v4105 = vunpack.c.h.b16 %v4011
        %v4106 = vunpack.c.l.b16 %v4012
        %v4107 = vunpack.c.h.b16 %v4012
        %v4108 = vunpack.c.l.b16 %v4013
        %v4109 = vunpack.c.h.b16 %v4013
        %v4110 = vpack.c.b16 %v4048, %v4046
        %v4111 = vpack.c.b16 %v4049, %v4047
        %v4112 = vpack.c.b16 %v4052, %v4050
        %v4113 = vpack.c.b16 %v4053, %v4051
        %v4114 = vpack.c.b16 %v4056, %v4054
        %v4115 = vpack.c.b16 %v4057, %v4055
        %v4116 = vpack.c.b16 %v4060, %v4058
        %v4117 = vpack.c.b16 %v4061, %v4059
        %v4118 = vpack.c.b16 %v4064, %v4062
        %v4119 = vpack.c.b16 %v4065, %v4063
        %v4120 = vpack.c.b16 %v4068, %v4066
        %v4121 = vpack.c.b16 %v4069, %v4067
        %v4122 = vpack.c.b16 %v4072, %v4070
        %v4123 = vpack.c.b16 %v4073, %v4071
        %v4124 = vpack.c.b16 %v4076, %v4074
        %v4125 = vpack.c.b16 %v4077, %v4075
        %v4126 = vpack.c.b16 %v4080, %v4078
        %v4127 = vpack.c.b16 %v4081, %v4079
        %v4128 = vpack.c.b16 %v4084, %v4082
        %v4129 = vpack.c.b16 %v4085, %v4083
        %v4130 = vpack.c.b16 %v4088, %v4086
        %v4131 = vpack.c.b16 %v4089, %v4087
        %v4132 = vpack.c.b16 %v4092, %v4090
        %v4133 = vpack.c.b16 %v4093, %v4091
        %v4134 = vpack.c.b16 %v4096, %v4094
        %v4135 = vpack.c.b16 %v4097, %v4095
        %v4136 = vpack.c.b16 %v4100, %v4098
        %v4137 = vpack.c.b16 %v4101, %v4099
        %v4138 = vpack.c.b16 %v4104, %v4102
        %v4139 = vpack.c.b16 %v4105, %v4103
        %v4140 = vpack.c.b16 %v4108, %v4106
        %v4141 = vpack.c.b16 %v4109, %v4107
        %4174 = vmatpush.bf16.msra.mxu0 %v712
        %4175 = vmatpush.bf16.msra.mxu0 %v711
        %4176 = vmatpush.bf16.msra.mxu0 %v710
        %4177 = vmatpush.bf16.msra.mxu0 %v709
        %4178 = vmatpush.bf16.msra.mxu0 %v708
        %4179 = vmatpush.bf16.msra.mxu0 %v707
        %4180 = vmatpush.bf16.msra.mxu0 %v706
        %4181 = vmatpush.bf16.msra.mxu0 %v705
        %4182 = vmatmul.bf16.gmra.mxu0 %v4110
        %v4183 = vpop.f32.mrf.mxu0
        %v4184 = vadd.f32 0.0, %v4183
        %v4185 = vpop.f32.mrf.mxu0
        %v4186 = vadd.f32 0.0, %v4185
        %4187 = vmatmul.bf16.gmra.mxu0 %v4112
        %v4188 = vpop.f32.mrf.mxu0
        %v4189 = vadd.f32 0.0, %v4188
        %v4190 = vpop.f32.mrf.mxu0
        %v4191 = vadd.f32 0.0, %v4190
        %4192 = vmatmul.bf16.gmra.mxu0 %v4114
        %v4193 = vpop.f32.mrf.mxu0
        %v4194 = vadd.f32 0.0, %v4193
        %v4195 = vpop.f32.mrf.mxu0
        %v4196 = vadd.f32 0.0, %v4195
        %4197 = vmatmul.bf16.gmra.mxu0 %v4116
        %v4198 = vpop.f32.mrf.mxu0
        %v4199 = vadd.f32 0.0, %v4198
        %v4200 = vpop.f32.mrf.mxu0
        %v4201 = vadd.f32 0.0, %v4200
        %4202 = vmatmul.bf16.gmra.mxu0 %v4118
        %v4203 = vpop.f32.mrf.mxu0
        %v4204 = vadd.f32 0.0, %v4203
        %v4205 = vpop.f32.mrf.mxu0
        %v4206 = vadd.f32 0.0, %v4205
        %4207 = vmatmul.bf16.gmra.mxu0 %v4120
        %v4208 = vpop.f32.mrf.mxu0
        %v4209 = vadd.f32 0.0, %v4208
        %v4210 = vpop.f32.mrf.mxu0
        %v4211 = vadd.f32 0.0, %v4210
        %4212 = vmatmul.bf16.gmra.mxu0 %v4122
        %v4213 = vpop.f32.mrf.mxu0
        %v4214 = vadd.f32 0.0, %v4213
        %v4215 = vpop.f32.mrf.mxu0
        %v4216 = vadd.f32 0.0, %v4215
        %4217 = vmatmul.bf16.gmra.mxu0 %v4124
        %v4218 = vpop.f32.mrf.mxu0
        %v4219 = vadd.f32 0.0, %v4218
        %v4220 = vpop.f32.mrf.mxu0
        %v4221 = vadd.f32 0.0, %v4220
        %4222 = vmatmul.bf16.gmra.mxu0 %v4126
        %v4223 = vpop.f32.mrf.mxu0
        %v4224 = vadd.f32 0.0, %v4223
        %v4225 = vpop.f32.mrf.mxu0
        %v4226 = vadd.f32 0.0, %v4225
        %4227 = vmatmul.bf16.gmra.mxu0 %v4128
        %v4228 = vpop.f32.mrf.mxu0
        %v4229 = vadd.f32 0.0, %v4228
        %v4230 = vpop.f32.mrf.mxu0
        %v4231 = vadd.f32 0.0, %v4230
        %4232 = vmatmul.bf16.gmra.mxu0 %v4130
        %v4233 = vpop.f32.mrf.mxu0
        %v4234 = vadd.f32 0.0, %v4233
        %v4235 = vpop.f32.mrf.mxu0
        %v4236 = vadd.f32 0.0, %v4235
        %4237 = vmatmul.bf16.gmra.mxu0 %v4132
        %v4238 = vpop.f32.mrf.mxu0
        %v4239 = vadd.f32 0.0, %v4238
        %v4240 = vpop.f32.mrf.mxu0
        %v4241 = vadd.f32 0.0, %v4240
        %4242 = vmatmul.bf16.gmra.mxu0 %v4134
        %v4243 = vpop.f32.mrf.mxu0
        %v4244 = vadd.f32 0.0, %v4243
        %v4245 = vpop.f32.mrf.mxu0
        %v4246 = vadd.f32 0.0, %v4245
        %4247 = vmatmul.bf16.gmra.mxu0 %v4136
        %v4248 = vpop.f32.mrf.mxu0
        %v4249 = vadd.f32 0.0, %v4248
        %v4250 = vpop.f32.mrf.mxu0
        %v4251 = vadd.f32 0.0, %v4250
        %4252 = vmatmul.bf16.gmra.mxu0 %v4138
        %v4253 = vpop.f32.mrf.mxu0
        %v4254 = vadd.f32 0.0, %v4253
        %v4255 = vpop.f32.mrf.mxu0
        %v4256 = vadd.f32 0.0, %v4255
        %4257 = vmatmul.bf16.gmra.mxu0 %v4140
        %v4258 = vpop.f32.mrf.mxu0
        %v4259 = vadd.f32 0.0, %v4258
        %v4260 = vpop.f32.mrf.mxu0
        %v4261 = vadd.f32 0.0, %v4260
        %4262 = vdwg.mxu0
        %4263 = vmatpush.bf16.msra.mxu0 %v720
        %4264 = vmatpush.bf16.msra.mxu0 %v719
        %4265 = vmatpush.bf16.msra.mxu0 %v718
        %4266 = vmatpush.bf16.msra.mxu0 %v717
        %4267 = vmatpush.bf16.msra.mxu0 %v716
        %4268 = vmatpush.bf16.msra.mxu0 %v715
        %4269 = vmatpush.bf16.msra.mxu0 %v714
        %4270 = vmatpush.bf16.msra.mxu0 %v713
        %4271 = vmatmul.bf16.gmra.mxu0 %v4111
        %v4272 = vpop.f32.mrf.mxu0
        %v4273 = vadd.f32 %v4184, %v4272
        %v4274 = vpop.f32.mrf.mxu0
        %v4275 = vadd.f32 %v4186, %v4274
        %4276 = vmatmul.bf16.gmra.mxu0 %v4113
        %v4277 = vpop.f32.mrf.mxu0
        %v4278 = vadd.f32 %v4189, %v4277
        %v4279 = vpop.f32.mrf.mxu0
        %v4280 = vadd.f32 %v4191, %v4279
        %4281 = vmatmul.bf16.gmra.mxu0 %v4115
        %v4282 = vpop.f32.mrf.mxu0
        %v4283 = vadd.f32 %v4194, %v4282
        %v4284 = vpop.f32.mrf.mxu0
        %v4285 = vadd.f32 %v4196, %v4284
        %4286 = vmatmul.bf16.gmra.mxu0 %v4117
        %v4287 = vpop.f32.mrf.mxu0
        %v4288 = vadd.f32 %v4199, %v4287
        %v4289 = vpop.f32.mrf.mxu0
        %v4290 = vadd.f32 %v4201, %v4289
        %4291 = vmatmul.bf16.gmra.mxu0 %v4119
        %v4292 = vpop.f32.mrf.mxu0
        %v4293 = vadd.f32 %v4204, %v4292
        %v4294 = vpop.f32.mrf.mxu0
        %v4295 = vadd.f32 %v4206, %v4294
        %4296 = vmatmul.bf16.gmra.mxu0 %v4121
        %v4297 = vpop.f32.mrf.mxu0
        %v4298 = vadd.f32 %v4209, %v4297
        %v4299 = vpop.f32.mrf.mxu0
        %v4300 = vadd.f32 %v4211, %v4299
        %4301 = vmatmul.bf16.gmra.mxu0 %v4123
        %v4302 = vpop.f32.mrf.mxu0
        %v4303 = vadd.f32 %v4214, %v4302
        %v4304 = vpop.f32.mrf.mxu0
        %v4305 = vadd.f32 %v4216, %v4304
        %4306 = vmatmul.bf16.gmra.mxu0 %v4125
        %v4307 = vpop.f32.mrf.mxu0
        %v4308 = vadd.f32 %v4219, %v4307
        %v4309 = vpop.f32.mrf.mxu0
        %v4310 = vadd.f32 %v4221, %v4309
        %4311 = vmatmul.bf16.gmra.mxu0 %v4127
        %v4312 = vpop.f32.mrf.mxu0
        %v4313 = vadd.f32 %v4224, %v4312
        %v4314 = vpop.f32.mrf.mxu0
        %v4315 = vadd.f32 %v4226, %v4314
        %4316 = vmatmul.bf16.gmra.mxu0 %v4129
        %v4317 = vpop.f32.mrf.mxu0
        %v4318 = vadd.f32 %v4229, %v4317
        %v4319 = vpop.f32.mrf.mxu0
        %v4320 = vadd.f32 %v4231, %v4319
        %4321 = vmatmul.bf16.gmra.mxu0 %v4131
        %v4322 = vpop.f32.mrf.mxu0
        %v4323 = vadd.f32 %v4234, %v4322
        %v4324 = vpop.f32.mrf.mxu0
        %v4325 = vadd.f32 %v4236, %v4324
        %4326 = vmatmul.bf16.gmra.mxu0 %v4133
        %v4327 = vpop.f32.mrf.mxu0
        %v4328 = vadd.f32 %v4239, %v4327
        %v4329 = vpop.f32.mrf.mxu0
        %v4330 = vadd.f32 %v4241, %v4329
        %4331 = vmatmul.bf16.gmra.mxu0 %v4135
        %v4332 = vpop.f32.mrf.mxu0
        %v4333 = vadd.f32 %v4244, %v4332
        %v4334 = vpop.f32.mrf.mxu0
        %v4335 = vadd.f32 %v4246, %v4334
        %4336 = vmatmul.bf16.gmra.mxu0 %v4137
        %v4337 = vpop.f32.mrf.mxu0
        %v4338 = vadd.f32 %v4249, %v4337
        %v4339 = vpop.f32.mrf.mxu0
        %v4340 = vadd.f32 %v4251, %v4339
        %4341 = vmatmul.bf16.gmra.mxu0 %v4139
        %v4342 = vpop.f32.mrf.mxu0
        %v4343 = vadd.f32 %v4254, %v4342
        %v4344 = vpop.f32.mrf.mxu0
        %v4345 = vadd.f32 %v4256, %v4344
        %4346 = vmatmul.bf16.gmra.mxu0 %v4141
        %v4347 = vpop.f32.mrf.mxu0
        %v4348 = vadd.f32 %v4259, %v4347
        %v4349 = vpop.f32.mrf.mxu0
        %v4350 = vadd.f32 %v4261, %v4349
        %4351 = vdwg.mxu0
        %v4352 = vpack.c.bf16 %v4275, %v4273
        %v4353 = vpack.c.bf16 %v4280, %v4278
        %v4354 = vpack.c.bf16 %v4285, %v4283
        %v4355 = vpack.c.bf16 %v4290, %v4288
        %v4356 = vpack.c.bf16 %v4295, %v4293
        %v4357 = vpack.c.bf16 %v4300, %v4298
        %v4358 = vpack.c.bf16 %v4305, %v4303
        %v4359 = vpack.c.bf16 %v4310, %v4308
        %v4360 = vpack.c.bf16 %v4315, %v4313
        %v4361 = vpack.c.bf16 %v4320, %v4318
        %v4362 = vpack.c.bf16 %v4325, %v4323
        %v4363 = vpack.c.bf16 %v4330, %v4328
        %v4364 = vpack.c.bf16 %v4335, %v4333
        %v4365 = vpack.c.bf16 %v4340, %v4338
        %v4366 = vpack.c.bf16 %v4345, %v4343
        %v4367 = vpack.c.bf16 %v4350, %v4348
        %s4368 = scalar_lea.vmem %s2, 384
        %v4369 = vld [vmem:[%s4368] sm:$0xf]
        %v4370 = vld [vmem:[%s4368 + $0x4] sm:$0xf]
        %v4371 = vld [vmem:[%s4368 + $0x8] sm:$0xf]
        %v4372 = vld [vmem:[%s4368 + $0xc] sm:$0xf]
        %v4373 = vld [vmem:[%s4368 + $0x10] sm:$0xf]
        %v4374 = vld [vmem:[%s4368 + $0x14] sm:$0xf]
        %v4375 = vld [vmem:[%s4368 + $0x18] sm:$0xf]
        %v4376 = vld [vmem:[%s4368 + $0x1c] sm:$0xf]
        %v4377 = vld [vmem:[%s4368 + $0x20] sm:$0xf]
        %v4378 = vld [vmem:[%s4368 + $0x24] sm:$0xf]
        %v4379 = vld [vmem:[%s4368 + $0x28] sm:$0xf]
        %v4380 = vld [vmem:[%s4368 + $0x2c] sm:$0xf]
        %v4381 = vld [vmem:[%s4368 + $0x30] sm:$0xf]
        %v4382 = vld [vmem:[%s4368 + $0x34] sm:$0xf]
        %v4383 = vld [vmem:[%s4368 + $0x38] sm:$0xf]
        %v4384 = vld [vmem:[%s4368 + $0x3c] sm:$0xf]
        %v4401 = vunpack.c.l.b16 %v4369
        %v4402 = vunpack.c.l.b16 %v4370
        %v4403 = vunpack.c.l.b16 %v4371
        %v4404 = vunpack.c.l.b16 %v4372
        %v4405 = vunpack.c.l.b16 %v4373
        %v4406 = vunpack.c.l.b16 %v4374
        %v4407 = vunpack.c.l.b16 %v4375
        %v4408 = vunpack.c.l.b16 %v4376
        %v4409 = vunpack.c.l.b16 %v4377
        %v4410 = vunpack.c.l.b16 %v4378
        %v4411 = vunpack.c.l.b16 %v4379
        %v4412 = vunpack.c.l.b16 %v4380
        %v4413 = vunpack.c.l.b16 %v4381
        %v4414 = vunpack.c.l.b16 %v4382
        %v4415 = vunpack.c.l.b16 %v4383
        %v4416 = vunpack.c.l.b16 %v4384
        %v4417 = vpack.c.b16 %v4402, %v4401
        %v4418 = vpack.c.b16 %v4404, %v4403
        %v4419 = vpack.c.b16 %v4406, %v4405
        %v4420 = vpack.c.b16 %v4408, %v4407
        %v4421 = vpack.c.b16 %v4410, %v4409
        %v4422 = vpack.c.b16 %v4412, %v4411
        %v4423 = vpack.c.b16 %v4414, %v4413
        %v4424 = vpack.c.b16 %v4416, %v4415
        %4433 = vmatpush.bf16.msra.mxu0 %v4424
        %4434 = vmatpush.bf16.msra.mxu0 %v4423
        %4435 = vmatpush.bf16.msra.mxu0 %v4422
        %4436 = vmatpush.bf16.msra.mxu0 %v4421
        %4437 = vmatpush.bf16.msra.mxu0 %v4420
        %4438 = vmatpush.bf16.msra.mxu0 %v4419
        %4439 = vmatpush.bf16.msra.mxu0 %v4418
        %4440 = vmatpush.bf16.msra.mxu0 %v4417
        %4441 = vmatmul.bf16.gmra.mxu0 %v4352
        %v4442 = vpop.f32.mrf.mxu0
        %v4443 = vadd.f32 0.0, %v4442
        %v4444 = vpop.f32.mrf.mxu0
        %v4445 = vadd.f32 0.0, %v4444
        %4446 = vmatmul.bf16.gmra.mxu0 %v4353
        %v4447 = vpop.f32.mrf.mxu0
        %v4448 = vadd.f32 0.0, %v4447
        %v4449 = vpop.f32.mrf.mxu0
        %v4450 = vadd.f32 0.0, %v4449
        %4451 = vmatmul.bf16.gmra.mxu0 %v4354
        %v4452 = vpop.f32.mrf.mxu0
        %v4453 = vadd.f32 0.0, %v4452
        %v4454 = vpop.f32.mrf.mxu0
        %v4455 = vadd.f32 0.0, %v4454
        %4456 = vmatmul.bf16.gmra.mxu0 %v4355
        %v4457 = vpop.f32.mrf.mxu0
        %v4458 = vadd.f32 0.0, %v4457
        %v4459 = vpop.f32.mrf.mxu0
        %v4460 = vadd.f32 0.0, %v4459
        %4461 = vmatmul.bf16.gmra.mxu0 %v4356
        %v4462 = vpop.f32.mrf.mxu0
        %v4463 = vadd.f32 0.0, %v4462
        %v4464 = vpop.f32.mrf.mxu0
        %v4465 = vadd.f32 0.0, %v4464
        %4466 = vmatmul.bf16.gmra.mxu0 %v4357
        %v4467 = vpop.f32.mrf.mxu0
        %v4468 = vadd.f32 0.0, %v4467
        %v4469 = vpop.f32.mrf.mxu0
        %v4470 = vadd.f32 0.0, %v4469
        %4471 = vmatmul.bf16.gmra.mxu0 %v4358
        %v4472 = vpop.f32.mrf.mxu0
        %v4473 = vadd.f32 0.0, %v4472
        %v4474 = vpop.f32.mrf.mxu0
        %v4475 = vadd.f32 0.0, %v4474
        %4476 = vmatmul.bf16.gmra.mxu0 %v4359
        %v4477 = vpop.f32.mrf.mxu0
        %v4478 = vadd.f32 0.0, %v4477
        %v4479 = vpop.f32.mrf.mxu0
        %v4480 = vadd.f32 0.0, %v4479
        %4481 = vmatmul.bf16.gmra.mxu0 %v4360
        %v4482 = vpop.f32.mrf.mxu0
        %v4483 = vadd.f32 0.0, %v4482
        %v4484 = vpop.f32.mrf.mxu0
        %v4485 = vadd.f32 0.0, %v4484
        %4486 = vmatmul.bf16.gmra.mxu0 %v4361
        %v4487 = vpop.f32.mrf.mxu0
        %v4488 = vadd.f32 0.0, %v4487
        %v4489 = vpop.f32.mrf.mxu0
        %v4490 = vadd.f32 0.0, %v4489
        %4491 = vmatmul.bf16.gmra.mxu0 %v4362
        %v4492 = vpop.f32.mrf.mxu0
        %v4493 = vadd.f32 0.0, %v4492
        %v4494 = vpop.f32.mrf.mxu0
        %v4495 = vadd.f32 0.0, %v4494
        %4496 = vmatmul.bf16.gmra.mxu0 %v4363
        %v4497 = vpop.f32.mrf.mxu0
        %v4498 = vadd.f32 0.0, %v4497
        %v4499 = vpop.f32.mrf.mxu0
        %v4500 = vadd.f32 0.0, %v4499
        %4501 = vmatmul.bf16.gmra.mxu0 %v4364
        %v4502 = vpop.f32.mrf.mxu0
        %v4503 = vadd.f32 0.0, %v4502
        %v4504 = vpop.f32.mrf.mxu0
        %v4505 = vadd.f32 0.0, %v4504
        %4506 = vmatmul.bf16.gmra.mxu0 %v4365
        %v4507 = vpop.f32.mrf.mxu0
        %v4508 = vadd.f32 0.0, %v4507
        %v4509 = vpop.f32.mrf.mxu0
        %v4510 = vadd.f32 0.0, %v4509
        %4511 = vmatmul.bf16.gmra.mxu0 %v4366
        %v4512 = vpop.f32.mrf.mxu0
        %v4513 = vadd.f32 0.0, %v4512
        %v4514 = vpop.f32.mrf.mxu0
        %v4515 = vadd.f32 0.0, %v4514
        %4516 = vmatmul.bf16.gmra.mxu0 %v4367
        %v4517 = vpop.f32.mrf.mxu0
        %v4518 = vadd.f32 0.0, %v4517
        %v4519 = vpop.f32.mrf.mxu0
        %v4520 = vadd.f32 0.0, %v4519
        %4521 = vdwg.mxu0
        %v4522 = vadd.f32 %v3949, %v4443
        %v4523 = vadd.f32 %v3950, %v4445
        %v4524 = vadd.f32 %v3951, %v4448
        %v4525 = vadd.f32 %v3952, %v4450
        %v4526 = vadd.f32 %v3953, %v4453
        %v4527 = vadd.f32 %v3954, %v4455
        %v4528 = vadd.f32 %v3955, %v4458
        %v4529 = vadd.f32 %v3956, %v4460
        %v4530 = vadd.f32 %v3957, %v4463
        %v4531 = vadd.f32 %v3958, %v4465
        %v4532 = vadd.f32 %v3959, %v4468
        %v4533 = vadd.f32 %v3960, %v4470
        %v4534 = vadd.f32 %v3961, %v4473
        %v4535 = vadd.f32 %v3962, %v4475
        %v4536 = vadd.f32 %v3963, %v4478
        %v4537 = vadd.f32 %v3964, %v4480
        %v4538 = vadd.f32 %v3965, %v4483
        %v4539 = vadd.f32 %v3966, %v4485
        %v4540 = vadd.f32 %v3967, %v4488
        %v4541 = vadd.f32 %v3968, %v4490
        %v4542 = vadd.f32 %v3969, %v4493
        %v4543 = vadd.f32 %v3970, %v4495
        %v4544 = vadd.f32 %v3971, %v4498
        %v4545 = vadd.f32 %v3972, %v4500
        %v4546 = vadd.f32 %v3973, %v4503
        %v4547 = vadd.f32 %v3974, %v4505
        %v4548 = vadd.f32 %v3975, %v4508
        %v4549 = vadd.f32 %v3976, %v4510
        %v4550 = vadd.f32 %v3977, %v4513
        %v4551 = vadd.f32 %v3978, %v4515
        %v4552 = vadd.f32 %v3979, %v4518
        %v4553 = vadd.f32 %v3980, %v4520
        %s4554 = scalar_lea.vmem %s1, 1792
        %v4555 = vld [vmem:[%s4554] sm:$0xff]
        %v4556 = vld [vmem:[%s4554 + $0x8] sm:$0xff]
        %v4557 = vld [vmem:[%s4554 + $0x10] sm:$0xff]
        %v4558 = vld [vmem:[%s4554 + $0x18] sm:$0xff]
        %v4559 = vld [vmem:[%s4554 + $0x20] sm:$0xff]
        %v4560 = vld [vmem:[%s4554 + $0x28] sm:$0xff]
        %v4561 = vld [vmem:[%s4554 + $0x30] sm:$0xff]
        %v4562 = vld [vmem:[%s4554 + $0x38] sm:$0xff]
        %v4563 = vld [vmem:[%s4554 + $0x40] sm:$0xff]
        %v4564 = vld [vmem:[%s4554 + $0x48] sm:$0xff]
        %v4565 = vld [vmem:[%s4554 + $0x50] sm:$0xff]
        %v4566 = vld [vmem:[%s4554 + $0x58] sm:$0xff]
        %v4567 = vld [vmem:[%s4554 + $0x60] sm:$0xff]
        %v4568 = vld [vmem:[%s4554 + $0x68] sm:$0xff]
        %v4569 = vld [vmem:[%s4554 + $0x70] sm:$0xff]
        %v4570 = vld [vmem:[%s4554 + $0x78] sm:$0xff]
        %v4571 = vld [vmem:[%s4554 + $0x80] sm:$0xff]
        %v4572 = vld [vmem:[%s4554 + $0x88] sm:$0xff]
        %v4573 = vld [vmem:[%s4554 + $0x90] sm:$0xff]
        %v4574 = vld [vmem:[%s4554 + $0x98] sm:$0xff]
        %v4575 = vld [vmem:[%s4554 + $0xa0] sm:$0xff]
        %v4576 = vld [vmem:[%s4554 + $0xa8] sm:$0xff]
        %v4577 = vld [vmem:[%s4554 + $0xb0] sm:$0xff]
        %v4578 = vld [vmem:[%s4554 + $0xb8] sm:$0xff]
        %v4579 = vld [vmem:[%s4554 + $0xc0] sm:$0xff]
        %v4580 = vld [vmem:[%s4554 + $0xc8] sm:$0xff]
        %v4581 = vld [vmem:[%s4554 + $0xd0] sm:$0xff]
        %v4582 = vld [vmem:[%s4554 + $0xd8] sm:$0xff]
        %v4583 = vld [vmem:[%s4554 + $0xe0] sm:$0xff]
        %v4584 = vld [vmem:[%s4554 + $0xe8] sm:$0xff]
        %v4585 = vld [vmem:[%s4554 + $0xf0] sm:$0xff]
        %v4586 = vld [vmem:[%s4554 + $0xf8] sm:$0xff]
        %v4619 = vunpack.c.l.b16 %v4555
        %v4620 = vunpack.c.h.b16 %v4555
        %v4621 = vunpack.c.l.b16 %v4556
        %v4622 = vunpack.c.h.b16 %v4556
        %v4623 = vunpack.c.l.b16 %v4557
        %v4624 = vunpack.c.h.b16 %v4557
        %v4625 = vunpack.c.l.b16 %v4558
        %v4626 = vunpack.c.h.b16 %v4558
        %v4627 = vunpack.c.l.b16 %v4559
        %v4628 = vunpack.c.h.b16 %v4559
        %v4629 = vunpack.c.l.b16 %v4560
        %v4630 = vunpack.c.h.b16 %v4560
        %v4631 = vunpack.c.l.b16 %v4561
        %v4632 = vunpack.c.h.b16 %v4561
        %v4633 = vunpack.c.l.b16 %v4562
        %v4634 = vunpack.c.h.b16 %v4562
        %v4635 = vunpack.c.l.b16 %v4563
        %v4636 = vunpack.c.h.b16 %v4563
        %v4637 = vunpack.c.l.b16 %v4564
        %v4638 = vunpack.c.h.b16 %v4564
        %v4639 = vunpack.c.l.b16 %v4565
        %v4640 = vunpack.c.h.b16 %v4565
        %v4641 = vunpack.c.l.b16 %v4566
        %v4642 = vunpack.c.h.b16 %v4566
        %v4643 = vunpack.c.l.b16 %v4567
        %v4644 = vunpack.c.h.b16 %v4567
        %v4645 = vunpack.c.l.b16 %v4568
        %v4646 = vunpack.c.h.b16 %v4568
        %v4647 = vunpack.c.l.b16 %v4569
        %v4648 = vunpack.c.h.b16 %v4569
        %v4649 = vunpack.c.l.b16 %v4570
        %v4650 = vunpack.c.h.b16 %v4570
        %v4651 = vunpack.c.l.b16 %v4571
        %v4652 = vunpack.c.h.b16 %v4571
        %v4653 = vunpack.c.l.b16 %v4572
        %v4654 = vunpack.c.h.b16 %v4572
        %v4655 = vunpack.c.l.b16 %v4573
        %v4656 = vunpack.c.h.b16 %v4573
        %v4657 = vunpack.c.l.b16 %v4574
        %v4658 = vunpack.c.h.b16 %v4574
        %v4659 = vunpack.c.l.b16 %v4575
        %v4660 = vunpack.c.h.b16 %v4575
        %v4661 = vunpack.c.l.b16 %v4576
        %v4662 = vunpack.c.h.b16 %v4576
        %v4663 = vunpack.c.l.b16 %v4577
        %v4664 = vunpack.c.h.b16 %v4577
        %v4665 = vunpack.c.l.b16 %v4578
        %v4666 = vunpack.c.h.b16 %v4578
        %v4667 = vunpack.c.l.b16 %v4579
        %v4668 = vunpack.c.h.b16 %v4579
        %v4669 = vunpack.c.l.b16 %v4580
        %v4670 = vunpack.c.h.b16 %v4580
        %v4671 = vunpack.c.l.b16 %v4581
        %v4672 = vunpack.c.h.b16 %v4581
        %v4673 = vunpack.c.l.b16 %v4582
        %v4674 = vunpack.c.h.b16 %v4582
        %v4675 = vunpack.c.l.b16 %v4583
        %v4676 = vunpack.c.h.b16 %v4583
        %v4677 = vunpack.c.l.b16 %v4584
        %v4678 = vunpack.c.h.b16 %v4584
        %v4679 = vunpack.c.l.b16 %v4585
        %v4680 = vunpack.c.h.b16 %v4585
        %v4681 = vunpack.c.l.b16 %v4586
        %v4682 = vunpack.c.h.b16 %v4586
        %v4683 = vpack.c.b16 %v4621, %v4619
        %v4684 = vpack.c.b16 %v4622, %v4620
        %v4685 = vpack.c.b16 %v4625, %v4623
        %v4686 = vpack.c.b16 %v4626, %v4624
        %v4687 = vpack.c.b16 %v4629, %v4627
        %v4688 = vpack.c.b16 %v4630, %v4628
        %v4689 = vpack.c.b16 %v4633, %v4631
        %v4690 = vpack.c.b16 %v4634, %v4632
        %v4691 = vpack.c.b16 %v4637, %v4635
        %v4692 = vpack.c.b16 %v4638, %v4636
        %v4693 = vpack.c.b16 %v4641, %v4639
        %v4694 = vpack.c.b16 %v4642, %v4640
        %v4695 = vpack.c.b16 %v4645, %v4643
        %v4696 = vpack.c.b16 %v4646, %v4644
        %v4697 = vpack.c.b16 %v4649, %v4647
        %v4698 = vpack.c.b16 %v4650, %v4648
        %v4699 = vpack.c.b16 %v4653, %v4651
        %v4700 = vpack.c.b16 %v4654, %v4652
        %v4701 = vpack.c.b16 %v4657, %v4655
        %v4702 = vpack.c.b16 %v4658, %v4656
        %v4703 = vpack.c.b16 %v4661, %v4659
        %v4704 = vpack.c.b16 %v4662, %v4660
        %v4705 = vpack.c.b16 %v4665, %v4663
        %v4706 = vpack.c.b16 %v4666, %v4664
        %v4707 = vpack.c.b16 %v4669, %v4667
        %v4708 = vpack.c.b16 %v4670, %v4668
        %v4709 = vpack.c.b16 %v4673, %v4671
        %v4710 = vpack.c.b16 %v4674, %v4672
        %v4711 = vpack.c.b16 %v4677, %v4675
        %v4712 = vpack.c.b16 %v4678, %v4676
        %v4713 = vpack.c.b16 %v4681, %v4679
        %v4714 = vpack.c.b16 %v4682, %v4680
        %4747 = vmatpush.bf16.msra.mxu0 %v712
        %4748 = vmatpush.bf16.msra.mxu0 %v711
        %4749 = vmatpush.bf16.msra.mxu0 %v710
        %4750 = vmatpush.bf16.msra.mxu0 %v709
        %4751 = vmatpush.bf16.msra.mxu0 %v708
        %4752 = vmatpush.bf16.msra.mxu0 %v707
        %4753 = vmatpush.bf16.msra.mxu0 %v706
        %4754 = vmatpush.bf16.msra.mxu0 %v705
        %4755 = vmatmul.bf16.gmra.mxu0 %v4683
        %v4756 = vpop.f32.mrf.mxu0
        %v4757 = vadd.f32 0.0, %v4756
        %v4758 = vpop.f32.mrf.mxu0
        %v4759 = vadd.f32 0.0, %v4758
        %4760 = vmatmul.bf16.gmra.mxu0 %v4685
        %v4761 = vpop.f32.mrf.mxu0
        %v4762 = vadd.f32 0.0, %v4761
        %v4763 = vpop.f32.mrf.mxu0
        %v4764 = vadd.f32 0.0, %v4763
        %4765 = vmatmul.bf16.gmra.mxu0 %v4687
        %v4766 = vpop.f32.mrf.mxu0
        %v4767 = vadd.f32 0.0, %v4766
        %v4768 = vpop.f32.mrf.mxu0
        %v4769 = vadd.f32 0.0, %v4768
        %4770 = vmatmul.bf16.gmra.mxu0 %v4689
        %v4771 = vpop.f32.mrf.mxu0
        %v4772 = vadd.f32 0.0, %v4771
        %v4773 = vpop.f32.mrf.mxu0
        %v4774 = vadd.f32 0.0, %v4773
        %4775 = vmatmul.bf16.gmra.mxu0 %v4691
        %v4776 = vpop.f32.mrf.mxu0
        %v4777 = vadd.f32 0.0, %v4776
        %v4778 = vpop.f32.mrf.mxu0
        %v4779 = vadd.f32 0.0, %v4778
        %4780 = vmatmul.bf16.gmra.mxu0 %v4693
        %v4781 = vpop.f32.mrf.mxu0
        %v4782 = vadd.f32 0.0, %v4781
        %v4783 = vpop.f32.mrf.mxu0
        %v4784 = vadd.f32 0.0, %v4783
        %4785 = vmatmul.bf16.gmra.mxu0 %v4695
        %v4786 = vpop.f32.mrf.mxu0
        %v4787 = vadd.f32 0.0, %v4786
        %v4788 = vpop.f32.mrf.mxu0
        %v4789 = vadd.f32 0.0, %v4788
        %4790 = vmatmul.bf16.gmra.mxu0 %v4697
        %v4791 = vpop.f32.mrf.mxu0
        %v4792 = vadd.f32 0.0, %v4791
        %v4793 = vpop.f32.mrf.mxu0
        %v4794 = vadd.f32 0.0, %v4793
        %4795 = vmatmul.bf16.gmra.mxu0 %v4699
        %v4796 = vpop.f32.mrf.mxu0
        %v4797 = vadd.f32 0.0, %v4796
        %v4798 = vpop.f32.mrf.mxu0
        %v4799 = vadd.f32 0.0, %v4798
        %4800 = vmatmul.bf16.gmra.mxu0 %v4701
        %v4801 = vpop.f32.mrf.mxu0
        %v4802 = vadd.f32 0.0, %v4801
        %v4803 = vpop.f32.mrf.mxu0
        %v4804 = vadd.f32 0.0, %v4803
        %4805 = vmatmul.bf16.gmra.mxu0 %v4703
        %v4806 = vpop.f32.mrf.mxu0
        %v4807 = vadd.f32 0.0, %v4806
        %v4808 = vpop.f32.mrf.mxu0
        %v4809 = vadd.f32 0.0, %v4808
        %4810 = vmatmul.bf16.gmra.mxu0 %v4705
        %v4811 = vpop.f32.mrf.mxu0
        %v4812 = vadd.f32 0.0, %v4811
        %v4813 = vpop.f32.mrf.mxu0
        %v4814 = vadd.f32 0.0, %v4813
        %4815 = vmatmul.bf16.gmra.mxu0 %v4707
        %v4816 = vpop.f32.mrf.mxu0
        %v4817 = vadd.f32 0.0, %v4816
        %v4818 = vpop.f32.mrf.mxu0
        %v4819 = vadd.f32 0.0, %v4818
        %4820 = vmatmul.bf16.gmra.mxu0 %v4709
        %v4821 = vpop.f32.mrf.mxu0
        %v4822 = vadd.f32 0.0, %v4821
        %v4823 = vpop.f32.mrf.mxu0
        %v4824 = vadd.f32 0.0, %v4823
        %4825 = vmatmul.bf16.gmra.mxu0 %v4711
        %v4826 = vpop.f32.mrf.mxu0
        %v4827 = vadd.f32 0.0, %v4826
        %v4828 = vpop.f32.mrf.mxu0
        %v4829 = vadd.f32 0.0, %v4828
        %4830 = vmatmul.bf16.gmra.mxu0 %v4713
        %v4831 = vpop.f32.mrf.mxu0
        %v4832 = vadd.f32 0.0, %v4831
        %v4833 = vpop.f32.mrf.mxu0
        %v4834 = vadd.f32 0.0, %v4833
        %4835 = vdwg.mxu0
        %4836 = vmatpush.bf16.msra.mxu0 %v720
        %4837 = vmatpush.bf16.msra.mxu0 %v719
        %4838 = vmatpush.bf16.msra.mxu0 %v718
        %4839 = vmatpush.bf16.msra.mxu0 %v717
        %4840 = vmatpush.bf16.msra.mxu0 %v716
        %4841 = vmatpush.bf16.msra.mxu0 %v715
        %4842 = vmatpush.bf16.msra.mxu0 %v714
        %4843 = vmatpush.bf16.msra.mxu0 %v713
        %4844 = vmatmul.bf16.gmra.mxu0 %v4684
        %v4845 = vpop.f32.mrf.mxu0
        %v4846 = vadd.f32 %v4757, %v4845
        %v4847 = vpop.f32.mrf.mxu0
        %v4848 = vadd.f32 %v4759, %v4847
        %4849 = vmatmul.bf16.gmra.mxu0 %v4686
        %v4850 = vpop.f32.mrf.mxu0
        %v4851 = vadd.f32 %v4762, %v4850
        %v4852 = vpop.f32.mrf.mxu0
        %v4853 = vadd.f32 %v4764, %v4852
        %4854 = vmatmul.bf16.gmra.mxu0 %v4688
        %v4855 = vpop.f32.mrf.mxu0
        %v4856 = vadd.f32 %v4767, %v4855
        %v4857 = vpop.f32.mrf.mxu0
        %v4858 = vadd.f32 %v4769, %v4857
        %4859 = vmatmul.bf16.gmra.mxu0 %v4690
        %v4860 = vpop.f32.mrf.mxu0
        %v4861 = vadd.f32 %v4772, %v4860
        %v4862 = vpop.f32.mrf.mxu0
        %v4863 = vadd.f32 %v4774, %v4862
        %4864 = vmatmul.bf16.gmra.mxu0 %v4692
        %v4865 = vpop.f32.mrf.mxu0
        %v4866 = vadd.f32 %v4777, %v4865
        %v4867 = vpop.f32.mrf.mxu0
        %v4868 = vadd.f32 %v4779, %v4867
        %4869 = vmatmul.bf16.gmra.mxu0 %v4694
        %v4870 = vpop.f32.mrf.mxu0
        %v4871 = vadd.f32 %v4782, %v4870
        %v4872 = vpop.f32.mrf.mxu0
        %v4873 = vadd.f32 %v4784, %v4872
        %4874 = vmatmul.bf16.gmra.mxu0 %v4696
        %v4875 = vpop.f32.mrf.mxu0
        %v4876 = vadd.f32 %v4787, %v4875
        %v4877 = vpop.f32.mrf.mxu0
        %v4878 = vadd.f32 %v4789, %v4877
        %4879 = vmatmul.bf16.gmra.mxu0 %v4698
        %v4880 = vpop.f32.mrf.mxu0
        %v4881 = vadd.f32 %v4792, %v4880
        %v4882 = vpop.f32.mrf.mxu0
        %v4883 = vadd.f32 %v4794, %v4882
        %4884 = vmatmul.bf16.gmra.mxu0 %v4700
        %v4885 = vpop.f32.mrf.mxu0
        %v4886 = vadd.f32 %v4797, %v4885
        %v4887 = vpop.f32.mrf.mxu0
        %v4888 = vadd.f32 %v4799, %v4887
        %4889 = vmatmul.bf16.gmra.mxu0 %v4702
        %v4890 = vpop.f32.mrf.mxu0
        %v4891 = vadd.f32 %v4802, %v4890
        %v4892 = vpop.f32.mrf.mxu0
        %v4893 = vadd.f32 %v4804, %v4892
        %4894 = vmatmul.bf16.gmra.mxu0 %v4704
        %v4895 = vpop.f32.mrf.mxu0
        %v4896 = vadd.f32 %v4807, %v4895
        %v4897 = vpop.f32.mrf.mxu0
        %v4898 = vadd.f32 %v4809, %v4897
        %4899 = vmatmul.bf16.gmra.mxu0 %v4706
        %v4900 = vpop.f32.mrf.mxu0
        %v4901 = vadd.f32 %v4812, %v4900
        %v4902 = vpop.f32.mrf.mxu0
        %v4903 = vadd.f32 %v4814, %v4902
        %4904 = vmatmul.bf16.gmra.mxu0 %v4708
        %v4905 = vpop.f32.mrf.mxu0
        %v4906 = vadd.f32 %v4817, %v4905
        %v4907 = vpop.f32.mrf.mxu0
        %v4908 = vadd.f32 %v4819, %v4907
        %4909 = vmatmul.bf16.gmra.mxu0 %v4710
        %v4910 = vpop.f32.mrf.mxu0
        %v4911 = vadd.f32 %v4822, %v4910
        %v4912 = vpop.f32.mrf.mxu0
        %v4913 = vadd.f32 %v4824, %v4912
        %4914 = vmatmul.bf16.gmra.mxu0 %v4712
        %v4915 = vpop.f32.mrf.mxu0
        %v4916 = vadd.f32 %v4827, %v4915
        %v4917 = vpop.f32.mrf.mxu0
        %v4918 = vadd.f32 %v4829, %v4917
        %4919 = vmatmul.bf16.gmra.mxu0 %v4714
        %v4920 = vpop.f32.mrf.mxu0
        %v4921 = vadd.f32 %v4832, %v4920
        %v4922 = vpop.f32.mrf.mxu0
        %v4923 = vadd.f32 %v4834, %v4922
        %4924 = vdwg.mxu0
        %v4925 = vpack.c.bf16 %v4848, %v4846
        %v4926 = vpack.c.bf16 %v4853, %v4851
        %v4927 = vpack.c.bf16 %v4858, %v4856
        %v4928 = vpack.c.bf16 %v4863, %v4861
        %v4929 = vpack.c.bf16 %v4868, %v4866
        %v4930 = vpack.c.bf16 %v4873, %v4871
        %v4931 = vpack.c.bf16 %v4878, %v4876
        %v4932 = vpack.c.bf16 %v4883, %v4881
        %v4933 = vpack.c.bf16 %v4888, %v4886
        %v4934 = vpack.c.bf16 %v4893, %v4891
        %v4935 = vpack.c.bf16 %v4898, %v4896
        %v4936 = vpack.c.bf16 %v4903, %v4901
        %v4937 = vpack.c.bf16 %v4908, %v4906
        %v4938 = vpack.c.bf16 %v4913, %v4911
        %v4939 = vpack.c.bf16 %v4918, %v4916
        %v4940 = vpack.c.bf16 %v4923, %v4921
        %s4941 = scalar_lea.vmem %s2, 448
        %v4942 = vld [vmem:[%s4941] sm:$0xf]
        %v4943 = vld [vmem:[%s4941 + $0x4] sm:$0xf]
        %v4944 = vld [vmem:[%s4941 + $0x8] sm:$0xf]
        %v4945 = vld [vmem:[%s4941 + $0xc] sm:$0xf]
        %v4946 = vld [vmem:[%s4941 + $0x10] sm:$0xf]
        %v4947 = vld [vmem:[%s4941 + $0x14] sm:$0xf]
        %v4948 = vld [vmem:[%s4941 + $0x18] sm:$0xf]
        %v4949 = vld [vmem:[%s4941 + $0x1c] sm:$0xf]
        %v4950 = vld [vmem:[%s4941 + $0x20] sm:$0xf]
        %v4951 = vld [vmem:[%s4941 + $0x24] sm:$0xf]
        %v4952 = vld [vmem:[%s4941 + $0x28] sm:$0xf]
        %v4953 = vld [vmem:[%s4941 + $0x2c] sm:$0xf]
        %v4954 = vld [vmem:[%s4941 + $0x30] sm:$0xf]
        %v4955 = vld [vmem:[%s4941 + $0x34] sm:$0xf]
        %v4956 = vld [vmem:[%s4941 + $0x38] sm:$0xf]
        %v4957 = vld [vmem:[%s4941 + $0x3c] sm:$0xf]
        %v4974 = vunpack.c.l.b16 %v4942
        %v4975 = vunpack.c.l.b16 %v4943
        %v4976 = vunpack.c.l.b16 %v4944
        %v4977 = vunpack.c.l.b16 %v4945
        %v4978 = vunpack.c.l.b16 %v4946
        %v4979 = vunpack.c.l.b16 %v4947
        %v4980 = vunpack.c.l.b16 %v4948
        %v4981 = vunpack.c.l.b16 %v4949
        %v4982 = vunpack.c.l.b16 %v4950
        %v4983 = vunpack.c.l.b16 %v4951
        %v4984 = vunpack.c.l.b16 %v4952
        %v4985 = vunpack.c.l.b16 %v4953
        %v4986 = vunpack.c.l.b16 %v4954
        %v4987 = vunpack.c.l.b16 %v4955
        %v4988 = vunpack.c.l.b16 %v4956
        %v4989 = vunpack.c.l.b16 %v4957
        %v4990 = vpack.c.b16 %v4975, %v4974
        %v4991 = vpack.c.b16 %v4977, %v4976
        %v4992 = vpack.c.b16 %v4979, %v4978
        %v4993 = vpack.c.b16 %v4981, %v4980
        %v4994 = vpack.c.b16 %v4983, %v4982
        %v4995 = vpack.c.b16 %v4985, %v4984
        %v4996 = vpack.c.b16 %v4987, %v4986
        %v4997 = vpack.c.b16 %v4989, %v4988
        %5006 = vmatpush.bf16.msra.mxu0 %v4997
        %5007 = vmatpush.bf16.msra.mxu0 %v4996
        %5008 = vmatpush.bf16.msra.mxu0 %v4995
        %5009 = vmatpush.bf16.msra.mxu0 %v4994
        %5010 = vmatpush.bf16.msra.mxu0 %v4993
        %5011 = vmatpush.bf16.msra.mxu0 %v4992
        %5012 = vmatpush.bf16.msra.mxu0 %v4991
        %5013 = vmatpush.bf16.msra.mxu0 %v4990
        %5014 = vmatmul.bf16.gmra.mxu0 %v4925
        %v5015 = vpop.f32.mrf.mxu0
        %v5016 = vadd.f32 0.0, %v5015
        %v5017 = vpop.f32.mrf.mxu0
        %v5018 = vadd.f32 0.0, %v5017
        %5019 = vmatmul.bf16.gmra.mxu0 %v4926
        %v5020 = vpop.f32.mrf.mxu0
        %v5021 = vadd.f32 0.0, %v5020
        %v5022 = vpop.f32.mrf.mxu0
        %v5023 = vadd.f32 0.0, %v5022
        %5024 = vmatmul.bf16.gmra.mxu0 %v4927
        %v5025 = vpop.f32.mrf.mxu0
        %v5026 = vadd.f32 0.0, %v5025
        %v5027 = vpop.f32.mrf.mxu0
        %v5028 = vadd.f32 0.0, %v5027
        %5029 = vmatmul.bf16.gmra.mxu0 %v4928
        %v5030 = vpop.f32.mrf.mxu0
        %v5031 = vadd.f32 0.0, %v5030
        %v5032 = vpop.f32.mrf.mxu0
        %v5033 = vadd.f32 0.0, %v5032
        %5034 = vmatmul.bf16.gmra.mxu0 %v4929
        %v5035 = vpop.f32.mrf.mxu0
        %v5036 = vadd.f32 0.0, %v5035
        %v5037 = vpop.f32.mrf.mxu0
        %v5038 = vadd.f32 0.0, %v5037
        %5039 = vmatmul.bf16.gmra.mxu0 %v4930
        %v5040 = vpop.f32.mrf.mxu0
        %v5041 = vadd.f32 0.0, %v5040
        %v5042 = vpop.f32.mrf.mxu0
        %v5043 = vadd.f32 0.0, %v5042
        %5044 = vmatmul.bf16.gmra.mxu0 %v4931
        %v5045 = vpop.f32.mrf.mxu0
        %v5046 = vadd.f32 0.0, %v5045
        %v5047 = vpop.f32.mrf.mxu0
        %v5048 = vadd.f32 0.0, %v5047
        %5049 = vmatmul.bf16.gmra.mxu0 %v4932
        %v5050 = vpop.f32.mrf.mxu0
        %v5051 = vadd.f32 0.0, %v5050
        %v5052 = vpop.f32.mrf.mxu0
        %v5053 = vadd.f32 0.0, %v5052
        %5054 = vmatmul.bf16.gmra.mxu0 %v4933
        %v5055 = vpop.f32.mrf.mxu0
        %v5056 = vadd.f32 0.0, %v5055
        %v5057 = vpop.f32.mrf.mxu0
        %v5058 = vadd.f32 0.0, %v5057
        %5059 = vmatmul.bf16.gmra.mxu0 %v4934
        %v5060 = vpop.f32.mrf.mxu0
        %v5061 = vadd.f32 0.0, %v5060
        %v5062 = vpop.f32.mrf.mxu0
        %v5063 = vadd.f32 0.0, %v5062
        %5064 = vmatmul.bf16.gmra.mxu0 %v4935
        %v5065 = vpop.f32.mrf.mxu0
        %v5066 = vadd.f32 0.0, %v5065
        %v5067 = vpop.f32.mrf.mxu0
        %v5068 = vadd.f32 0.0, %v5067
        %5069 = vmatmul.bf16.gmra.mxu0 %v4936
        %v5070 = vpop.f32.mrf.mxu0
        %v5071 = vadd.f32 0.0, %v5070
        %v5072 = vpop.f32.mrf.mxu0
        %v5073 = vadd.f32 0.0, %v5072
        %5074 = vmatmul.bf16.gmra.mxu0 %v4937
        %v5075 = vpop.f32.mrf.mxu0
        %v5076 = vadd.f32 0.0, %v5075
        %v5077 = vpop.f32.mrf.mxu0
        %v5078 = vadd.f32 0.0, %v5077
        %5079 = vmatmul.bf16.gmra.mxu0 %v4938
        %v5080 = vpop.f32.mrf.mxu0
        %v5081 = vadd.f32 0.0, %v5080
        %v5082 = vpop.f32.mrf.mxu0
        %v5083 = vadd.f32 0.0, %v5082
        %5084 = vmatmul.bf16.gmra.mxu0 %v4939
        %v5085 = vpop.f32.mrf.mxu0
        %v5086 = vadd.f32 0.0, %v5085
        %v5087 = vpop.f32.mrf.mxu0
        %v5088 = vadd.f32 0.0, %v5087
        %5089 = vmatmul.bf16.gmra.mxu0 %v4940
        %v5090 = vpop.f32.mrf.mxu0
        %v5091 = vadd.f32 0.0, %v5090
        %v5092 = vpop.f32.mrf.mxu0
        %v5093 = vadd.f32 0.0, %v5092
        %5094 = vdwg.mxu0
        %v5095 = vadd.f32 %v4522, %v5016
        %v5096 = vadd.f32 %v4523, %v5018
        %v5097 = vadd.f32 %v4524, %v5021
        %v5098 = vadd.f32 %v4525, %v5023
        %v5099 = vadd.f32 %v4526, %v5026
        %v5100 = vadd.f32 %v4527, %v5028
        %v5101 = vadd.f32 %v4528, %v5031
        %v5102 = vadd.f32 %v4529, %v5033
        %v5103 = vadd.f32 %v4530, %v5036
        %v5104 = vadd.f32 %v4531, %v5038
        %v5105 = vadd.f32 %v4532, %v5041
        %v5106 = vadd.f32 %v4533, %v5043
        %v5107 = vadd.f32 %v4534, %v5046
        %v5108 = vadd.f32 %v4535, %v5048
        %v5109 = vadd.f32 %v4536, %v5051
        %v5110 = vadd.f32 %v4537, %v5053
        %v5111 = vadd.f32 %v4538, %v5056
        %v5112 = vadd.f32 %v4539, %v5058
        %v5113 = vadd.f32 %v4540, %v5061
        %v5114 = vadd.f32 %v4541, %v5063
        %v5115 = vadd.f32 %v4542, %v5066
        %v5116 = vadd.f32 %v4543, %v5068
        %v5117 = vadd.f32 %v4544, %v5071
        %v5118 = vadd.f32 %v4545, %v5073
        %v5119 = vadd.f32 %v4546, %v5076
        %v5120 = vadd.f32 %v4547, %v5078
        %v5121 = vadd.f32 %v4548, %v5081
        %v5122 = vadd.f32 %v4549, %v5083
        %v5123 = vadd.f32 %v4550, %v5086
        %v5124 = vadd.f32 %v4551, %v5088
        %v5125 = vadd.f32 %v4552, %v5091
        %v5126 = vadd.f32 %v4553, %v5093
        %s5127 = scalar_lea.vmem %s1, 2048
        %v5128 = vld [vmem:[%s5127] sm:$0xff]
        %v5129 = vld [vmem:[%s5127 + $0x8] sm:$0xff]
        %v5130 = vld [vmem:[%s5127 + $0x10] sm:$0xff]
        %v5131 = vld [vmem:[%s5127 + $0x18] sm:$0xff]
        %v5132 = vld [vmem:[%s5127 + $0x20] sm:$0xff]
        %v5133 = vld [vmem:[%s5127 + $0x28] sm:$0xff]
        %v5134 = vld [vmem:[%s5127 + $0x30] sm:$0xff]
        %v5135 = vld [vmem:[%s5127 + $0x38] sm:$0xff]
        %v5136 = vld [vmem:[%s5127 + $0x40] sm:$0xff]
        %v5137 = vld [vmem:[%s5127 + $0x48] sm:$0xff]
        %v5138 = vld [vmem:[%s5127 + $0x50] sm:$0xff]
        %v5139 = vld [vmem:[%s5127 + $0x58] sm:$0xff]
        %v5140 = vld [vmem:[%s5127 + $0x60] sm:$0xff]
        %v5141 = vld [vmem:[%s5127 + $0x68] sm:$0xff]
        %v5142 = vld [vmem:[%s5127 + $0x70] sm:$0xff]
        %v5143 = vld [vmem:[%s5127 + $0x78] sm:$0xff]
        %v5144 = vld [vmem:[%s5127 + $0x80] sm:$0xff]
        %v5145 = vld [vmem:[%s5127 + $0x88] sm:$0xff]
        %v5146 = vld [vmem:[%s5127 + $0x90] sm:$0xff]
        %v5147 = vld [vmem:[%s5127 + $0x98] sm:$0xff]
        %v5148 = vld [vmem:[%s5127 + $0xa0] sm:$0xff]
        %v5149 = vld [vmem:[%s5127 + $0xa8] sm:$0xff]
        %v5150 = vld [vmem:[%s5127 + $0xb0] sm:$0xff]
        %v5151 = vld [vmem:[%s5127 + $0xb8] sm:$0xff]
        %v5152 = vld [vmem:[%s5127 + $0xc0] sm:$0xff]
        %v5153 = vld [vmem:[%s5127 + $0xc8] sm:$0xff]
        %v5154 = vld [vmem:[%s5127 + $0xd0] sm:$0xff]
        %v5155 = vld [vmem:[%s5127 + $0xd8] sm:$0xff]
        %v5156 = vld [vmem:[%s5127 + $0xe0] sm:$0xff]
        %v5157 = vld [vmem:[%s5127 + $0xe8] sm:$0xff]
        %v5158 = vld [vmem:[%s5127 + $0xf0] sm:$0xff]
        %v5159 = vld [vmem:[%s5127 + $0xf8] sm:$0xff]
        %v5192 = vunpack.c.l.b16 %v5128
        %v5193 = vunpack.c.h.b16 %v5128
        %v5194 = vunpack.c.l.b16 %v5129
        %v5195 = vunpack.c.h.b16 %v5129
        %v5196 = vunpack.c.l.b16 %v5130
        %v5197 = vunpack.c.h.b16 %v5130
        %v5198 = vunpack.c.l.b16 %v5131
        %v5199 = vunpack.c.h.b16 %v5131
        %v5200 = vunpack.c.l.b16 %v5132
        %v5201 = vunpack.c.h.b16 %v5132
        %v5202 = vunpack.c.l.b16 %v5133
        %v5203 = vunpack.c.h.b16 %v5133
        %v5204 = vunpack.c.l.b16 %v5134
        %v5205 = vunpack.c.h.b16 %v5134
        %v5206 = vunpack.c.l.b16 %v5135
        %v5207 = vunpack.c.h.b16 %v5135
        %v5208 = vunpack.c.l.b16 %v5136
        %v5209 = vunpack.c.h.b16 %v5136
        %v5210 = vunpack.c.l.b16 %v5137
        %v5211 = vunpack.c.h.b16 %v5137
        %v5212 = vunpack.c.l.b16 %v5138
        %v5213 = vunpack.c.h.b16 %v5138
        %v5214 = vunpack.c.l.b16 %v5139
        %v5215 = vunpack.c.h.b16 %v5139
        %v5216 = vunpack.c.l.b16 %v5140
        %v5217 = vunpack.c.h.b16 %v5140
        %v5218 = vunpack.c.l.b16 %v5141
        %v5219 = vunpack.c.h.b16 %v5141
        %v5220 = vunpack.c.l.b16 %v5142
        %v5221 = vunpack.c.h.b16 %v5142
        %v5222 = vunpack.c.l.b16 %v5143
        %v5223 = vunpack.c.h.b16 %v5143
        %v5224 = vunpack.c.l.b16 %v5144
        %v5225 = vunpack.c.h.b16 %v5144
        %v5226 = vunpack.c.l.b16 %v5145
        %v5227 = vunpack.c.h.b16 %v5145
        %v5228 = vunpack.c.l.b16 %v5146
        %v5229 = vunpack.c.h.b16 %v5146
        %v5230 = vunpack.c.l.b16 %v5147
        %v5231 = vunpack.c.h.b16 %v5147
        %v5232 = vunpack.c.l.b16 %v5148
        %v5233 = vunpack.c.h.b16 %v5148
        %v5234 = vunpack.c.l.b16 %v5149
        %v5235 = vunpack.c.h.b16 %v5149
        %v5236 = vunpack.c.l.b16 %v5150
        %v5237 = vunpack.c.h.b16 %v5150
        %v5238 = vunpack.c.l.b16 %v5151
        %v5239 = vunpack.c.h.b16 %v5151
        %v5240 = vunpack.c.l.b16 %v5152
        %v5241 = vunpack.c.h.b16 %v5152
        %v5242 = vunpack.c.l.b16 %v5153
        %v5243 = vunpack.c.h.b16 %v5153
        %v5244 = vunpack.c.l.b16 %v5154
        %v5245 = vunpack.c.h.b16 %v5154
        %v5246 = vunpack.c.l.b16 %v5155
        %v5247 = vunpack.c.h.b16 %v5155
        %v5248 = vunpack.c.l.b16 %v5156
        %v5249 = vunpack.c.h.b16 %v5156
        %v5250 = vunpack.c.l.b16 %v5157
        %v5251 = vunpack.c.h.b16 %v5157
        %v5252 = vunpack.c.l.b16 %v5158
        %v5253 = vunpack.c.h.b16 %v5158
        %v5254 = vunpack.c.l.b16 %v5159
        %v5255 = vunpack.c.h.b16 %v5159
        %v5256 = vpack.c.b16 %v5194, %v5192
        %v5257 = vpack.c.b16 %v5195, %v5193
        %v5258 = vpack.c.b16 %v5198, %v5196
        %v5259 = vpack.c.b16 %v5199, %v5197
        %v5260 = vpack.c.b16 %v5202, %v5200
        %v5261 = vpack.c.b16 %v5203, %v5201
        %v5262 = vpack.c.b16 %v5206, %v5204
        %v5263 = vpack.c.b16 %v5207, %v5205
        %v5264 = vpack.c.b16 %v5210, %v5208
        %v5265 = vpack.c.b16 %v5211, %v5209
        %v5266 = vpack.c.b16 %v5214, %v5212
        %v5267 = vpack.c.b16 %v5215, %v5213
        %v5268 = vpack.c.b16 %v5218, %v5216
        %v5269 = vpack.c.b16 %v5219, %v5217
        %v5270 = vpack.c.b16 %v5222, %v5220
        %v5271 = vpack.c.b16 %v5223, %v5221
        %v5272 = vpack.c.b16 %v5226, %v5224
        %v5273 = vpack.c.b16 %v5227, %v5225
        %v5274 = vpack.c.b16 %v5230, %v5228
        %v5275 = vpack.c.b16 %v5231, %v5229
        %v5276 = vpack.c.b16 %v5234, %v5232
        %v5277 = vpack.c.b16 %v5235, %v5233
        %v5278 = vpack.c.b16 %v5238, %v5236
        %v5279 = vpack.c.b16 %v5239, %v5237
        %v5280 = vpack.c.b16 %v5242, %v5240
        %v5281 = vpack.c.b16 %v5243, %v5241
        %v5282 = vpack.c.b16 %v5246, %v5244
        %v5283 = vpack.c.b16 %v5247, %v5245
        %v5284 = vpack.c.b16 %v5250, %v5248
        %v5285 = vpack.c.b16 %v5251, %v5249
        %v5286 = vpack.c.b16 %v5254, %v5252
        %v5287 = vpack.c.b16 %v5255, %v5253
        %5320 = vmatpush.bf16.msra.mxu0 %v712
        %5321 = vmatpush.bf16.msra.mxu0 %v711
        %5322 = vmatpush.bf16.msra.mxu0 %v710
        %5323 = vmatpush.bf16.msra.mxu0 %v709
        %5324 = vmatpush.bf16.msra.mxu0 %v708
        %5325 = vmatpush.bf16.msra.mxu0 %v707
        %5326 = vmatpush.bf16.msra.mxu0 %v706
        %5327 = vmatpush.bf16.msra.mxu0 %v705
        %5328 = vmatmul.bf16.gmra.mxu0 %v5256
        %v5329 = vpop.f32.mrf.mxu0
        %v5330 = vadd.f32 0.0, %v5329
        %v5331 = vpop.f32.mrf.mxu0
        %v5332 = vadd.f32 0.0, %v5331
        %5333 = vmatmul.bf16.gmra.mxu0 %v5258
        %v5334 = vpop.f32.mrf.mxu0
        %v5335 = vadd.f32 0.0, %v5334
        %v5336 = vpop.f32.mrf.mxu0
        %v5337 = vadd.f32 0.0, %v5336
        %5338 = vmatmul.bf16.gmra.mxu0 %v5260
        %v5339 = vpop.f32.mrf.mxu0
        %v5340 = vadd.f32 0.0, %v5339
        %v5341 = vpop.f32.mrf.mxu0
        %v5342 = vadd.f32 0.0, %v5341
        %5343 = vmatmul.bf16.gmra.mxu0 %v5262
        %v5344 = vpop.f32.mrf.mxu0
        %v5345 = vadd.f32 0.0, %v5344
        %v5346 = vpop.f32.mrf.mxu0
        %v5347 = vadd.f32 0.0, %v5346
        %5348 = vmatmul.bf16.gmra.mxu0 %v5264
        %v5349 = vpop.f32.mrf.mxu0
        %v5350 = vadd.f32 0.0, %v5349
        %v5351 = vpop.f32.mrf.mxu0
        %v5352 = vadd.f32 0.0, %v5351
        %5353 = vmatmul.bf16.gmra.mxu0 %v5266
        %v5354 = vpop.f32.mrf.mxu0
        %v5355 = vadd.f32 0.0, %v5354
        %v5356 = vpop.f32.mrf.mxu0
        %v5357 = vadd.f32 0.0, %v5356
        %5358 = vmatmul.bf16.gmra.mxu0 %v5268
        %v5359 = vpop.f32.mrf.mxu0
        %v5360 = vadd.f32 0.0, %v5359
        %v5361 = vpop.f32.mrf.mxu0
        %v5362 = vadd.f32 0.0, %v5361
        %5363 = vmatmul.bf16.gmra.mxu0 %v5270
        %v5364 = vpop.f32.mrf.mxu0
        %v5365 = vadd.f32 0.0, %v5364
        %v5366 = vpop.f32.mrf.mxu0
        %v5367 = vadd.f32 0.0, %v5366
        %5368 = vmatmul.bf16.gmra.mxu0 %v5272
        %v5369 = vpop.f32.mrf.mxu0
        %v5370 = vadd.f32 0.0, %v5369
        %v5371 = vpop.f32.mrf.mxu0
        %v5372 = vadd.f32 0.0, %v5371
        %5373 = vmatmul.bf16.gmra.mxu0 %v5274
        %v5374 = vpop.f32.mrf.mxu0
        %v5375 = vadd.f32 0.0, %v5374
        %v5376 = vpop.f32.mrf.mxu0
        %v5377 = vadd.f32 0.0, %v5376
        %5378 = vmatmul.bf16.gmra.mxu0 %v5276
        %v5379 = vpop.f32.mrf.mxu0
        %v5380 = vadd.f32 0.0, %v5379
        %v5381 = vpop.f32.mrf.mxu0
        %v5382 = vadd.f32 0.0, %v5381
        %5383 = vmatmul.bf16.gmra.mxu0 %v5278
        %v5384 = vpop.f32.mrf.mxu0
        %v5385 = vadd.f32 0.0, %v5384
        %v5386 = vpop.f32.mrf.mxu0
        %v5387 = vadd.f32 0.0, %v5386
        %5388 = vmatmul.bf16.gmra.mxu0 %v5280
        %v5389 = vpop.f32.mrf.mxu0
        %v5390 = vadd.f32 0.0, %v5389
        %v5391 = vpop.f32.mrf.mxu0
        %v5392 = vadd.f32 0.0, %v5391
        %5393 = vmatmul.bf16.gmra.mxu0 %v5282
        %v5394 = vpop.f32.mrf.mxu0
        %v5395 = vadd.f32 0.0, %v5394
        %v5396 = vpop.f32.mrf.mxu0
        %v5397 = vadd.f32 0.0, %v5396
        %5398 = vmatmul.bf16.gmra.mxu0 %v5284
        %v5399 = vpop.f32.mrf.mxu0
        %v5400 = vadd.f32 0.0, %v5399
        %v5401 = vpop.f32.mrf.mxu0
        %v5402 = vadd.f32 0.0, %v5401
        %5403 = vmatmul.bf16.gmra.mxu0 %v5286
        %v5404 = vpop.f32.mrf.mxu0
        %v5405 = vadd.f32 0.0, %v5404
        %v5406 = vpop.f32.mrf.mxu0
        %v5407 = vadd.f32 0.0, %v5406
        %5408 = vdwg.mxu0
        %5409 = vmatpush.bf16.msra.mxu0 %v720
        %5410 = vmatpush.bf16.msra.mxu0 %v719
        %5411 = vmatpush.bf16.msra.mxu0 %v718
        %5412 = vmatpush.bf16.msra.mxu0 %v717
        %5413 = vmatpush.bf16.msra.mxu0 %v716
        %5414 = vmatpush.bf16.msra.mxu0 %v715
        %5415 = vmatpush.bf16.msra.mxu0 %v714
        %5416 = vmatpush.bf16.msra.mxu0 %v713
        %5417 = vmatmul.bf16.gmra.mxu0 %v5257
        %v5418 = vpop.f32.mrf.mxu0
        %v5419 = vadd.f32 %v5330, %v5418
        %v5420 = vpop.f32.mrf.mxu0
        %v5421 = vadd.f32 %v5332, %v5420
        %5422 = vmatmul.bf16.gmra.mxu0 %v5259
        %v5423 = vpop.f32.mrf.mxu0
        %v5424 = vadd.f32 %v5335, %v5423
        %v5425 = vpop.f32.mrf.mxu0
        %v5426 = vadd.f32 %v5337, %v5425
        %5427 = vmatmul.bf16.gmra.mxu0 %v5261
        %v5428 = vpop.f32.mrf.mxu0
        %v5429 = vadd.f32 %v5340, %v5428
        %v5430 = vpop.f32.mrf.mxu0
        %v5431 = vadd.f32 %v5342, %v5430
        %5432 = vmatmul.bf16.gmra.mxu0 %v5263
        %v5433 = vpop.f32.mrf.mxu0
        %v5434 = vadd.f32 %v5345, %v5433
        %v5435 = vpop.f32.mrf.mxu0
        %v5436 = vadd.f32 %v5347, %v5435
        %5437 = vmatmul.bf16.gmra.mxu0 %v5265
        %v5438 = vpop.f32.mrf.mxu0
        %v5439 = vadd.f32 %v5350, %v5438
        %v5440 = vpop.f32.mrf.mxu0
        %v5441 = vadd.f32 %v5352, %v5440
        %5442 = vmatmul.bf16.gmra.mxu0 %v5267
        %v5443 = vpop.f32.mrf.mxu0
        %v5444 = vadd.f32 %v5355, %v5443
        %v5445 = vpop.f32.mrf.mxu0
        %v5446 = vadd.f32 %v5357, %v5445
        %5447 = vmatmul.bf16.gmra.mxu0 %v5269
        %v5448 = vpop.f32.mrf.mxu0
        %v5449 = vadd.f32 %v5360, %v5448
        %v5450 = vpop.f32.mrf.mxu0
        %v5451 = vadd.f32 %v5362, %v5450
        %5452 = vmatmul.bf16.gmra.mxu0 %v5271
        %v5453 = vpop.f32.mrf.mxu0
        %v5454 = vadd.f32 %v5365, %v5453
        %v5455 = vpop.f32.mrf.mxu0
        %v5456 = vadd.f32 %v5367, %v5455
        %5457 = vmatmul.bf16.gmra.mxu0 %v5273
        %v5458 = vpop.f32.mrf.mxu0
        %v5459 = vadd.f32 %v5370, %v5458
        %v5460 = vpop.f32.mrf.mxu0
        %v5461 = vadd.f32 %v5372, %v5460
        %5462 = vmatmul.bf16.gmra.mxu0 %v5275
        %v5463 = vpop.f32.mrf.mxu0
        %v5464 = vadd.f32 %v5375, %v5463
        %v5465 = vpop.f32.mrf.mxu0
        %v5466 = vadd.f32 %v5377, %v5465
        %5467 = vmatmul.bf16.gmra.mxu0 %v5277
        %v5468 = vpop.f32.mrf.mxu0
        %v5469 = vadd.f32 %v5380, %v5468
        %v5470 = vpop.f32.mrf.mxu0
        %v5471 = vadd.f32 %v5382, %v5470
        %5472 = vmatmul.bf16.gmra.mxu0 %v5279
        %v5473 = vpop.f32.mrf.mxu0
        %v5474 = vadd.f32 %v5385, %v5473
        %v5475 = vpop.f32.mrf.mxu0
        %v5476 = vadd.f32 %v5387, %v5475
        %5477 = vmatmul.bf16.gmra.mxu0 %v5281
        %v5478 = vpop.f32.mrf.mxu0
        %v5479 = vadd.f32 %v5390, %v5478
        %v5480 = vpop.f32.mrf.mxu0
        %v5481 = vadd.f32 %v5392, %v5480
        %5482 = vmatmul.bf16.gmra.mxu0 %v5283
        %v5483 = vpop.f32.mrf.mxu0
        %v5484 = vadd.f32 %v5395, %v5483
        %v5485 = vpop.f32.mrf.mxu0
        %v5486 = vadd.f32 %v5397, %v5485
        %5487 = vmatmul.bf16.gmra.mxu0 %v5285
        %v5488 = vpop.f32.mrf.mxu0
        %v5489 = vadd.f32 %v5400, %v5488
        %v5490 = vpop.f32.mrf.mxu0
        %v5491 = vadd.f32 %v5402, %v5490
        %5492 = vmatmul.bf16.gmra.mxu0 %v5287
        %v5493 = vpop.f32.mrf.mxu0
        %v5494 = vadd.f32 %v5405, %v5493
        %v5495 = vpop.f32.mrf.mxu0
        %v5496 = vadd.f32 %v5407, %v5495
        %5497 = vdwg.mxu0
        %v5498 = vpack.c.bf16 %v5421, %v5419
        %v5499 = vpack.c.bf16 %v5426, %v5424
        %v5500 = vpack.c.bf16 %v5431, %v5429
        %v5501 = vpack.c.bf16 %v5436, %v5434
        %v5502 = vpack.c.bf16 %v5441, %v5439
        %v5503 = vpack.c.bf16 %v5446, %v5444
        %v5504 = vpack.c.bf16 %v5451, %v5449
        %v5505 = vpack.c.bf16 %v5456, %v5454
        %v5506 = vpack.c.bf16 %v5461, %v5459
        %v5507 = vpack.c.bf16 %v5466, %v5464
        %v5508 = vpack.c.bf16 %v5471, %v5469
        %v5509 = vpack.c.bf16 %v5476, %v5474
        %v5510 = vpack.c.bf16 %v5481, %v5479
        %v5511 = vpack.c.bf16 %v5486, %v5484
        %v5512 = vpack.c.bf16 %v5491, %v5489
        %v5513 = vpack.c.bf16 %v5496, %v5494
        %s5514 = scalar_lea.vmem %s2, 512
        %v5515 = vld [vmem:[%s5514] sm:$0xf]
        %v5516 = vld [vmem:[%s5514 + $0x4] sm:$0xf]
        %v5517 = vld [vmem:[%s5514 + $0x8] sm:$0xf]
        %v5518 = vld [vmem:[%s5514 + $0xc] sm:$0xf]
        %v5519 = vld [vmem:[%s5514 + $0x10] sm:$0xf]
        %v5520 = vld [vmem:[%s5514 + $0x14] sm:$0xf]
        %v5521 = vld [vmem:[%s5514 + $0x18] sm:$0xf]
        %v5522 = vld [vmem:[%s5514 + $0x1c] sm:$0xf]
        %v5523 = vld [vmem:[%s5514 + $0x20] sm:$0xf]
        %v5524 = vld [vmem:[%s5514 + $0x24] sm:$0xf]
        %v5525 = vld [vmem:[%s5514 + $0x28] sm:$0xf]
        %v5526 = vld [vmem:[%s5514 + $0x2c] sm:$0xf]
        %v5527 = vld [vmem:[%s5514 + $0x30] sm:$0xf]
        %v5528 = vld [vmem:[%s5514 + $0x34] sm:$0xf]
        %v5529 = vld [vmem:[%s5514 + $0x38] sm:$0xf]
        %v5530 = vld [vmem:[%s5514 + $0x3c] sm:$0xf]
        %v5547 = vunpack.c.l.b16 %v5515
        %v5548 = vunpack.c.l.b16 %v5516
        %v5549 = vunpack.c.l.b16 %v5517
        %v5550 = vunpack.c.l.b16 %v5518
        %v5551 = vunpack.c.l.b16 %v5519
        %v5552 = vunpack.c.l.b16 %v5520
        %v5553 = vunpack.c.l.b16 %v5521
        %v5554 = vunpack.c.l.b16 %v5522
        %v5555 = vunpack.c.l.b16 %v5523
        %v5556 = vunpack.c.l.b16 %v5524
        %v5557 = vunpack.c.l.b16 %v5525
        %v5558 = vunpack.c.l.b16 %v5526
        %v5559 = vunpack.c.l.b16 %v5527
        %v5560 = vunpack.c.l.b16 %v5528
        %v5561 = vunpack.c.l.b16 %v5529
        %v5562 = vunpack.c.l.b16 %v5530
        %v5563 = vpack.c.b16 %v5548, %v5547
        %v5564 = vpack.c.b16 %v5550, %v5549
        %v5565 = vpack.c.b16 %v5552, %v5551
        %v5566 = vpack.c.b16 %v5554, %v5553
        %v5567 = vpack.c.b16 %v5556, %v5555
        %v5568 = vpack.c.b16 %v5558, %v5557
        %v5569 = vpack.c.b16 %v5560, %v5559
        %v5570 = vpack.c.b16 %v5562, %v5561
        %5579 = vmatpush.bf16.msra.mxu0 %v5570
        %5580 = vmatpush.bf16.msra.mxu0 %v5569
        %5581 = vmatpush.bf16.msra.mxu0 %v5568
        %5582 = vmatpush.bf16.msra.mxu0 %v5567
        %5583 = vmatpush.bf16.msra.mxu0 %v5566
        %5584 = vmatpush.bf16.msra.mxu0 %v5565
        %5585 = vmatpush.bf16.msra.mxu0 %v5564
        %5586 = vmatpush.bf16.msra.mxu0 %v5563
        %5587 = vmatmul.bf16.gmra.mxu0 %v5498
        %v5588 = vpop.f32.mrf.mxu0
        %v5589 = vadd.f32 0.0, %v5588
        %v5590 = vpop.f32.mrf.mxu0
        %v5591 = vadd.f32 0.0, %v5590
        %5592 = vmatmul.bf16.gmra.mxu0 %v5499
        %v5593 = vpop.f32.mrf.mxu0
        %v5594 = vadd.f32 0.0, %v5593
        %v5595 = vpop.f32.mrf.mxu0
        %v5596 = vadd.f32 0.0, %v5595
        %5597 = vmatmul.bf16.gmra.mxu0 %v5500
        %v5598 = vpop.f32.mrf.mxu0
        %v5599 = vadd.f32 0.0, %v5598
        %v5600 = vpop.f32.mrf.mxu0
        %v5601 = vadd.f32 0.0, %v5600
        %5602 = vmatmul.bf16.gmra.mxu0 %v5501
        %v5603 = vpop.f32.mrf.mxu0
        %v5604 = vadd.f32 0.0, %v5603
        %v5605 = vpop.f32.mrf.mxu0
        %v5606 = vadd.f32 0.0, %v5605
        %5607 = vmatmul.bf16.gmra.mxu0 %v5502
        %v5608 = vpop.f32.mrf.mxu0
        %v5609 = vadd.f32 0.0, %v5608
        %v5610 = vpop.f32.mrf.mxu0
        %v5611 = vadd.f32 0.0, %v5610
        %5612 = vmatmul.bf16.gmra.mxu0 %v5503
        %v5613 = vpop.f32.mrf.mxu0
        %v5614 = vadd.f32 0.0, %v5613
        %v5615 = vpop.f32.mrf.mxu0
        %v5616 = vadd.f32 0.0, %v5615
        %5617 = vmatmul.bf16.gmra.mxu0 %v5504
        %v5618 = vpop.f32.mrf.mxu0
        %v5619 = vadd.f32 0.0, %v5618
        %v5620 = vpop.f32.mrf.mxu0
        %v5621 = vadd.f32 0.0, %v5620
        %5622 = vmatmul.bf16.gmra.mxu0 %v5505
        %v5623 = vpop.f32.mrf.mxu0
        %v5624 = vadd.f32 0.0, %v5623
        %v5625 = vpop.f32.mrf.mxu0
        %v5626 = vadd.f32 0.0, %v5625
        %5627 = vmatmul.bf16.gmra.mxu0 %v5506
        %v5628 = vpop.f32.mrf.mxu0
        %v5629 = vadd.f32 0.0, %v5628
        %v5630 = vpop.f32.mrf.mxu0
        %v5631 = vadd.f32 0.0, %v5630
        %5632 = vmatmul.bf16.gmra.mxu0 %v5507
        %v5633 = vpop.f32.mrf.mxu0
        %v5634 = vadd.f32 0.0, %v5633
        %v5635 = vpop.f32.mrf.mxu0
        %v5636 = vadd.f32 0.0, %v5635
        %5637 = vmatmul.bf16.gmra.mxu0 %v5508
        %v5638 = vpop.f32.mrf.mxu0
        %v5639 = vadd.f32 0.0, %v5638
        %v5640 = vpop.f32.mrf.mxu0
        %v5641 = vadd.f32 0.0, %v5640
        %5642 = vmatmul.bf16.gmra.mxu0 %v5509
        %v5643 = vpop.f32.mrf.mxu0
        %v5644 = vadd.f32 0.0, %v5643
        %v5645 = vpop.f32.mrf.mxu0
        %v5646 = vadd.f32 0.0, %v5645
        %5647 = vmatmul.bf16.gmra.mxu0 %v5510
        %v5648 = vpop.f32.mrf.mxu0
        %v5649 = vadd.f32 0.0, %v5648
        %v5650 = vpop.f32.mrf.mxu0
        %v5651 = vadd.f32 0.0, %v5650
        %5652 = vmatmul.bf16.gmra.mxu0 %v5511
        %v5653 = vpop.f32.mrf.mxu0
        %v5654 = vadd.f32 0.0, %v5653
        %v5655 = vpop.f32.mrf.mxu0
        %v5656 = vadd.f32 0.0, %v5655
        %5657 = vmatmul.bf16.gmra.mxu0 %v5512
        %v5658 = vpop.f32.mrf.mxu0
        %v5659 = vadd.f32 0.0, %v5658
        %v5660 = vpop.f32.mrf.mxu0
        %v5661 = vadd.f32 0.0, %v5660
        %5662 = vmatmul.bf16.gmra.mxu0 %v5513
        %v5663 = vpop.f32.mrf.mxu0
        %v5664 = vadd.f32 0.0, %v5663
        %v5665 = vpop.f32.mrf.mxu0
        %v5666 = vadd.f32 0.0, %v5665
        %5667 = vdwg.mxu0
        %v5668 = vadd.f32 %v5095, %v5589
        %v5669 = vadd.f32 %v5096, %v5591
        %v5670 = vadd.f32 %v5097, %v5594
        %v5671 = vadd.f32 %v5098, %v5596
        %v5672 = vadd.f32 %v5099, %v5599
        %v5673 = vadd.f32 %v5100, %v5601
        %v5674 = vadd.f32 %v5101, %v5604
        %v5675 = vadd.f32 %v5102, %v5606
        %v5676 = vadd.f32 %v5103, %v5609
        %v5677 = vadd.f32 %v5104, %v5611
        %v5678 = vadd.f32 %v5105, %v5614
        %v5679 = vadd.f32 %v5106, %v5616
        %v5680 = vadd.f32 %v5107, %v5619
        %v5681 = vadd.f32 %v5108, %v5621
        %v5682 = vadd.f32 %v5109, %v5624
        %v5683 = vadd.f32 %v5110, %v5626
        %v5684 = vadd.f32 %v5111, %v5629
        %v5685 = vadd.f32 %v5112, %v5631
        %v5686 = vadd.f32 %v5113, %v5634
        %v5687 = vadd.f32 %v5114, %v5636
        %v5688 = vadd.f32 %v5115, %v5639
        %v5689 = vadd.f32 %v5116, %v5641
        %v5690 = vadd.f32 %v5117, %v5644
        %v5691 = vadd.f32 %v5118, %v5646
        %v5692 = vadd.f32 %v5119, %v5649
        %v5693 = vadd.f32 %v5120, %v5651
        %v5694 = vadd.f32 %v5121, %v5654
        %v5695 = vadd.f32 %v5122, %v5656
        %v5696 = vadd.f32 %v5123, %v5659
        %v5697 = vadd.f32 %v5124, %v5661
        %v5698 = vadd.f32 %v5125, %v5664
        %v5699 = vadd.f32 %v5126, %v5666
        %v5700 = vmax.f32 %v5668, 0.0
        %v5701 = vmax.f32 %v5669, 0.0
        %v5702 = vmax.f32 %v5670, 0.0
        %v5703 = vmax.f32 %v5671, 0.0
        %v5704 = vmax.f32 %v5672, 0.0
        %v5705 = vmax.f32 %v5673, 0.0
        %v5706 = vmax.f32 %v5674, 0.0
        %v5707 = vmax.f32 %v5675, 0.0
        %v5708 = vmax.f32 %v5676, 0.0
        %v5709 = vmax.f32 %v5677, 0.0
        %v5710 = vmax.f32 %v5678, 0.0
        %v5711 = vmax.f32 %v5679, 0.0
        %v5712 = vmax.f32 %v5680, 0.0
        %v5713 = vmax.f32 %v5681, 0.0
        %v5714 = vmax.f32 %v5682, 0.0
        %v5715 = vmax.f32 %v5683, 0.0
        %v5716 = vmax.f32 %v5684, 0.0
        %v5717 = vmax.f32 %v5685, 0.0
        %v5718 = vmax.f32 %v5686, 0.0
        %v5719 = vmax.f32 %v5687, 0.0
        %v5720 = vmax.f32 %v5688, 0.0
        %v5721 = vmax.f32 %v5689, 0.0
        %v5722 = vmax.f32 %v5690, 0.0
        %v5723 = vmax.f32 %v5691, 0.0
        %v5724 = vmax.f32 %v5692, 0.0
        %v5725 = vmax.f32 %v5693, 0.0
        %v5726 = vmax.f32 %v5694, 0.0
        %v5727 = vmax.f32 %v5695, 0.0
        %v5728 = vmax.f32 %v5696, 0.0
        %v5729 = vmax.f32 %v5697, 0.0
        %v5730 = vmax.f32 %v5698, 0.0
        %v5731 = vmax.f32 %v5699, 0.0
        %v5732 = vpack.c.bf16 %v5701, %v5700
        %v5733 = vpack.c.bf16 %v5703, %v5702
        %v5734 = vpack.c.bf16 %v5705, %v5704
        %v5735 = vpack.c.bf16 %v5707, %v5706
        %v5736 = vpack.c.bf16 %v5709, %v5708
        %v5737 = vpack.c.bf16 %v5711, %v5710
        %v5738 = vpack.c.bf16 %v5713, %v5712
        %v5739 = vpack.c.bf16 %v5715, %v5714
        %v5740 = vpack.c.bf16 %v5717, %v5716
        %v5741 = vpack.c.bf16 %v5719, %v5718
        %v5742 = vpack.c.bf16 %v5721, %v5720
        %v5743 = vpack.c.bf16 %v5723, %v5722
        %v5744 = vpack.c.bf16 %v5725, %v5724
        %v5745 = vpack.c.bf16 %v5727, %v5726
        %v5746 = vpack.c.bf16 %v5729, %v5728
        %v5747 = vpack.c.bf16 %v5731, %v5730
        %v5748 = vld [vmem:[%s6] sm:$0x1]
        %v5750 = vperm.slane %v5748, 0
        %v5752 = vadd.f32 %v5750, 0.0
        %v5753 = vld [vmem:[%s4] sm:$0xff]
        %v5754 = vld [vmem:[%s4 + $0x8] sm:$0xff]
        %v5755 = vld [vmem:[%s4 + $0x10] sm:$0xff]
        %v5756 = vld [vmem:[%s4 + $0x18] sm:$0xff]
        %v5757 = vld [vmem:[%s4 + $0x20] sm:$0xff]
        %v5758 = vld [vmem:[%s4 + $0x28] sm:$0xff]
        %v5759 = vld [vmem:[%s4 + $0x30] sm:$0xff]
        %v5760 = vld [vmem:[%s4 + $0x38] sm:$0xff]
        %v5769 = vunpack.c.l.b16 %v5753
        %v5770 = vunpack.c.h.b16 %v5753
        %v5771 = vunpack.c.l.b16 %v5754
        %v5772 = vunpack.c.h.b16 %v5754
        %v5773 = vunpack.c.l.b16 %v5755
        %v5774 = vunpack.c.h.b16 %v5755
        %v5775 = vunpack.c.l.b16 %v5756
        %v5776 = vunpack.c.h.b16 %v5756
        %v5777 = vunpack.c.l.b16 %v5757
        %v5778 = vunpack.c.h.b16 %v5757
        %v5779 = vunpack.c.l.b16 %v5758
        %v5780 = vunpack.c.h.b16 %v5758
        %v5781 = vunpack.c.l.b16 %v5759
        %v5782 = vunpack.c.h.b16 %v5759
        %v5783 = vunpack.c.l.b16 %v5760
        %v5784 = vunpack.c.h.b16 %v5760
        %v5785 = vpack.c.b16 %v5771, %v5769
        %v5786 = vpack.c.b16 %v5772, %v5770
        %v5787 = vpack.c.b16 %v5775, %v5773
        %v5788 = vpack.c.b16 %v5776, %v5774
        %v5789 = vpack.c.b16 %v5779, %v5777
        %v5790 = vpack.c.b16 %v5780, %v5778
        %v5791 = vpack.c.b16 %v5783, %v5781
        %v5792 = vpack.c.b16 %v5784, %v5782
        %5801 = vmatpush.bf16.msra.mxu0 %v5739
        %5802 = vmatpush.bf16.msra.mxu0 %v5738
        %5803 = vmatpush.bf16.msra.mxu0 %v5737
        %5804 = vmatpush.bf16.msra.mxu0 %v5736
        %5805 = vmatpush.bf16.msra.mxu0 %v5735
        %5806 = vmatpush.bf16.msra.mxu0 %v5734
        %5807 = vmatpush.bf16.msra.mxu0 %v5733
        %5808 = vmatpush.bf16.msra.mxu0 %v5732
        %5809 = vmatmul.bf16.gmra.mxu0 %v5785
        %v5810 = vpop.f32.mrf.mxu0
        %v5811 = vadd.f32 0.0, %v5810
        %v5812 = vpop.f32.mrf.mxu0
        %v5813 = vadd.f32 0.0, %v5812
        %5814 = vmatmul.bf16.gmra.mxu0 %v5787
        %v5815 = vpop.f32.mrf.mxu0
        %v5816 = vadd.f32 0.0, %v5815
        %v5817 = vpop.f32.mrf.mxu0
        %v5818 = vadd.f32 0.0, %v5817
        %5819 = vmatmul.bf16.gmra.mxu0 %v5789
        %v5820 = vpop.f32.mrf.mxu0
        %v5821 = vadd.f32 0.0, %v5820
        %v5822 = vpop.f32.mrf.mxu0
        %v5823 = vadd.f32 0.0, %v5822
        %5824 = vmatmul.bf16.gmra.mxu0 %v5791
        %v5825 = vpop.f32.mrf.mxu0
        %v5826 = vadd.f32 0.0, %v5825
        %v5827 = vpop.f32.mrf.mxu0
        %v5828 = vadd.f32 0.0, %v5827
        %5829 = vdwg.mxu0
        %5830 = vmatpush.bf16.msra.mxu0 %v5747
        %5831 = vmatpush.bf16.msra.mxu0 %v5746
        %5832 = vmatpush.bf16.msra.mxu0 %v5745
        %5833 = vmatpush.bf16.msra.mxu0 %v5744
        %5834 = vmatpush.bf16.msra.mxu0 %v5743
        %5835 = vmatpush.bf16.msra.mxu0 %v5742
        %5836 = vmatpush.bf16.msra.mxu0 %v5741
        %5837 = vmatpush.bf16.msra.mxu0 %v5740
        %5838 = vmatmul.bf16.gmra.mxu0 %v5786
        %v5839 = vpop.f32.mrf.mxu0
        %v5840 = vadd.f32 %v5811, %v5839
        %v5841 = vpop.f32.mrf.mxu0
        %v5842 = vadd.f32 %v5813, %v5841
        %5843 = vmatmul.bf16.gmra.mxu0 %v5788
        %v5844 = vpop.f32.mrf.mxu0
        %v5845 = vadd.f32 %v5816, %v5844
        %v5846 = vpop.f32.mrf.mxu0
        %v5847 = vadd.f32 %v5818, %v5846
        %5848 = vmatmul.bf16.gmra.mxu0 %v5790
        %v5849 = vpop.f32.mrf.mxu0
        %v5850 = vadd.f32 %v5821, %v5849
        %v5851 = vpop.f32.mrf.mxu0
        %v5852 = vadd.f32 %v5823, %v5851
        %5853 = vmatmul.bf16.gmra.mxu0 %v5792
        %v5854 = vpop.f32.mrf.mxu0
        %v5855 = vadd.f32 %v5826, %v5854
        %v5856 = vpop.f32.mrf.mxu0
        %v5857 = vadd.f32 %v5828, %v5856
        %5858 = vdwg.mxu0
        %v5859 = vpack.c.bf16 %v5842, %v5840
        %v5860 = vpack.c.bf16 %v5847, %v5845
        %v5861 = vpack.c.bf16 %v5852, %v5850
        %v5862 = vpack.c.bf16 %v5857, %v5855
        %v5863 = vld [vmem:[%s5] sm:$0xf]
        %v5864 = vld [vmem:[%s5 + $0x4] sm:$0xf]
        %v5865 = vld [vmem:[%s5 + $0x8] sm:$0xf]
        %v5866 = vld [vmem:[%s5 + $0xc] sm:$0xf]
        %v5871 = vunpack.c.l.b16 %v5863
        %v5872 = vunpack.c.l.b16 %v5864
        %v5873 = vunpack.c.l.b16 %v5865
        %v5874 = vunpack.c.l.b16 %v5866
        %v5875 = vpack.c.b16 %v5872, %v5871
        %v5876 = vpack.c.b16 %v5874, %v5873
        %vm5879 = vcmask 261120
        %v5881 = vsel %vm5879, %v5859, 0
        %v5884 = vsel %vm5879, %v5860, 0
        %v5887 = vsel %vm5879, %v5861, 0
        %v5890 = vsel %vm5879, %v5862, 0
        %5892 = vmatpush.bf16.msra.mxu0 0
        %5893 = vmatpush.bf16.msra.mxu0 0
        %5894 = vmatpush.bf16.msra.mxu0 0
        %5895 = vmatpush.bf16.msra.mxu0 0
        %5896 = vmatpush.bf16.msra.mxu0 0
        %5897 = vmatpush.bf16.msra.mxu0 0
        %5898 = vmatpush.bf16.msra.mxu0 %v5876
        %5899 = vmatpush.bf16.msra.mxu0 %v5875
        %5900 = vmatmul.bf16.gmra.mxu0 %v5881
        %v5901 = vpop.f32.mrf.mxu0
        %v5902 = vadd.f32 0.0, %v5901
        %v5903 = vpop.f32.mrf.mxu0
        %v5904 = vadd.f32 0.0, %v5903
        %5905 = vmatmul.bf16.gmra.mxu0 %v5884
        %v5906 = vpop.f32.mrf.mxu0
        %v5907 = vadd.f32 0.0, %v5906
        %v5908 = vpop.f32.mrf.mxu0
        %v5909 = vadd.f32 0.0, %v5908
        %5910 = vmatmul.bf16.gmra.mxu0 %v5887
        %v5911 = vpop.f32.mrf.mxu0
        %v5912 = vadd.f32 0.0, %v5911
        %v5913 = vpop.f32.mrf.mxu0
        %v5914 = vadd.f32 0.0, %v5913
        %5915 = vmatmul.bf16.gmra.mxu0 %v5890
        %v5916 = vpop.f32.mrf.mxu0
        %v5917 = vadd.f32 0.0, %v5916
        %v5918 = vpop.f32.mrf.mxu0
        %v5919 = vadd.f32 0.0, %v5918
        %5920 = vdwg.mxu0
        %v5921 = vadd.f32 %v5752, %v5902
        %v5922 = vadd.f32 %v5752, %v5904
        %v5923 = vadd.f32 %v5752, %v5907
        %v5924 = vadd.f32 %v5752, %v5909
        %v5925 = vadd.f32 %v5752, %v5912
        %v5926 = vadd.f32 %v5752, %v5914
        %v5927 = vadd.f32 %v5752, %v5917
        %v5928 = vadd.f32 %v5752, %v5919
        %s5929 = scalar_lea.vmem %s4, 64
        %v5930 = vld [vmem:[%s5929] sm:$0xff]
        %v5931 = vld [vmem:[%s5929 + $0x8] sm:$0xff]
        %v5932 = vld [vmem:[%s5929 + $0x10] sm:$0xff]
        %v5933 = vld [vmem:[%s5929 + $0x18] sm:$0xff]
        %v5934 = vld [vmem:[%s5929 + $0x20] sm:$0xff]
        %v5935 = vld [vmem:[%s5929 + $0x28] sm:$0xff]
        %v5936 = vld [vmem:[%s5929 + $0x30] sm:$0xff]
        %v5937 = vld [vmem:[%s5929 + $0x38] sm:$0xff]
        %v5946 = vunpack.c.l.b16 %v5930
        %v5947 = vunpack.c.h.b16 %v5930
        %v5948 = vunpack.c.l.b16 %v5931
        %v5949 = vunpack.c.h.b16 %v5931
        %v5950 = vunpack.c.l.b16 %v5932
        %v5951 = vunpack.c.h.b16 %v5932
        %v5952 = vunpack.c.l.b16 %v5933
        %v5953 = vunpack.c.h.b16 %v5933
        %v5954 = vunpack.c.l.b16 %v5934
        %v5955 = vunpack.c.h.b16 %v5934
        %v5956 = vunpack.c.l.b16 %v5935
        %v5957 = vunpack.c.h.b16 %v5935
        %v5958 = vunpack.c.l.b16 %v5936
        %v5959 = vunpack.c.h.b16 %v5936
        %v5960 = vunpack.c.l.b16 %v5937
        %v5961 = vunpack.c.h.b16 %v5937
        %v5962 = vpack.c.b16 %v5948, %v5946
        %v5963 = vpack.c.b16 %v5949, %v5947
        %v5964 = vpack.c.b16 %v5952, %v5950
        %v5965 = vpack.c.b16 %v5953, %v5951
        %v5966 = vpack.c.b16 %v5956, %v5954
        %v5967 = vpack.c.b16 %v5957, %v5955
        %v5968 = vpack.c.b16 %v5960, %v5958
        %v5969 = vpack.c.b16 %v5961, %v5959
        %5978 = vmatpush.bf16.msra.mxu0 %v5739
        %5979 = vmatpush.bf16.msra.mxu0 %v5738
        %5980 = vmatpush.bf16.msra.mxu0 %v5737
        %5981 = vmatpush.bf16.msra.mxu0 %v5736
        %5982 = vmatpush.bf16.msra.mxu0 %v5735
        %5983 = vmatpush.bf16.msra.mxu0 %v5734
        %5984 = vmatpush.bf16.msra.mxu0 %v5733
        %5985 = vmatpush.bf16.msra.mxu0 %v5732
        %5986 = vmatmul.bf16.gmra.mxu0 %v5962
        %v5987 = vpop.f32.mrf.mxu0
        %v5988 = vadd.f32 0.0, %v5987
        %v5989 = vpop.f32.mrf.mxu0
        %v5990 = vadd.f32 0.0, %v5989
        %5991 = vmatmul.bf16.gmra.mxu0 %v5964
        %v5992 = vpop.f32.mrf.mxu0
        %v5993 = vadd.f32 0.0, %v5992
        %v5994 = vpop.f32.mrf.mxu0
        %v5995 = vadd.f32 0.0, %v5994
        %5996 = vmatmul.bf16.gmra.mxu0 %v5966
        %v5997 = vpop.f32.mrf.mxu0
        %v5998 = vadd.f32 0.0, %v5997
        %v5999 = vpop.f32.mrf.mxu0
        %v6000 = vadd.f32 0.0, %v5999
        %6001 = vmatmul.bf16.gmra.mxu0 %v5968
        %v6002 = vpop.f32.mrf.mxu0
        %v6003 = vadd.f32 0.0, %v6002
        %v6004 = vpop.f32.mrf.mxu0
        %v6005 = vadd.f32 0.0, %v6004
        %6006 = vdwg.mxu0
        %6007 = vmatpush.bf16.msra.mxu0 %v5747
        %6008 = vmatpush.bf16.msra.mxu0 %v5746
        %6009 = vmatpush.bf16.msra.mxu0 %v5745
        %6010 = vmatpush.bf16.msra.mxu0 %v5744
        %6011 = vmatpush.bf16.msra.mxu0 %v5743
        %6012 = vmatpush.bf16.msra.mxu0 %v5742
        %6013 = vmatpush.bf16.msra.mxu0 %v5741
        %6014 = vmatpush.bf16.msra.mxu0 %v5740
        %6015 = vmatmul.bf16.gmra.mxu0 %v5963
        %v6016 = vpop.f32.mrf.mxu0
        %v6017 = vadd.f32 %v5988, %v6016
        %v6018 = vpop.f32.mrf.mxu0
        %v6019 = vadd.f32 %v5990, %v6018
        %6020 = vmatmul.bf16.gmra.mxu0 %v5965
        %v6021 = vpop.f32.mrf.mxu0
        %v6022 = vadd.f32 %v5993, %v6021
        %v6023 = vpop.f32.mrf.mxu0
        %v6024 = vadd.f32 %v5995, %v6023
        %6025 = vmatmul.bf16.gmra.mxu0 %v5967
        %v6026 = vpop.f32.mrf.mxu0
        %v6027 = vadd.f32 %v5998, %v6026
        %v6028 = vpop.f32.mrf.mxu0
        %v6029 = vadd.f32 %v6000, %v6028
        %6030 = vmatmul.bf16.gmra.mxu0 %v5969
        %v6031 = vpop.f32.mrf.mxu0
        %v6032 = vadd.f32 %v6003, %v6031
        %v6033 = vpop.f32.mrf.mxu0
        %v6034 = vadd.f32 %v6005, %v6033
        %6035 = vdwg.mxu0
        %v6036 = vpack.c.bf16 %v6019, %v6017
        %v6037 = vpack.c.bf16 %v6024, %v6022
        %v6038 = vpack.c.bf16 %v6029, %v6027
        %v6039 = vpack.c.bf16 %v6034, %v6032
        %s6040 = scalar_lea.vmem %s5, 16
        %v6041 = vld [vmem:[%s6040] sm:$0xf]
        %v6042 = vld [vmem:[%s6040 + $0x4] sm:$0xf]
        %v6043 = vld [vmem:[%s6040 + $0x8] sm:$0xf]
        %v6044 = vld [vmem:[%s6040 + $0xc] sm:$0xf]
        %v6049 = vunpack.c.l.b16 %v6041
        %v6050 = vunpack.c.l.b16 %v6042
        %v6051 = vunpack.c.l.b16 %v6043
        %v6052 = vunpack.c.l.b16 %v6044
        %v6053 = vpack.c.b16 %v6050, %v6049
        %v6054 = vpack.c.b16 %v6052, %v6051
        %v6058 = vsel %vm5879, %v6036, 0
        %v6061 = vsel %vm5879, %v6037, 0
        %v6064 = vsel %vm5879, %v6038, 0
        %v6067 = vsel %vm5879, %v6039, 0
        %6069 = vmatpush.bf16.msra.mxu0 0
        %6070 = vmatpush.bf16.msra.mxu0 0
        %6071 = vmatpush.bf16.msra.mxu0 0
        %6072 = vmatpush.bf16.msra.mxu0 0
        %6073 = vmatpush.bf16.msra.mxu0 0
        %6074 = vmatpush.bf16.msra.mxu0 0
        %6075 = vmatpush.bf16.msra.mxu0 %v6054
        %6076 = vmatpush.bf16.msra.mxu0 %v6053
        %6077 = vmatmul.bf16.gmra.mxu0 %v6058
        %v6078 = vpop.f32.mrf.mxu0
        %v6079 = vadd.f32 0.0, %v6078
        %v6080 = vpop.f32.mrf.mxu0
        %v6081 = vadd.f32 0.0, %v6080
        %6082 = vmatmul.bf16.gmra.mxu0 %v6061
        %v6083 = vpop.f32.mrf.mxu0
        %v6084 = vadd.f32 0.0, %v6083
        %v6085 = vpop.f32.mrf.mxu0
        %v6086 = vadd.f32 0.0, %v6085
        %6087 = vmatmul.bf16.gmra.mxu0 %v6064
        %v6088 = vpop.f32.mrf.mxu0
        %v6089 = vadd.f32 0.0, %v6088
        %v6090 = vpop.f32.mrf.mxu0
        %v6091 = vadd.f32 0.0, %v6090
        %6092 = vmatmul.bf16.gmra.mxu0 %v6067
        %v6093 = vpop.f32.mrf.mxu0
        %v6094 = vadd.f32 0.0, %v6093
        %v6095 = vpop.f32.mrf.mxu0
        %v6096 = vadd.f32 0.0, %v6095
        %6097 = vdwg.mxu0
        %v6098 = vadd.f32 %v5921, %v6079
        %v6099 = vadd.f32 %v5922, %v6081
        %v6100 = vadd.f32 %v5923, %v6084
        %v6101 = vadd.f32 %v5924, %v6086
        %v6102 = vadd.f32 %v5925, %v6089
        %v6103 = vadd.f32 %v5926, %v6091
        %v6104 = vadd.f32 %v5927, %v6094
        %v6105 = vadd.f32 %v5928, %v6096
        %s6106 = scalar_lea.vmem %s4, 128
        %v6107 = vld [vmem:[%s6106] sm:$0xff]
        %v6108 = vld [vmem:[%s6106 + $0x8] sm:$0xff]
        %v6109 = vld [vmem:[%s6106 + $0x10] sm:$0xff]
        %v6110 = vld [vmem:[%s6106 + $0x18] sm:$0xff]
        %v6111 = vld [vmem:[%s6106 + $0x20] sm:$0xff]
        %v6112 = vld [vmem:[%s6106 + $0x28] sm:$0xff]
        %v6113 = vld [vmem:[%s6106 + $0x30] sm:$0xff]
        %v6114 = vld [vmem:[%s6106 + $0x38] sm:$0xff]
        %v6123 = vunpack.c.l.b16 %v6107
        %v6124 = vunpack.c.h.b16 %v6107
        %v6125 = vunpack.c.l.b16 %v6108
        %v6126 = vunpack.c.h.b16 %v6108
        %v6127 = vunpack.c.l.b16 %v6109
        %v6128 = vunpack.c.h.b16 %v6109
        %v6129 = vunpack.c.l.b16 %v6110
        %v6130 = vunpack.c.h.b16 %v6110
        %v6131 = vunpack.c.l.b16 %v6111
        %v6132 = vunpack.c.h.b16 %v6111
        %v6133 = vunpack.c.l.b16 %v6112
        %v6134 = vunpack.c.h.b16 %v6112
        %v6135 = vunpack.c.l.b16 %v6113
        %v6136 = vunpack.c.h.b16 %v6113
        %v6137 = vunpack.c.l.b16 %v6114
        %v6138 = vunpack.c.h.b16 %v6114
        %v6139 = vpack.c.b16 %v6125, %v6123
        %v6140 = vpack.c.b16 %v6126, %v6124
        %v6141 = vpack.c.b16 %v6129, %v6127
        %v6142 = vpack.c.b16 %v6130, %v6128
        %v6143 = vpack.c.b16 %v6133, %v6131
        %v6144 = vpack.c.b16 %v6134, %v6132
        %v6145 = vpack.c.b16 %v6137, %v6135
        %v6146 = vpack.c.b16 %v6138, %v6136
        %6155 = vmatpush.bf16.msra.mxu0 %v5739
        %6156 = vmatpush.bf16.msra.mxu0 %v5738
        %6157 = vmatpush.bf16.msra.mxu0 %v5737
        %6158 = vmatpush.bf16.msra.mxu0 %v5736
        %6159 = vmatpush.bf16.msra.mxu0 %v5735
        %6160 = vmatpush.bf16.msra.mxu0 %v5734
        %6161 = vmatpush.bf16.msra.mxu0 %v5733
        %6162 = vmatpush.bf16.msra.mxu0 %v5732
        %6163 = vmatmul.bf16.gmra.mxu0 %v6139
        %v6164 = vpop.f32.mrf.mxu0
        %v6165 = vadd.f32 0.0, %v6164
        %v6166 = vpop.f32.mrf.mxu0
        %v6167 = vadd.f32 0.0, %v6166
        %6168 = vmatmul.bf16.gmra.mxu0 %v6141
        %v6169 = vpop.f32.mrf.mxu0
        %v6170 = vadd.f32 0.0, %v6169
        %v6171 = vpop.f32.mrf.mxu0
        %v6172 = vadd.f32 0.0, %v6171
        %6173 = vmatmul.bf16.gmra.mxu0 %v6143
        %v6174 = vpop.f32.mrf.mxu0
        %v6175 = vadd.f32 0.0, %v6174
        %v6176 = vpop.f32.mrf.mxu0
        %v6177 = vadd.f32 0.0, %v6176
        %6178 = vmatmul.bf16.gmra.mxu0 %v6145
        %v6179 = vpop.f32.mrf.mxu0
        %v6180 = vadd.f32 0.0, %v6179
        %v6181 = vpop.f32.mrf.mxu0
        %v6182 = vadd.f32 0.0, %v6181
        %6183 = vdwg.mxu0
        %6184 = vmatpush.bf16.msra.mxu0 %v5747
        %6185 = vmatpush.bf16.msra.mxu0 %v5746
        %6186 = vmatpush.bf16.msra.mxu0 %v5745
        %6187 = vmatpush.bf16.msra.mxu0 %v5744
        %6188 = vmatpush.bf16.msra.mxu0 %v5743
        %6189 = vmatpush.bf16.msra.mxu0 %v5742
        %6190 = vmatpush.bf16.msra.mxu0 %v5741
        %6191 = vmatpush.bf16.msra.mxu0 %v5740
        %6192 = vmatmul.bf16.gmra.mxu0 %v6140
        %v6193 = vpop.f32.mrf.mxu0
        %v6194 = vadd.f32 %v6165, %v6193
        %v6195 = vpop.f32.mrf.mxu0
        %v6196 = vadd.f32 %v6167, %v6195
        %6197 = vmatmul.bf16.gmra.mxu0 %v6142
        %v6198 = vpop.f32.mrf.mxu0
        %v6199 = vadd.f32 %v6170, %v6198
        %v6200 = vpop.f32.mrf.mxu0
        %v6201 = vadd.f32 %v6172, %v6200
        %6202 = vmatmul.bf16.gmra.mxu0 %v6144
        %v6203 = vpop.f32.mrf.mxu0
        %v6204 = vadd.f32 %v6175, %v6203
        %v6205 = vpop.f32.mrf.mxu0
        %v6206 = vadd.f32 %v6177, %v6205
        %6207 = vmatmul.bf16.gmra.mxu0 %v6146
        %v6208 = vpop.f32.mrf.mxu0
        %v6209 = vadd.f32 %v6180, %v6208
        %v6210 = vpop.f32.mrf.mxu0
        %v6211 = vadd.f32 %v6182, %v6210
        %6212 = vdwg.mxu0
        %v6213 = vpack.c.bf16 %v6196, %v6194
        %v6214 = vpack.c.bf16 %v6201, %v6199
        %v6215 = vpack.c.bf16 %v6206, %v6204
        %v6216 = vpack.c.bf16 %v6211, %v6209
        %s6217 = scalar_lea.vmem %s5, 32
        %v6218 = vld [vmem:[%s6217] sm:$0xf]
        %v6219 = vld [vmem:[%s6217 + $0x4] sm:$0xf]
        %v6220 = vld [vmem:[%s6217 + $0x8] sm:$0xf]
        %v6221 = vld [vmem:[%s6217 + $0xc] sm:$0xf]
        %v6226 = vunpack.c.l.b16 %v6218
        %v6227 = vunpack.c.l.b16 %v6219
        %v6228 = vunpack.c.l.b16 %v6220
        %v6229 = vunpack.c.l.b16 %v6221
        %v6230 = vpack.c.b16 %v6227, %v6226
        %v6231 = vpack.c.b16 %v6229, %v6228
        %v6235 = vsel %vm5879, %v6213, 0
        %v6238 = vsel %vm5879, %v6214, 0
        %v6241 = vsel %vm5879, %v6215, 0
        %v6244 = vsel %vm5879, %v6216, 0
        %6246 = vmatpush.bf16.msra.mxu0 0
        %6247 = vmatpush.bf16.msra.mxu0 0
        %6248 = vmatpush.bf16.msra.mxu0 0
        %6249 = vmatpush.bf16.msra.mxu0 0
        %6250 = vmatpush.bf16.msra.mxu0 0
        %6251 = vmatpush.bf16.msra.mxu0 0
        %6252 = vmatpush.bf16.msra.mxu0 %v6231
        %6253 = vmatpush.bf16.msra.mxu0 %v6230
        %6254 = vmatmul.bf16.gmra.mxu0 %v6235
        %v6255 = vpop.f32.mrf.mxu0
        %v6256 = vadd.f32 0.0, %v6255
        %v6257 = vpop.f32.mrf.mxu0
        %v6258 = vadd.f32 0.0, %v6257
        %6259 = vmatmul.bf16.gmra.mxu0 %v6238
        %v6260 = vpop.f32.mrf.mxu0
        %v6261 = vadd.f32 0.0, %v6260
        %v6262 = vpop.f32.mrf.mxu0
        %v6263 = vadd.f32 0.0, %v6262
        %6264 = vmatmul.bf16.gmra.mxu0 %v6241
        %v6265 = vpop.f32.mrf.mxu0
        %v6266 = vadd.f32 0.0, %v6265
        %v6267 = vpop.f32.mrf.mxu0
        %v6268 = vadd.f32 0.0, %v6267
        %6269 = vmatmul.bf16.gmra.mxu0 %v6244
        %v6270 = vpop.f32.mrf.mxu0
        %v6271 = vadd.f32 0.0, %v6270
        %v6272 = vpop.f32.mrf.mxu0
        %v6273 = vadd.f32 0.0, %v6272
        %6274 = vdwg.mxu0
        %v6275 = vadd.f32 %v6098, %v6256
        %v6276 = vadd.f32 %v6099, %v6258
        %v6277 = vadd.f32 %v6100, %v6261
        %v6278 = vadd.f32 %v6101, %v6263
        %v6279 = vadd.f32 %v6102, %v6266
        %v6280 = vadd.f32 %v6103, %v6268
        %v6281 = vadd.f32 %v6104, %v6271
        %v6282 = vadd.f32 %v6105, %v6273
        %s6283 = scalar_lea.vmem %s4, 192
        %v6284 = vld [vmem:[%s6283] sm:$0xff]
        %v6285 = vld [vmem:[%s6283 + $0x8] sm:$0xff]
        %v6286 = vld [vmem:[%s6283 + $0x10] sm:$0xff]
        %v6287 = vld [vmem:[%s6283 + $0x18] sm:$0xff]
        %v6288 = vld [vmem:[%s6283 + $0x20] sm:$0xff]
        %v6289 = vld [vmem:[%s6283 + $0x28] sm:$0xff]
        %v6290 = vld [vmem:[%s6283 + $0x30] sm:$0xff]
        %v6291 = vld [vmem:[%s6283 + $0x38] sm:$0xff]
        %v6300 = vunpack.c.l.b16 %v6284
        %v6301 = vunpack.c.h.b16 %v6284
        %v6302 = vunpack.c.l.b16 %v6285
        %v6303 = vunpack.c.h.b16 %v6285
        %v6304 = vunpack.c.l.b16 %v6286
        %v6305 = vunpack.c.h.b16 %v6286
        %v6306 = vunpack.c.l.b16 %v6287
        %v6307 = vunpack.c.h.b16 %v6287
        %v6308 = vunpack.c.l.b16 %v6288
        %v6309 = vunpack.c.h.b16 %v6288
        %v6310 = vunpack.c.l.b16 %v6289
        %v6311 = vunpack.c.h.b16 %v6289
        %v6312 = vunpack.c.l.b16 %v6290
        %v6313 = vunpack.c.h.b16 %v6290
        %v6314 = vunpack.c.l.b16 %v6291
        %v6315 = vunpack.c.h.b16 %v6291
        %v6316 = vpack.c.b16 %v6302, %v6300
        %v6317 = vpack.c.b16 %v6303, %v6301
        %v6318 = vpack.c.b16 %v6306, %v6304
        %v6319 = vpack.c.b16 %v6307, %v6305
        %v6320 = vpack.c.b16 %v6310, %v6308
        %v6321 = vpack.c.b16 %v6311, %v6309
        %v6322 = vpack.c.b16 %v6314, %v6312
        %v6323 = vpack.c.b16 %v6315, %v6313
        %6332 = vmatpush.bf16.msra.mxu0 %v5739
        %6333 = vmatpush.bf16.msra.mxu0 %v5738
        %6334 = vmatpush.bf16.msra.mxu0 %v5737
        %6335 = vmatpush.bf16.msra.mxu0 %v5736
        %6336 = vmatpush.bf16.msra.mxu0 %v5735
        %6337 = vmatpush.bf16.msra.mxu0 %v5734
        %6338 = vmatpush.bf16.msra.mxu0 %v5733
        %6339 = vmatpush.bf16.msra.mxu0 %v5732
        %6340 = vmatmul.bf16.gmra.mxu0 %v6316
        %v6341 = vpop.f32.mrf.mxu0
        %v6342 = vadd.f32 0.0, %v6341
        %v6343 = vpop.f32.mrf.mxu0
        %v6344 = vadd.f32 0.0, %v6343
        %6345 = vmatmul.bf16.gmra.mxu0 %v6318
        %v6346 = vpop.f32.mrf.mxu0
        %v6347 = vadd.f32 0.0, %v6346
        %v6348 = vpop.f32.mrf.mxu0
        %v6349 = vadd.f32 0.0, %v6348
        %6350 = vmatmul.bf16.gmra.mxu0 %v6320
        %v6351 = vpop.f32.mrf.mxu0
        %v6352 = vadd.f32 0.0, %v6351
        %v6353 = vpop.f32.mrf.mxu0
        %v6354 = vadd.f32 0.0, %v6353
        %6355 = vmatmul.bf16.gmra.mxu0 %v6322
        %v6356 = vpop.f32.mrf.mxu0
        %v6357 = vadd.f32 0.0, %v6356
        %v6358 = vpop.f32.mrf.mxu0
        %v6359 = vadd.f32 0.0, %v6358
        %6360 = vdwg.mxu0
        %6361 = vmatpush.bf16.msra.mxu0 %v5747
        %6362 = vmatpush.bf16.msra.mxu0 %v5746
        %6363 = vmatpush.bf16.msra.mxu0 %v5745
        %6364 = vmatpush.bf16.msra.mxu0 %v5744
        %6365 = vmatpush.bf16.msra.mxu0 %v5743
        %6366 = vmatpush.bf16.msra.mxu0 %v5742
        %6367 = vmatpush.bf16.msra.mxu0 %v5741
        %6368 = vmatpush.bf16.msra.mxu0 %v5740
        %6369 = vmatmul.bf16.gmra.mxu0 %v6317
        %v6370 = vpop.f32.mrf.mxu0
        %v6371 = vadd.f32 %v6342, %v6370
        %v6372 = vpop.f32.mrf.mxu0
        %v6373 = vadd.f32 %v6344, %v6372
        %6374 = vmatmul.bf16.gmra.mxu0 %v6319
        %v6375 = vpop.f32.mrf.mxu0
        %v6376 = vadd.f32 %v6347, %v6375
        %v6377 = vpop.f32.mrf.mxu0
        %v6378 = vadd.f32 %v6349, %v6377
        %6379 = vmatmul.bf16.gmra.mxu0 %v6321
        %v6380 = vpop.f32.mrf.mxu0
        %v6381 = vadd.f32 %v6352, %v6380
        %v6382 = vpop.f32.mrf.mxu0
        %v6383 = vadd.f32 %v6354, %v6382
        %6384 = vmatmul.bf16.gmra.mxu0 %v6323
        %v6385 = vpop.f32.mrf.mxu0
        %v6386 = vadd.f32 %v6357, %v6385
        %v6387 = vpop.f32.mrf.mxu0
        %v6388 = vadd.f32 %v6359, %v6387
        %6389 = vdwg.mxu0
        %v6390 = vpack.c.bf16 %v6373, %v6371
        %v6391 = vpack.c.bf16 %v6378, %v6376
        %v6392 = vpack.c.bf16 %v6383, %v6381
        %v6393 = vpack.c.bf16 %v6388, %v6386
        %s6394 = scalar_lea.vmem %s5, 48
        %v6395 = vld [vmem:[%s6394] sm:$0xf]
        %v6396 = vld [vmem:[%s6394 + $0x4] sm:$0xf]
        %v6397 = vld [vmem:[%s6394 + $0x8] sm:$0xf]
        %v6398 = vld [vmem:[%s6394 + $0xc] sm:$0xf]
        %v6403 = vunpack.c.l.b16 %v6395
        %v6404 = vunpack.c.l.b16 %v6396
        %v6405 = vunpack.c.l.b16 %v6397
        %v6406 = vunpack.c.l.b16 %v6398
        %v6407 = vpack.c.b16 %v6404, %v6403
        %v6408 = vpack.c.b16 %v6406, %v6405
        %v6412 = vsel %vm5879, %v6390, 0
        %v6415 = vsel %vm5879, %v6391, 0
        %v6418 = vsel %vm5879, %v6392, 0
        %v6421 = vsel %vm5879, %v6393, 0
        %6423 = vmatpush.bf16.msra.mxu0 0
        %6424 = vmatpush.bf16.msra.mxu0 0
        %6425 = vmatpush.bf16.msra.mxu0 0
        %6426 = vmatpush.bf16.msra.mxu0 0
        %6427 = vmatpush.bf16.msra.mxu0 0
        %6428 = vmatpush.bf16.msra.mxu0 0
        %6429 = vmatpush.bf16.msra.mxu0 %v6408
        %6430 = vmatpush.bf16.msra.mxu0 %v6407
        %6431 = vmatmul.bf16.gmra.mxu0 %v6412
        %v6432 = vpop.f32.mrf.mxu0
        %v6433 = vadd.f32 0.0, %v6432
        %v6434 = vpop.f32.mrf.mxu0
        %v6435 = vadd.f32 0.0, %v6434
        %6436 = vmatmul.bf16.gmra.mxu0 %v6415
        %v6437 = vpop.f32.mrf.mxu0
        %v6438 = vadd.f32 0.0, %v6437
        %v6439 = vpop.f32.mrf.mxu0
        %v6440 = vadd.f32 0.0, %v6439
        %6441 = vmatmul.bf16.gmra.mxu0 %v6418
        %v6442 = vpop.f32.mrf.mxu0
        %v6443 = vadd.f32 0.0, %v6442
        %v6444 = vpop.f32.mrf.mxu0
        %v6445 = vadd.f32 0.0, %v6444
        %6446 = vmatmul.bf16.gmra.mxu0 %v6421
        %v6447 = vpop.f32.mrf.mxu0
        %v6448 = vadd.f32 0.0, %v6447
        %v6449 = vpop.f32.mrf.mxu0
        %v6450 = vadd.f32 0.0, %v6449
        %6451 = vdwg.mxu0
        %v6452 = vadd.f32 %v6275, %v6433
        %v6453 = vadd.f32 %v6276, %v6435
        %v6454 = vadd.f32 %v6277, %v6438
        %v6455 = vadd.f32 %v6278, %v6440
        %v6456 = vadd.f32 %v6279, %v6443
        %v6457 = vadd.f32 %v6280, %v6445
        %v6458 = vadd.f32 %v6281, %v6448
        %v6459 = vadd.f32 %v6282, %v6450
        %s6460 = scalar_lea.vmem %s4, 256
        %v6461 = vld [vmem:[%s6460] sm:$0xff]
        %v6462 = vld [vmem:[%s6460 + $0x8] sm:$0xff]
        %v6463 = vld [vmem:[%s6460 + $0x10] sm:$0xff]
        %v6464 = vld [vmem:[%s6460 + $0x18] sm:$0xff]
        %v6465 = vld [vmem:[%s6460 + $0x20] sm:$0xff]
        %v6466 = vld [vmem:[%s6460 + $0x28] sm:$0xff]
        %v6467 = vld [vmem:[%s6460 + $0x30] sm:$0xff]
        %v6468 = vld [vmem:[%s6460 + $0x38] sm:$0xff]
        %v6477 = vunpack.c.l.b16 %v6461
        %v6478 = vunpack.c.h.b16 %v6461
        %v6479 = vunpack.c.l.b16 %v6462
        %v6480 = vunpack.c.h.b16 %v6462
        %v6481 = vunpack.c.l.b16 %v6463
        %v6482 = vunpack.c.h.b16 %v6463
        %v6483 = vunpack.c.l.b16 %v6464
        %v6484 = vunpack.c.h.b16 %v6464
        %v6485 = vunpack.c.l.b16 %v6465
        %v6486 = vunpack.c.h.b16 %v6465
        %v6487 = vunpack.c.l.b16 %v6466
        %v6488 = vunpack.c.h.b16 %v6466
        %v6489 = vunpack.c.l.b16 %v6467
        %v6490 = vunpack.c.h.b16 %v6467
        %v6491 = vunpack.c.l.b16 %v6468
        %v6492 = vunpack.c.h.b16 %v6468
        %v6493 = vpack.c.b16 %v6479, %v6477
        %v6494 = vpack.c.b16 %v6480, %v6478
        %v6495 = vpack.c.b16 %v6483, %v6481
        %v6496 = vpack.c.b16 %v6484, %v6482
        %v6497 = vpack.c.b16 %v6487, %v6485
        %v6498 = vpack.c.b16 %v6488, %v6486
        %v6499 = vpack.c.b16 %v6491, %v6489
        %v6500 = vpack.c.b16 %v6492, %v6490
        %6509 = vmatpush.bf16.msra.mxu0 %v5739
        %6510 = vmatpush.bf16.msra.mxu0 %v5738
        %6511 = vmatpush.bf16.msra.mxu0 %v5737
        %6512 = vmatpush.bf16.msra.mxu0 %v5736
        %6513 = vmatpush.bf16.msra.mxu0 %v5735
        %6514 = vmatpush.bf16.msra.mxu0 %v5734
        %6515 = vmatpush.bf16.msra.mxu0 %v5733
        %6516 = vmatpush.bf16.msra.mxu0 %v5732
        %6517 = vmatmul.bf16.gmra.mxu0 %v6493
        %v6518 = vpop.f32.mrf.mxu0
        %v6519 = vadd.f32 0.0, %v6518
        %v6520 = vpop.f32.mrf.mxu0
        %v6521 = vadd.f32 0.0, %v6520
        %6522 = vmatmul.bf16.gmra.mxu0 %v6495
        %v6523 = vpop.f32.mrf.mxu0
        %v6524 = vadd.f32 0.0, %v6523
        %v6525 = vpop.f32.mrf.mxu0
        %v6526 = vadd.f32 0.0, %v6525
        %6527 = vmatmul.bf16.gmra.mxu0 %v6497
        %v6528 = vpop.f32.mrf.mxu0
        %v6529 = vadd.f32 0.0, %v6528
        %v6530 = vpop.f32.mrf.mxu0
        %v6531 = vadd.f32 0.0, %v6530
        %6532 = vmatmul.bf16.gmra.mxu0 %v6499
        %v6533 = vpop.f32.mrf.mxu0
        %v6534 = vadd.f32 0.0, %v6533
        %v6535 = vpop.f32.mrf.mxu0
        %v6536 = vadd.f32 0.0, %v6535
        %6537 = vdwg.mxu0
        %6538 = vmatpush.bf16.msra.mxu0 %v5747
        %6539 = vmatpush.bf16.msra.mxu0 %v5746
        %6540 = vmatpush.bf16.msra.mxu0 %v5745
        %6541 = vmatpush.bf16.msra.mxu0 %v5744
        %6542 = vmatpush.bf16.msra.mxu0 %v5743
        %6543 = vmatpush.bf16.msra.mxu0 %v5742
        %6544 = vmatpush.bf16.msra.mxu0 %v5741
        %6545 = vmatpush.bf16.msra.mxu0 %v5740
        %6546 = vmatmul.bf16.gmra.mxu0 %v6494
        %v6547 = vpop.f32.mrf.mxu0
        %v6548 = vadd.f32 %v6519, %v6547
        %v6549 = vpop.f32.mrf.mxu0
        %v6550 = vadd.f32 %v6521, %v6549
        %6551 = vmatmul.bf16.gmra.mxu0 %v6496
        %v6552 = vpop.f32.mrf.mxu0
        %v6553 = vadd.f32 %v6524, %v6552
        %v6554 = vpop.f32.mrf.mxu0
        %v6555 = vadd.f32 %v6526, %v6554
        %6556 = vmatmul.bf16.gmra.mxu0 %v6498
        %v6557 = vpop.f32.mrf.mxu0
        %v6558 = vadd.f32 %v6529, %v6557
        %v6559 = vpop.f32.mrf.mxu0
        %v6560 = vadd.f32 %v6531, %v6559
        %6561 = vmatmul.bf16.gmra.mxu0 %v6500
        %v6562 = vpop.f32.mrf.mxu0
        %v6563 = vadd.f32 %v6534, %v6562
        %v6564 = vpop.f32.mrf.mxu0
        %v6565 = vadd.f32 %v6536, %v6564
        %6566 = vdwg.mxu0
        %v6567 = vpack.c.bf16 %v6550, %v6548
        %v6568 = vpack.c.bf16 %v6555, %v6553
        %v6569 = vpack.c.bf16 %v6560, %v6558
        %v6570 = vpack.c.bf16 %v6565, %v6563
        %s6571 = scalar_lea.vmem %s5, 64
        %v6572 = vld [vmem:[%s6571] sm:$0xf]
        %v6573 = vld [vmem:[%s6571 + $0x4] sm:$0xf]
        %v6574 = vld [vmem:[%s6571 + $0x8] sm:$0xf]
        %v6575 = vld [vmem:[%s6571 + $0xc] sm:$0xf]
        %v6580 = vunpack.c.l.b16 %v6572
        %v6581 = vunpack.c.l.b16 %v6573
        %v6582 = vunpack.c.l.b16 %v6574
        %v6583 = vunpack.c.l.b16 %v6575
        %v6584 = vpack.c.b16 %v6581, %v6580
        %v6585 = vpack.c.b16 %v6583, %v6582
        %v6589 = vsel %vm5879, %v6567, 0
        %v6592 = vsel %vm5879, %v6568, 0
        %v6595 = vsel %vm5879, %v6569, 0
        %v6598 = vsel %vm5879, %v6570, 0
        %6600 = vmatpush.bf16.msra.mxu0 0
        %6601 = vmatpush.bf16.msra.mxu0 0
        %6602 = vmatpush.bf16.msra.mxu0 0
        %6603 = vmatpush.bf16.msra.mxu0 0
        %6604 = vmatpush.bf16.msra.mxu0 0
        %6605 = vmatpush.bf16.msra.mxu0 0
        %6606 = vmatpush.bf16.msra.mxu0 %v6585
        %6607 = vmatpush.bf16.msra.mxu0 %v6584
        %6608 = vmatmul.bf16.gmra.mxu0 %v6589
        %v6609 = vpop.f32.mrf.mxu0
        %v6610 = vadd.f32 0.0, %v6609
        %v6611 = vpop.f32.mrf.mxu0
        %v6612 = vadd.f32 0.0, %v6611
        %6613 = vmatmul.bf16.gmra.mxu0 %v6592
        %v6614 = vpop.f32.mrf.mxu0
        %v6615 = vadd.f32 0.0, %v6614
        %v6616 = vpop.f32.mrf.mxu0
        %v6617 = vadd.f32 0.0, %v6616
        %6618 = vmatmul.bf16.gmra.mxu0 %v6595
        %v6619 = vpop.f32.mrf.mxu0
        %v6620 = vadd.f32 0.0, %v6619
        %v6621 = vpop.f32.mrf.mxu0
        %v6622 = vadd.f32 0.0, %v6621
        %6623 = vmatmul.bf16.gmra.mxu0 %v6598
        %v6624 = vpop.f32.mrf.mxu0
        %v6625 = vadd.f32 0.0, %v6624
        %v6626 = vpop.f32.mrf.mxu0
        %v6627 = vadd.f32 0.0, %v6626
        %6628 = vdwg.mxu0
        %v6629 = vadd.f32 %v6452, %v6610
        %v6630 = vadd.f32 %v6453, %v6612
        %v6631 = vadd.f32 %v6454, %v6615
        %v6632 = vadd.f32 %v6455, %v6617
        %v6633 = vadd.f32 %v6456, %v6620
        %v6634 = vadd.f32 %v6457, %v6622
        %v6635 = vadd.f32 %v6458, %v6625
        %v6636 = vadd.f32 %v6459, %v6627
        %s6637 = scalar_lea.vmem %s4, 320
        %v6638 = vld [vmem:[%s6637] sm:$0xff]
        %v6639 = vld [vmem:[%s6637 + $0x8] sm:$0xff]
        %v6640 = vld [vmem:[%s6637 + $0x10] sm:$0xff]
        %v6641 = vld [vmem:[%s6637 + $0x18] sm:$0xff]
        %v6642 = vld [vmem:[%s6637 + $0x20] sm:$0xff]
        %v6643 = vld [vmem:[%s6637 + $0x28] sm:$0xff]
        %v6644 = vld [vmem:[%s6637 + $0x30] sm:$0xff]
        %v6645 = vld [vmem:[%s6637 + $0x38] sm:$0xff]
        %v6654 = vunpack.c.l.b16 %v6638
        %v6655 = vunpack.c.h.b16 %v6638
        %v6656 = vunpack.c.l.b16 %v6639
        %v6657 = vunpack.c.h.b16 %v6639
        %v6658 = vunpack.c.l.b16 %v6640
        %v6659 = vunpack.c.h.b16 %v6640
        %v6660 = vunpack.c.l.b16 %v6641
        %v6661 = vunpack.c.h.b16 %v6641
        %v6662 = vunpack.c.l.b16 %v6642
        %v6663 = vunpack.c.h.b16 %v6642
        %v6664 = vunpack.c.l.b16 %v6643
        %v6665 = vunpack.c.h.b16 %v6643
        %v6666 = vunpack.c.l.b16 %v6644
        %v6667 = vunpack.c.h.b16 %v6644
        %v6668 = vunpack.c.l.b16 %v6645
        %v6669 = vunpack.c.h.b16 %v6645
        %v6670 = vpack.c.b16 %v6656, %v6654
        %v6671 = vpack.c.b16 %v6657, %v6655
        %v6672 = vpack.c.b16 %v6660, %v6658
        %v6673 = vpack.c.b16 %v6661, %v6659
        %v6674 = vpack.c.b16 %v6664, %v6662
        %v6675 = vpack.c.b16 %v6665, %v6663
        %v6676 = vpack.c.b16 %v6668, %v6666
        %v6677 = vpack.c.b16 %v6669, %v6667
        %6686 = vmatpush.bf16.msra.mxu0 %v5739
        %6687 = vmatpush.bf16.msra.mxu0 %v5738
        %6688 = vmatpush.bf16.msra.mxu0 %v5737
        %6689 = vmatpush.bf16.msra.mxu0 %v5736
        %6690 = vmatpush.bf16.msra.mxu0 %v5735
        %6691 = vmatpush.bf16.msra.mxu0 %v5734
        %6692 = vmatpush.bf16.msra.mxu0 %v5733
        %6693 = vmatpush.bf16.msra.mxu0 %v5732
        %6694 = vmatmul.bf16.gmra.mxu0 %v6670
        %v6695 = vpop.f32.mrf.mxu0
        %v6696 = vadd.f32 0.0, %v6695
        %v6697 = vpop.f32.mrf.mxu0
        %v6698 = vadd.f32 0.0, %v6697
        %6699 = vmatmul.bf16.gmra.mxu0 %v6672
        %v6700 = vpop.f32.mrf.mxu0
        %v6701 = vadd.f32 0.0, %v6700
        %v6702 = vpop.f32.mrf.mxu0
        %v6703 = vadd.f32 0.0, %v6702
        %6704 = vmatmul.bf16.gmra.mxu0 %v6674
        %v6705 = vpop.f32.mrf.mxu0
        %v6706 = vadd.f32 0.0, %v6705
        %v6707 = vpop.f32.mrf.mxu0
        %v6708 = vadd.f32 0.0, %v6707
        %6709 = vmatmul.bf16.gmra.mxu0 %v6676
        %v6710 = vpop.f32.mrf.mxu0
        %v6711 = vadd.f32 0.0, %v6710
        %v6712 = vpop.f32.mrf.mxu0
        %v6713 = vadd.f32 0.0, %v6712
        %6714 = vdwg.mxu0
        %6715 = vmatpush.bf16.msra.mxu0 %v5747
        %6716 = vmatpush.bf16.msra.mxu0 %v5746
        %6717 = vmatpush.bf16.msra.mxu0 %v5745
        %6718 = vmatpush.bf16.msra.mxu0 %v5744
        %6719 = vmatpush.bf16.msra.mxu0 %v5743
        %6720 = vmatpush.bf16.msra.mxu0 %v5742
        %6721 = vmatpush.bf16.msra.mxu0 %v5741
        %6722 = vmatpush.bf16.msra.mxu0 %v5740
        %6723 = vmatmul.bf16.gmra.mxu0 %v6671
        %v6724 = vpop.f32.mrf.mxu0
        %v6725 = vadd.f32 %v6696, %v6724
        %v6726 = vpop.f32.mrf.mxu0
        %v6727 = vadd.f32 %v6698, %v6726
        %6728 = vmatmul.bf16.gmra.mxu0 %v6673
        %v6729 = vpop.f32.mrf.mxu0
        %v6730 = vadd.f32 %v6701, %v6729
        %v6731 = vpop.f32.mrf.mxu0
        %v6732 = vadd.f32 %v6703, %v6731
        %6733 = vmatmul.bf16.gmra.mxu0 %v6675
        %v6734 = vpop.f32.mrf.mxu0
        %v6735 = vadd.f32 %v6706, %v6734
        %v6736 = vpop.f32.mrf.mxu0
        %v6737 = vadd.f32 %v6708, %v6736
        %6738 = vmatmul.bf16.gmra.mxu0 %v6677
        %v6739 = vpop.f32.mrf.mxu0
        %v6740 = vadd.f32 %v6711, %v6739
        %v6741 = vpop.f32.mrf.mxu0
        %v6742 = vadd.f32 %v6713, %v6741
        %6743 = vdwg.mxu0
        %v6744 = vpack.c.bf16 %v6727, %v6725
        %v6745 = vpack.c.bf16 %v6732, %v6730
        %v6746 = vpack.c.bf16 %v6737, %v6735
        %v6747 = vpack.c.bf16 %v6742, %v6740
        %s6748 = scalar_lea.vmem %s5, 80
        %v6749 = vld [vmem:[%s6748] sm:$0xf]
        %v6750 = vld [vmem:[%s6748 + $0x4] sm:$0xf]
        %v6751 = vld [vmem:[%s6748 + $0x8] sm:$0xf]
        %v6752 = vld [vmem:[%s6748 + $0xc] sm:$0xf]
        %v6757 = vunpack.c.l.b16 %v6749
        %v6758 = vunpack.c.l.b16 %v6750
        %v6759 = vunpack.c.l.b16 %v6751
        %v6760 = vunpack.c.l.b16 %v6752
        %v6761 = vpack.c.b16 %v6758, %v6757
        %v6762 = vpack.c.b16 %v6760, %v6759
        %v6766 = vsel %vm5879, %v6744, 0
        %v6769 = vsel %vm5879, %v6745, 0
        %v6772 = vsel %vm5879, %v6746, 0
        %v6775 = vsel %vm5879, %v6747, 0
        %6777 = vmatpush.bf16.msra.mxu0 0
        %6778 = vmatpush.bf16.msra.mxu0 0
        %6779 = vmatpush.bf16.msra.mxu0 0
        %6780 = vmatpush.bf16.msra.mxu0 0
        %6781 = vmatpush.bf16.msra.mxu0 0
        %6782 = vmatpush.bf16.msra.mxu0 0
        %6783 = vmatpush.bf16.msra.mxu0 %v6762
        %6784 = vmatpush.bf16.msra.mxu0 %v6761
        %6785 = vmatmul.bf16.gmra.mxu0 %v6766
        %v6786 = vpop.f32.mrf.mxu0
        %v6787 = vadd.f32 0.0, %v6786
        %v6788 = vpop.f32.mrf.mxu0
        %v6789 = vadd.f32 0.0, %v6788
        %6790 = vmatmul.bf16.gmra.mxu0 %v6769
        %v6791 = vpop.f32.mrf.mxu0
        %v6792 = vadd.f32 0.0, %v6791
        %v6793 = vpop.f32.mrf.mxu0
        %v6794 = vadd.f32 0.0, %v6793
        %6795 = vmatmul.bf16.gmra.mxu0 %v6772
        %v6796 = vpop.f32.mrf.mxu0
        %v6797 = vadd.f32 0.0, %v6796
        %v6798 = vpop.f32.mrf.mxu0
        %v6799 = vadd.f32 0.0, %v6798
        %6800 = vmatmul.bf16.gmra.mxu0 %v6775
        %v6801 = vpop.f32.mrf.mxu0
        %v6802 = vadd.f32 0.0, %v6801
        %v6803 = vpop.f32.mrf.mxu0
        %v6804 = vadd.f32 0.0, %v6803
        %6805 = vdwg.mxu0
        %v6806 = vadd.f32 %v6629, %v6787
        %v6807 = vadd.f32 %v6630, %v6789
        %v6808 = vadd.f32 %v6631, %v6792
        %v6809 = vadd.f32 %v6632, %v6794
        %v6810 = vadd.f32 %v6633, %v6797
        %v6811 = vadd.f32 %v6634, %v6799
        %v6812 = vadd.f32 %v6635, %v6802
        %v6813 = vadd.f32 %v6636, %v6804
        %s6814 = scalar_lea.vmem %s4, 384
        %v6815 = vld [vmem:[%s6814] sm:$0xff]
        %v6816 = vld [vmem:[%s6814 + $0x8] sm:$0xff]
        %v6817 = vld [vmem:[%s6814 + $0x10] sm:$0xff]
        %v6818 = vld [vmem:[%s6814 + $0x18] sm:$0xff]
        %v6819 = vld [vmem:[%s6814 + $0x20] sm:$0xff]
        %v6820 = vld [vmem:[%s6814 + $0x28] sm:$0xff]
        %v6821 = vld [vmem:[%s6814 + $0x30] sm:$0xff]
        %v6822 = vld [vmem:[%s6814 + $0x38] sm:$0xff]
        %v6831 = vunpack.c.l.b16 %v6815
        %v6832 = vunpack.c.h.b16 %v6815
        %v6833 = vunpack.c.l.b16 %v6816
        %v6834 = vunpack.c.h.b16 %v6816
        %v6835 = vunpack.c.l.b16 %v6817
        %v6836 = vunpack.c.h.b16 %v6817
        %v6837 = vunpack.c.l.b16 %v6818
        %v6838 = vunpack.c.h.b16 %v6818
        %v6839 = vunpack.c.l.b16 %v6819
        %v6840 = vunpack.c.h.b16 %v6819
        %v6841 = vunpack.c.l.b16 %v6820
        %v6842 = vunpack.c.h.b16 %v6820
        %v6843 = vunpack.c.l.b16 %v6821
        %v6844 = vunpack.c.h.b16 %v6821
        %v6845 = vunpack.c.l.b16 %v6822
        %v6846 = vunpack.c.h.b16 %v6822
        %v6847 = vpack.c.b16 %v6833, %v6831
        %v6848 = vpack.c.b16 %v6834, %v6832
        %v6849 = vpack.c.b16 %v6837, %v6835
        %v6850 = vpack.c.b16 %v6838, %v6836
        %v6851 = vpack.c.b16 %v6841, %v6839
        %v6852 = vpack.c.b16 %v6842, %v6840
        %v6853 = vpack.c.b16 %v6845, %v6843
        %v6854 = vpack.c.b16 %v6846, %v6844
        %6863 = vmatpush.bf16.msra.mxu0 %v5739
        %6864 = vmatpush.bf16.msra.mxu0 %v5738
        %6865 = vmatpush.bf16.msra.mxu0 %v5737
        %6866 = vmatpush.bf16.msra.mxu0 %v5736
        %6867 = vmatpush.bf16.msra.mxu0 %v5735
        %6868 = vmatpush.bf16.msra.mxu0 %v5734
        %6869 = vmatpush.bf16.msra.mxu0 %v5733
        %6870 = vmatpush.bf16.msra.mxu0 %v5732
        %6871 = vmatmul.bf16.gmra.mxu0 %v6847
        %v6872 = vpop.f32.mrf.mxu0
        %v6873 = vadd.f32 0.0, %v6872
        %v6874 = vpop.f32.mrf.mxu0
        %v6875 = vadd.f32 0.0, %v6874
        %6876 = vmatmul.bf16.gmra.mxu0 %v6849
        %v6877 = vpop.f32.mrf.mxu0
        %v6878 = vadd.f32 0.0, %v6877
        %v6879 = vpop.f32.mrf.mxu0
        %v6880 = vadd.f32 0.0, %v6879
        %6881 = vmatmul.bf16.gmra.mxu0 %v6851
        %v6882 = vpop.f32.mrf.mxu0
        %v6883 = vadd.f32 0.0, %v6882
        %v6884 = vpop.f32.mrf.mxu0
        %v6885 = vadd.f32 0.0, %v6884
        %6886 = vmatmul.bf16.gmra.mxu0 %v6853
        %v6887 = vpop.f32.mrf.mxu0
        %v6888 = vadd.f32 0.0, %v6887
        %v6889 = vpop.f32.mrf.mxu0
        %v6890 = vadd.f32 0.0, %v6889
        %6891 = vdwg.mxu0
        %6892 = vmatpush.bf16.msra.mxu0 %v5747
        %6893 = vmatpush.bf16.msra.mxu0 %v5746
        %6894 = vmatpush.bf16.msra.mxu0 %v5745
        %6895 = vmatpush.bf16.msra.mxu0 %v5744
        %6896 = vmatpush.bf16.msra.mxu0 %v5743
        %6897 = vmatpush.bf16.msra.mxu0 %v5742
        %6898 = vmatpush.bf16.msra.mxu0 %v5741
        %6899 = vmatpush.bf16.msra.mxu0 %v5740
        %6900 = vmatmul.bf16.gmra.mxu0 %v6848
        %v6901 = vpop.f32.mrf.mxu0
        %v6902 = vadd.f32 %v6873, %v6901
        %v6903 = vpop.f32.mrf.mxu0
        %v6904 = vadd.f32 %v6875, %v6903
        %6905 = vmatmul.bf16.gmra.mxu0 %v6850
        %v6906 = vpop.f32.mrf.mxu0
        %v6907 = vadd.f32 %v6878, %v6906
        %v6908 = vpop.f32.mrf.mxu0
        %v6909 = vadd.f32 %v6880, %v6908
        %6910 = vmatmul.bf16.gmra.mxu0 %v6852
        %v6911 = vpop.f32.mrf.mxu0
        %v6912 = vadd.f32 %v6883, %v6911
        %v6913 = vpop.f32.mrf.mxu0
        %v6914 = vadd.f32 %v6885, %v6913
        %6915 = vmatmul.bf16.gmra.mxu0 %v6854
        %v6916 = vpop.f32.mrf.mxu0
        %v6917 = vadd.f32 %v6888, %v6916
        %v6918 = vpop.f32.mrf.mxu0
        %v6919 = vadd.f32 %v6890, %v6918
        %6920 = vdwg.mxu0
        %v6921 = vpack.c.bf16 %v6904, %v6902
        %v6922 = vpack.c.bf16 %v6909, %v6907
        %v6923 = vpack.c.bf16 %v6914, %v6912
        %v6924 = vpack.c.bf16 %v6919, %v6917
        %s6925 = scalar_lea.vmem %s5, 96
        %v6926 = vld [vmem:[%s6925] sm:$0xf]
        %v6927 = vld [vmem:[%s6925 + $0x4] sm:$0xf]
        %v6928 = vld [vmem:[%s6925 + $0x8] sm:$0xf]
        %v6929 = vld [vmem:[%s6925 + $0xc] sm:$0xf]
        %v6934 = vunpack.c.l.b16 %v6926
        %v6935 = vunpack.c.l.b16 %v6927
        %v6936 = vunpack.c.l.b16 %v6928
        %v6937 = vunpack.c.l.b16 %v6929
        %v6938 = vpack.c.b16 %v6935, %v6934
        %v6939 = vpack.c.b16 %v6937, %v6936
        %v6943 = vsel %vm5879, %v6921, 0
        %v6946 = vsel %vm5879, %v6922, 0
        %v6949 = vsel %vm5879, %v6923, 0
        %v6952 = vsel %vm5879, %v6924, 0
        %6954 = vmatpush.bf16.msra.mxu0 0
        %6955 = vmatpush.bf16.msra.mxu0 0
        %6956 = vmatpush.bf16.msra.mxu0 0
        %6957 = vmatpush.bf16.msra.mxu0 0
        %6958 = vmatpush.bf16.msra.mxu0 0
        %6959 = vmatpush.bf16.msra.mxu0 0
        %6960 = vmatpush.bf16.msra.mxu0 %v6939
        %6961 = vmatpush.bf16.msra.mxu0 %v6938
        %6962 = vmatmul.bf16.gmra.mxu0 %v6943
        %v6963 = vpop.f32.mrf.mxu0
        %v6964 = vadd.f32 0.0, %v6963
        %v6965 = vpop.f32.mrf.mxu0
        %v6966 = vadd.f32 0.0, %v6965
        %6967 = vmatmul.bf16.gmra.mxu0 %v6946
        %v6968 = vpop.f32.mrf.mxu0
        %v6969 = vadd.f32 0.0, %v6968
        %v6970 = vpop.f32.mrf.mxu0
        %v6971 = vadd.f32 0.0, %v6970
        %6972 = vmatmul.bf16.gmra.mxu0 %v6949
        %v6973 = vpop.f32.mrf.mxu0
        %v6974 = vadd.f32 0.0, %v6973
        %v6975 = vpop.f32.mrf.mxu0
        %v6976 = vadd.f32 0.0, %v6975
        %6977 = vmatmul.bf16.gmra.mxu0 %v6952
        %v6978 = vpop.f32.mrf.mxu0
        %v6979 = vadd.f32 0.0, %v6978
        %v6980 = vpop.f32.mrf.mxu0
        %v6981 = vadd.f32 0.0, %v6980
        %6982 = vdwg.mxu0
        %v6983 = vadd.f32 %v6806, %v6964
        %v6984 = vadd.f32 %v6807, %v6966
        %v6985 = vadd.f32 %v6808, %v6969
        %v6986 = vadd.f32 %v6809, %v6971
        %v6987 = vadd.f32 %v6810, %v6974
        %v6988 = vadd.f32 %v6811, %v6976
        %v6989 = vadd.f32 %v6812, %v6979
        %v6990 = vadd.f32 %v6813, %v6981
        %s6991 = scalar_lea.vmem %s4, 448
        %v6992 = vld [vmem:[%s6991] sm:$0xff]
        %v6993 = vld [vmem:[%s6991 + $0x8] sm:$0xff]
        %v6994 = vld [vmem:[%s6991 + $0x10] sm:$0xff]
        %v6995 = vld [vmem:[%s6991 + $0x18] sm:$0xff]
        %v6996 = vld [vmem:[%s6991 + $0x20] sm:$0xff]
        %v6997 = vld [vmem:[%s6991 + $0x28] sm:$0xff]
        %v6998 = vld [vmem:[%s6991 + $0x30] sm:$0xff]
        %v6999 = vld [vmem:[%s6991 + $0x38] sm:$0xff]
        %v7008 = vunpack.c.l.b16 %v6992
        %v7009 = vunpack.c.h.b16 %v6992
        %v7010 = vunpack.c.l.b16 %v6993
        %v7011 = vunpack.c.h.b16 %v6993
        %v7012 = vunpack.c.l.b16 %v6994
        %v7013 = vunpack.c.h.b16 %v6994
        %v7014 = vunpack.c.l.b16 %v6995
        %v7015 = vunpack.c.h.b16 %v6995
        %v7016 = vunpack.c.l.b16 %v6996
        %v7017 = vunpack.c.h.b16 %v6996
        %v7018 = vunpack.c.l.b16 %v6997
        %v7019 = vunpack.c.h.b16 %v6997
        %v7020 = vunpack.c.l.b16 %v6998
        %v7021 = vunpack.c.h.b16 %v6998
        %v7022 = vunpack.c.l.b16 %v6999
        %v7023 = vunpack.c.h.b16 %v6999
        %v7024 = vpack.c.b16 %v7010, %v7008
        %v7025 = vpack.c.b16 %v7011, %v7009
        %v7026 = vpack.c.b16 %v7014, %v7012
        %v7027 = vpack.c.b16 %v7015, %v7013
        %v7028 = vpack.c.b16 %v7018, %v7016
        %v7029 = vpack.c.b16 %v7019, %v7017
        %v7030 = vpack.c.b16 %v7022, %v7020
        %v7031 = vpack.c.b16 %v7023, %v7021
        %7040 = vmatpush.bf16.msra.mxu0 %v5739
        %7041 = vmatpush.bf16.msra.mxu0 %v5738
        %7042 = vmatpush.bf16.msra.mxu0 %v5737
        %7043 = vmatpush.bf16.msra.mxu0 %v5736
        %7044 = vmatpush.bf16.msra.mxu0 %v5735
        %7045 = vmatpush.bf16.msra.mxu0 %v5734
        %7046 = vmatpush.bf16.msra.mxu0 %v5733
        %7047 = vmatpush.bf16.msra.mxu0 %v5732
        %7048 = vmatmul.bf16.gmra.mxu0 %v7024
        %v7049 = vpop.f32.mrf.mxu0
        %v7050 = vadd.f32 0.0, %v7049
        %v7051 = vpop.f32.mrf.mxu0
        %v7052 = vadd.f32 0.0, %v7051
        %7053 = vmatmul.bf16.gmra.mxu0 %v7026
        %v7054 = vpop.f32.mrf.mxu0
        %v7055 = vadd.f32 0.0, %v7054
        %v7056 = vpop.f32.mrf.mxu0
        %v7057 = vadd.f32 0.0, %v7056
        %7058 = vmatmul.bf16.gmra.mxu0 %v7028
        %v7059 = vpop.f32.mrf.mxu0
        %v7060 = vadd.f32 0.0, %v7059
        %v7061 = vpop.f32.mrf.mxu0
        %v7062 = vadd.f32 0.0, %v7061
        %7063 = vmatmul.bf16.gmra.mxu0 %v7030
        %v7064 = vpop.f32.mrf.mxu0
        %v7065 = vadd.f32 0.0, %v7064
        %v7066 = vpop.f32.mrf.mxu0
        %v7067 = vadd.f32 0.0, %v7066
        %7068 = vdwg.mxu0
        %7069 = vmatpush.bf16.msra.mxu0 %v5747
        %7070 = vmatpush.bf16.msra.mxu0 %v5746
        %7071 = vmatpush.bf16.msra.mxu0 %v5745
        %7072 = vmatpush.bf16.msra.mxu0 %v5744
        %7073 = vmatpush.bf16.msra.mxu0 %v5743
        %7074 = vmatpush.bf16.msra.mxu0 %v5742
        %7075 = vmatpush.bf16.msra.mxu0 %v5741
        %7076 = vmatpush.bf16.msra.mxu0 %v5740
        %7077 = vmatmul.bf16.gmra.mxu0 %v7025
        %v7078 = vpop.f32.mrf.mxu0
        %v7079 = vadd.f32 %v7050, %v7078
        %v7080 = vpop.f32.mrf.mxu0
        %v7081 = vadd.f32 %v7052, %v7080
        %7082 = vmatmul.bf16.gmra.mxu0 %v7027
        %v7083 = vpop.f32.mrf.mxu0
        %v7084 = vadd.f32 %v7055, %v7083
        %v7085 = vpop.f32.mrf.mxu0
        %v7086 = vadd.f32 %v7057, %v7085
        %7087 = vmatmul.bf16.gmra.mxu0 %v7029
        %v7088 = vpop.f32.mrf.mxu0
        %v7089 = vadd.f32 %v7060, %v7088
        %v7090 = vpop.f32.mrf.mxu0
        %v7091 = vadd.f32 %v7062, %v7090
        %7092 = vmatmul.bf16.gmra.mxu0 %v7031
        %v7093 = vpop.f32.mrf.mxu0
        %v7094 = vadd.f32 %v7065, %v7093
        %v7095 = vpop.f32.mrf.mxu0
        %v7096 = vadd.f32 %v7067, %v7095
        %7097 = vdwg.mxu0
        %v7098 = vpack.c.bf16 %v7081, %v7079
        %v7099 = vpack.c.bf16 %v7086, %v7084
        %v7100 = vpack.c.bf16 %v7091, %v7089
        %v7101 = vpack.c.bf16 %v7096, %v7094
        %s7102 = scalar_lea.vmem %s5, 112
        %v7103 = vld [vmem:[%s7102] sm:$0xf]
        %v7104 = vld [vmem:[%s7102 + $0x4] sm:$0xf]
        %v7105 = vld [vmem:[%s7102 + $0x8] sm:$0xf]
        %v7106 = vld [vmem:[%s7102 + $0xc] sm:$0xf]
        %v7111 = vunpack.c.l.b16 %v7103
        %v7112 = vunpack.c.l.b16 %v7104
        %v7113 = vunpack.c.l.b16 %v7105
        %v7114 = vunpack.c.l.b16 %v7106
        %v7115 = vpack.c.b16 %v7112, %v7111
        %v7116 = vpack.c.b16 %v7114, %v7113
        %v7120 = vsel %vm5879, %v7098, 0
        %v7123 = vsel %vm5879, %v7099, 0
        %v7126 = vsel %vm5879, %v7100, 0
        %v7129 = vsel %vm5879, %v7101, 0
        %7131 = vmatpush.bf16.msra.mxu0 0
        %7132 = vmatpush.bf16.msra.mxu0 0
        %7133 = vmatpush.bf16.msra.mxu0 0
        %7134 = vmatpush.bf16.msra.mxu0 0
        %7135 = vmatpush.bf16.msra.mxu0 0
        %7136 = vmatpush.bf16.msra.mxu0 0
        %7137 = vmatpush.bf16.msra.mxu0 %v7116
        %7138 = vmatpush.bf16.msra.mxu0 %v7115
        %7139 = vmatmul.bf16.gmra.mxu0 %v7120
        %v7140 = vpop.f32.mrf.mxu0
        %v7141 = vadd.f32 0.0, %v7140
        %v7142 = vpop.f32.mrf.mxu0
        %v7143 = vadd.f32 0.0, %v7142
        %7144 = vmatmul.bf16.gmra.mxu0 %v7123
        %v7145 = vpop.f32.mrf.mxu0
        %v7146 = vadd.f32 0.0, %v7145
        %v7147 = vpop.f32.mrf.mxu0
        %v7148 = vadd.f32 0.0, %v7147
        %7149 = vmatmul.bf16.gmra.mxu0 %v7126
        %v7150 = vpop.f32.mrf.mxu0
        %v7151 = vadd.f32 0.0, %v7150
        %v7152 = vpop.f32.mrf.mxu0
        %v7153 = vadd.f32 0.0, %v7152
        %7154 = vmatmul.bf16.gmra.mxu0 %v7129
        %v7155 = vpop.f32.mrf.mxu0
        %v7156 = vadd.f32 0.0, %v7155
        %v7157 = vpop.f32.mrf.mxu0
        %v7158 = vadd.f32 0.0, %v7157
        %7159 = vdwg.mxu0
        %v7160 = vadd.f32 %v6983, %v7141
        %v7161 = vadd.f32 %v6984, %v7143
        %v7162 = vadd.f32 %v6985, %v7146
        %v7163 = vadd.f32 %v6986, %v7148
        %v7164 = vadd.f32 %v6987, %v7151
        %v7165 = vadd.f32 %v6988, %v7153
        %v7166 = vadd.f32 %v6989, %v7156
        %v7167 = vadd.f32 %v6990, %v7158
        %s7168 = scalar_lea.vmem %s4, 512
        %v7169 = vld [vmem:[%s7168] sm:$0xff]
        %v7170 = vld [vmem:[%s7168 + $0x8] sm:$0xff]
        %v7171 = vld [vmem:[%s7168 + $0x10] sm:$0xff]
        %v7172 = vld [vmem:[%s7168 + $0x18] sm:$0xff]
        %v7173 = vld [vmem:[%s7168 + $0x20] sm:$0xff]
        %v7174 = vld [vmem:[%s7168 + $0x28] sm:$0xff]
        %v7175 = vld [vmem:[%s7168 + $0x30] sm:$0xff]
        %v7176 = vld [vmem:[%s7168 + $0x38] sm:$0xff]
        %v7185 = vunpack.c.l.b16 %v7169
        %v7186 = vunpack.c.h.b16 %v7169
        %v7187 = vunpack.c.l.b16 %v7170
        %v7188 = vunpack.c.h.b16 %v7170
        %v7189 = vunpack.c.l.b16 %v7171
        %v7190 = vunpack.c.h.b16 %v7171
        %v7191 = vunpack.c.l.b16 %v7172
        %v7192 = vunpack.c.h.b16 %v7172
        %v7193 = vunpack.c.l.b16 %v7173
        %v7194 = vunpack.c.h.b16 %v7173
        %v7195 = vunpack.c.l.b16 %v7174
        %v7196 = vunpack.c.h.b16 %v7174
        %v7197 = vunpack.c.l.b16 %v7175
        %v7198 = vunpack.c.h.b16 %v7175
        %v7199 = vunpack.c.l.b16 %v7176
        %v7200 = vunpack.c.h.b16 %v7176
        %v7201 = vpack.c.b16 %v7187, %v7185
        %v7202 = vpack.c.b16 %v7188, %v7186
        %v7203 = vpack.c.b16 %v7191, %v7189
        %v7204 = vpack.c.b16 %v7192, %v7190
        %v7205 = vpack.c.b16 %v7195, %v7193
        %v7206 = vpack.c.b16 %v7196, %v7194
        %v7207 = vpack.c.b16 %v7199, %v7197
        %v7208 = vpack.c.b16 %v7200, %v7198
        %7217 = vmatpush.bf16.msra.mxu0 %v5739
        %7218 = vmatpush.bf16.msra.mxu0 %v5738
        %7219 = vmatpush.bf16.msra.mxu0 %v5737
        %7220 = vmatpush.bf16.msra.mxu0 %v5736
        %7221 = vmatpush.bf16.msra.mxu0 %v5735
        %7222 = vmatpush.bf16.msra.mxu0 %v5734
        %7223 = vmatpush.bf16.msra.mxu0 %v5733
        %7224 = vmatpush.bf16.msra.mxu0 %v5732
        %7225 = vmatmul.bf16.gmra.mxu0 %v7201
        %v7226 = vpop.f32.mrf.mxu0
        %v7227 = vadd.f32 0.0, %v7226
        %v7228 = vpop.f32.mrf.mxu0
        %v7229 = vadd.f32 0.0, %v7228
        %7230 = vmatmul.bf16.gmra.mxu0 %v7203
        %v7231 = vpop.f32.mrf.mxu0
        %v7232 = vadd.f32 0.0, %v7231
        %v7233 = vpop.f32.mrf.mxu0
        %v7234 = vadd.f32 0.0, %v7233
        %7235 = vmatmul.bf16.gmra.mxu0 %v7205
        %v7236 = vpop.f32.mrf.mxu0
        %v7237 = vadd.f32 0.0, %v7236
        %v7238 = vpop.f32.mrf.mxu0
        %v7239 = vadd.f32 0.0, %v7238
        %7240 = vmatmul.bf16.gmra.mxu0 %v7207
        %v7241 = vpop.f32.mrf.mxu0
        %v7242 = vadd.f32 0.0, %v7241
        %v7243 = vpop.f32.mrf.mxu0
        %v7244 = vadd.f32 0.0, %v7243
        %7245 = vdwg.mxu0
        %7246 = vmatpush.bf16.msra.mxu0 %v5747
        %7247 = vmatpush.bf16.msra.mxu0 %v5746
        %7248 = vmatpush.bf16.msra.mxu0 %v5745
        %7249 = vmatpush.bf16.msra.mxu0 %v5744
        %7250 = vmatpush.bf16.msra.mxu0 %v5743
        %7251 = vmatpush.bf16.msra.mxu0 %v5742
        %7252 = vmatpush.bf16.msra.mxu0 %v5741
        %7253 = vmatpush.bf16.msra.mxu0 %v5740
        %7254 = vmatmul.bf16.gmra.mxu0 %v7202
        %v7255 = vpop.f32.mrf.mxu0
        %v7256 = vadd.f32 %v7227, %v7255
        %v7257 = vpop.f32.mrf.mxu0
        %v7258 = vadd.f32 %v7229, %v7257
        %7259 = vmatmul.bf16.gmra.mxu0 %v7204
        %v7260 = vpop.f32.mrf.mxu0
        %v7261 = vadd.f32 %v7232, %v7260
        %v7262 = vpop.f32.mrf.mxu0
        %v7263 = vadd.f32 %v7234, %v7262
        %7264 = vmatmul.bf16.gmra.mxu0 %v7206
        %v7265 = vpop.f32.mrf.mxu0
        %v7266 = vadd.f32 %v7237, %v7265
        %v7267 = vpop.f32.mrf.mxu0
        %v7268 = vadd.f32 %v7239, %v7267
        %7269 = vmatmul.bf16.gmra.mxu0 %v7208
        %v7270 = vpop.f32.mrf.mxu0
        %v7271 = vadd.f32 %v7242, %v7270
        %v7272 = vpop.f32.mrf.mxu0
        %v7273 = vadd.f32 %v7244, %v7272
        %7274 = vdwg.mxu0
        %v7275 = vpack.c.bf16 %v7258, %v7256
        %v7276 = vpack.c.bf16 %v7263, %v7261
        %v7277 = vpack.c.bf16 %v7268, %v7266
        %v7278 = vpack.c.bf16 %v7273, %v7271
        %s7279 = scalar_lea.vmem %s5, 128
        %v7280 = vld [vmem:[%s7279] sm:$0xf]
        %v7281 = vld [vmem:[%s7279 + $0x4] sm:$0xf]
        %v7282 = vld [vmem:[%s7279 + $0x8] sm:$0xf]
        %v7283 = vld [vmem:[%s7279 + $0xc] sm:$0xf]
        %v7288 = vunpack.c.l.b16 %v7280
        %v7289 = vunpack.c.l.b16 %v7281
        %v7290 = vunpack.c.l.b16 %v7282
        %v7291 = vunpack.c.l.b16 %v7283
        %v7292 = vpack.c.b16 %v7289, %v7288
        %v7293 = vpack.c.b16 %v7291, %v7290
        %v7297 = vsel %vm5879, %v7275, 0
        %v7300 = vsel %vm5879, %v7276, 0
        %v7303 = vsel %vm5879, %v7277, 0
        %v7306 = vsel %vm5879, %v7278, 0
        %7308 = vmatpush.bf16.msra.mxu0 0
        %7309 = vmatpush.bf16.msra.mxu0 0
        %7310 = vmatpush.bf16.msra.mxu0 0
        %7311 = vmatpush.bf16.msra.mxu0 0
        %7312 = vmatpush.bf16.msra.mxu0 0
        %7313 = vmatpush.bf16.msra.mxu0 0
        %7314 = vmatpush.bf16.msra.mxu0 %v7293
        %7315 = vmatpush.bf16.msra.mxu0 %v7292
        %7316 = vmatmul.bf16.gmra.mxu0 %v7297
        %v7317 = vpop.f32.mrf.mxu0
        %v7318 = vadd.f32 0.0, %v7317
        %v7319 = vpop.f32.mrf.mxu0
        %v7320 = vadd.f32 0.0, %v7319
        %7321 = vmatmul.bf16.gmra.mxu0 %v7300
        %v7322 = vpop.f32.mrf.mxu0
        %v7323 = vadd.f32 0.0, %v7322
        %v7324 = vpop.f32.mrf.mxu0
        %v7325 = vadd.f32 0.0, %v7324
        %7326 = vmatmul.bf16.gmra.mxu0 %v7303
        %v7327 = vpop.f32.mrf.mxu0
        %v7328 = vadd.f32 0.0, %v7327
        %v7329 = vpop.f32.mrf.mxu0
        %v7330 = vadd.f32 0.0, %v7329
        %7331 = vmatmul.bf16.gmra.mxu0 %v7306
        %v7332 = vpop.f32.mrf.mxu0
        %v7333 = vadd.f32 0.0, %v7332
        %v7334 = vpop.f32.mrf.mxu0
        %v7335 = vadd.f32 0.0, %v7334
        %7336 = vdwg.mxu0
        %v7337 = vadd.f32 %v7160, %v7318
        %v7338 = vadd.f32 %v7161, %v7320
        %v7339 = vadd.f32 %v7162, %v7323
        %v7340 = vadd.f32 %v7163, %v7325
        %v7341 = vadd.f32 %v7164, %v7328
        %v7342 = vadd.f32 %v7165, %v7330
        %v7343 = vadd.f32 %v7166, %v7333
        %v7344 = vadd.f32 %v7167, %v7335
        %v7345 = vmax.f32 %v7337, 0.0
        %v7346 = vmax.f32 %v7338, 0.0
        %v7347 = vmax.f32 %v7339, 0.0
        %v7348 = vmax.f32 %v7340, 0.0
        %v7349 = vmax.f32 %v7341, 0.0
        %v7350 = vmax.f32 %v7342, 0.0
        %v7351 = vmax.f32 %v7343, 0.0
        %v7352 = vmax.f32 %v7344, 0.0
        %v7353 = vpack.c.bf16 %v7346, %v7345
        %v7354 = vpack.c.bf16 %v7348, %v7347
        %v7355 = vpack.c.bf16 %v7350, %v7349
        %v7356 = vpack.c.bf16 %v7352, %v7351
        %v7357 = vld [vmem:[%s9] sm:$0x1]
        %v7359 = vperm.slane %v7357, 0
        %v7361 = vadd.f32 %v7359, 0.0
        %v7362 = vld [vmem:[%s7] sm:$0xf]
        %v7363 = vld [vmem:[%s7 + $0x4] sm:$0xf]
        %v7366 = vunpack.c.l.b16 %v7362
        %v7367 = vunpack.c.l.b16 %v7363
        %v7368 = vpack.c.b16 %v7367, %v7366
        %vm7369 = vcmask 523264
        %v7371 = vsel %vm7369, %v7368, 0
        %7373 = vmatpush.bf16.msra.mxu0 0
        %7374 = vmatpush.bf16.msra.mxu0 0
        %7375 = vmatpush.bf16.msra.mxu0 0
        %7376 = vmatpush.bf16.msra.mxu0 0
        %7377 = vmatpush.bf16.msra.mxu0 %v7356
        %7378 = vmatpush.bf16.msra.mxu0 %v7355
        %7379 = vmatpush.bf16.msra.mxu0 %v7354
        %7380 = vmatpush.bf16.msra.mxu0 %v7353
        %7381 = vmatmul.bf16.gmra.mxu0 %v7371
        %v7382 = vpop.f32.mrf.mxu0
        %v7383 = vadd.f32 0.0, %v7382
        %v7384 = vpop.f32.mrf.mxu0
        %v7385 = vadd.f32 0.0, %v7384
        %7386 = vdwg.mxu0
        %v7387 = vpack.c.bf16 %v7385, %v7383
        %v7388 = vld [vmem:[%s8] sm:$0xf]
        %v7389 = vld [vmem:[%s8 + $0x4] sm:$0xf]
        %v7390 = vld [vmem:[%s8 + $0x8] sm:$0xf]
        %v7391 = vld [vmem:[%s8 + $0xc] sm:$0xf]
        %v7392 = vld [vmem:[%s8 + $0x10] sm:$0xf]
        %v7393 = vld [vmem:[%s8 + $0x14] sm:$0xf]
        %v7394 = vld [vmem:[%s8 + $0x18] sm:$0xf]
        %v7395 = vld [vmem:[%s8 + $0x1c] sm:$0xf]
        %v7404 = vunpack.c.l.b16 %v7388
        %v7405 = vunpack.c.l.b16 %v7389
        %v7406 = vunpack.c.l.b16 %v7390
        %v7407 = vunpack.c.l.b16 %v7391
        %v7408 = vunpack.c.l.b16 %v7392
        %v7409 = vunpack.c.l.b16 %v7393
        %v7410 = vunpack.c.l.b16 %v7394
        %v7411 = vunpack.c.l.b16 %v7395
        %v7412 = vpack.c.b16 %v7405, %v7404
        %v7413 = vpack.c.b16 %v7407, %v7406
        %v7414 = vpack.c.b16 %v7409, %v7408
        %v7415 = vpack.c.b16 %v7411, %v7410
        %v7421 = vsel %vm7369, %v7387, 0
        %7423 = vmatpush.bf16.msra.mxu0 0
        %7424 = vmatpush.bf16.msra.mxu0 0
        %7425 = vmatpush.bf16.msra.mxu0 0
        %7426 = vmatpush.bf16.msra.mxu0 0
        %7427 = vmatpush.bf16.msra.mxu0 %v7415
        %7428 = vmatpush.bf16.msra.mxu0 %v7414
        %7429 = vmatpush.bf16.msra.mxu0 %v7413
        %7430 = vmatpush.bf16.msra.mxu0 %v7412
        %7431 = vmatmul.bf16.gmra.mxu0 %v7421
        %v7432 = vpop.f32.mrf.mxu0
        %v7433 = vadd.f32 0.0, %v7432
        %v7434 = vpop.f32.mrf.mxu0
        %v7435 = vadd.f32 0.0, %v7434
        %7436 = vdwg.mxu0
        %v7437 = vadd.f32 %v7361, %v7433
        %v7438 = vadd.f32 %v7361, %v7435
        %s7439 = scalar_lea.vmem %s7, 8
        %v7440 = vld [vmem:[%s7439] sm:$0xf]
        %v7441 = vld [vmem:[%s7439 + $0x4] sm:$0xf]
        %v7444 = vunpack.c.l.b16 %v7440
        %v7445 = vunpack.c.l.b16 %v7441
        %v7446 = vpack.c.b16 %v7445, %v7444
        %v7448 = vsel %vm7369, %v7446, 0
        %7450 = vmatpush.bf16.msra.mxu0 0
        %7451 = vmatpush.bf16.msra.mxu0 0
        %7452 = vmatpush.bf16.msra.mxu0 0
        %7453 = vmatpush.bf16.msra.mxu0 0
        %7454 = vmatpush.bf16.msra.mxu0 %v7356
        %7455 = vmatpush.bf16.msra.mxu0 %v7355
        %7456 = vmatpush.bf16.msra.mxu0 %v7354
        %7457 = vmatpush.bf16.msra.mxu0 %v7353
        %7458 = vmatmul.bf16.gmra.mxu0 %v7448
        %v7459 = vpop.f32.mrf.mxu0
        %v7460 = vadd.f32 0.0, %v7459
        %v7461 = vpop.f32.mrf.mxu0
        %v7462 = vadd.f32 0.0, %v7461
        %7463 = vdwg.mxu0
        %v7464 = vpack.c.bf16 %v7462, %v7460
        %s7465 = scalar_lea.vmem %s8, 32
        %v7466 = vld [vmem:[%s7465] sm:$0xf]
        %v7467 = vld [vmem:[%s7465 + $0x4] sm:$0xf]
        %v7468 = vld [vmem:[%s7465 + $0x8] sm:$0xf]
        %v7469 = vld [vmem:[%s7465 + $0xc] sm:$0xf]
        %v7470 = vld [vmem:[%s7465 + $0x10] sm:$0xf]
        %v7471 = vld [vmem:[%s7465 + $0x14] sm:$0xf]
        %v7472 = vld [vmem:[%s7465 + $0x18] sm:$0xf]
        %v7473 = vld [vmem:[%s7465 + $0x1c] sm:$0xf]
        %v7482 = vunpack.c.l.b16 %v7466
        %v7483 = vunpack.c.l.b16 %v7467
        %v7484 = vunpack.c.l.b16 %v7468
        %v7485 = vunpack.c.l.b16 %v7469
        %v7486 = vunpack.c.l.b16 %v7470
        %v7487 = vunpack.c.l.b16 %v7471
        %v7488 = vunpack.c.l.b16 %v7472
        %v7489 = vunpack.c.l.b16 %v7473
        %v7490 = vpack.c.b16 %v7483, %v7482
        %v7491 = vpack.c.b16 %v7485, %v7484
        %v7492 = vpack.c.b16 %v7487, %v7486
        %v7493 = vpack.c.b16 %v7489, %v7488
        %v7499 = vsel %vm7369, %v7464, 0
        %7501 = vmatpush.bf16.msra.mxu0 0
        %7502 = vmatpush.bf16.msra.mxu0 0
        %7503 = vmatpush.bf16.msra.mxu0 0
        %7504 = vmatpush.bf16.msra.mxu0 0
        %7505 = vmatpush.bf16.msra.mxu0 %v7493
        %7506 = vmatpush.bf16.msra.mxu0 %v7492
        %7507 = vmatpush.bf16.msra.mxu0 %v7491
        %7508 = vmatpush.bf16.msra.mxu0 %v7490
        %7509 = vmatmul.bf16.gmra.mxu0 %v7499
        %v7510 = vpop.f32.mrf.mxu0
        %v7511 = vadd.f32 0.0, %v7510
        %v7512 = vpop.f32.mrf.mxu0
        %v7513 = vadd.f32 0.0, %v7512
        %7514 = vdwg.mxu0
        %v7515 = vadd.f32 %v7437, %v7511
        %v7516 = vadd.f32 %v7438, %v7513
        %s7517 = scalar_lea.vmem %s7, 16
        %v7518 = vld [vmem:[%s7517] sm:$0xf]
        %v7519 = vld [vmem:[%s7517 + $0x4] sm:$0xf]
        %v7522 = vunpack.c.l.b16 %v7518
        %v7523 = vunpack.c.l.b16 %v7519
        %v7524 = vpack.c.b16 %v7523, %v7522
        %v7526 = vsel %vm7369, %v7524, 0
        %7528 = vmatpush.bf16.msra.mxu0 0
        %7529 = vmatpush.bf16.msra.mxu0 0
        %7530 = vmatpush.bf16.msra.mxu0 0
        %7531 = vmatpush.bf16.msra.mxu0 0
        %7532 = vmatpush.bf16.msra.mxu0 %v7356
        %7533 = vmatpush.bf16.msra.mxu0 %v7355
        %7534 = vmatpush.bf16.msra.mxu0 %v7354
        %7535 = vmatpush.bf16.msra.mxu0 %v7353
        %7536 = vmatmul.bf16.gmra.mxu0 %v7526
        %v7537 = vpop.f32.mrf.mxu0
        %v7538 = vadd.f32 0.0, %v7537
        %v7539 = vpop.f32.mrf.mxu0
        %v7540 = vadd.f32 0.0, %v7539
        %7541 = vdwg.mxu0
        %v7542 = vpack.c.bf16 %v7540, %v7538
        %s7543 = scalar_lea.vmem %s8, 64
        %v7544 = vld [vmem:[%s7543] sm:$0xf]
        %v7545 = vld [vmem:[%s7543 + $0x4] sm:$0xf]
        %v7546 = vld [vmem:[%s7543 + $0x8] sm:$0xf]
        %v7547 = vld [vmem:[%s7543 + $0xc] sm:$0xf]
        %v7548 = vld [vmem:[%s7543 + $0x10] sm:$0xf]
        %v7549 = vld [vmem:[%s7543 + $0x14] sm:$0xf]
        %v7550 = vld [vmem:[%s7543 + $0x18] sm:$0xf]
        %v7551 = vld [vmem:[%s7543 + $0x1c] sm:$0xf]
        %v7560 = vunpack.c.l.b16 %v7544
        %v7561 = vunpack.c.l.b16 %v7545
        %v7562 = vunpack.c.l.b16 %v7546
        %v7563 = vunpack.c.l.b16 %v7547
        %v7564 = vunpack.c.l.b16 %v7548
        %v7565 = vunpack.c.l.b16 %v7549
        %v7566 = vunpack.c.l.b16 %v7550
        %v7567 = vunpack.c.l.b16 %v7551
        %v7568 = vpack.c.b16 %v7561, %v7560
        %v7569 = vpack.c.b16 %v7563, %v7562
        %v7570 = vpack.c.b16 %v7565, %v7564
        %v7571 = vpack.c.b16 %v7567, %v7566
        %v7577 = vsel %vm7369, %v7542, 0
        %7579 = vmatpush.bf16.msra.mxu0 0
        %7580 = vmatpush.bf16.msra.mxu0 0
        %7581 = vmatpush.bf16.msra.mxu0 0
        %7582 = vmatpush.bf16.msra.mxu0 0
        %7583 = vmatpush.bf16.msra.mxu0 %v7571
        %7584 = vmatpush.bf16.msra.mxu0 %v7570
        %7585 = vmatpush.bf16.msra.mxu0 %v7569
        %7586 = vmatpush.bf16.msra.mxu0 %v7568
        %7587 = vmatmul.bf16.gmra.mxu0 %v7577
        %v7588 = vpop.f32.mrf.mxu0
        %v7589 = vadd.f32 0.0, %v7588
        %v7590 = vpop.f32.mrf.mxu0
        %v7591 = vadd.f32 0.0, %v7590
        %7592 = vdwg.mxu0
        %v7593 = vadd.f32 %v7515, %v7589
        %v7594 = vadd.f32 %v7516, %v7591
        %s7595 = scalar_lea.vmem %s7, 24
        %v7596 = vld [vmem:[%s7595] sm:$0xf]
        %v7597 = vld [vmem:[%s7595 + $0x4] sm:$0xf]
        %v7600 = vunpack.c.l.b16 %v7596
        %v7601 = vunpack.c.l.b16 %v7597
        %v7602 = vpack.c.b16 %v7601, %v7600
        %v7604 = vsel %vm7369, %v7602, 0
        %7606 = vmatpush.bf16.msra.mxu0 0
        %7607 = vmatpush.bf16.msra.mxu0 0
        %7608 = vmatpush.bf16.msra.mxu0 0
        %7609 = vmatpush.bf16.msra.mxu0 0
        %7610 = vmatpush.bf16.msra.mxu0 %v7356
        %7611 = vmatpush.bf16.msra.mxu0 %v7355
        %7612 = vmatpush.bf16.msra.mxu0 %v7354
        %7613 = vmatpush.bf16.msra.mxu0 %v7353
        %7614 = vmatmul.bf16.gmra.mxu0 %v7604
        %v7615 = vpop.f32.mrf.mxu0
        %v7616 = vadd.f32 0.0, %v7615
        %v7617 = vpop.f32.mrf.mxu0
        %v7618 = vadd.f32 0.0, %v7617
        %7619 = vdwg.mxu0
        %v7620 = vpack.c.bf16 %v7618, %v7616
        %s7621 = scalar_lea.vmem %s8, 96
        %v7622 = vld [vmem:[%s7621] sm:$0xf]
        %v7623 = vld [vmem:[%s7621 + $0x4] sm:$0xf]
        %v7624 = vld [vmem:[%s7621 + $0x8] sm:$0xf]
        %v7625 = vld [vmem:[%s7621 + $0xc] sm:$0xf]
        %v7626 = vld [vmem:[%s7621 + $0x10] sm:$0xf]
        %v7627 = vld [vmem:[%s7621 + $0x14] sm:$0xf]
        %v7628 = vld [vmem:[%s7621 + $0x18] sm:$0xf]
        %v7629 = vld [vmem:[%s7621 + $0x1c] sm:$0xf]
        %v7638 = vunpack.c.l.b16 %v7622
        %v7639 = vunpack.c.l.b16 %v7623
        %v7640 = vunpack.c.l.b16 %v7624
        %v7641 = vunpack.c.l.b16 %v7625
        %v7642 = vunpack.c.l.b16 %v7626
        %v7643 = vunpack.c.l.b16 %v7627
        %v7644 = vunpack.c.l.b16 %v7628
        %v7645 = vunpack.c.l.b16 %v7629
        %v7646 = vpack.c.b16 %v7639, %v7638
        %v7647 = vpack.c.b16 %v7641, %v7640
        %v7648 = vpack.c.b16 %v7643, %v7642
        %v7649 = vpack.c.b16 %v7645, %v7644
        %v7655 = vsel %vm7369, %v7620, 0
        %7657 = vmatpush.bf16.msra.mxu0 0
        %7658 = vmatpush.bf16.msra.mxu0 0
        %7659 = vmatpush.bf16.msra.mxu0 0
        %7660 = vmatpush.bf16.msra.mxu0 0
        %7661 = vmatpush.bf16.msra.mxu0 %v7649
        %7662 = vmatpush.bf16.msra.mxu0 %v7648
        %7663 = vmatpush.bf16.msra.mxu0 %v7647
        %7664 = vmatpush.bf16.msra.mxu0 %v7646
        %7665 = vmatmul.bf16.gmra.mxu0 %v7655
        %v7666 = vpop.f32.mrf.mxu0
        %v7667 = vadd.f32 0.0, %v7666
        %v7668 = vpop.f32.mrf.mxu0
        %v7669 = vadd.f32 0.0, %v7668
        %7670 = vdwg.mxu0
        %v7671 = vadd.f32 %v7593, %v7667
        %v7672 = vadd.f32 %v7594, %v7669
        %s7673 = scalar_lea.vmem %s7, 32
        %v7674 = vld [vmem:[%s7673] sm:$0xf]
        %v7675 = vld [vmem:[%s7673 + $0x4] sm:$0xf]
        %v7678 = vunpack.c.l.b16 %v7674
        %v7679 = vunpack.c.l.b16 %v7675
        %v7680 = vpack.c.b16 %v7679, %v7678
        %v7682 = vsel %vm7369, %v7680, 0
        %7684 = vmatpush.bf16.msra.mxu0 0
        %7685 = vmatpush.bf16.msra.mxu0 0
        %7686 = vmatpush.bf16.msra.mxu0 0
        %7687 = vmatpush.bf16.msra.mxu0 0
        %7688 = vmatpush.bf16.msra.mxu0 %v7356
        %7689 = vmatpush.bf16.msra.mxu0 %v7355
        %7690 = vmatpush.bf16.msra.mxu0 %v7354
        %7691 = vmatpush.bf16.msra.mxu0 %v7353
        %7692 = vmatmul.bf16.gmra.mxu0 %v7682
        %v7693 = vpop.f32.mrf.mxu0
        %v7694 = vadd.f32 0.0, %v7693
        %v7695 = vpop.f32.mrf.mxu0
        %v7696 = vadd.f32 0.0, %v7695
        %7697 = vdwg.mxu0
        %v7698 = vpack.c.bf16 %v7696, %v7694
        %s7699 = scalar_lea.vmem %s8, 128
        %v7700 = vld [vmem:[%s7699] sm:$0xf]
        %v7701 = vld [vmem:[%s7699 + $0x4] sm:$0xf]
        %v7702 = vld [vmem:[%s7699 + $0x8] sm:$0xf]
        %v7703 = vld [vmem:[%s7699 + $0xc] sm:$0xf]
        %v7704 = vld [vmem:[%s7699 + $0x10] sm:$0xf]
        %v7705 = vld [vmem:[%s7699 + $0x14] sm:$0xf]
        %v7706 = vld [vmem:[%s7699 + $0x18] sm:$0xf]
        %v7707 = vld [vmem:[%s7699 + $0x1c] sm:$0xf]
        %v7716 = vunpack.c.l.b16 %v7700
        %v7717 = vunpack.c.l.b16 %v7701
        %v7718 = vunpack.c.l.b16 %v7702
        %v7719 = vunpack.c.l.b16 %v7703
        %v7720 = vunpack.c.l.b16 %v7704
        %v7721 = vunpack.c.l.b16 %v7705
        %v7722 = vunpack.c.l.b16 %v7706
        %v7723 = vunpack.c.l.b16 %v7707
        %v7724 = vpack.c.b16 %v7717, %v7716
        %v7725 = vpack.c.b16 %v7719, %v7718
        %v7726 = vpack.c.b16 %v7721, %v7720
        %v7727 = vpack.c.b16 %v7723, %v7722
        %v7733 = vsel %vm7369, %v7698, 0
        %7735 = vmatpush.bf16.msra.mxu0 0
        %7736 = vmatpush.bf16.msra.mxu0 0
        %7737 = vmatpush.bf16.msra.mxu0 0
        %7738 = vmatpush.bf16.msra.mxu0 0
        %7739 = vmatpush.bf16.msra.mxu0 %v7727
        %7740 = vmatpush.bf16.msra.mxu0 %v7726
        %7741 = vmatpush.bf16.msra.mxu0 %v7725
        %7742 = vmatpush.bf16.msra.mxu0 %v7724
        %7743 = vmatmul.bf16.gmra.mxu0 %v7733
        %v7744 = vpop.f32.mrf.mxu0
        %v7745 = vadd.f32 0.0, %v7744
        %v7746 = vpop.f32.mrf.mxu0
        %v7747 = vadd.f32 0.0, %v7746
        %7748 = vdwg.mxu0
        %v7749 = vadd.f32 %v7671, %v7745
        %v7750 = vadd.f32 %v7672, %v7747
        %s7751 = scalar_lea.vmem %s7, 40
        %v7752 = vld [vmem:[%s7751] sm:$0xf]
        %v7753 = vld [vmem:[%s7751 + $0x4] sm:$0xf]
        %v7756 = vunpack.c.l.b16 %v7752
        %v7757 = vunpack.c.l.b16 %v7753
        %v7758 = vpack.c.b16 %v7757, %v7756
        %v7760 = vsel %vm7369, %v7758, 0
        %7762 = vmatpush.bf16.msra.mxu0 0
        %7763 = vmatpush.bf16.msra.mxu0 0
        %7764 = vmatpush.bf16.msra.mxu0 0
        %7765 = vmatpush.bf16.msra.mxu0 0
        %7766 = vmatpush.bf16.msra.mxu0 %v7356
        %7767 = vmatpush.bf16.msra.mxu0 %v7355
        %7768 = vmatpush.bf16.msra.mxu0 %v7354
        %7769 = vmatpush.bf16.msra.mxu0 %v7353
        %7770 = vmatmul.bf16.gmra.mxu0 %v7760
        %v7771 = vpop.f32.mrf.mxu0
        %v7772 = vadd.f32 0.0, %v7771
        %v7773 = vpop.f32.mrf.mxu0
        %v7774 = vadd.f32 0.0, %v7773
        %7775 = vdwg.mxu0
        %v7776 = vpack.c.bf16 %v7774, %v7772
        %s7777 = scalar_lea.vmem %s8, 160
        %v7778 = vld [vmem:[%s7777] sm:$0xf]
        %v7779 = vld [vmem:[%s7777 + $0x4] sm:$0xf]
        %v7780 = vld [vmem:[%s7777 + $0x8] sm:$0xf]
        %v7781 = vld [vmem:[%s7777 + $0xc] sm:$0xf]
        %v7782 = vld [vmem:[%s7777 + $0x10] sm:$0xf]
        %v7783 = vld [vmem:[%s7777 + $0x14] sm:$0xf]
        %v7784 = vld [vmem:[%s7777 + $0x18] sm:$0xf]
        %v7785 = vld [vmem:[%s7777 + $0x1c] sm:$0xf]
        %v7794 = vunpack.c.l.b16 %v7778
        %v7795 = vunpack.c.l.b16 %v7779
        %v7796 = vunpack.c.l.b16 %v7780
        %v7797 = vunpack.c.l.b16 %v7781
        %v7798 = vunpack.c.l.b16 %v7782
        %v7799 = vunpack.c.l.b16 %v7783
        %v7800 = vunpack.c.l.b16 %v7784
        %v7801 = vunpack.c.l.b16 %v7785
        %v7802 = vpack.c.b16 %v7795, %v7794
        %v7803 = vpack.c.b16 %v7797, %v7796
        %v7804 = vpack.c.b16 %v7799, %v7798
        %v7805 = vpack.c.b16 %v7801, %v7800
        %v7811 = vsel %vm7369, %v7776, 0
        %7813 = vmatpush.bf16.msra.mxu0 0
        %7814 = vmatpush.bf16.msra.mxu0 0
        %7815 = vmatpush.bf16.msra.mxu0 0
        %7816 = vmatpush.bf16.msra.mxu0 0
        %7817 = vmatpush.bf16.msra.mxu0 %v7805
        %7818 = vmatpush.bf16.msra.mxu0 %v7804
        %7819 = vmatpush.bf16.msra.mxu0 %v7803
        %7820 = vmatpush.bf16.msra.mxu0 %v7802
        %7821 = vmatmul.bf16.gmra.mxu0 %v7811
        %v7822 = vpop.f32.mrf.mxu0
        %v7823 = vadd.f32 0.0, %v7822
        %v7824 = vpop.f32.mrf.mxu0
        %v7825 = vadd.f32 0.0, %v7824
        %7826 = vdwg.mxu0
        %v7827 = vadd.f32 %v7749, %v7823
        %v7828 = vadd.f32 %v7750, %v7825
        %s7829 = scalar_lea.vmem %s7, 48
        %v7830 = vld [vmem:[%s7829] sm:$0xf]
        %v7831 = vld [vmem:[%s7829 + $0x4] sm:$0xf]
        %v7834 = vunpack.c.l.b16 %v7830
        %v7835 = vunpack.c.l.b16 %v7831
        %v7836 = vpack.c.b16 %v7835, %v7834
        %v7838 = vsel %vm7369, %v7836, 0
        %7840 = vmatpush.bf16.msra.mxu0 0
        %7841 = vmatpush.bf16.msra.mxu0 0
        %7842 = vmatpush.bf16.msra.mxu0 0
        %7843 = vmatpush.bf16.msra.mxu0 0
        %7844 = vmatpush.bf16.msra.mxu0 %v7356
        %7845 = vmatpush.bf16.msra.mxu0 %v7355
        %7846 = vmatpush.bf16.msra.mxu0 %v7354
        %7847 = vmatpush.bf16.msra.mxu0 %v7353
        %7848 = vmatmul.bf16.gmra.mxu0 %v7838
        %v7849 = vpop.f32.mrf.mxu0
        %v7850 = vadd.f32 0.0, %v7849
        %v7851 = vpop.f32.mrf.mxu0
        %v7852 = vadd.f32 0.0, %v7851
        %7853 = vdwg.mxu0
        %v7854 = vpack.c.bf16 %v7852, %v7850
        %s7855 = scalar_lea.vmem %s8, 192
        %v7856 = vld [vmem:[%s7855] sm:$0xf]
        %v7857 = vld [vmem:[%s7855 + $0x4] sm:$0xf]
        %v7858 = vld [vmem:[%s7855 + $0x8] sm:$0xf]
        %v7859 = vld [vmem:[%s7855 + $0xc] sm:$0xf]
        %v7860 = vld [vmem:[%s7855 + $0x10] sm:$0xf]
        %v7861 = vld [vmem:[%s7855 + $0x14] sm:$0xf]
        %v7862 = vld [vmem:[%s7855 + $0x18] sm:$0xf]
        %v7863 = vld [vmem:[%s7855 + $0x1c] sm:$0xf]
        %v7872 = vunpack.c.l.b16 %v7856
        %v7873 = vunpack.c.l.b16 %v7857
        %v7874 = vunpack.c.l.b16 %v7858
        %v7875 = vunpack.c.l.b16 %v7859
        %v7876 = vunpack.c.l.b16 %v7860
        %v7877 = vunpack.c.l.b16 %v7861
        %v7878 = vunpack.c.l.b16 %v7862
        %v7879 = vunpack.c.l.b16 %v7863
        %v7880 = vpack.c.b16 %v7873, %v7872
        %v7881 = vpack.c.b16 %v7875, %v7874
        %v7882 = vpack.c.b16 %v7877, %v7876
        %v7883 = vpack.c.b16 %v7879, %v7878
        %v7889 = vsel %vm7369, %v7854, 0
        %7891 = vmatpush.bf16.msra.mxu0 0
        %7892 = vmatpush.bf16.msra.mxu0 0
        %7893 = vmatpush.bf16.msra.mxu0 0
        %7894 = vmatpush.bf16.msra.mxu0 0
        %7895 = vmatpush.bf16.msra.mxu0 %v7883
        %7896 = vmatpush.bf16.msra.mxu0 %v7882
        %7897 = vmatpush.bf16.msra.mxu0 %v7881
        %7898 = vmatpush.bf16.msra.mxu0 %v7880
        %7899 = vmatmul.bf16.gmra.mxu0 %v7889
        %v7900 = vpop.f32.mrf.mxu0
        %v7901 = vadd.f32 0.0, %v7900
        %v7902 = vpop.f32.mrf.mxu0
        %v7903 = vadd.f32 0.0, %v7902
        %7904 = vdwg.mxu0
        %v7905 = vadd.f32 %v7827, %v7901
        %v7906 = vadd.f32 %v7828, %v7903
        %s7907 = scalar_lea.vmem %s7, 56
        %v7908 = vld [vmem:[%s7907] sm:$0xf]
        %v7909 = vld [vmem:[%s7907 + $0x4] sm:$0xf]
        %v7912 = vunpack.c.l.b16 %v7908
        %v7913 = vunpack.c.l.b16 %v7909
        %v7914 = vpack.c.b16 %v7913, %v7912
        %v7916 = vsel %vm7369, %v7914, 0
        %7918 = vmatpush.bf16.msra.mxu0 0
        %7919 = vmatpush.bf16.msra.mxu0 0
        %7920 = vmatpush.bf16.msra.mxu0 0
        %7921 = vmatpush.bf16.msra.mxu0 0
        %7922 = vmatpush.bf16.msra.mxu0 %v7356
        %7923 = vmatpush.bf16.msra.mxu0 %v7355
        %7924 = vmatpush.bf16.msra.mxu0 %v7354
        %7925 = vmatpush.bf16.msra.mxu0 %v7353
        %7926 = vmatmul.bf16.gmra.mxu0 %v7916
        %v7927 = vpop.f32.mrf.mxu0
        %v7928 = vadd.f32 0.0, %v7927
        %v7929 = vpop.f32.mrf.mxu0
        %v7930 = vadd.f32 0.0, %v7929
        %7931 = vdwg.mxu0
        %v7932 = vpack.c.bf16 %v7930, %v7928
        %s7933 = scalar_lea.vmem %s8, 224
        %v7934 = vld [vmem:[%s7933] sm:$0xf]
        %v7935 = vld [vmem:[%s7933 + $0x4] sm:$0xf]
        %v7936 = vld [vmem:[%s7933 + $0x8] sm:$0xf]
        %v7937 = vld [vmem:[%s7933 + $0xc] sm:$0xf]
        %v7938 = vld [vmem:[%s7933 + $0x10] sm:$0xf]
        %v7939 = vld [vmem:[%s7933 + $0x14] sm:$0xf]
        %v7940 = vld [vmem:[%s7933 + $0x18] sm:$0xf]
        %v7941 = vld [vmem:[%s7933 + $0x1c] sm:$0xf]
        %v7950 = vunpack.c.l.b16 %v7934
        %v7951 = vunpack.c.l.b16 %v7935
        %v7952 = vunpack.c.l.b16 %v7936
        %v7953 = vunpack.c.l.b16 %v7937
        %v7954 = vunpack.c.l.b16 %v7938
        %v7955 = vunpack.c.l.b16 %v7939
        %v7956 = vunpack.c.l.b16 %v7940
        %v7957 = vunpack.c.l.b16 %v7941
        %v7958 = vpack.c.b16 %v7951, %v7950
        %v7959 = vpack.c.b16 %v7953, %v7952
        %v7960 = vpack.c.b16 %v7955, %v7954
        %v7961 = vpack.c.b16 %v7957, %v7956
        %v7967 = vsel %vm7369, %v7932, 0
        %7969 = vmatpush.bf16.msra.mxu0 0
        %7970 = vmatpush.bf16.msra.mxu0 0
        %7971 = vmatpush.bf16.msra.mxu0 0
        %7972 = vmatpush.bf16.msra.mxu0 0
        %7973 = vmatpush.bf16.msra.mxu0 %v7961
        %7974 = vmatpush.bf16.msra.mxu0 %v7960
        %7975 = vmatpush.bf16.msra.mxu0 %v7959
        %7976 = vmatpush.bf16.msra.mxu0 %v7958
        %7977 = vmatmul.bf16.gmra.mxu0 %v7967
        %v7978 = vpop.f32.mrf.mxu0
        %v7979 = vadd.f32 0.0, %v7978
        %v7980 = vpop.f32.mrf.mxu0
        %v7981 = vadd.f32 0.0, %v7980
        %7982 = vdwg.mxu0
        %v7983 = vadd.f32 %v7905, %v7979
        %v7984 = vadd.f32 %v7906, %v7981
        %s7985 = scalar_lea.vmem %s7, 64
        %v7986 = vld [vmem:[%s7985] sm:$0xf]
        %v7987 = vld [vmem:[%s7985 + $0x4] sm:$0xf]
        %v7990 = vunpack.c.l.b16 %v7986
        %v7991 = vunpack.c.l.b16 %v7987
        %v7992 = vpack.c.b16 %v7991, %v7990
        %v7994 = vsel %vm7369, %v7992, 0
        %7996 = vmatpush.bf16.msra.mxu0 0
        %7997 = vmatpush.bf16.msra.mxu0 0
        %7998 = vmatpush.bf16.msra.mxu0 0
        %7999 = vmatpush.bf16.msra.mxu0 0
        %8000 = vmatpush.bf16.msra.mxu0 %v7356
        %8001 = vmatpush.bf16.msra.mxu0 %v7355
        %8002 = vmatpush.bf16.msra.mxu0 %v7354
        %8003 = vmatpush.bf16.msra.mxu0 %v7353
        %8004 = vmatmul.bf16.gmra.mxu0 %v7994
        %v8005 = vpop.f32.mrf.mxu0
        %v8006 = vadd.f32 0.0, %v8005
        %v8007 = vpop.f32.mrf.mxu0
        %v8008 = vadd.f32 0.0, %v8007
        %8009 = vdwg.mxu0
        %v8010 = vpack.c.bf16 %v8008, %v8006
        %s8011 = scalar_lea.vmem %s8, 256
        %v8012 = vld [vmem:[%s8011] sm:$0xf]
        %v8013 = vld [vmem:[%s8011 + $0x4] sm:$0xf]
        %v8014 = vld [vmem:[%s8011 + $0x8] sm:$0xf]
        %v8015 = vld [vmem:[%s8011 + $0xc] sm:$0xf]
        %v8016 = vld [vmem:[%s8011 + $0x10] sm:$0xf]
        %v8017 = vld [vmem:[%s8011 + $0x14] sm:$0xf]
        %v8018 = vld [vmem:[%s8011 + $0x18] sm:$0xf]
        %v8019 = vld [vmem:[%s8011 + $0x1c] sm:$0xf]
        %v8028 = vunpack.c.l.b16 %v8012
        %v8029 = vunpack.c.l.b16 %v8013
        %v8030 = vunpack.c.l.b16 %v8014
        %v8031 = vunpack.c.l.b16 %v8015
        %v8032 = vunpack.c.l.b16 %v8016
        %v8033 = vunpack.c.l.b16 %v8017
        %v8034 = vunpack.c.l.b16 %v8018
        %v8035 = vunpack.c.l.b16 %v8019
        %v8036 = vpack.c.b16 %v8029, %v8028
        %v8037 = vpack.c.b16 %v8031, %v8030
        %v8038 = vpack.c.b16 %v8033, %v8032
        %v8039 = vpack.c.b16 %v8035, %v8034
        %v8045 = vsel %vm7369, %v8010, 0
        %8047 = vmatpush.bf16.msra.mxu0 0
        %8048 = vmatpush.bf16.msra.mxu0 0
        %8049 = vmatpush.bf16.msra.mxu0 0
        %8050 = vmatpush.bf16.msra.mxu0 0
        %8051 = vmatpush.bf16.msra.mxu0 %v8039
        %8052 = vmatpush.bf16.msra.mxu0 %v8038
        %8053 = vmatpush.bf16.msra.mxu0 %v8037
        %8054 = vmatpush.bf16.msra.mxu0 %v8036
        %8055 = vmatmul.bf16.gmra.mxu0 %v8045
        %v8056 = vpop.f32.mrf.mxu0
        %v8057 = vadd.f32 0.0, %v8056
        %v8058 = vpop.f32.mrf.mxu0
        %v8059 = vadd.f32 0.0, %v8058
        %8060 = vdwg.mxu0
        %v8061 = vadd.f32 %v7983, %v8057
        %v8062 = vadd.f32 %v7984, %v8059
        %v8063 = vmax.f32 %v8061, 0.0
        %v8064 = vmax.f32 %v8062, 0.0
        %v8065 = vld [vmem:[%s10] sm:$0xff]
        %v8066 = vld [vmem:[%s10 + $0x8] sm:$0xff]
        %v8067 = vld [vmem:[%s10 + $0x10] sm:$0xff]
        %v8068 = vld [vmem:[%s10 + $0x18] sm:$0xff]
        %v8069 = vld [vmem:[%s10 + $0x20] sm:$0xff]
        %v8070 = vld [vmem:[%s10 + $0x28] sm:$0xff]
        %v8071 = vld [vmem:[%s10 + $0x30] sm:$0xff]
        %v8072 = vld [vmem:[%s10 + $0x38] sm:$0xff]
        %v8073 = vld [vmem:[%s10 + $0x40] sm:$0xff]
        %v8074 = vld [vmem:[%s10 + $0x48] sm:$0xff]
        %v8075 = vld [vmem:[%s10 + $0x50] sm:$0xff]
        %v8076 = vld [vmem:[%s10 + $0x58] sm:$0xff]
        %v8077 = vld [vmem:[%s10 + $0x60] sm:$0xff]
        %v8078 = vld [vmem:[%s10 + $0x68] sm:$0xff]
        %v8079 = vld [vmem:[%s10 + $0x70] sm:$0xff]
        %v8080 = vld [vmem:[%s10 + $0x78] sm:$0xff]
        %8081 = vmatpush.msra.mxu0 %v8080
        %8082 = vmatpush.msra.mxu0 %v8079
        %8083 = vmatpush.msra.mxu0 %v8078
        %8084 = vmatpush.msra.mxu0 %v8077
        %8085 = vmatpush.msra.mxu0 %v8076
        %8086 = vmatpush.msra.mxu0 %v8075
        %8087 = vmatpush.msra.mxu0 %v8074
        %8088 = vmatpush.msra.mxu0 %v8073
        %8089 = vmatpush.msra.mxu0 %v8072
        %8090 = vmatpush.msra.mxu0 %v8071
        %8091 = vmatpush.msra.mxu0 %v8070
        %8092 = vmatpush.msra.mxu0 %v8069
        %8093 = vmatpush.msra.mxu0 %v8068
        %8094 = vmatpush.msra.mxu0 %v8067
        %8095 = vmatpush.msra.mxu0 %v8066
        %8096 = vmatpush.msra.mxu0 %v8065
        %8097 = vmatmul.f32.gmra.mxu0 %v8063
        %v8098 = vpop.f32.mrf.mxu0
        %v8099 = vadd.f32 0.0, %v8098
        %8100 = vmatmul.f32.gmra.mxu0 %v8064
        %v8101 = vpop.f32.mrf.mxu0
        %v8102 = vadd.f32 0.0, %v8101
        %8103 = vdwg.mxu0
        %v8104 = vsel %vm5879, %v8099, 0.0
        %v8105 = vsel %vm5879, %v8102, 0.0
        %v8106 = vadd.f32 %v8104, %v8105
        %v8107 = vrot.slane %v8106, 4
        %v8108 = vadd.f32 %v8106, %v8107
        %v8109 = vrot.slane %v8108, 2
        %v8110 = vadd.f32 %v8108, %v8109
        %v8111 = vrot.slane %v8110, 1
        %v8112 = vadd.f32 %v8110, %v8111
        %v8113 = vld [vmem:[%s11] sm:$0x1]
        %v8114 = vadd.f32 %v8112, %v8113
        %vm8115 = vcmask 253952
        %8116 = vst.msk [vmem:[%s405] sm:$0x1] %vm8115, %v8114
        %s8117 = sand.u32 %s291, 1
        %s8118 = scalar_lea.sflag [#allocation3], %s8117
        %s8119 = sand.u32 %s291, 1
        %s8120 = scalar_lea.vmem [#allocation2], %s8119
        // Predicated region
        $region69: #{temporal_analyzer_forward.1} parent=67 // pred_check
          %p8121 = pneg %p301
        $region70: #{temporal_analyzer_forward.1} parent=67 // pred_check_branch
          %8123 = sbr.rel (%p8121) target = $region72
        $region71: #{temporal_analyzer_forward.1} parent=67 // pred_region
          %8125 = vsyncadd %s8118, 0
          %s8126 = scalar_lea.hbm %s12, %s26
          %s8128 = sshll.u32 %s8120, 4
          %s8129 = int_to_ptr.vmem [resolvable:$true] %s8128
          %s8130 = sshll.u32 %s8126, 4
          %s8131 = int_to_ptr.hbm [resolvable:$true] %s8130
          %8133 = dma.vmem_to_hbm [thread:$0]  %s8129, 16, %s8131, %s8118
        $region72: #{temporal_analyzer_forward.1} parent=67 // pred_fallthru
          _
      $region68: #{temporal_analyzer_forward.1} parent=5 // pred_fallthru
        _
      %p8134 = scmp.le.s32.totalorder 2, %s21
      // Predicated region
      $region73: #{temporal_analyzer_forward.1} parent=5 // pred_check
        %p8135 = pneg %p8134
      $region74: #{temporal_analyzer_forward.1} parent=5 // pred_check_branch
        %8137 = sbr.rel (%p8135) target = $region76
      $region75: #{temporal_analyzer_forward.1} parent=5 // pred_region
        %s8138 = ssub.s32 %s21, 2
        // Predicated region
        $region77: #{temporal_analyzer_forward.1} parent=75 // pred_check
          %p8139 = pneg %p307
        $region78: #{temporal_analyzer_forward.1} parent=75 // pred_check_branch
          %8141 = sbr.rel (%p8139) target = $region80
        $region79: #{temporal_analyzer_forward.1} parent=75 // pred_region
          %s8142 = sand.u32 %s292, 1
          %s8143 = scalar_lea.sflag [#allocation3], %s8142
          %s8144 = sand.u32 %s292, 1
          %s8145 = scalar_lea.vmem [#allocation2], %s8144
          %8147 = dma.done %s8143, 16
        $region80: #{temporal_analyzer_forward.1} parent=75 // pred_fallthru
          _
      $region76: #{temporal_analyzer_forward.1} parent=5 // pred_fallthru
        _
    $region6: #{temporal_analyzer_forward.1} parent=1 // loop_footer
      %s25 = sadd.s32 1, %s21
    $region7: #{temporal_analyzer_forward.1} parent=1 // loop_footer_branch
      %20 = sbr.rel target = $region3
    $region8: #{temporal_analyzer_forward.1} parent=1 // loop_exit
      _
    %8148 = vsyncpa [#allocation3], 1
    %s8149 = scalar_lea.sflag [#allocation3], 1
    %8150 = vsyncpa %s8149, 1

</llo_original>
